<compile_context>
chip_gen: v6e
topology: v6e:2x2x1
jax: 0.10.0
libtpu: 0.0.40
codegen_flags: <defaults>
</compile_context>

<pallas_src>
import functools
import math

import jax
import jax.numpy as jnp
from jax.experimental import pallas as pl
from jax.experimental.pallas import tpu as pltpu


CFG = dict(
    vocab_size=100,
    hidden=32,
    n_heads=4,
    ffn=64,
    n_layers=2,
    max_pos=16,
    seq=8,
    batch=2,
    n_classes=3,
    pad_token_id=0,
    ln_eps=1e-12,
)


# --------------------------------------------------------------------------
# Fused kernel: [encoder(title), encoder(comment)] + classifier head
# --------------------------------------------------------------------------
def _fused_model_kernel(x_ref, neg_ref,
                        wqkv_ref, bqkv_ref, wo_ref,
                        w1_ref, b1_ref, w2_ref,
                        vec_ref, wp_ref,
                        h1w_ref, h1b_ref, ow_ref, ob_ref,
                        o_ref,
                        pooled_sc,
                        *, n_layers, n_heads, batch, seq, eps):
    """Grid axis 0 = encoder index (0=title, 1=comment), sequential ("arbitrary").

    x:(1,B*S,H) summed embeddings; neg:(1,B,S) additive key mask.
    wqkv:(2, L*3*nH, H, hd)  per-head Q/K/V weights (scale folded into Q).
    bqkv:(2, L*3*nH, 1, hd)  per-head Q/K/V biases.
    wo  :(2, L*nH, hd, H)    per-head output-projection rows.
    vec :(2, 3+6L, 1, H)     all H-wide rows (LN params, bo, ffn_b2, pool_b).
    Head weights (h1/out) are shared; logits written on the last grid step.
    """
    e = pl.program_id(0)
    H = x_ref.shape[-1]
    hd = H // n_heads
    N = batch * seq

    def layer_norm(y, g_idx, b_idx):
        g = vec_ref[e, g_idx]                              # (1, H)
        b = vec_ref[e, b_idx]
        mu = jnp.mean(y, axis=-1, keepdims=True)
        var = jnp.mean((y - mu) ** 2, axis=-1, keepdims=True)
        return (y - mu) * jax.lax.rsqrt(var + eps) * g + b

    # embedding LayerNorm
    x = layer_norm(x_ref[0].astype(jnp.float32), 0, 1)     # (B*S, H)
    neg3 = neg_ref[0][:, None, :]                          # (B, 1, S): 0 / -1e9

    for l in range(n_layers):                              # static unroll (L=2)
        vbase = 2 + 6 * l

        # ---- multi-head self-attention (per-head weights: no lane slicing)
        acc = None
        for h in range(n_heads):                           # static unroll
            iq = (l * 3 + 0) * n_heads + h
            ik = (l * 3 + 1) * n_heads + h
            iv = (l * 3 + 2) * n_heads + h
            q = jnp.dot(x, wqkv_ref[e, iq],
                        preferred_element_type=jnp.float32) + bqkv_ref[e, iq]
            k = jnp.dot(x, wqkv_ref[e, ik],
                        preferred_element_type=jnp.float32) + bqkv_ref[e, ik]
            v = jnp.dot(x, wqkv_ref[e, iv],
                        preferred_element_type=jnp.float32) + bqkv_ref[e, iv]
            q3 = q.reshape(batch, seq, hd)                 # leading-dim split only
            k3 = k.reshape(batch, seq, hd)
            v3 = v.reshape(batch, seq, hd)
            # batched over B; 1/sqrt(hd) already folded into Wq
            s = jnp.einsum('bqd,bkd->bqk', q3, k3,
                           preferred_element_type=jnp.float32) + neg3
            m = jnp.max(s, axis=-1, keepdims=True)
            p = jnp.exp(s - m)
            p = p * pl.reciprocal(jnp.sum(p, axis=-1, keepdims=True), approx=True)
            ctx = jnp.einsum('bqk,bkd->bqd', p, v3,
                             preferred_element_type=jnp.float32)
            part = jnp.dot(ctx.reshape(N, hd), wo_ref[e, l * n_heads + h],
                           preferred_element_type=jnp.float32)
            acc = part if acc is None else acc + part
        attn = acc + vec_ref[e, vbase + 0]                 # + bo
        x = layer_norm(attn + x, vbase + 1, vbase + 2)

        # ---- feed-forward block
        h1 = jnp.dot(x, w1_ref[e, l],
                     preferred_element_type=jnp.float32) + b1_ref[e, l]
        h1 = jax.nn.gelu(h1)                               # tanh approx
        ff = jnp.dot(h1, w2_ref[e, l],
                     preferred_element_type=jnp.float32) + vec_ref[e, vbase + 3]
        x = layer_norm(ff + x, vbase + 4, vbase + 5)

    # ---- [CLS] pooler: tanh(cls @ Wp + bp), concat-free CLS gather
    cls = x.reshape(batch, seq, H)[:, 0, :]                # (B, H)
    pooled = jnp.tanh(jnp.dot(cls, wp_ref[e],
                              preferred_element_type=jnp.float32)
                      + vec_ref[e, 2 + 6 * n_layers])

    @pl.when(e == 0)
    def _():                                               # stash title pooled
        pooled_sc[...] = pooled

    @pl.when(e == pl.num_programs(0) - 1)
    def _():                                               # classifier head
        title = pooled_sc[...]                             # (B, H)
        comment = pooled                                   # (B, H)
        # torch.cat([comment, title], 1) @ W1 == comment@W1[:H] + title@W1[H:]
        hmid = (jnp.dot(comment, h1w_ref[0:H, :],
                        preferred_element_type=jnp.float32)
                + jnp.dot(title, h1w_ref[H:2 * H, :],
                          preferred_element_type=jnp.float32)
                + h1b_ref[...])
        logits = (jnp.dot(hmid, ow_ref[...],
                          preferred_element_type=jnp.float32) + ob_ref[...])
        o_ref[...] = logits.astype(o_ref.dtype)


# --------------------------------------------------------------------------
# pallas_call wrapper
# --------------------------------------------------------------------------
def fused_forward(params, x0, neg, cfg):
    B, S, H, C = cfg["batch"], cfg["seq"], cfg["hidden"], cfg["n_classes"]

    weight_args = [params["wqkv"], params["bqkv"], params["wo"],
                   params["ffn_w1"], params["ffn_b1"], params["ffn_w2"],
                   params["vecs"], params["pool_w"],
                   params["h1_w"], params["h1_b"], params["out_w"], params["out_b"]]

    def resident(a):                                       # full block, fetched once
        n = a.ndim
        return pl.BlockSpec(a.shape, lambda e, _n=n: (0,) * _n)

    in_specs = ([pl.BlockSpec((1, B * S, H), lambda e: (e, 0, 0)),
                 pl.BlockSpec((1, B, S), lambda e: (e, 0, 0))]
                + [resident(a) for a in weight_args])

    return pl.pallas_call(
        functools.partial(_fused_model_kernel,
                          n_layers=cfg["n_layers"], n_heads=cfg["n_heads"],
                          batch=B, seq=S, eps=cfg["ln_eps"]),
        grid=(2,),
        in_specs=in_specs,
        out_specs=pl.BlockSpec((B, C), lambda e: (0, 0)),
        out_shape=jax.ShapeDtypeStruct((B, C), jnp.float32),
        scratch_shapes=[pltpu.VMEM((B, H), jnp.float32)],   # title pooled, persists
        compiler_params=pltpu.CompilerParams(
            # step 1 reads step 0's scratch -> must be sequential
            dimension_semantics=("arbitrary",)),
    )(x0, neg, *weight_args)


# --------------------------------------------------------------------------
# Forward pass (matches CustomTransformerModel.forward semantics)
# --------------------------------------------------------------------------
def custom_transformer_forward(params, comment_input_ids, title_input_ids, cfg):
    pad = cfg["pad_token_id"]
    B, S = comment_input_ids.shape
    H = cfg["hidden"]

    # stack the two sequences: index 0 = title, index 1 = comment
    ids = jnp.stack([title_input_ids, comment_input_ids], axis=0)      # (2,B,S)
    # (ids != pad) -> additive key mask, hoisted out of the kernel
    mask = (ids != pad).astype(jnp.float32)
    neg = (1.0 - mask) * jnp.float32(-1e9)                             # (2,B,S)

    # embedding gathers stay in plain JAX; everything else is one fused kernel
    word = jax.vmap(lambda tbl, i: tbl[i])(params["word_emb"], ids)    # (2,B,S,H)
    pos = params["pos_emb"][:, :S, :][:, None, :, :]                   # (2,1,S,H)
    typ = params["type_emb"][:, 0, :][:, None, None, :]                # (2,1,1,H)
    x0 = (word + pos + typ).reshape(2, B * S, H).astype(jnp.float32)

    return fused_forward(params, x0, neg, cfg)                         # (B, C)


# --------------------------------------------------------------------------
# Deterministic parameter init + packing (axis 0 = [title, comment])
# --------------------------------------------------------------------------
def init_all_params(key, cfg):
    H, F, L, nH = cfg["hidden"], cfg["ffn"], cfg["n_layers"], cfg["n_heads"]
    hd = H // nH
    V, P, C = cfg["vocab_size"], cfg["max_pos"], cfg["n_classes"]
    E = 2
    scale = 1.0 / math.sqrt(hd)

    def nrm(k, shape):
        return 0.02 * jax.random.normal(k, shape, dtype=jnp.float32)

    keys = iter(jax.random.split(key, 16))

    word_emb = nrm(next(keys), (E, V, H))
    pos_emb = nrm(next(keys), (E, P, H))
    type_emb = nrm(next(keys), (E, 2, H))

    # 1/sqrt(hd) folded into Wq (and, implicitly, into bq which is zero here)
    wq = nrm(next(keys), (E, L, H, H)) * scale
    wk = nrm(next(keys), (E, L, H, H))
    wv = nrm(next(keys), (E, L, H, H))
    wo = nrm(next(keys), (E, L, H, H))
    bq = jnp.zeros((E, L, H), jnp.float32)
    bk = jnp.zeros((E, L, H), jnp.float32)
    bv = jnp.zeros((E, L, H), jnp.float32)
    bo = jnp.zeros((E, L, H), jnp.float32)

    ffn_w1 = nrm(next(keys), (E, L, H, F))
    ffn_b1 = jnp.zeros((E, L, 1, F), jnp.float32)
    ffn_w2 = nrm(next(keys), (E, L, F, H))
    ffn_b2 = jnp.zeros((E, L, H), jnp.float32)

    emb_ln_g = jnp.ones((E, H), jnp.float32)
    emb_ln_b = jnp.zeros((E, H), jnp.float32)
    attn_ln_g = jnp.ones((E, L, H), jnp.float32)
    attn_ln_b = jnp.zeros((E, L, H), jnp.float32)
    ffn_ln_g = jnp.ones((E, L, H), jnp.float32)
    ffn_ln_b = jnp.zeros((E, L, H), jnp.float32)

    pool_w = nrm(next(keys), (E, H, H))
    pool_b = jnp.zeros((E, H), jnp.float32)

    # ---- pack per-head QKV weights: (E,L,H,H) -> (E, L*3*nH, H, hd)
    def split_heads(w):                      # output columns split per head
        return w.reshape(E, L, H, nH, hd).transpose(0, 1, 3, 2, 4)

    wqkv = jnp.stack([split_heads(wq), split_heads(wk), split_heads(wv)], axis=2)
    wqkv = wqkv.reshape(E, L * 3 * nH, H, hd)            # idx = (l*3+p)*nH + h

    def split_bias(b):
        return b.reshape(E, L, nH, hd)

    bqkv = jnp.stack([split_bias(bq), split_bias(bk), split_bias(bv)], axis=2)
    bqkv = bqkv.reshape(E, L * 3 * nH, 1, hd)

    # output projection split along its input rows (per head): (E, L*nH, hd, H)
    wo_h = wo.reshape(E, L, nH, hd, H).reshape(E, L * nH, hd, H)

    # all H-wide rows packed into one (E, 3+6L, 1, H) array
    rows = [emb_ln_g, emb_ln_b]
    for l in range(L):
        rows += [bo[:, l], attn_ln_g[:, l], attn_ln_b[:, l],
                 ffn_b2[:, l], ffn_ln_g[:, l], ffn_ln_b[:, l]]
    rows.append(pool_b)
    vecs = jnp.stack(rows, axis=1)[:, :, None, :]

    return dict(
        word_emb=word_emb, pos_emb=pos_emb, type_emb=type_emb,
        wqkv=wqkv, bqkv=bqkv, wo=wo_h,
        ffn_w1=ffn_w1, ffn_b1=ffn_b1, ffn_w2=ffn_w2,
        vecs=vecs, pool_w=pool_w,
        # classifier head: nn.Linear(2H,H) and nn.Linear(H,C); weights [in,out]
        h1_w=nrm(next(keys), (2 * H, H)),
        h1_b=jnp.zeros((1, H), jnp.float32),
        out_w=nrm(next(keys), (H, C)),
        out_b=jnp.zeros((1, C), jnp.float32),
    )


# --------------------------------------------------------------------------
# Main
# --------------------------------------------------------------------------
if __name__ == "__main__":
    key = jax.random.PRNGKey(0)
    k_params, k_cids, k_tids = jax.random.split(key, 3)

    params = init_all_params(k_params, CFG)

    B, S = CFG["batch"], CFG["seq"]
    comment_ids = jax.random.randint(k_cids, (B, S), 1, CFG["vocab_size"],
                                     dtype=jnp.int32)
    title_ids = jax.random.randint(k_tids, (B, S), 1, CFG["vocab_size"],
                                   dtype=jnp.int32)
    # introduce some padding (pad_token_id = 0) so the attention mask matters
    comment_ids = comment_ids.at[:, -2:].set(CFG["pad_token_id"])
    title_ids = title_ids.at[:, -3:].set(CFG["pad_token_id"])

    fwd = jax.jit(lambda p, c, t: custom_transformer_forward(p, c, t, CFG))
    logits = fwd(params, comment_ids, title_ids)
    jax.block_until_ready(logits)

    assert logits.shape == (B, CFG["n_classes"])
    assert logits.dtype == jnp.float32
    assert bool(jnp.all(jnp.isfinite(logits)))
    print("KERNEL_OK")
</pallas_src>

<mosaic_0001>
module attributes {stable_mosaic.version = 11 : i64} {
  func.func @_fused_model_kernel(%arg0: i32, %arg1: memref<1x16x32xf32, #tpu.memory_space<vmem>>, %arg2: memref<1x2x8xf32, #tpu.memory_space<vmem>>, %arg3: memref<2x24x32x8xf32, #tpu.memory_space<vmem>>, %arg4: memref<2x24x1x8xf32, #tpu.memory_space<vmem>>, %arg5: memref<2x8x8x32xf32, #tpu.memory_space<vmem>>, %arg6: memref<2x2x32x64xf32, #tpu.memory_space<vmem>>, %arg7: memref<2x2x1x64xf32, #tpu.memory_space<vmem>>, %arg8: memref<2x2x64x32xf32, #tpu.memory_space<vmem>>, %arg9: memref<2x15x1x32xf32, #tpu.memory_space<vmem>>, %arg10: memref<2x32x32xf32, #tpu.memory_space<vmem>>, %arg11: memref<64x32xf32, #tpu.memory_space<vmem>>, %arg12: memref<1x32xf32, #tpu.memory_space<vmem>>, %arg13: memref<32x3xf32, #tpu.memory_space<vmem>>, %arg14: memref<1x3xf32, #tpu.memory_space<vmem>>, %arg15: memref<2x3xf32, #tpu.memory_space<vmem>>, %arg16: memref<2x32xf32, #tpu.memory_space<vmem>>) attributes {dimension_semantics = [#tpu.dimension_semantics<arbitrary>], iteration_bounds = array<i64: 2>, scalar_prefetch = 0 : i64, scratch_operands = 1 : i64, tpu.core_type = #tpu.core_type<tc>, window_params = [{transform_indices = @transform_0, window_bounds = array<i64: 1, 16, 32>}, {transform_indices = @transform_1, window_bounds = array<i64: 1, 2, 8>}, {pipeline_mode = #tpu.pipeline_mode<synchronous>, transform_indices = @transform_2, window_bounds = array<i64: 2, 24, 32, 8>}, {pipeline_mode = #tpu.pipeline_mode<synchronous>, transform_indices = @transform_3, window_bounds = array<i64: 2, 24, 1, 8>}, {pipeline_mode = #tpu.pipeline_mode<synchronous>, transform_indices = @transform_4, window_bounds = array<i64: 2, 8, 8, 32>}, {pipeline_mode = #tpu.pipeline_mode<synchronous>, transform_indices = @transform_5, window_bounds = array<i64: 2, 2, 32, 64>}, {pipeline_mode = #tpu.pipeline_mode<synchronous>, transform_indices = @transform_6, window_bounds = array<i64: 2, 2, 1, 64>}, {pipeline_mode = #tpu.pipeline_mode<synchronous>, transform_indices = @transform_7, window_bounds = array<i64: 2, 2, 64, 32>}, {pipeline_mode = #tpu.pipeline_mode<synchronous>, transform_indices = @transform_8, window_bounds = array<i64: 2, 15, 1, 32>}, {pipeline_mode = #tpu.pipeline_mode<synchronous>, transform_indices = @transform_9, window_bounds = array<i64: 2, 32, 32>}, {pipeline_mode = #tpu.pipeline_mode<synchronous>, transform_indices = @transform_10, window_bounds = array<i64: 64, 32>}, {pipeline_mode = #tpu.pipeline_mode<synchronous>, transform_indices = @transform_11, window_bounds = array<i64: 1, 32>}, {pipeline_mode = #tpu.pipeline_mode<synchronous>, transform_indices = @transform_12, window_bounds = array<i64: 32, 3>}, {pipeline_mode = #tpu.pipeline_mode<synchronous>, transform_indices = @transform_13, window_bounds = array<i64: 1, 3>}, {pipeline_mode = #tpu.pipeline_mode<synchronous>, transform_indices = @transform_14, window_bounds = array<i64: 2, 3>}]} {
    %c0 = arith.constant 0 : index
    %c0_0 = arith.constant 0 : index
    %c0_1 = arith.constant 0 : index
    %0 = vector.load %arg1[%c0, %c0_0, %c0_1] : memref<1x16x32xf32, #tpu.memory_space<vmem>>, vector<1x16x32xf32>
    %1 = vector.shape_cast %0 : vector<1x16x32xf32> to vector<16x32xf32>
    %2 = arith.index_cast %arg0 : i32 to index
    %c0_2 = arith.constant 0 : index
    %c0_3 = arith.constant 0 : index
    %c0_4 = arith.constant 0 : index
    %3 = vector.load %arg9[%2, %c0_2, %c0_3, %c0_4] : memref<2x15x1x32xf32, #tpu.memory_space<vmem>>, vector<1x1x1x32xf32>
    %4 = vector.shape_cast %3 : vector<1x1x1x32xf32> to vector<1x32xf32>
    %5 = arith.index_cast %arg0 : i32 to index
    %c1 = arith.constant 1 : index
    %c0_5 = arith.constant 0 : index
    %c0_6 = arith.constant 0 : index
    %6 = vector.load %arg9[%5, %c1, %c0_5, %c0_6] : memref<2x15x1x32xf32, #tpu.memory_space<vmem>>, vector<1x1x1x32xf32>
    %7 = vector.shape_cast %6 : vector<1x1x1x32xf32> to vector<1x32xf32>
    %cst = arith.constant dense<0.000000e+00> : vector<16xf32>
    %8 = vector.multi_reduction <add>, %1, %cst [1] : vector<16x32xf32> to vector<16xf32>
    %9 = vector.shape_cast %8 : vector<16xf32> to vector<16x1xf32>
    %cst_7 = arith.constant 3.200000e+01 : f32
    %10 = vector.broadcast %cst_7 : f32 to vector<16x1xf32>
    %11 = arith.divf %9, %10 : vector<16x1xf32>
    %12 = vector.broadcast %11 : vector<16x1xf32> to vector<16x32xf32>
    %13 = arith.subf %1, %12 : vector<16x32xf32>
    %14 = arith.mulf %13, %13 : vector<16x32xf32>
    %cst_8 = arith.constant dense<0.000000e+00> : vector<16xf32>
    %15 = vector.multi_reduction <add>, %14, %cst_8 [1] : vector<16x32xf32> to vector<16xf32>
    %16 = vector.shape_cast %15 : vector<16xf32> to vector<16x1xf32>
    %cst_9 = arith.constant 3.200000e+01 : f32
    %17 = vector.broadcast %cst_9 : f32 to vector<16x1xf32>
    %18 = arith.divf %16, %17 : vector<16x1xf32>
    %19 = vector.broadcast %11 : vector<16x1xf32> to vector<16x32xf32>
    %20 = arith.subf %1, %19 : vector<16x32xf32>
    %cst_10 = arith.constant 9.99999996E-13 : f32
    %21 = vector.broadcast %cst_10 : f32 to vector<16x1xf32>
    %22 = arith.addf %18, %21 : vector<16x1xf32>
    %23 = math.rsqrt %22 : vector<16x1xf32>
    %24 = vector.broadcast %23 : vector<16x1xf32> to vector<16x32xf32>
    %25 = arith.mulf %20, %24 : vector<16x32xf32>
    %26 = vector.broadcast %4 : vector<1x32xf32> to vector<16x32xf32>
    %27 = arith.mulf %25, %26 : vector<16x32xf32>
    %28 = vector.broadcast %7 : vector<1x32xf32> to vector<16x32xf32>
    %29 = arith.addf %27, %28 : vector<16x32xf32>
    %c0_11 = arith.constant 0 : index
    %c0_12 = arith.constant 0 : index
    %c0_13 = arith.constant 0 : index
    %30 = vector.load %arg2[%c0_11, %c0_12, %c0_13] : memref<1x2x8xf32, #tpu.memory_space<vmem>>, vector<1x2x8xf32>
    %31 = vector.shape_cast %30 : vector<1x2x8xf32> to vector<2x8xf32>
    %32 = vector.shape_cast %31 : vector<2x8xf32> to vector<2x1x8xf32>
    %33 = arith.index_cast %arg0 : i32 to index
    %c0_14 = arith.constant 0 : index
    %c0_15 = arith.constant 0 : index
    %c0_16 = arith.constant 0 : index
    %34 = vector.load %arg3[%33, %c0_14, %c0_15, %c0_16] : memref<2x24x32x8xf32, #tpu.memory_space<vmem>>, vector<1x1x32x8xf32>
    %35 = vector.shape_cast %34 : vector<1x1x32x8xf32> to vector<32x8xf32>
    %cst_17 = arith.constant dense<0.000000e+00> : vector<16x8xf32>
    %36 = tpu.matmul %29, %35, %cst_17 {dimension_numbers = #tpu.dot_dimension_numbers<[1], [0], [0], [1], [0, 0, 1, 1], [], []>} : vector<16x32xf32>, vector<32x8xf32>, vector<16x8xf32> -> vector<16x8xf32>
    %37 = arith.index_cast %arg0 : i32 to index
    %c0_18 = arith.constant 0 : index
    %c0_19 = arith.constant 0 : index
    %c0_20 = arith.constant 0 : index
    %38 = vector.load %arg4[%37, %c0_18, %c0_19, %c0_20] : memref<2x24x1x8xf32, #tpu.memory_space<vmem>>, vector<1x1x1x8xf32>
    %39 = vector.shape_cast %38 : vector<1x1x1x8xf32> to vector<1x8xf32>
    %40 = vector.broadcast %39 : vector<1x8xf32> to vector<16x8xf32>
    %41 = arith.addf %36, %40 : vector<16x8xf32>
    %42 = arith.index_cast %arg0 : i32 to index
    %c4 = arith.constant 4 : index
    %c0_21 = arith.constant 0 : index
    %c0_22 = arith.constant 0 : index
    %43 = vector.load %arg3[%42, %c4, %c0_21, %c0_22] : memref<2x24x32x8xf32, #tpu.memory_space<vmem>>, vector<1x1x32x8xf32>
    %44 = vector.shape_cast %43 : vector<1x1x32x8xf32> to vector<32x8xf32>
    %cst_23 = arith.constant dense<0.000000e+00> : vector<16x8xf32>
    %45 = tpu.matmul %29, %44, %cst_23 {dimension_numbers = #tpu.dot_dimension_numbers<[1], [0], [0], [1], [0, 0, 1, 1], [], []>} : vector<16x32xf32>, vector<32x8xf32>, vector<16x8xf32> -> vector<16x8xf32>
    %46 = arith.index_cast %arg0 : i32 to index
    %c4_24 = arith.constant 4 : index
    %c0_25 = arith.constant 0 : index
    %c0_26 = arith.constant 0 : index
    %47 = vector.load %arg4[%46, %c4_24, %c0_25, %c0_26] : memref<2x24x1x8xf32, #tpu.memory_space<vmem>>, vector<1x1x1x8xf32>
    %48 = vector.shape_cast %47 : vector<1x1x1x8xf32> to vector<1x8xf32>
    %49 = vector.broadcast %48 : vector<1x8xf32> to vector<16x8xf32>
    %50 = arith.addf %45, %49 : vector<16x8xf32>
    %51 = arith.index_cast %arg0 : i32 to index
    %c8 = arith.constant 8 : index
    %c0_27 = arith.constant 0 : index
    %c0_28 = arith.constant 0 : index
    %52 = vector.load %arg3[%51, %c8, %c0_27, %c0_28] : memref<2x24x32x8xf32, #tpu.memory_space<vmem>>, vector<1x1x32x8xf32>
    %53 = vector.shape_cast %52 : vector<1x1x32x8xf32> to vector<32x8xf32>
    %cst_29 = arith.constant dense<0.000000e+00> : vector<16x8xf32>
    %54 = tpu.matmul %29, %53, %cst_29 {dimension_numbers = #tpu.dot_dimension_numbers<[1], [0], [0], [1], [0, 0, 1, 1], [], []>} : vector<16x32xf32>, vector<32x8xf32>, vector<16x8xf32> -> vector<16x8xf32>
    %55 = arith.index_cast %arg0 : i32 to index
    %c8_30 = arith.constant 8 : index
    %c0_31 = arith.constant 0 : index
    %c0_32 = arith.constant 0 : index
    %56 = vector.load %arg4[%55, %c8_30, %c0_31, %c0_32] : memref<2x24x1x8xf32, #tpu.memory_space<vmem>>, vector<1x1x1x8xf32>
    %57 = vector.shape_cast %56 : vector<1x1x1x8xf32> to vector<1x8xf32>
    %58 = vector.broadcast %57 : vector<1x8xf32> to vector<16x8xf32>
    %59 = arith.addf %54, %58 : vector<16x8xf32>
    %60 = vector.shape_cast %41 : vector<16x8xf32> to vector<2x8x8xf32>
    %61 = vector.shape_cast %50 : vector<16x8xf32> to vector<2x8x8xf32>
    %62 = vector.shape_cast %59 : vector<16x8xf32> to vector<2x8x8xf32>
    "tpu.trace_start"() <{level = 10 : i32, message = "bqd,bkd->bqk"}> : () -> ()
    %cst_33 = arith.constant dense<0.000000e+00> : vector<2x8x8xf32>
    %63 = tpu.matmul %60, %61, %cst_33 {dimension_numbers = #tpu.dot_dimension_numbers<[2], [2], [1], [1], [0, 0, 0, 1, 1, 1], [0], [0]>} : vector<2x8x8xf32>, vector<2x8x8xf32>, vector<2x8x8xf32> -> vector<2x8x8xf32>
    "tpu.trace_stop"() : () -> ()
    %64 = vector.broadcast %32 : vector<2x1x8xf32> to vector<2x8x8xf32>
    %65 = arith.addf %63, %64 : vector<2x8x8xf32>
    %cst_34 = arith.constant dense<0xFF800000> : vector<2x8xf32>
    %66 = vector.multi_reduction <maximumf>, %65, %cst_34 [2] : vector<2x8x8xf32> to vector<2x8xf32>
    %67 = vector.shape_cast %66 : vector<2x8xf32> to vector<2x8x1xf32>
    %68 = vector.broadcast %67 : vector<2x8x1xf32> to vector<2x8x8xf32>
    %69 = arith.subf %65, %68 : vector<2x8x8xf32>
    %70 = math.exp %69 : vector<2x8x8xf32>
    %cst_35 = arith.constant dense<0.000000e+00> : vector<2x8xf32>
    %71 = vector.multi_reduction <add>, %70, %cst_35 [2] : vector<2x8x8xf32> to vector<2x8xf32>
    %72 = vector.shape_cast %71 : vector<2x8xf32> to vector<2x8x1xf32>
    %73 = tpu.reciprocal %72 {approx = true} : vector<2x8x1xf32> -> vector<2x8x1xf32>
    %74 = vector.broadcast %73 : vector<2x8x1xf32> to vector<2x8x8xf32>
    %75 = arith.mulf %70, %74 : vector<2x8x8xf32>
    "tpu.trace_start"() <{level = 10 : i32, message = "bqk,bkd->bqd"}> : () -> ()
    %cst_36 = arith.constant dense<0.000000e+00> : vector<2x8x8xf32>
    %76 = tpu.matmul %75, %62, %cst_36 {dimension_numbers = #tpu.dot_dimension_numbers<[2], [1], [1], [2], [0, 0, 0, 1, 1, 2], [0], [0]>} : vector<2x8x8xf32>, vector<2x8x8xf32>, vector<2x8x8xf32> -> vector<2x8x8xf32>
    "tpu.trace_stop"() : () -> ()
    %77 = vector.shape_cast %76 : vector<2x8x8xf32> to vector<16x8xf32>
    %78 = arith.index_cast %arg0 : i32 to index
    %c0_37 = arith.constant 0 : index
    %c0_38 = arith.constant 0 : index
    %c0_39 = arith.constant 0 : index
    %79 = vector.load %arg5[%78, %c0_37, %c0_38, %c0_39] : memref<2x8x8x32xf32, #tpu.memory_space<vmem>>, vector<1x1x8x32xf32>
    %80 = vector.shape_cast %79 : vector<1x1x8x32xf32> to vector<8x32xf32>
    %cst_40 = arith.constant dense<0.000000e+00> : vector<16x32xf32>
    %81 = tpu.matmul %77, %80, %cst_40 {dimension_numbers = #tpu.dot_dimension_numbers<[1], [0], [0], [1], [0, 0, 1, 1], [], []>} : vector<16x8xf32>, vector<8x32xf32>, vector<16x32xf32> -> vector<16x32xf32>
    %82 = arith.index_cast %arg0 : i32 to index
    %c1_41 = arith.constant 1 : index
    %c0_42 = arith.constant 0 : index
    %c0_43 = arith.constant 0 : index
    %83 = vector.load %arg3[%82, %c1_41, %c0_42, %c0_43] : memref<2x24x32x8xf32, #tpu.memory_space<vmem>>, vector<1x1x32x8xf32>
    %84 = vector.shape_cast %83 : vector<1x1x32x8xf32> to vector<32x8xf32>
    %cst_44 = arith.constant dense<0.000000e+00> : vector<16x8xf32>
    %85 = tpu.matmul %29, %84, %cst_44 {dimension_numbers = #tpu.dot_dimension_numbers<[1], [0], [0], [1], [0, 0, 1, 1], [], []>} : vector<16x32xf32>, vector<32x8xf32>, vector<16x8xf32> -> vector<16x8xf32>
    %86 = arith.index_cast %arg0 : i32 to index
    %c1_45 = arith.constant 1 : index
    %c0_46 = arith.constant 0 : index
    %c0_47 = arith.constant 0 : index
    %87 = vector.load %arg4[%86, %c1_45, %c0_46, %c0_47] : memref<2x24x1x8xf32, #tpu.memory_space<vmem>>, vector<1x1x1x8xf32>
    %88 = vector.shape_cast %87 : vector<1x1x1x8xf32> to vector<1x8xf32>
    %89 = vector.broadcast %88 : vector<1x8xf32> to vector<16x8xf32>
    %90 = arith.addf %85, %89 : vector<16x8xf32>
    %91 = arith.index_cast %arg0 : i32 to index
    %c5 = arith.constant 5 : index
    %c0_48 = arith.constant 0 : index
    %c0_49 = arith.constant 0 : index
    %92 = vector.load %arg3[%91, %c5, %c0_48, %c0_49] : memref<2x24x32x8xf32, #tpu.memory_space<vmem>>, vector<1x1x32x8xf32>
    %93 = vector.shape_cast %92 : vector<1x1x32x8xf32> to vector<32x8xf32>
    %cst_50 = arith.constant dense<0.000000e+00> : vector<16x8xf32>
    %94 = tpu.matmul %29, %93, %cst_50 {dimension_numbers = #tpu.dot_dimension_numbers<[1], [0], [0], [1], [0, 0, 1, 1], [], []>} : vector<16x32xf32>, vector<32x8xf32>, vector<16x8xf32> -> vector<16x8xf32>
    %95 = arith.index_cast %arg0 : i32 to index
    %c5_51 = arith.constant 5 : index
    %c0_52 = arith.constant 0 : index
    %c0_53 = arith.constant 0 : index
    %96 = vector.load %arg4[%95, %c5_51, %c0_52, %c0_53] : memref<2x24x1x8xf32, #tpu.memory_space<vmem>>, vector<1x1x1x8xf32>
    %97 = vector.shape_cast %96 : vector<1x1x1x8xf32> to vector<1x8xf32>
    %98 = vector.broadcast %97 : vector<1x8xf32> to vector<16x8xf32>
    %99 = arith.addf %94, %98 : vector<16x8xf32>
    %100 = arith.index_cast %arg0 : i32 to index
    %c9 = arith.constant 9 : index
    %c0_54 = arith.constant 0 : index
    %c0_55 = arith.constant 0 : index
    %101 = vector.load %arg3[%100, %c9, %c0_54, %c0_55] : memref<2x24x32x8xf32, #tpu.memory_space<vmem>>, vector<1x1x32x8xf32>
    %102 = vector.shape_cast %101 : vector<1x1x32x8xf32> to vector<32x8xf32>
    %cst_56 = arith.constant dense<0.000000e+00> : vector<16x8xf32>
    %103 = tpu.matmul %29, %102, %cst_56 {dimension_numbers = #tpu.dot_dimension_numbers<[1], [0], [0], [1], [0, 0, 1, 1], [], []>} : vector<16x32xf32>, vector<32x8xf32>, vector<16x8xf32> -> vector<16x8xf32>
    %104 = arith.index_cast %arg0 : i32 to index
    %c9_57 = arith.constant 9 : index
    %c0_58 = arith.constant 0 : index
    %c0_59 = arith.constant 0 : index
    %105 = vector.load %arg4[%104, %c9_57, %c0_58, %c0_59] : memref<2x24x1x8xf32, #tpu.memory_space<vmem>>, vector<1x1x1x8xf32>
    %106 = vector.shape_cast %105 : vector<1x1x1x8xf32> to vector<1x8xf32>
    %107 = vector.broadcast %106 : vector<1x8xf32> to vector<16x8xf32>
    %108 = arith.addf %103, %107 : vector<16x8xf32>
    %109 = vector.shape_cast %90 : vector<16x8xf32> to vector<2x8x8xf32>
    %110 = vector.shape_cast %99 : vector<16x8xf32> to vector<2x8x8xf32>
    %111 = vector.shape_cast %108 : vector<16x8xf32> to vector<2x8x8xf32>
    "tpu.trace_start"() <{level = 10 : i32, message = "bqd,bkd->bqk"}> : () -> ()
    %cst_60 = arith.constant dense<0.000000e+00> : vector<2x8x8xf32>
    %112 = tpu.matmul %109, %110, %cst_60 {dimension_numbers = #tpu.dot_dimension_numbers<[2], [2], [1], [1], [0, 0, 0, 1, 1, 1], [0], [0]>} : vector<2x8x8xf32>, vector<2x8x8xf32>, vector<2x8x8xf32> -> vector<2x8x8xf32>
    "tpu.trace_stop"() : () -> ()
    %113 = vector.broadcast %32 : vector<2x1x8xf32> to vector<2x8x8xf32>
    %114 = arith.addf %112, %113 : vector<2x8x8xf32>
    %cst_61 = arith.constant dense<0xFF800000> : vector<2x8xf32>
    %115 = vector.multi_reduction <maximumf>, %114, %cst_61 [2] : vector<2x8x8xf32> to vector<2x8xf32>
    %116 = vector.shape_cast %115 : vector<2x8xf32> to vector<2x8x1xf32>
    %117 = vector.broadcast %116 : vector<2x8x1xf32> to vector<2x8x8xf32>
    %118 = arith.subf %114, %117 : vector<2x8x8xf32>
    %119 = math.exp %118 : vector<2x8x8xf32>
    %cst_62 = arith.constant dense<0.000000e+00> : vector<2x8xf32>
    %120 = vector.multi_reduction <add>, %119, %cst_62 [2] : vector<2x8x8xf32> to vector<2x8xf32>
    %121 = vector.shape_cast %120 : vector<2x8xf32> to vector<2x8x1xf32>
    %122 = tpu.reciprocal %121 {approx = true} : vector<2x8x1xf32> -> vector<2x8x1xf32>
    %123 = vector.broadcast %122 : vector<2x8x1xf32> to vector<2x8x8xf32>
    %124 = arith.mulf %119, %123 : vector<2x8x8xf32>
    "tpu.trace_start"() <{level = 10 : i32, message = "bqk,bkd->bqd"}> : () -> ()
    %cst_63 = arith.constant dense<0.000000e+00> : vector<2x8x8xf32>
    %125 = tpu.matmul %124, %111, %cst_63 {dimension_numbers = #tpu.dot_dimension_numbers<[2], [1], [1], [2], [0, 0, 0, 1, 1, 2], [0], [0]>} : vector<2x8x8xf32>, vector<2x8x8xf32>, vector<2x8x8xf32> -> vector<2x8x8xf32>
    "tpu.trace_stop"() : () -> ()
    %126 = vector.shape_cast %125 : vector<2x8x8xf32> to vector<16x8xf32>
    %127 = arith.index_cast %arg0 : i32 to index
    %c1_64 = arith.constant 1 : index
    %c0_65 = arith.constant 0 : index
    %c0_66 = arith.constant 0 : index
    %128 = vector.load %arg5[%127, %c1_64, %c0_65, %c0_66] : memref<2x8x8x32xf32, #tpu.memory_space<vmem>>, vector<1x1x8x32xf32>
    %129 = vector.shape_cast %128 : vector<1x1x8x32xf32> to vector<8x32xf32>
    %cst_67 = arith.constant dense<0.000000e+00> : vector<16x32xf32>
    %130 = tpu.matmul %126, %129, %cst_67 {dimension_numbers = #tpu.dot_dimension_numbers<[1], [0], [0], [1], [0, 0, 1, 1], [], []>} : vector<16x8xf32>, vector<8x32xf32>, vector<16x32xf32> -> vector<16x32xf32>
    %131 = arith.addf %81, %130 : vector<16x32xf32>
    %132 = arith.index_cast %arg0 : i32 to index
    %c2 = arith.constant 2 : index
    %c0_68 = arith.constant 0 : index
    %c0_69 = arith.constant 0 : index
    %133 = vector.load %arg3[%132, %c2, %c0_68, %c0_69] : memref<2x24x32x8xf32, #tpu.memory_space<vmem>>, vector<1x1x32x8xf32>
    %134 = vector.shape_cast %133 : vector<1x1x32x8xf32> to vector<32x8xf32>
    %cst_70 = arith.constant dense<0.000000e+00> : vector<16x8xf32>
    %135 = tpu.matmul %29, %134, %cst_70 {dimension_numbers = #tpu.dot_dimension_numbers<[1], [0], [0], [1], [0, 0, 1, 1], [], []>} : vector<16x32xf32>, vector<32x8xf32>, vector<16x8xf32> -> vector<16x8xf32>
    %136 = arith.index_cast %arg0 : i32 to index
    %c2_71 = arith.constant 2 : index
    %c0_72 = arith.constant 0 : index
    %c0_73 = arith.constant 0 : index
    %137 = vector.load %arg4[%136, %c2_71, %c0_72, %c0_73] : memref<2x24x1x8xf32, #tpu.memory_space<vmem>>, vector<1x1x1x8xf32>
    %138 = vector.shape_cast %137 : vector<1x1x1x8xf32> to vector<1x8xf32>
    %139 = vector.broadcast %138 : vector<1x8xf32> to vector<16x8xf32>
    %140 = arith.addf %135, %139 : vector<16x8xf32>
    %141 = arith.index_cast %arg0 : i32 to index
    %c6 = arith.constant 6 : index
    %c0_74 = arith.constant 0 : index
    %c0_75 = arith.constant 0 : index
    %142 = vector.load %arg3[%141, %c6, %c0_74, %c0_75] : memref<2x24x32x8xf32, #tpu.memory_space<vmem>>, vector<1x1x32x8xf32>
    %143 = vector.shape_cast %142 : vector<1x1x32x8xf32> to vector<32x8xf32>
    %cst_76 = arith.constant dense<0.000000e+00> : vector<16x8xf32>
    %144 = tpu.matmul %29, %143, %cst_76 {dimension_numbers = #tpu.dot_dimension_numbers<[1], [0], [0], [1], [0, 0, 1, 1], [], []>} : vector<16x32xf32>, vector<32x8xf32>, vector<16x8xf32> -> vector<16x8xf32>
    %145 = arith.index_cast %arg0 : i32 to index
    %c6_77 = arith.constant 6 : index
    %c0_78 = arith.constant 0 : index
    %c0_79 = arith.constant 0 : index
    %146 = vector.load %arg4[%145, %c6_77, %c0_78, %c0_79] : memref<2x24x1x8xf32, #tpu.memory_space<vmem>>, vector<1x1x1x8xf32>
    %147 = vector.shape_cast %146 : vector<1x1x1x8xf32> to vector<1x8xf32>
    %148 = vector.broadcast %147 : vector<1x8xf32> to vector<16x8xf32>
    %149 = arith.addf %144, %148 : vector<16x8xf32>
    %150 = arith.index_cast %arg0 : i32 to index
    %c10 = arith.constant 10 : index
    %c0_80 = arith.constant 0 : index
    %c0_81 = arith.constant 0 : index
    %151 = vector.load %arg3[%150, %c10, %c0_80, %c0_81] : memref<2x24x32x8xf32, #tpu.memory_space<vmem>>, vector<1x1x32x8xf32>
    %152 = vector.shape_cast %151 : vector<1x1x32x8xf32> to vector<32x8xf32>
    %cst_82 = arith.constant dense<0.000000e+00> : vector<16x8xf32>
    %153 = tpu.matmul %29, %152, %cst_82 {dimension_numbers = #tpu.dot_dimension_numbers<[1], [0], [0], [1], [0, 0, 1, 1], [], []>} : vector<16x32xf32>, vector<32x8xf32>, vector<16x8xf32> -> vector<16x8xf32>
    %154 = arith.index_cast %arg0 : i32 to index
    %c10_83 = arith.constant 10 : index
    %c0_84 = arith.constant 0 : index
    %c0_85 = arith.constant 0 : index
    %155 = vector.load %arg4[%154, %c10_83, %c0_84, %c0_85] : memref<2x24x1x8xf32, #tpu.memory_space<vmem>>, vector<1x1x1x8xf32>
    %156 = vector.shape_cast %155 : vector<1x1x1x8xf32> to vector<1x8xf32>
    %157 = vector.broadcast %156 : vector<1x8xf32> to vector<16x8xf32>
    %158 = arith.addf %153, %157 : vector<16x8xf32>
    %159 = vector.shape_cast %140 : vector<16x8xf32> to vector<2x8x8xf32>
    %160 = vector.shape_cast %149 : vector<16x8xf32> to vector<2x8x8xf32>
    %161 = vector.shape_cast %158 : vector<16x8xf32> to vector<2x8x8xf32>
    "tpu.trace_start"() <{level = 10 : i32, message = "bqd,bkd->bqk"}> : () -> ()
    %cst_86 = arith.constant dense<0.000000e+00> : vector<2x8x8xf32>
    %162 = tpu.matmul %159, %160, %cst_86 {dimension_numbers = #tpu.dot_dimension_numbers<[2], [2], [1], [1], [0, 0, 0, 1, 1, 1], [0], [0]>} : vector<2x8x8xf32>, vector<2x8x8xf32>, vector<2x8x8xf32> -> vector<2x8x8xf32>
    "tpu.trace_stop"() : () -> ()
    %163 = vector.broadcast %32 : vector<2x1x8xf32> to vector<2x8x8xf32>
    %164 = arith.addf %162, %163 : vector<2x8x8xf32>
    %cst_87 = arith.constant dense<0xFF800000> : vector<2x8xf32>
    %165 = vector.multi_reduction <maximumf>, %164, %cst_87 [2] : vector<2x8x8xf32> to vector<2x8xf32>
    %166 = vector.shape_cast %165 : vector<2x8xf32> to vector<2x8x1xf32>
    %167 = vector.broadcast %166 : vector<2x8x1xf32> to vector<2x8x8xf32>
    %168 = arith.subf %164, %167 : vector<2x8x8xf32>
    %169 = math.exp %168 : vector<2x8x8xf32>
    %cst_88 = arith.constant dense<0.000000e+00> : vector<2x8xf32>
    %170 = vector.multi_reduction <add>, %169, %cst_88 [2] : vector<2x8x8xf32> to vector<2x8xf32>
    %171 = vector.shape_cast %170 : vector<2x8xf32> to vector<2x8x1xf32>
    %172 = tpu.reciprocal %171 {approx = true} : vector<2x8x1xf32> -> vector<2x8x1xf32>
    %173 = vector.broadcast %172 : vector<2x8x1xf32> to vector<2x8x8xf32>
    %174 = arith.mulf %169, %173 : vector<2x8x8xf32>
    "tpu.trace_start"() <{level = 10 : i32, message = "bqk,bkd->bqd"}> : () -> ()
    %cst_89 = arith.constant dense<0.000000e+00> : vector<2x8x8xf32>
    %175 = tpu.matmul %174, %161, %cst_89 {dimension_numbers = #tpu.dot_dimension_numbers<[2], [1], [1], [2], [0, 0, 0, 1, 1, 2], [0], [0]>} : vector<2x8x8xf32>, vector<2x8x8xf32>, vector<2x8x8xf32> -> vector<2x8x8xf32>
    "tpu.trace_stop"() : () -> ()
    %176 = vector.shape_cast %175 : vector<2x8x8xf32> to vector<16x8xf32>
    %177 = arith.index_cast %arg0 : i32 to index
    %c2_90 = arith.constant 2 : index
    %c0_91 = arith.constant 0 : index
    %c0_92 = arith.constant 0 : index
    %178 = vector.load %arg5[%177, %c2_90, %c0_91, %c0_92] : memref<2x8x8x32xf32, #tpu.memory_space<vmem>>, vector<1x1x8x32xf32>
    %179 = vector.shape_cast %178 : vector<1x1x8x32xf32> to vector<8x32xf32>
    %cst_93 = arith.constant dense<0.000000e+00> : vector<16x32xf32>
    %180 = tpu.matmul %176, %179, %cst_93 {dimension_numbers = #tpu.dot_dimension_numbers<[1], [0], [0], [1], [0, 0, 1, 1], [], []>} : vector<16x8xf32>, vector<8x32xf32>, vector<16x32xf32> -> vector<16x32xf32>
    %181 = arith.addf %131, %180 : vector<16x32xf32>
    %182 = arith.index_cast %arg0 : i32 to index
    %c3 = arith.constant 3 : index
    %c0_94 = arith.constant 0 : index
    %c0_95 = arith.constant 0 : index
    %183 = vector.load %arg3[%182, %c3, %c0_94, %c0_95] : memref<2x24x32x8xf32, #tpu.memory_space<vmem>>, vector<1x1x32x8xf32>
    %184 = vector.shape_cast %183 : vector<1x1x32x8xf32> to vector<32x8xf32>
    %cst_96 = arith.constant dense<0.000000e+00> : vector<16x8xf32>
    %185 = tpu.matmul %29, %184, %cst_96 {dimension_numbers = #tpu.dot_dimension_numbers<[1], [0], [0], [1], [0, 0, 1, 1], [], []>} : vector<16x32xf32>, vector<32x8xf32>, vector<16x8xf32> -> vector<16x8xf32>
    %186 = arith.index_cast %arg0 : i32 to index
    %c3_97 = arith.constant 3 : index
    %c0_98 = arith.constant 0 : index
    %c0_99 = arith.constant 0 : index
    %187 = vector.load %arg4[%186, %c3_97, %c0_98, %c0_99] : memref<2x24x1x8xf32, #tpu.memory_space<vmem>>, vector<1x1x1x8xf32>
    %188 = vector.shape_cast %187 : vector<1x1x1x8xf32> to vector<1x8xf32>
    %189 = vector.broadcast %188 : vector<1x8xf32> to vector<16x8xf32>
    %190 = arith.addf %185, %189 : vector<16x8xf32>
    %191 = arith.index_cast %arg0 : i32 to index
    %c7 = arith.constant 7 : index
    %c0_100 = arith.constant 0 : index
    %c0_101 = arith.constant 0 : index
    %192 = vector.load %arg3[%191, %c7, %c0_100, %c0_101] : memref<2x24x32x8xf32, #tpu.memory_space<vmem>>, vector<1x1x32x8xf32>
    %193 = vector.shape_cast %192 : vector<1x1x32x8xf32> to vector<32x8xf32>
    %cst_102 = arith.constant dense<0.000000e+00> : vector<16x8xf32>
    %194 = tpu.matmul %29, %193, %cst_102 {dimension_numbers = #tpu.dot_dimension_numbers<[1], [0], [0], [1], [0, 0, 1, 1], [], []>} : vector<16x32xf32>, vector<32x8xf32>, vector<16x8xf32> -> vector<16x8xf32>
    %195 = arith.index_cast %arg0 : i32 to index
    %c7_103 = arith.constant 7 : index
    %c0_104 = arith.constant 0 : index
    %c0_105 = arith.constant 0 : index
    %196 = vector.load %arg4[%195, %c7_103, %c0_104, %c0_105] : memref<2x24x1x8xf32, #tpu.memory_space<vmem>>, vector<1x1x1x8xf32>
    %197 = vector.shape_cast %196 : vector<1x1x1x8xf32> to vector<1x8xf32>
    %198 = vector.broadcast %197 : vector<1x8xf32> to vector<16x8xf32>
    %199 = arith.addf %194, %198 : vector<16x8xf32>
    %200 = arith.index_cast %arg0 : i32 to index
    %c11 = arith.constant 11 : index
    %c0_106 = arith.constant 0 : index
    %c0_107 = arith.constant 0 : index
    %201 = vector.load %arg3[%200, %c11, %c0_106, %c0_107] : memref<2x24x32x8xf32, #tpu.memory_space<vmem>>, vector<1x1x32x8xf32>
    %202 = vector.shape_cast %201 : vector<1x1x32x8xf32> to vector<32x8xf32>
    %cst_108 = arith.constant dense<0.000000e+00> : vector<16x8xf32>
    %203 = tpu.matmul %29, %202, %cst_108 {dimension_numbers = #tpu.dot_dimension_numbers<[1], [0], [0], [1], [0, 0, 1, 1], [], []>} : vector<16x32xf32>, vector<32x8xf32>, vector<16x8xf32> -> vector<16x8xf32>
    %204 = arith.index_cast %arg0 : i32 to index
    %c11_109 = arith.constant 11 : index
    %c0_110 = arith.constant 0 : index
    %c0_111 = arith.constant 0 : index
    %205 = vector.load %arg4[%204, %c11_109, %c0_110, %c0_111] : memref<2x24x1x8xf32, #tpu.memory_space<vmem>>, vector<1x1x1x8xf32>
    %206 = vector.shape_cast %205 : vector<1x1x1x8xf32> to vector<1x8xf32>
    %207 = vector.broadcast %206 : vector<1x8xf32> to vector<16x8xf32>
    %208 = arith.addf %203, %207 : vector<16x8xf32>
    %209 = vector.shape_cast %190 : vector<16x8xf32> to vector<2x8x8xf32>
    %210 = vector.shape_cast %199 : vector<16x8xf32> to vector<2x8x8xf32>
    %211 = vector.shape_cast %208 : vector<16x8xf32> to vector<2x8x8xf32>
    "tpu.trace_start"() <{level = 10 : i32, message = "bqd,bkd->bqk"}> : () -> ()
    %cst_112 = arith.constant dense<0.000000e+00> : vector<2x8x8xf32>
    %212 = tpu.matmul %209, %210, %cst_112 {dimension_numbers = #tpu.dot_dimension_numbers<[2], [2], [1], [1], [0, 0, 0, 1, 1, 1], [0], [0]>} : vector<2x8x8xf32>, vector<2x8x8xf32>, vector<2x8x8xf32> -> vector<2x8x8xf32>
    "tpu.trace_stop"() : () -> ()
    %213 = vector.broadcast %32 : vector<2x1x8xf32> to vector<2x8x8xf32>
    %214 = arith.addf %212, %213 : vector<2x8x8xf32>
    %cst_113 = arith.constant dense<0xFF800000> : vector<2x8xf32>
    %215 = vector.multi_reduction <maximumf>, %214, %cst_113 [2] : vector<2x8x8xf32> to vector<2x8xf32>
    %216 = vector.shape_cast %215 : vector<2x8xf32> to vector<2x8x1xf32>
    %217 = vector.broadcast %216 : vector<2x8x1xf32> to vector<2x8x8xf32>
    %218 = arith.subf %214, %217 : vector<2x8x8xf32>
    %219 = math.exp %218 : vector<2x8x8xf32>
    %cst_114 = arith.constant dense<0.000000e+00> : vector<2x8xf32>
    %220 = vector.multi_reduction <add>, %219, %cst_114 [2] : vector<2x8x8xf32> to vector<2x8xf32>
    %221 = vector.shape_cast %220 : vector<2x8xf32> to vector<2x8x1xf32>
    %222 = tpu.reciprocal %221 {approx = true} : vector<2x8x1xf32> -> vector<2x8x1xf32>
    %223 = vector.broadcast %222 : vector<2x8x1xf32> to vector<2x8x8xf32>
    %224 = arith.mulf %219, %223 : vector<2x8x8xf32>
    "tpu.trace_start"() <{level = 10 : i32, message = "bqk,bkd->bqd"}> : () -> ()
    %cst_115 = arith.constant dense<0.000000e+00> : vector<2x8x8xf32>
    %225 = tpu.matmul %224, %211, %cst_115 {dimension_numbers = #tpu.dot_dimension_numbers<[2], [1], [1], [2], [0, 0, 0, 1, 1, 2], [0], [0]>} : vector<2x8x8xf32>, vector<2x8x8xf32>, vector<2x8x8xf32> -> vector<2x8x8xf32>
    "tpu.trace_stop"() : () -> ()
    %226 = vector.shape_cast %225 : vector<2x8x8xf32> to vector<16x8xf32>
    %227 = arith.index_cast %arg0 : i32 to index
    %c3_116 = arith.constant 3 : index
    %c0_117 = arith.constant 0 : index
    %c0_118 = arith.constant 0 : index
    %228 = vector.load %arg5[%227, %c3_116, %c0_117, %c0_118] : memref<2x8x8x32xf32, #tpu.memory_space<vmem>>, vector<1x1x8x32xf32>
    %229 = vector.shape_cast %228 : vector<1x1x8x32xf32> to vector<8x32xf32>
    %cst_119 = arith.constant dense<0.000000e+00> : vector<16x32xf32>
    %230 = tpu.matmul %226, %229, %cst_119 {dimension_numbers = #tpu.dot_dimension_numbers<[1], [0], [0], [1], [0, 0, 1, 1], [], []>} : vector<16x8xf32>, vector<8x32xf32>, vector<16x32xf32> -> vector<16x32xf32>
    %231 = arith.addf %181, %230 : vector<16x32xf32>
    %232 = arith.index_cast %arg0 : i32 to index
    %c2_120 = arith.constant 2 : index
    %c0_121 = arith.constant 0 : index
    %c0_122 = arith.constant 0 : index
    %233 = vector.load %arg9[%232, %c2_120, %c0_121, %c0_122] : memref<2x15x1x32xf32, #tpu.memory_space<vmem>>, vector<1x1x1x32xf32>
    %234 = vector.shape_cast %233 : vector<1x1x1x32xf32> to vector<1x32xf32>
    %235 = vector.broadcast %234 : vector<1x32xf32> to vector<16x32xf32>
    %236 = arith.addf %231, %235 : vector<16x32xf32>
    %237 = arith.addf %236, %29 : vector<16x32xf32>
    %238 = arith.index_cast %arg0 : i32 to index
    %c3_123 = arith.constant 3 : index
    %c0_124 = arith.constant 0 : index
    %c0_125 = arith.constant 0 : index
    %239 = vector.load %arg9[%238, %c3_123, %c0_124, %c0_125] : memref<2x15x1x32xf32, #tpu.memory_space<vmem>>, vector<1x1x1x32xf32>
    %240 = vector.shape_cast %239 : vector<1x1x1x32xf32> to vector<1x32xf32>
    %241 = arith.index_cast %arg0 : i32 to index
    %c4_126 = arith.constant 4 : index
    %c0_127 = arith.constant 0 : index
    %c0_128 = arith.constant 0 : index
    %242 = vector.load %arg9[%241, %c4_126, %c0_127, %c0_128] : memref<2x15x1x32xf32, #tpu.memory_space<vmem>>, vector<1x1x1x32xf32>
    %243 = vector.shape_cast %242 : vector<1x1x1x32xf32> to vector<1x32xf32>
    %cst_129 = arith.constant dense<0.000000e+00> : vector<16xf32>
    %244 = vector.multi_reduction <add>, %237, %cst_129 [1] : vector<16x32xf32> to vector<16xf32>
    %245 = vector.shape_cast %244 : vector<16xf32> to vector<16x1xf32>
    %cst_130 = arith.constant 3.200000e+01 : f32
    %246 = vector.broadcast %cst_130 : f32 to vector<16x1xf32>
    %247 = arith.divf %245, %246 : vector<16x1xf32>
    %248 = vector.broadcast %247 : vector<16x1xf32> to vector<16x32xf32>
    %249 = arith.subf %237, %248 : vector<16x32xf32>
    %250 = arith.mulf %249, %249 : vector<16x32xf32>
    %cst_131 = arith.constant dense<0.000000e+00> : vector<16xf32>
    %251 = vector.multi_reduction <add>, %250, %cst_131 [1] : vector<16x32xf32> to vector<16xf32>
    %252 = vector.shape_cast %251 : vector<16xf32> to vector<16x1xf32>
    %cst_132 = arith.constant 3.200000e+01 : f32
    %253 = vector.broadcast %cst_132 : f32 to vector<16x1xf32>
    %254 = arith.divf %252, %253 : vector<16x1xf32>
    %255 = vector.broadcast %247 : vector<16x1xf32> to vector<16x32xf32>
    %256 = arith.subf %237, %255 : vector<16x32xf32>
    %cst_133 = arith.constant 9.99999996E-13 : f32
    %257 = vector.broadcast %cst_133 : f32 to vector<16x1xf32>
    %258 = arith.addf %254, %257 : vector<16x1xf32>
    %259 = math.rsqrt %258 : vector<16x1xf32>
    %260 = vector.broadcast %259 : vector<16x1xf32> to vector<16x32xf32>
    %261 = arith.mulf %256, %260 : vector<16x32xf32>
    %262 = vector.broadcast %240 : vector<1x32xf32> to vector<16x32xf32>
    %263 = arith.mulf %261, %262 : vector<16x32xf32>
    %264 = vector.broadcast %243 : vector<1x32xf32> to vector<16x32xf32>
    %265 = arith.addf %263, %264 : vector<16x32xf32>
    %266 = arith.index_cast %arg0 : i32 to index
    %c0_134 = arith.constant 0 : index
    %c0_135 = arith.constant 0 : index
    %c0_136 = arith.constant 0 : index
    %267 = vector.load %arg6[%266, %c0_134, %c0_135, %c0_136] : memref<2x2x32x64xf32, #tpu.memory_space<vmem>>, vector<1x1x32x64xf32>
    %268 = vector.shape_cast %267 : vector<1x1x32x64xf32> to vector<32x64xf32>
    %cst_137 = arith.constant dense<0.000000e+00> : vector<16x64xf32>
    %269 = tpu.matmul %265, %268, %cst_137 {dimension_numbers = #tpu.dot_dimension_numbers<[1], [0], [0], [1], [0, 0, 1, 1], [], []>} : vector<16x32xf32>, vector<32x64xf32>, vector<16x64xf32> -> vector<16x64xf32>
    %270 = arith.index_cast %arg0 : i32 to index
    %c0_138 = arith.constant 0 : index
    %c0_139 = arith.constant 0 : index
    %c0_140 = arith.constant 0 : index
    %271 = vector.load %arg7[%270, %c0_138, %c0_139, %c0_140] : memref<2x2x1x64xf32, #tpu.memory_space<vmem>>, vector<1x1x1x64xf32>
    %272 = vector.shape_cast %271 : vector<1x1x1x64xf32> to vector<1x64xf32>
    %273 = vector.broadcast %272 : vector<1x64xf32> to vector<16x64xf32>
    %274 = arith.addf %269, %273 : vector<16x64xf32>
    %275 = arith.mulf %274, %274 : vector<16x64xf32>
    %276 = arith.mulf %274, %275 : vector<16x64xf32>
    %cst_141 = arith.constant 4.471500e-02 : f32
    %277 = vector.broadcast %cst_141 : f32 to vector<16x64xf32>
    %278 = arith.mulf %277, %276 : vector<16x64xf32>
    %279 = arith.addf %274, %278 : vector<16x64xf32>
    %cst_142 = arith.constant 0.797884583 : f32
    %280 = vector.broadcast %cst_142 : f32 to vector<16x64xf32>
    %281 = arith.mulf %280, %279 : vector<16x64xf32>
    %282 = math.tanh %281 : vector<16x64xf32>
    %cst_143 = arith.constant 1.000000e+00 : f32
    %283 = vector.broadcast %cst_143 : f32 to vector<16x64xf32>
    %284 = arith.addf %283, %282 : vector<16x64xf32>
    %cst_144 = arith.constant 5.000000e-01 : f32
    %285 = vector.broadcast %cst_144 : f32 to vector<16x64xf32>
    %286 = arith.mulf %285, %284 : vector<16x64xf32>
    %287 = arith.mulf %274, %286 : vector<16x64xf32>
    %288 = arith.index_cast %arg0 : i32 to index
    %c0_145 = arith.constant 0 : index
    %c0_146 = arith.constant 0 : index
    %c0_147 = arith.constant 0 : index
    %289 = vector.load %arg8[%288, %c0_145, %c0_146, %c0_147] : memref<2x2x64x32xf32, #tpu.memory_space<vmem>>, vector<1x1x64x32xf32>
    %290 = vector.shape_cast %289 : vector<1x1x64x32xf32> to vector<64x32xf32>
    %cst_148 = arith.constant dense<0.000000e+00> : vector<16x32xf32>
    %291 = tpu.matmul %287, %290, %cst_148 {dimension_numbers = #tpu.dot_dimension_numbers<[1], [0], [0], [1], [0, 0, 1, 1], [], []>} : vector<16x64xf32>, vector<64x32xf32>, vector<16x32xf32> -> vector<16x32xf32>
    %292 = arith.index_cast %arg0 : i32 to index
    %c5_149 = arith.constant 5 : index
    %c0_150 = arith.constant 0 : index
    %c0_151 = arith.constant 0 : index
    %293 = vector.load %arg9[%292, %c5_149, %c0_150, %c0_151] : memref<2x15x1x32xf32, #tpu.memory_space<vmem>>, vector<1x1x1x32xf32>
    %294 = vector.shape_cast %293 : vector<1x1x1x32xf32> to vector<1x32xf32>
    %295 = vector.broadcast %294 : vector<1x32xf32> to vector<16x32xf32>
    %296 = arith.addf %291, %295 : vector<16x32xf32>
    %297 = arith.addf %296, %265 : vector<16x32xf32>
    %298 = arith.index_cast %arg0 : i32 to index
    %c6_152 = arith.constant 6 : index
    %c0_153 = arith.constant 0 : index
    %c0_154 = arith.constant 0 : index
    %299 = vector.load %arg9[%298, %c6_152, %c0_153, %c0_154] : memref<2x15x1x32xf32, #tpu.memory_space<vmem>>, vector<1x1x1x32xf32>
    %300 = vector.shape_cast %299 : vector<1x1x1x32xf32> to vector<1x32xf32>
    %301 = arith.index_cast %arg0 : i32 to index
    %c7_155 = arith.constant 7 : index
    %c0_156 = arith.constant 0 : index
    %c0_157 = arith.constant 0 : index
    %302 = vector.load %arg9[%301, %c7_155, %c0_156, %c0_157] : memref<2x15x1x32xf32, #tpu.memory_space<vmem>>, vector<1x1x1x32xf32>
    %303 = vector.shape_cast %302 : vector<1x1x1x32xf32> to vector<1x32xf32>
    %cst_158 = arith.constant dense<0.000000e+00> : vector<16xf32>
    %304 = vector.multi_reduction <add>, %297, %cst_158 [1] : vector<16x32xf32> to vector<16xf32>
    %305 = vector.shape_cast %304 : vector<16xf32> to vector<16x1xf32>
    %cst_159 = arith.constant 3.200000e+01 : f32
    %306 = vector.broadcast %cst_159 : f32 to vector<16x1xf32>
    %307 = arith.divf %305, %306 : vector<16x1xf32>
    %308 = vector.broadcast %307 : vector<16x1xf32> to vector<16x32xf32>
    %309 = arith.subf %297, %308 : vector<16x32xf32>
    %310 = arith.mulf %309, %309 : vector<16x32xf32>
    %cst_160 = arith.constant dense<0.000000e+00> : vector<16xf32>
    %311 = vector.multi_reduction <add>, %310, %cst_160 [1] : vector<16x32xf32> to vector<16xf32>
    %312 = vector.shape_cast %311 : vector<16xf32> to vector<16x1xf32>
    %cst_161 = arith.constant 3.200000e+01 : f32
    %313 = vector.broadcast %cst_161 : f32 to vector<16x1xf32>
    %314 = arith.divf %312, %313 : vector<16x1xf32>
    %315 = vector.broadcast %307 : vector<16x1xf32> to vector<16x32xf32>
    %316 = arith.subf %297, %315 : vector<16x32xf32>
    %cst_162 = arith.constant 9.99999996E-13 : f32
    %317 = vector.broadcast %cst_162 : f32 to vector<16x1xf32>
    %318 = arith.addf %314, %317 : vector<16x1xf32>
    %319 = math.rsqrt %318 : vector<16x1xf32>
    %320 = vector.broadcast %319 : vector<16x1xf32> to vector<16x32xf32>
    %321 = arith.mulf %316, %320 : vector<16x32xf32>
    %322 = vector.broadcast %300 : vector<1x32xf32> to vector<16x32xf32>
    %323 = arith.mulf %321, %322 : vector<16x32xf32>
    %324 = vector.broadcast %303 : vector<1x32xf32> to vector<16x32xf32>
    %325 = arith.addf %323, %324 : vector<16x32xf32>
    %326 = arith.index_cast %arg0 : i32 to index
    %c12 = arith.constant 12 : index
    %c0_163 = arith.constant 0 : index
    %c0_164 = arith.constant 0 : index
    %327 = vector.load %arg3[%326, %c12, %c0_163, %c0_164] : memref<2x24x32x8xf32, #tpu.memory_space<vmem>>, vector<1x1x32x8xf32>
    %328 = vector.shape_cast %327 : vector<1x1x32x8xf32> to vector<32x8xf32>
    %cst_165 = arith.constant dense<0.000000e+00> : vector<16x8xf32>
    %329 = tpu.matmul %325, %328, %cst_165 {dimension_numbers = #tpu.dot_dimension_numbers<[1], [0], [0], [1], [0, 0, 1, 1], [], []>} : vector<16x32xf32>, vector<32x8xf32>, vector<16x8xf32> -> vector<16x8xf32>
    %330 = arith.index_cast %arg0 : i32 to index
    %c12_166 = arith.constant 12 : index
    %c0_167 = arith.constant 0 : index
    %c0_168 = arith.constant 0 : index
    %331 = vector.load %arg4[%330, %c12_166, %c0_167, %c0_168] : memref<2x24x1x8xf32, #tpu.memory_space<vmem>>, vector<1x1x1x8xf32>
    %332 = vector.shape_cast %331 : vector<1x1x1x8xf32> to vector<1x8xf32>
    %333 = vector.broadcast %332 : vector<1x8xf32> to vector<16x8xf32>
    %334 = arith.addf %329, %333 : vector<16x8xf32>
    %335 = arith.index_cast %arg0 : i32 to index
    %c16 = arith.constant 16 : index
    %c0_169 = arith.constant 0 : index
    %c0_170 = arith.constant 0 : index
    %336 = vector.load %arg3[%335, %c16, %c0_169, %c0_170] : memref<2x24x32x8xf32, #tpu.memory_space<vmem>>, vector<1x1x32x8xf32>
    %337 = vector.shape_cast %336 : vector<1x1x32x8xf32> to vector<32x8xf32>
    %cst_171 = arith.constant dense<0.000000e+00> : vector<16x8xf32>
    %338 = tpu.matmul %325, %337, %cst_171 {dimension_numbers = #tpu.dot_dimension_numbers<[1], [0], [0], [1], [0, 0, 1, 1], [], []>} : vector<16x32xf32>, vector<32x8xf32>, vector<16x8xf32> -> vector<16x8xf32>
    %339 = arith.index_cast %arg0 : i32 to index
    %c16_172 = arith.constant 16 : index
    %c0_173 = arith.constant 0 : index
    %c0_174 = arith.constant 0 : index
    %340 = vector.load %arg4[%339, %c16_172, %c0_173, %c0_174] : memref<2x24x1x8xf32, #tpu.memory_space<vmem>>, vector<1x1x1x8xf32>
    %341 = vector.shape_cast %340 : vector<1x1x1x8xf32> to vector<1x8xf32>
    %342 = vector.broadcast %341 : vector<1x8xf32> to vector<16x8xf32>
    %343 = arith.addf %338, %342 : vector<16x8xf32>
    %344 = arith.index_cast %arg0 : i32 to index
    %c20 = arith.constant 20 : index
    %c0_175 = arith.constant 0 : index
    %c0_176 = arith.constant 0 : index
    %345 = vector.load %arg3[%344, %c20, %c0_175, %c0_176] : memref<2x24x32x8xf32, #tpu.memory_space<vmem>>, vector<1x1x32x8xf32>
    %346 = vector.shape_cast %345 : vector<1x1x32x8xf32> to vector<32x8xf32>
    %cst_177 = arith.constant dense<0.000000e+00> : vector<16x8xf32>
    %347 = tpu.matmul %325, %346, %cst_177 {dimension_numbers = #tpu.dot_dimension_numbers<[1], [0], [0], [1], [0, 0, 1, 1], [], []>} : vector<16x32xf32>, vector<32x8xf32>, vector<16x8xf32> -> vector<16x8xf32>
    %348 = arith.index_cast %arg0 : i32 to index
    %c20_178 = arith.constant 20 : index
    %c0_179 = arith.constant 0 : index
    %c0_180 = arith.constant 0 : index
    %349 = vector.load %arg4[%348, %c20_178, %c0_179, %c0_180] : memref<2x24x1x8xf32, #tpu.memory_space<vmem>>, vector<1x1x1x8xf32>
    %350 = vector.shape_cast %349 : vector<1x1x1x8xf32> to vector<1x8xf32>
    %351 = vector.broadcast %350 : vector<1x8xf32> to vector<16x8xf32>
    %352 = arith.addf %347, %351 : vector<16x8xf32>
    %353 = vector.shape_cast %334 : vector<16x8xf32> to vector<2x8x8xf32>
    %354 = vector.shape_cast %343 : vector<16x8xf32> to vector<2x8x8xf32>
    %355 = vector.shape_cast %352 : vector<16x8xf32> to vector<2x8x8xf32>
    "tpu.trace_start"() <{level = 10 : i32, message = "bqd,bkd->bqk"}> : () -> ()
    %cst_181 = arith.constant dense<0.000000e+00> : vector<2x8x8xf32>
    %356 = tpu.matmul %353, %354, %cst_181 {dimension_numbers = #tpu.dot_dimension_numbers<[2], [2], [1], [1], [0, 0, 0, 1, 1, 1], [0], [0]>} : vector<2x8x8xf32>, vector<2x8x8xf32>, vector<2x8x8xf32> -> vector<2x8x8xf32>
    "tpu.trace_stop"() : () -> ()
    %357 = vector.broadcast %32 : vector<2x1x8xf32> to vector<2x8x8xf32>
    %358 = arith.addf %356, %357 : vector<2x8x8xf32>
    %cst_182 = arith.constant dense<0xFF800000> : vector<2x8xf32>
    %359 = vector.multi_reduction <maximumf>, %358, %cst_182 [2] : vector<2x8x8xf32> to vector<2x8xf32>
    %360 = vector.shape_cast %359 : vector<2x8xf32> to vector<2x8x1xf32>
    %361 = vector.broadcast %360 : vector<2x8x1xf32> to vector<2x8x8xf32>
    %362 = arith.subf %358, %361 : vector<2x8x8xf32>
    %363 = math.exp %362 : vector<2x8x8xf32>
    %cst_183 = arith.constant dense<0.000000e+00> : vector<2x8xf32>
    %364 = vector.multi_reduction <add>, %363, %cst_183 [2] : vector<2x8x8xf32> to vector<2x8xf32>
    %365 = vector.shape_cast %364 : vector<2x8xf32> to vector<2x8x1xf32>
    %366 = tpu.reciprocal %365 {approx = true} : vector<2x8x1xf32> -> vector<2x8x1xf32>
    %367 = vector.broadcast %366 : vector<2x8x1xf32> to vector<2x8x8xf32>
    %368 = arith.mulf %363, %367 : vector<2x8x8xf32>
    "tpu.trace_start"() <{level = 10 : i32, message = "bqk,bkd->bqd"}> : () -> ()
    %cst_184 = arith.constant dense<0.000000e+00> : vector<2x8x8xf32>
    %369 = tpu.matmul %368, %355, %cst_184 {dimension_numbers = #tpu.dot_dimension_numbers<[2], [1], [1], [2], [0, 0, 0, 1, 1, 2], [0], [0]>} : vector<2x8x8xf32>, vector<2x8x8xf32>, vector<2x8x8xf32> -> vector<2x8x8xf32>
    "tpu.trace_stop"() : () -> ()
    %370 = vector.shape_cast %369 : vector<2x8x8xf32> to vector<16x8xf32>
    %371 = arith.index_cast %arg0 : i32 to index
    %c4_185 = arith.constant 4 : index
    %c0_186 = arith.constant 0 : index
    %c0_187 = arith.constant 0 : index
    %372 = vector.load %arg5[%371, %c4_185, %c0_186, %c0_187] : memref<2x8x8x32xf32, #tpu.memory_space<vmem>>, vector<1x1x8x32xf32>
    %373 = vector.shape_cast %372 : vector<1x1x8x32xf32> to vector<8x32xf32>
    %cst_188 = arith.constant dense<0.000000e+00> : vector<16x32xf32>
    %374 = tpu.matmul %370, %373, %cst_188 {dimension_numbers = #tpu.dot_dimension_numbers<[1], [0], [0], [1], [0, 0, 1, 1], [], []>} : vector<16x8xf32>, vector<8x32xf32>, vector<16x32xf32> -> vector<16x32xf32>
    %375 = arith.index_cast %arg0 : i32 to index
    %c13 = arith.constant 13 : index
    %c0_189 = arith.constant 0 : index
    %c0_190 = arith.constant 0 : index
    %376 = vector.load %arg3[%375, %c13, %c0_189, %c0_190] : memref<2x24x32x8xf32, #tpu.memory_space<vmem>>, vector<1x1x32x8xf32>
    %377 = vector.shape_cast %376 : vector<1x1x32x8xf32> to vector<32x8xf32>
    %cst_191 = arith.constant dense<0.000000e+00> : vector<16x8xf32>
    %378 = tpu.matmul %325, %377, %cst_191 {dimension_numbers = #tpu.dot_dimension_numbers<[1], [0], [0], [1], [0, 0, 1, 1], [], []>} : vector<16x32xf32>, vector<32x8xf32>, vector<16x8xf32> -> vector<16x8xf32>
    %379 = arith.index_cast %arg0 : i32 to index
    %c13_192 = arith.constant 13 : index
    %c0_193 = arith.constant 0 : index
    %c0_194 = arith.constant 0 : index
    %380 = vector.load %arg4[%379, %c13_192, %c0_193, %c0_194] : memref<2x24x1x8xf32, #tpu.memory_space<vmem>>, vector<1x1x1x8xf32>
    %381 = vector.shape_cast %380 : vector<1x1x1x8xf32> to vector<1x8xf32>
    %382 = vector.broadcast %381 : vector<1x8xf32> to vector<16x8xf32>
    %383 = arith.addf %378, %382 : vector<16x8xf32>
    %384 = arith.index_cast %arg0 : i32 to index
    %c17 = arith.constant 17 : index
    %c0_195 = arith.constant 0 : index
    %c0_196 = arith.constant 0 : index
    %385 = vector.load %arg3[%384, %c17, %c0_195, %c0_196] : memref<2x24x32x8xf32, #tpu.memory_space<vmem>>, vector<1x1x32x8xf32>
    %386 = vector.shape_cast %385 : vector<1x1x32x8xf32> to vector<32x8xf32>
    %cst_197 = arith.constant dense<0.000000e+00> : vector<16x8xf32>
    %387 = tpu.matmul %325, %386, %cst_197 {dimension_numbers = #tpu.dot_dimension_numbers<[1], [0], [0], [1], [0, 0, 1, 1], [], []>} : vector<16x32xf32>, vector<32x8xf32>, vector<16x8xf32> -> vector<16x8xf32>
    %388 = arith.index_cast %arg0 : i32 to index
    %c17_198 = arith.constant 17 : index
    %c0_199 = arith.constant 0 : index
    %c0_200 = arith.constant 0 : index
    %389 = vector.load %arg4[%388, %c17_198, %c0_199, %c0_200] : memref<2x24x1x8xf32, #tpu.memory_space<vmem>>, vector<1x1x1x8xf32>
    %390 = vector.shape_cast %389 : vector<1x1x1x8xf32> to vector<1x8xf32>
    %391 = vector.broadcast %390 : vector<1x8xf32> to vector<16x8xf32>
    %392 = arith.addf %387, %391 : vector<16x8xf32>
    %393 = arith.index_cast %arg0 : i32 to index
    %c21 = arith.constant 21 : index
    %c0_201 = arith.constant 0 : index
    %c0_202 = arith.constant 0 : index
    %394 = vector.load %arg3[%393, %c21, %c0_201, %c0_202] : memref<2x24x32x8xf32, #tpu.memory_space<vmem>>, vector<1x1x32x8xf32>
    %395 = vector.shape_cast %394 : vector<1x1x32x8xf32> to vector<32x8xf32>
    %cst_203 = arith.constant dense<0.000000e+00> : vector<16x8xf32>
    %396 = tpu.matmul %325, %395, %cst_203 {dimension_numbers = #tpu.dot_dimension_numbers<[1], [0], [0], [1], [0, 0, 1, 1], [], []>} : vector<16x32xf32>, vector<32x8xf32>, vector<16x8xf32> -> vector<16x8xf32>
    %397 = arith.index_cast %arg0 : i32 to index
    %c21_204 = arith.constant 21 : index
    %c0_205 = arith.constant 0 : index
    %c0_206 = arith.constant 0 : index
    %398 = vector.load %arg4[%397, %c21_204, %c0_205, %c0_206] : memref<2x24x1x8xf32, #tpu.memory_space<vmem>>, vector<1x1x1x8xf32>
    %399 = vector.shape_cast %398 : vector<1x1x1x8xf32> to vector<1x8xf32>
    %400 = vector.broadcast %399 : vector<1x8xf32> to vector<16x8xf32>
    %401 = arith.addf %396, %400 : vector<16x8xf32>
    %402 = vector.shape_cast %383 : vector<16x8xf32> to vector<2x8x8xf32>
    %403 = vector.shape_cast %392 : vector<16x8xf32> to vector<2x8x8xf32>
    %404 = vector.shape_cast %401 : vector<16x8xf32> to vector<2x8x8xf32>
    "tpu.trace_start"() <{level = 10 : i32, message = "bqd,bkd->bqk"}> : () -> ()
    %cst_207 = arith.constant dense<0.000000e+00> : vector<2x8x8xf32>
    %405 = tpu.matmul %402, %403, %cst_207 {dimension_numbers = #tpu.dot_dimension_numbers<[2], [2], [1], [1], [0, 0, 0, 1, 1, 1], [0], [0]>} : vector<2x8x8xf32>, vector<2x8x8xf32>, vector<2x8x8xf32> -> vector<2x8x8xf32>
    "tpu.trace_stop"() : () -> ()
    %406 = vector.broadcast %32 : vector<2x1x8xf32> to vector<2x8x8xf32>
    %407 = arith.addf %405, %406 : vector<2x8x8xf32>
    %cst_208 = arith.constant dense<0xFF800000> : vector<2x8xf32>
    %408 = vector.multi_reduction <maximumf>, %407, %cst_208 [2] : vector<2x8x8xf32> to vector<2x8xf32>
    %409 = vector.shape_cast %408 : vector<2x8xf32> to vector<2x8x1xf32>
    %410 = vector.broadcast %409 : vector<2x8x1xf32> to vector<2x8x8xf32>
    %411 = arith.subf %407, %410 : vector<2x8x8xf32>
    %412 = math.exp %411 : vector<2x8x8xf32>
    %cst_209 = arith.constant dense<0.000000e+00> : vector<2x8xf32>
    %413 = vector.multi_reduction <add>, %412, %cst_209 [2] : vector<2x8x8xf32> to vector<2x8xf32>
    %414 = vector.shape_cast %413 : vector<2x8xf32> to vector<2x8x1xf32>
    %415 = tpu.reciprocal %414 {approx = true} : vector<2x8x1xf32> -> vector<2x8x1xf32>
    %416 = vector.broadcast %415 : vector<2x8x1xf32> to vector<2x8x8xf32>
    %417 = arith.mulf %412, %416 : vector<2x8x8xf32>
    "tpu.trace_start"() <{level = 10 : i32, message = "bqk,bkd->bqd"}> : () -> ()
    %cst_210 = arith.constant dense<0.000000e+00> : vector<2x8x8xf32>
    %418 = tpu.matmul %417, %404, %cst_210 {dimension_numbers = #tpu.dot_dimension_numbers<[2], [1], [1], [2], [0, 0, 0, 1, 1, 2], [0], [0]>} : vector<2x8x8xf32>, vector<2x8x8xf32>, vector<2x8x8xf32> -> vector<2x8x8xf32>
    "tpu.trace_stop"() : () -> ()
    %419 = vector.shape_cast %418 : vector<2x8x8xf32> to vector<16x8xf32>
    %420 = arith.index_cast %arg0 : i32 to index
    %c5_211 = arith.constant 5 : index
    %c0_212 = arith.constant 0 : index
    %c0_213 = arith.constant 0 : index
    %421 = vector.load %arg5[%420, %c5_211, %c0_212, %c0_213] : memref<2x8x8x32xf32, #tpu.memory_space<vmem>>, vector<1x1x8x32xf32>
    %422 = vector.shape_cast %421 : vector<1x1x8x32xf32> to vector<8x32xf32>
    %cst_214 = arith.constant dense<0.000000e+00> : vector<16x32xf32>
    %423 = tpu.matmul %419, %422, %cst_214 {dimension_numbers = #tpu.dot_dimension_numbers<[1], [0], [0], [1], [0, 0, 1, 1], [], []>} : vector<16x8xf32>, vector<8x32xf32>, vector<16x32xf32> -> vector<16x32xf32>
    %424 = arith.addf %374, %423 : vector<16x32xf32>
    %425 = arith.index_cast %arg0 : i32 to index
    %c14 = arith.constant 14 : index
    %c0_215 = arith.constant 0 : index
    %c0_216 = arith.constant 0 : index
    %426 = vector.load %arg3[%425, %c14, %c0_215, %c0_216] : memref<2x24x32x8xf32, #tpu.memory_space<vmem>>, vector<1x1x32x8xf32>
    %427 = vector.shape_cast %426 : vector<1x1x32x8xf32> to vector<32x8xf32>
    %cst_217 = arith.constant dense<0.000000e+00> : vector<16x8xf32>
    %428 = tpu.matmul %325, %427, %cst_217 {dimension_numbers = #tpu.dot_dimension_numbers<[1], [0], [0], [1], [0, 0, 1, 1], [], []>} : vector<16x32xf32>, vector<32x8xf32>, vector<16x8xf32> -> vector<16x8xf32>
    %429 = arith.index_cast %arg0 : i32 to index
    %c14_218 = arith.constant 14 : index
    %c0_219 = arith.constant 0 : index
    %c0_220 = arith.constant 0 : index
    %430 = vector.load %arg4[%429, %c14_218, %c0_219, %c0_220] : memref<2x24x1x8xf32, #tpu.memory_space<vmem>>, vector<1x1x1x8xf32>
    %431 = vector.shape_cast %430 : vector<1x1x1x8xf32> to vector<1x8xf32>
    %432 = vector.broadcast %431 : vector<1x8xf32> to vector<16x8xf32>
    %433 = arith.addf %428, %432 : vector<16x8xf32>
    %434 = arith.index_cast %arg0 : i32 to index
    %c18 = arith.constant 18 : index
    %c0_221 = arith.constant 0 : index
    %c0_222 = arith.constant 0 : index
    %435 = vector.load %arg3[%434, %c18, %c0_221, %c0_222] : memref<2x24x32x8xf32, #tpu.memory_space<vmem>>, vector<1x1x32x8xf32>
    %436 = vector.shape_cast %435 : vector<1x1x32x8xf32> to vector<32x8xf32>
    %cst_223 = arith.constant dense<0.000000e+00> : vector<16x8xf32>
    %437 = tpu.matmul %325, %436, %cst_223 {dimension_numbers = #tpu.dot_dimension_numbers<[1], [0], [0], [1], [0, 0, 1, 1], [], []>} : vector<16x32xf32>, vector<32x8xf32>, vector<16x8xf32> -> vector<16x8xf32>
    %438 = arith.index_cast %arg0 : i32 to index
    %c18_224 = arith.constant 18 : index
    %c0_225 = arith.constant 0 : index
    %c0_226 = arith.constant 0 : index
    %439 = vector.load %arg4[%438, %c18_224, %c0_225, %c0_226] : memref<2x24x1x8xf32, #tpu.memory_space<vmem>>, vector<1x1x1x8xf32>
    %440 = vector.shape_cast %439 : vector<1x1x1x8xf32> to vector<1x8xf32>
    %441 = vector.broadcast %440 : vector<1x8xf32> to vector<16x8xf32>
    %442 = arith.addf %437, %441 : vector<16x8xf32>
    %443 = arith.index_cast %arg0 : i32 to index
    %c22 = arith.constant 22 : index
    %c0_227 = arith.constant 0 : index
    %c0_228 = arith.constant 0 : index
    %444 = vector.load %arg3[%443, %c22, %c0_227, %c0_228] : memref<2x24x32x8xf32, #tpu.memory_space<vmem>>, vector<1x1x32x8xf32>
    %445 = vector.shape_cast %444 : vector<1x1x32x8xf32> to vector<32x8xf32>
    %cst_229 = arith.constant dense<0.000000e+00> : vector<16x8xf32>
    %446 = tpu.matmul %325, %445, %cst_229 {dimension_numbers = #tpu.dot_dimension_numbers<[1], [0], [0], [1], [0, 0, 1, 1], [], []>} : vector<16x32xf32>, vector<32x8xf32>, vector<16x8xf32> -> vector<16x8xf32>
    %447 = arith.index_cast %arg0 : i32 to index
    %c22_230 = arith.constant 22 : index
    %c0_231 = arith.constant 0 : index
    %c0_232 = arith.constant 0 : index
    %448 = vector.load %arg4[%447, %c22_230, %c0_231, %c0_232] : memref<2x24x1x8xf32, #tpu.memory_space<vmem>>, vector<1x1x1x8xf32>
    %449 = vector.shape_cast %448 : vector<1x1x1x8xf32> to vector<1x8xf32>
    %450 = vector.broadcast %449 : vector<1x8xf32> to vector<16x8xf32>
    %451 = arith.addf %446, %450 : vector<16x8xf32>
    %452 = vector.shape_cast %433 : vector<16x8xf32> to vector<2x8x8xf32>
    %453 = vector.shape_cast %442 : vector<16x8xf32> to vector<2x8x8xf32>
    %454 = vector.shape_cast %451 : vector<16x8xf32> to vector<2x8x8xf32>
    "tpu.trace_start"() <{level = 10 : i32, message = "bqd,bkd->bqk"}> : () -> ()
    %cst_233 = arith.constant dense<0.000000e+00> : vector<2x8x8xf32>
    %455 = tpu.matmul %452, %453, %cst_233 {dimension_numbers = #tpu.dot_dimension_numbers<[2], [2], [1], [1], [0, 0, 0, 1, 1, 1], [0], [0]>} : vector<2x8x8xf32>, vector<2x8x8xf32>, vector<2x8x8xf32> -> vector<2x8x8xf32>
    "tpu.trace_stop"() : () -> ()
    %456 = vector.broadcast %32 : vector<2x1x8xf32> to vector<2x8x8xf32>
    %457 = arith.addf %455, %456 : vector<2x8x8xf32>
    %cst_234 = arith.constant dense<0xFF800000> : vector<2x8xf32>
    %458 = vector.multi_reduction <maximumf>, %457, %cst_234 [2] : vector<2x8x8xf32> to vector<2x8xf32>
    %459 = vector.shape_cast %458 : vector<2x8xf32> to vector<2x8x1xf32>
    %460 = vector.broadcast %459 : vector<2x8x1xf32> to vector<2x8x8xf32>
    %461 = arith.subf %457, %460 : vector<2x8x8xf32>
    %462 = math.exp %461 : vector<2x8x8xf32>
    %cst_235 = arith.constant dense<0.000000e+00> : vector<2x8xf32>
    %463 = vector.multi_reduction <add>, %462, %cst_235 [2] : vector<2x8x8xf32> to vector<2x8xf32>
    %464 = vector.shape_cast %463 : vector<2x8xf32> to vector<2x8x1xf32>
    %465 = tpu.reciprocal %464 {approx = true} : vector<2x8x1xf32> -> vector<2x8x1xf32>
    %466 = vector.broadcast %465 : vector<2x8x1xf32> to vector<2x8x8xf32>
    %467 = arith.mulf %462, %466 : vector<2x8x8xf32>
    "tpu.trace_start"() <{level = 10 : i32, message = "bqk,bkd->bqd"}> : () -> ()
    %cst_236 = arith.constant dense<0.000000e+00> : vector<2x8x8xf32>
    %468 = tpu.matmul %467, %454, %cst_236 {dimension_numbers = #tpu.dot_dimension_numbers<[2], [1], [1], [2], [0, 0, 0, 1, 1, 2], [0], [0]>} : vector<2x8x8xf32>, vector<2x8x8xf32>, vector<2x8x8xf32> -> vector<2x8x8xf32>
    "tpu.trace_stop"() : () -> ()
    %469 = vector.shape_cast %468 : vector<2x8x8xf32> to vector<16x8xf32>
    %470 = arith.index_cast %arg0 : i32 to index
    %c6_237 = arith.constant 6 : index
    %c0_238 = arith.constant 0 : index
    %c0_239 = arith.constant 0 : index
    %471 = vector.load %arg5[%470, %c6_237, %c0_238, %c0_239] : memref<2x8x8x32xf32, #tpu.memory_space<vmem>>, vector<1x1x8x32xf32>
    %472 = vector.shape_cast %471 : vector<1x1x8x32xf32> to vector<8x32xf32>
    %cst_240 = arith.constant dense<0.000000e+00> : vector<16x32xf32>
    %473 = tpu.matmul %469, %472, %cst_240 {dimension_numbers = #tpu.dot_dimension_numbers<[1], [0], [0], [1], [0, 0, 1, 1], [], []>} : vector<16x8xf32>, vector<8x32xf32>, vector<16x32xf32> -> vector<16x32xf32>
    %474 = arith.addf %424, %473 : vector<16x32xf32>
    %475 = arith.index_cast %arg0 : i32 to index
    %c15 = arith.constant 15 : index
    %c0_241 = arith.constant 0 : index
    %c0_242 = arith.constant 0 : index
    %476 = vector.load %arg3[%475, %c15, %c0_241, %c0_242] : memref<2x24x32x8xf32, #tpu.memory_space<vmem>>, vector<1x1x32x8xf32>
    %477 = vector.shape_cast %476 : vector<1x1x32x8xf32> to vector<32x8xf32>
    %cst_243 = arith.constant dense<0.000000e+00> : vector<16x8xf32>
    %478 = tpu.matmul %325, %477, %cst_243 {dimension_numbers = #tpu.dot_dimension_numbers<[1], [0], [0], [1], [0, 0, 1, 1], [], []>} : vector<16x32xf32>, vector<32x8xf32>, vector<16x8xf32> -> vector<16x8xf32>
    %479 = arith.index_cast %arg0 : i32 to index
    %c15_244 = arith.constant 15 : index
    %c0_245 = arith.constant 0 : index
    %c0_246 = arith.constant 0 : index
    %480 = vector.load %arg4[%479, %c15_244, %c0_245, %c0_246] : memref<2x24x1x8xf32, #tpu.memory_space<vmem>>, vector<1x1x1x8xf32>
    %481 = vector.shape_cast %480 : vector<1x1x1x8xf32> to vector<1x8xf32>
    %482 = vector.broadcast %481 : vector<1x8xf32> to vector<16x8xf32>
    %483 = arith.addf %478, %482 : vector<16x8xf32>
    %484 = arith.index_cast %arg0 : i32 to index
    %c19 = arith.constant 19 : index
    %c0_247 = arith.constant 0 : index
    %c0_248 = arith.constant 0 : index
    %485 = vector.load %arg3[%484, %c19, %c0_247, %c0_248] : memref<2x24x32x8xf32, #tpu.memory_space<vmem>>, vector<1x1x32x8xf32>
    %486 = vector.shape_cast %485 : vector<1x1x32x8xf32> to vector<32x8xf32>
    %cst_249 = arith.constant dense<0.000000e+00> : vector<16x8xf32>
    %487 = tpu.matmul %325, %486, %cst_249 {dimension_numbers = #tpu.dot_dimension_numbers<[1], [0], [0], [1], [0, 0, 1, 1], [], []>} : vector<16x32xf32>, vector<32x8xf32>, vector<16x8xf32> -> vector<16x8xf32>
    %488 = arith.index_cast %arg0 : i32 to index
    %c19_250 = arith.constant 19 : index
    %c0_251 = arith.constant 0 : index
    %c0_252 = arith.constant 0 : index
    %489 = vector.load %arg4[%488, %c19_250, %c0_251, %c0_252] : memref<2x24x1x8xf32, #tpu.memory_space<vmem>>, vector<1x1x1x8xf32>
    %490 = vector.shape_cast %489 : vector<1x1x1x8xf32> to vector<1x8xf32>
    %491 = vector.broadcast %490 : vector<1x8xf32> to vector<16x8xf32>
    %492 = arith.addf %487, %491 : vector<16x8xf32>
    %493 = arith.index_cast %arg0 : i32 to index
    %c23 = arith.constant 23 : index
    %c0_253 = arith.constant 0 : index
    %c0_254 = arith.constant 0 : index
    %494 = vector.load %arg3[%493, %c23, %c0_253, %c0_254] : memref<2x24x32x8xf32, #tpu.memory_space<vmem>>, vector<1x1x32x8xf32>
    %495 = vector.shape_cast %494 : vector<1x1x32x8xf32> to vector<32x8xf32>
    %cst_255 = arith.constant dense<0.000000e+00> : vector<16x8xf32>
    %496 = tpu.matmul %325, %495, %cst_255 {dimension_numbers = #tpu.dot_dimension_numbers<[1], [0], [0], [1], [0, 0, 1, 1], [], []>} : vector<16x32xf32>, vector<32x8xf32>, vector<16x8xf32> -> vector<16x8xf32>
    %497 = arith.index_cast %arg0 : i32 to index
    %c23_256 = arith.constant 23 : index
    %c0_257 = arith.constant 0 : index
    %c0_258 = arith.constant 0 : index
    %498 = vector.load %arg4[%497, %c23_256, %c0_257, %c0_258] : memref<2x24x1x8xf32, #tpu.memory_space<vmem>>, vector<1x1x1x8xf32>
    %499 = vector.shape_cast %498 : vector<1x1x1x8xf32> to vector<1x8xf32>
    %500 = vector.broadcast %499 : vector<1x8xf32> to vector<16x8xf32>
    %501 = arith.addf %496, %500 : vector<16x8xf32>
    %502 = vector.shape_cast %483 : vector<16x8xf32> to vector<2x8x8xf32>
    %503 = vector.shape_cast %492 : vector<16x8xf32> to vector<2x8x8xf32>
    %504 = vector.shape_cast %501 : vector<16x8xf32> to vector<2x8x8xf32>
    "tpu.trace_start"() <{level = 10 : i32, message = "bqd,bkd->bqk"}> : () -> ()
    %cst_259 = arith.constant dense<0.000000e+00> : vector<2x8x8xf32>
    %505 = tpu.matmul %502, %503, %cst_259 {dimension_numbers = #tpu.dot_dimension_numbers<[2], [2], [1], [1], [0, 0, 0, 1, 1, 1], [0], [0]>} : vector<2x8x8xf32>, vector<2x8x8xf32>, vector<2x8x8xf32> -> vector<2x8x8xf32>
    "tpu.trace_stop"() : () -> ()
    %506 = vector.broadcast %32 : vector<2x1x8xf32> to vector<2x8x8xf32>
    %507 = arith.addf %505, %506 : vector<2x8x8xf32>
    %cst_260 = arith.constant dense<0xFF800000> : vector<2x8xf32>
    %508 = vector.multi_reduction <maximumf>, %507, %cst_260 [2] : vector<2x8x8xf32> to vector<2x8xf32>
    %509 = vector.shape_cast %508 : vector<2x8xf32> to vector<2x8x1xf32>
    %510 = vector.broadcast %509 : vector<2x8x1xf32> to vector<2x8x8xf32>
    %511 = arith.subf %507, %510 : vector<2x8x8xf32>
    %512 = math.exp %511 : vector<2x8x8xf32>
    %cst_261 = arith.constant dense<0.000000e+00> : vector<2x8xf32>
    %513 = vector.multi_reduction <add>, %512, %cst_261 [2] : vector<2x8x8xf32> to vector<2x8xf32>
    %514 = vector.shape_cast %513 : vector<2x8xf32> to vector<2x8x1xf32>
    %515 = tpu.reciprocal %514 {approx = true} : vector<2x8x1xf32> -> vector<2x8x1xf32>
    %516 = vector.broadcast %515 : vector<2x8x1xf32> to vector<2x8x8xf32>
    %517 = arith.mulf %512, %516 : vector<2x8x8xf32>
    "tpu.trace_start"() <{level = 10 : i32, message = "bqk,bkd->bqd"}> : () -> ()
    %cst_262 = arith.constant dense<0.000000e+00> : vector<2x8x8xf32>
    %518 = tpu.matmul %517, %504, %cst_262 {dimension_numbers = #tpu.dot_dimension_numbers<[2], [1], [1], [2], [0, 0, 0, 1, 1, 2], [0], [0]>} : vector<2x8x8xf32>, vector<2x8x8xf32>, vector<2x8x8xf32> -> vector<2x8x8xf32>
    "tpu.trace_stop"() : () -> ()
    %519 = vector.shape_cast %518 : vector<2x8x8xf32> to vector<16x8xf32>
    %520 = arith.index_cast %arg0 : i32 to index
    %c7_263 = arith.constant 7 : index
    %c0_264 = arith.constant 0 : index
    %c0_265 = arith.constant 0 : index
    %521 = vector.load %arg5[%520, %c7_263, %c0_264, %c0_265] : memref<2x8x8x32xf32, #tpu.memory_space<vmem>>, vector<1x1x8x32xf32>
    %522 = vector.shape_cast %521 : vector<1x1x8x32xf32> to vector<8x32xf32>
    %cst_266 = arith.constant dense<0.000000e+00> : vector<16x32xf32>
    %523 = tpu.matmul %519, %522, %cst_266 {dimension_numbers = #tpu.dot_dimension_numbers<[1], [0], [0], [1], [0, 0, 1, 1], [], []>} : vector<16x8xf32>, vector<8x32xf32>, vector<16x32xf32> -> vector<16x32xf32>
    %524 = arith.addf %474, %523 : vector<16x32xf32>
    %525 = arith.index_cast %arg0 : i32 to index
    %c8_267 = arith.constant 8 : index
    %c0_268 = arith.constant 0 : index
    %c0_269 = arith.constant 0 : index
    %526 = vector.load %arg9[%525, %c8_267, %c0_268, %c0_269] : memref<2x15x1x32xf32, #tpu.memory_space<vmem>>, vector<1x1x1x32xf32>
    %527 = vector.shape_cast %526 : vector<1x1x1x32xf32> to vector<1x32xf32>
    %528 = vector.broadcast %527 : vector<1x32xf32> to vector<16x32xf32>
    %529 = arith.addf %524, %528 : vector<16x32xf32>
    %530 = arith.addf %529, %325 : vector<16x32xf32>
    %531 = arith.index_cast %arg0 : i32 to index
    %c9_270 = arith.constant 9 : index
    %c0_271 = arith.constant 0 : index
    %c0_272 = arith.constant 0 : index
    %532 = vector.load %arg9[%531, %c9_270, %c0_271, %c0_272] : memref<2x15x1x32xf32, #tpu.memory_space<vmem>>, vector<1x1x1x32xf32>
    %533 = vector.shape_cast %532 : vector<1x1x1x32xf32> to vector<1x32xf32>
    %534 = arith.index_cast %arg0 : i32 to index
    %c10_273 = arith.constant 10 : index
    %c0_274 = arith.constant 0 : index
    %c0_275 = arith.constant 0 : index
    %535 = vector.load %arg9[%534, %c10_273, %c0_274, %c0_275] : memref<2x15x1x32xf32, #tpu.memory_space<vmem>>, vector<1x1x1x32xf32>
    %536 = vector.shape_cast %535 : vector<1x1x1x32xf32> to vector<1x32xf32>
    %cst_276 = arith.constant dense<0.000000e+00> : vector<16xf32>
    %537 = vector.multi_reduction <add>, %530, %cst_276 [1] : vector<16x32xf32> to vector<16xf32>
    %538 = vector.shape_cast %537 : vector<16xf32> to vector<16x1xf32>
    %cst_277 = arith.constant 3.200000e+01 : f32
    %539 = vector.broadcast %cst_277 : f32 to vector<16x1xf32>
    %540 = arith.divf %538, %539 : vector<16x1xf32>
    %541 = vector.broadcast %540 : vector<16x1xf32> to vector<16x32xf32>
    %542 = arith.subf %530, %541 : vector<16x32xf32>
    %543 = arith.mulf %542, %542 : vector<16x32xf32>
    %cst_278 = arith.constant dense<0.000000e+00> : vector<16xf32>
    %544 = vector.multi_reduction <add>, %543, %cst_278 [1] : vector<16x32xf32> to vector<16xf32>
    %545 = vector.shape_cast %544 : vector<16xf32> to vector<16x1xf32>
    %cst_279 = arith.constant 3.200000e+01 : f32
    %546 = vector.broadcast %cst_279 : f32 to vector<16x1xf32>
    %547 = arith.divf %545, %546 : vector<16x1xf32>
    %548 = vector.broadcast %540 : vector<16x1xf32> to vector<16x32xf32>
    %549 = arith.subf %530, %548 : vector<16x32xf32>
    %cst_280 = arith.constant 9.99999996E-13 : f32
    %550 = vector.broadcast %cst_280 : f32 to vector<16x1xf32>
    %551 = arith.addf %547, %550 : vector<16x1xf32>
    %552 = math.rsqrt %551 : vector<16x1xf32>
    %553 = vector.broadcast %552 : vector<16x1xf32> to vector<16x32xf32>
    %554 = arith.mulf %549, %553 : vector<16x32xf32>
    %555 = vector.broadcast %533 : vector<1x32xf32> to vector<16x32xf32>
    %556 = arith.mulf %554, %555 : vector<16x32xf32>
    %557 = vector.broadcast %536 : vector<1x32xf32> to vector<16x32xf32>
    %558 = arith.addf %556, %557 : vector<16x32xf32>
    %559 = arith.index_cast %arg0 : i32 to index
    %c1_281 = arith.constant 1 : index
    %c0_282 = arith.constant 0 : index
    %c0_283 = arith.constant 0 : index
    %560 = vector.load %arg6[%559, %c1_281, %c0_282, %c0_283] : memref<2x2x32x64xf32, #tpu.memory_space<vmem>>, vector<1x1x32x64xf32>
    %561 = vector.shape_cast %560 : vector<1x1x32x64xf32> to vector<32x64xf32>
    %cst_284 = arith.constant dense<0.000000e+00> : vector<16x64xf32>
    %562 = tpu.matmul %558, %561, %cst_284 {dimension_numbers = #tpu.dot_dimension_numbers<[1], [0], [0], [1], [0, 0, 1, 1], [], []>} : vector<16x32xf32>, vector<32x64xf32>, vector<16x64xf32> -> vector<16x64xf32>
    %563 = arith.index_cast %arg0 : i32 to index
    %c1_285 = arith.constant 1 : index
    %c0_286 = arith.constant 0 : index
    %c0_287 = arith.constant 0 : index
    %564 = vector.load %arg7[%563, %c1_285, %c0_286, %c0_287] : memref<2x2x1x64xf32, #tpu.memory_space<vmem>>, vector<1x1x1x64xf32>
    %565 = vector.shape_cast %564 : vector<1x1x1x64xf32> to vector<1x64xf32>
    %566 = vector.broadcast %565 : vector<1x64xf32> to vector<16x64xf32>
    %567 = arith.addf %562, %566 : vector<16x64xf32>
    %568 = arith.mulf %567, %567 : vector<16x64xf32>
    %569 = arith.mulf %567, %568 : vector<16x64xf32>
    %cst_288 = arith.constant 4.471500e-02 : f32
    %570 = vector.broadcast %cst_288 : f32 to vector<16x64xf32>
    %571 = arith.mulf %570, %569 : vector<16x64xf32>
    %572 = arith.addf %567, %571 : vector<16x64xf32>
    %cst_289 = arith.constant 0.797884583 : f32
    %573 = vector.broadcast %cst_289 : f32 to vector<16x64xf32>
    %574 = arith.mulf %573, %572 : vector<16x64xf32>
    %575 = math.tanh %574 : vector<16x64xf32>
    %cst_290 = arith.constant 1.000000e+00 : f32
    %576 = vector.broadcast %cst_290 : f32 to vector<16x64xf32>
    %577 = arith.addf %576, %575 : vector<16x64xf32>
    %cst_291 = arith.constant 5.000000e-01 : f32
    %578 = vector.broadcast %cst_291 : f32 to vector<16x64xf32>
    %579 = arith.mulf %578, %577 : vector<16x64xf32>
    %580 = arith.mulf %567, %579 : vector<16x64xf32>
    %581 = arith.index_cast %arg0 : i32 to index
    %c1_292 = arith.constant 1 : index
    %c0_293 = arith.constant 0 : index
    %c0_294 = arith.constant 0 : index
    %582 = vector.load %arg8[%581, %c1_292, %c0_293, %c0_294] : memref<2x2x64x32xf32, #tpu.memory_space<vmem>>, vector<1x1x64x32xf32>
    %583 = vector.shape_cast %582 : vector<1x1x64x32xf32> to vector<64x32xf32>
    %cst_295 = arith.constant dense<0.000000e+00> : vector<16x32xf32>
    %584 = tpu.matmul %580, %583, %cst_295 {dimension_numbers = #tpu.dot_dimension_numbers<[1], [0], [0], [1], [0, 0, 1, 1], [], []>} : vector<16x64xf32>, vector<64x32xf32>, vector<16x32xf32> -> vector<16x32xf32>
    %585 = arith.index_cast %arg0 : i32 to index
    %c11_296 = arith.constant 11 : index
    %c0_297 = arith.constant 0 : index
    %c0_298 = arith.constant 0 : index
    %586 = vector.load %arg9[%585, %c11_296, %c0_297, %c0_298] : memref<2x15x1x32xf32, #tpu.memory_space<vmem>>, vector<1x1x1x32xf32>
    %587 = vector.shape_cast %586 : vector<1x1x1x32xf32> to vector<1x32xf32>
    %588 = vector.broadcast %587 : vector<1x32xf32> to vector<16x32xf32>
    %589 = arith.addf %584, %588 : vector<16x32xf32>
    %590 = arith.addf %589, %558 : vector<16x32xf32>
    %591 = arith.index_cast %arg0 : i32 to index
    %c12_299 = arith.constant 12 : index
    %c0_300 = arith.constant 0 : index
    %c0_301 = arith.constant 0 : index
    %592 = vector.load %arg9[%591, %c12_299, %c0_300, %c0_301] : memref<2x15x1x32xf32, #tpu.memory_space<vmem>>, vector<1x1x1x32xf32>
    %593 = vector.shape_cast %592 : vector<1x1x1x32xf32> to vector<1x32xf32>
    %594 = arith.index_cast %arg0 : i32 to index
    %c13_302 = arith.constant 13 : index
    %c0_303 = arith.constant 0 : index
    %c0_304 = arith.constant 0 : index
    %595 = vector.load %arg9[%594, %c13_302, %c0_303, %c0_304] : memref<2x15x1x32xf32, #tpu.memory_space<vmem>>, vector<1x1x1x32xf32>
    %596 = vector.shape_cast %595 : vector<1x1x1x32xf32> to vector<1x32xf32>
    %cst_305 = arith.constant dense<0.000000e+00> : vector<16xf32>
    %597 = vector.multi_reduction <add>, %590, %cst_305 [1] : vector<16x32xf32> to vector<16xf32>
    %598 = vector.shape_cast %597 : vector<16xf32> to vector<16x1xf32>
    %cst_306 = arith.constant 3.200000e+01 : f32
    %599 = vector.broadcast %cst_306 : f32 to vector<16x1xf32>
    %600 = arith.divf %598, %599 : vector<16x1xf32>
    %601 = vector.broadcast %600 : vector<16x1xf32> to vector<16x32xf32>
    %602 = arith.subf %590, %601 : vector<16x32xf32>
    %603 = arith.mulf %602, %602 : vector<16x32xf32>
    %cst_307 = arith.constant dense<0.000000e+00> : vector<16xf32>
    %604 = vector.multi_reduction <add>, %603, %cst_307 [1] : vector<16x32xf32> to vector<16xf32>
    %605 = vector.shape_cast %604 : vector<16xf32> to vector<16x1xf32>
    %cst_308 = arith.constant 3.200000e+01 : f32
    %606 = vector.broadcast %cst_308 : f32 to vector<16x1xf32>
    %607 = arith.divf %605, %606 : vector<16x1xf32>
    %608 = vector.broadcast %600 : vector<16x1xf32> to vector<16x32xf32>
    %609 = arith.subf %590, %608 : vector<16x32xf32>
    %cst_309 = arith.constant 9.99999996E-13 : f32
    %610 = vector.broadcast %cst_309 : f32 to vector<16x1xf32>
    %611 = arith.addf %607, %610 : vector<16x1xf32>
    %612 = math.rsqrt %611 : vector<16x1xf32>
    %613 = vector.broadcast %612 : vector<16x1xf32> to vector<16x32xf32>
    %614 = arith.mulf %609, %613 : vector<16x32xf32>
    %615 = vector.broadcast %593 : vector<1x32xf32> to vector<16x32xf32>
    %616 = arith.mulf %614, %615 : vector<16x32xf32>
    %617 = vector.broadcast %596 : vector<1x32xf32> to vector<16x32xf32>
    %618 = arith.addf %616, %617 : vector<16x32xf32>
    %619 = vector.shape_cast %618 : vector<16x32xf32> to vector<2x8x32xf32>
    %620 = vector.extract_strided_slice %619 {offsets = [0, 0, 0], sizes = [2, 1, 32], strides = [1, 1, 1]} : vector<2x8x32xf32> to vector<2x1x32xf32>
    %621 = vector.shape_cast %620 : vector<2x1x32xf32> to vector<2x32xf32>
    %622 = arith.index_cast %arg0 : i32 to index
    %c0_310 = arith.constant 0 : index
    %c0_311 = arith.constant 0 : index
    %623 = vector.load %arg10[%622, %c0_310, %c0_311] : memref<2x32x32xf32, #tpu.memory_space<vmem>>, vector<1x32x32xf32>
    %624 = vector.shape_cast %623 : vector<1x32x32xf32> to vector<32x32xf32>
    %cst_312 = arith.constant dense<0.000000e+00> : vector<2x32xf32>
    %625 = tpu.matmul %621, %624, %cst_312 {dimension_numbers = #tpu.dot_dimension_numbers<[1], [0], [0], [1], [0, 0, 1, 1], [], []>} : vector<2x32xf32>, vector<32x32xf32>, vector<2x32xf32> -> vector<2x32xf32>
    %626 = arith.index_cast %arg0 : i32 to index
    %c14_313 = arith.constant 14 : index
    %c0_314 = arith.constant 0 : index
    %c0_315 = arith.constant 0 : index
    %627 = vector.load %arg9[%626, %c14_313, %c0_314, %c0_315] : memref<2x15x1x32xf32, #tpu.memory_space<vmem>>, vector<1x1x1x32xf32>
    %628 = vector.shape_cast %627 : vector<1x1x1x32xf32> to vector<1x32xf32>
    %629 = vector.broadcast %628 : vector<1x32xf32> to vector<2x32xf32>
    %630 = arith.addf %625, %629 : vector<2x32xf32>
    %631 = math.tanh %630 : vector<2x32xf32>
    %c0_i32 = arith.constant 0 : i32
    %632 = arith.cmpi eq, %arg0, %c0_i32 : i32
    %633 = arith.extui %632 : i1 to i32
    %c0_i32_316 = arith.constant 0 : i32
    %634 = arith.cmpi ne, %633, %c0_i32_316 : i32
    scf.if %634 {
      %c0_318 = arith.constant 0 : index
      %c0_319 = arith.constant 0 : index
      %638 = vector.load %arg16[%c0_318, %c0_319] : memref<2x32xf32, #tpu.memory_space<vmem>>, vector<2x32xf32>
      tpu.vector_store %arg16[%c0_318, %c0_319], %631 {strides = array<i32>} : memref<2x32xf32, #tpu.memory_space<vmem>>, vector<2x32xf32>,
    } else {
    }
    %c1_i32 = arith.constant 1 : i32
    %635 = arith.cmpi eq, %arg0, %c1_i32 : i32
    %636 = arith.extui %635 : i1 to i32
    %c0_i32_317 = arith.constant 0 : i32
    %637 = arith.cmpi ne, %636, %c0_i32_317 : i32
    scf.if %637 {
      %c0_318 = arith.constant 0 : index
      %c0_319 = arith.constant 0 : index
      %638 = vector.load %arg16[%c0_318, %c0_319] : memref<2x32xf32, #tpu.memory_space<vmem>>, vector<2x32xf32>
      %c0_320 = arith.constant 0 : index
      %c0_321 = arith.constant 0 : index
      %639 = vector.load %arg11[%c0_320, %c0_321] : memref<64x32xf32, #tpu.memory_space<vmem>>, vector<32x32xf32>
      %cst_322 = arith.constant dense<0.000000e+00> : vector<2x32xf32>
      %640 = tpu.matmul %631, %639, %cst_322 {dimension_numbers = #tpu.dot_dimension_numbers<[1], [0], [0], [1], [0, 0, 1, 1], [], []>} : vector<2x32xf32>, vector<32x32xf32>, vector<2x32xf32> -> vector<2x32xf32>
      %c32 = arith.constant 32 : index
      %c0_323 = arith.constant 0 : index
      %641 = vector.load %arg11[%c32, %c0_323] : memref<64x32xf32, #tpu.memory_space<vmem>>, vector<32x32xf32>
      %cst_324 = arith.constant dense<0.000000e+00> : vector<2x32xf32>
      %642 = tpu.matmul %638, %641, %cst_324 {dimension_numbers = #tpu.dot_dimension_numbers<[1], [0], [0], [1], [0, 0, 1, 1], [], []>} : vector<2x32xf32>, vector<32x32xf32>, vector<2x32xf32> -> vector<2x32xf32>
      %643 = arith.addf %640, %642 : vector<2x32xf32>
      %c0_325 = arith.constant 0 : index
      %c0_326 = arith.constant 0 : index
      %644 = vector.load %arg12[%c0_325, %c0_326] : memref<1x32xf32, #tpu.memory_space<vmem>>, vector<1x32xf32>
      %645 = vector.broadcast %644 : vector<1x32xf32> to vector<2x32xf32>
      %646 = arith.addf %643, %645 : vector<2x32xf32>
      %c0_327 = arith.constant 0 : index
      %c0_328 = arith.constant 0 : index
      %647 = vector.load %arg13[%c0_327, %c0_328] : memref<32x3xf32, #tpu.memory_space<vmem>>, vector<32x3xf32>
      %cst_329 = arith.constant dense<0.000000e+00> : vector<2x3xf32>
      %648 = tpu.matmul %646, %647, %cst_329 {dimension_numbers = #tpu.dot_dimension_numbers<[1], [0], [0], [1], [0, 0, 1, 1], [], []>} : vector<2x32xf32>, vector<32x3xf32>, vector<2x3xf32> -> vector<2x3xf32>
      %c0_330 = arith.constant 0 : index
      %c0_331 = arith.constant 0 : index
      %649 = vector.load %arg14[%c0_330, %c0_331] : memref<1x3xf32, #tpu.memory_space<vmem>>, vector<1x3xf32>
      %650 = vector.broadcast %649 : vector<1x3xf32> to vector<2x3xf32>
      %651 = arith.addf %648, %650 : vector<2x3xf32>
      %c0_332 = arith.constant 0 : index
      %c0_333 = arith.constant 0 : index
      %652 = vector.load %arg15[%c0_332, %c0_333] : memref<2x3xf32, #tpu.memory_space<vmem>>, vector<2x3xf32>
      tpu.vector_store %arg15[%c0_332, %c0_333], %651 {strides = array<i32>} : memref<2x3xf32, #tpu.memory_space<vmem>>, vector<2x3xf32>,
    } else {
    }
    return
  }
  func.func @transform_0(%arg0: i32) -> (i32, i32, i32) {
    %c0_i32 = arith.constant 0 : i32
    %c0_i32_0 = arith.constant 0 : i32
    %c0_i32_1 = arith.constant 0 : i32
    return %arg0, %c0_i32, %c0_i32_0 : i32, i32, i32
  }
  func.func @transform_1(%arg0: i32) -> (i32, i32, i32) {
    %c0_i32 = arith.constant 0 : i32
    %c0_i32_0 = arith.constant 0 : i32
    %c0_i32_1 = arith.constant 0 : i32
    return %arg0, %c0_i32, %c0_i32_0 : i32, i32, i32
  }
  func.func @transform_2(%arg0: i32) -> (i32, i32, i32, i32) {
    %c0_i32 = arith.constant 0 : i32
    %c0_i32_0 = arith.constant 0 : i32
    %c0_i32_1 = arith.constant 0 : i32
    %c0_i32_2 = arith.constant 0 : i32
    %c0_i32_3 = arith.constant 0 : i32
    return %c0_i32, %c0_i32_0, %c0_i32_1, %c0_i32_2 : i32, i32, i32, i32
  }
  func.func @transform_3(%arg0: i32) -> (i32, i32, i32, i32) {
    %c0_i32 = arith.constant 0 : i32
    %c0_i32_0 = arith.constant 0 : i32
    %c0_i32_1 = arith.constant 0 : i32
    %c0_i32_2 = arith.constant 0 : i32
    %c0_i32_3 = arith.constant 0 : i32
    return %c0_i32, %c0_i32_0, %c0_i32_1, %c0_i32_2 : i32, i32, i32, i32
  }
  func.func @transform_4(%arg0: i32) -> (i32, i32, i32, i32) {
    %c0_i32 = arith.constant 0 : i32
    %c0_i32_0 = arith.constant 0 : i32
    %c0_i32_1 = arith.constant 0 : i32
    %c0_i32_2 = arith.constant 0 : i32
    %c0_i32_3 = arith.constant 0 : i32
    return %c0_i32, %c0_i32_0, %c0_i32_1, %c0_i32_2 : i32, i32, i32, i32
  }
  func.func @transform_5(%arg0: i32) -> (i32, i32, i32, i32) {
    %c0_i32 = arith.constant 0 : i32
    %c0_i32_0 = arith.constant 0 : i32
    %c0_i32_1 = arith.constant 0 : i32
    %c0_i32_2 = arith.constant 0 : i32
    %c0_i32_3 = arith.constant 0 : i32
    return %c0_i32, %c0_i32_0, %c0_i32_1, %c0_i32_2 : i32, i32, i32, i32
  }
  func.func @transform_6(%arg0: i32) -> (i32, i32, i32, i32) {
    %c0_i32 = arith.constant 0 : i32
    %c0_i32_0 = arith.constant 0 : i32
    %c0_i32_1 = arith.constant 0 : i32
    %c0_i32_2 = arith.constant 0 : i32
    %c0_i32_3 = arith.constant 0 : i32
    return %c0_i32, %c0_i32_0, %c0_i32_1, %c0_i32_2 : i32, i32, i32, i32
  }
  func.func @transform_7(%arg0: i32) -> (i32, i32, i32, i32) {
    %c0_i32 = arith.constant 0 : i32
    %c0_i32_0 = arith.constant 0 : i32
    %c0_i32_1 = arith.constant 0 : i32
    %c0_i32_2 = arith.constant 0 : i32
    %c0_i32_3 = arith.constant 0 : i32
    return %c0_i32, %c0_i32_0, %c0_i32_1, %c0_i32_2 : i32, i32, i32, i32
  }
  func.func @transform_8(%arg0: i32) -> (i32, i32, i32, i32) {
    %c0_i32 = arith.constant 0 : i32
    %c0_i32_0 = arith.constant 0 : i32
    %c0_i32_1 = arith.constant 0 : i32
    %c0_i32_2 = arith.constant 0 : i32
    %c0_i32_3 = arith.constant 0 : i32
    return %c0_i32, %c0_i32_0, %c0_i32_1, %c0_i32_2 : i32, i32, i32, i32
  }
  func.func @transform_9(%arg0: i32) -> (i32, i32, i32) {
    %c0_i32 = arith.constant 0 : i32
    %c0_i32_0 = arith.constant 0 : i32
    %c0_i32_1 = arith.constant 0 : i32
    %c0_i32_2 = arith.constant 0 : i32
    return %c0_i32, %c0_i32_0, %c0_i32_1 : i32, i32, i32
  }
  func.func @transform_10(%arg0: i32) -> (i32, i32) {
    %c0_i32 = arith.constant 0 : i32
    %c0_i32_0 = arith.constant 0 : i32
    %c0_i32_1 = arith.constant 0 : i32
    return %c0_i32, %c0_i32_0 : i32, i32
  }
  func.func @transform_11(%arg0: i32) -> (i32, i32) {
    %c0_i32 = arith.constant 0 : i32
    %c0_i32_0 = arith.constant 0 : i32
    %c0_i32_1 = arith.constant 0 : i32
    return %c0_i32, %c0_i32_0 : i32, i32
  }
  func.func @transform_12(%arg0: i32) -> (i32, i32) {
    %c0_i32 = arith.constant 0 : i32
    %c0_i32_0 = arith.constant 0 : i32
    %c0_i32_1 = arith.constant 0 : i32
    return %c0_i32, %c0_i32_0 : i32, i32
  }
  func.func @transform_13(%arg0: i32) -> (i32, i32) {
    %c0_i32 = arith.constant 0 : i32
    %c0_i32_0 = arith.constant 0 : i32
    %c0_i32_1 = arith.constant 0 : i32
    return %c0_i32, %c0_i32_0 : i32, i32
  }
  func.func @transform_14(%arg0: i32) -> (i32, i32) {
    %c0_i32 = arith.constant 0 : i32
    %c0_i32_0 = arith.constant 0 : i32
    %c0_i32_1 = arith.constant 0 : i32
    return %c0_i32, %c0_i32_0 : i32, i32
  }
}

</mosaic_0001>

<llo_original>
// kernel: _lambda_.1
$region0: #{_lambda_.1}
  #allocation0 [shape = 'u32[]', space=smem, size = 0x4, offset = 0x4, fixed_abs, tag = 'smem constant byte address 0x4 - core index']
  #allocation1 [shape = 'u32[144,128]{1,0:T(1,128)}', space=vmem, size = 0x12000, scoped, tag = 'internal scratch']
  #allocation2 [shape = 'f32[2,32]{1,0:T(2,128)}', space=vmem, size = 0x400, scoped, tag = 'scratch operand']
  %s0 = inlined_call_operand.vmem [shape: f32[2,16,32], index: 0, kind: input, shape index: {}]
  %s1 = inlined_call_operand.vmem [shape: f32[2,2,8], index: 1, kind: input, shape index: {}]
  %s2 = inlined_call_operand.vmem [shape: f32[2,24,32,8], index: 2, kind: input, shape index: {}]
  %s3 = inlined_call_operand.vmem [shape: f32[2,24,1,8], index: 3, kind: input, shape index: {}]
  %s4 = inlined_call_operand.vmem [shape: f32[2,8,8,32], index: 4, kind: input, shape index: {}]
  %s5 = inlined_call_operand.vmem [shape: f32[2,2,32,64], index: 5, kind: input, shape index: {}]
  %s6 = inlined_call_operand.vmem [shape: f32[2,2,1,64], index: 6, kind: input, shape index: {}]
  %s7 = inlined_call_operand.vmem [shape: f32[2,2,64,32], index: 7, kind: input, shape index: {}]
  %s8 = inlined_call_operand.vmem [shape: f32[2,15,1,32], index: 8, kind: input, shape index: {}]
  %s9 = inlined_call_operand.vmem [shape: f32[2,32,32], index: 9, kind: input, shape index: {}]
  %s10 = inlined_call_operand.vmem [shape: f32[64,32], index: 10, kind: input, shape index: {}]
  %s11 = inlined_call_operand.vmem [shape: f32[1,32], index: 11, kind: input, shape index: {}]
  %s12 = inlined_call_operand.vmem [shape: f32[32,3], index: 12, kind: input, shape index: {}]
  %s13 = inlined_call_operand.vmem [shape: f32[1,3], index: 13, kind: input, shape index: {}]
  %s14 = inlined_call_operand.hbm [shape: f32[2,3], index: 14, kind: output, shape index: {}]
  %s15 = sld [smem:[#allocation0]]
  $region97: #{_lambda_.1} parent=0
    _
  %s17 = ssub.s32 1, %s15
  %s18 = scalar_select 0, %s17, %s15
  $region1: #{_lambda_.1} parent=0
    #allocation3 [shape = 'u8[1024]{0}', space=vmem, size = 0x400, scoped, tag = 'output window, operand 0, single buffered']
    #allocation4 [shape = 's32[2]{0}', space=sflag, size = 0x8, scoped, tag = 'scoped memory for _lambda_.1']
    %19 = vsyncpa [#allocation4], 0
    loop: start=0, step=1, limit=4
    $region2: #{_lambda_.1} parent=1 // loop_pre_header
      _
    $region3: #{_lambda_.1} parent=1 // loop_header
      %s21 = sphi 0, %s25
      %p22 = scmp.ge.s32.totalorder %s21, 4
      %s31 = sphi 0, %s33
      %s34 = sphi 0, %s31
      %s35 = sphi 0, %s34
      %s51 = sphi 0, %s35
      %s57 = sphi 0, %s59
      %s60 = sphi 0, %s57
      %s61 = sphi 0, %s60
      %s77 = sphi 0, %s61
      %s81 = sphi 0, %s81
      %s83 = sphi 0, %s81
      %s84 = sphi 0, %s83
      %s98 = sphi 0, %s84
      %s102 = sphi 0, %s102
      %s104 = sphi 0, %s102
      %s105 = sphi 0, %s104
      %s119 = sphi 0, %s105
      %s123 = sphi 0, %s123
      %s125 = sphi 0, %s123
      %s126 = sphi 0, %s125
      %s140 = sphi 0, %s126
      %s144 = sphi 0, %s144
      %s146 = sphi 0, %s144
      %s147 = sphi 0, %s146
      %s161 = sphi 0, %s147
      %s165 = sphi 0, %s165
      %s167 = sphi 0, %s165
      %s168 = sphi 0, %s167
      %s182 = sphi 0, %s168
      %s186 = sphi 0, %s186
      %s188 = sphi 0, %s186
      %s189 = sphi 0, %s188
      %s203 = sphi 0, %s189
      %s207 = sphi 0, %s207
      %s209 = sphi 0, %s207
      %s210 = sphi 0, %s209
      %s224 = sphi 0, %s210
      %s228 = sphi 0, %s228
      %s230 = sphi 0, %s228
      %s231 = sphi 0, %s230
      %s245 = sphi 0, %s231
      %s249 = sphi 0, %s249
      %s251 = sphi 0, %s249
      %s252 = sphi 0, %s251
      %s266 = sphi 0, %s252
      %s270 = sphi 0, %s270
      %s272 = sphi 0, %s270
      %s273 = sphi 0, %s272
      %s287 = sphi 0, %s273
      %s291 = sphi 0, %s291
      %s293 = sphi 0, %s291
      %s294 = sphi 0, %s293
      %s308 = sphi 0, %s294
      %s312 = sphi 0, %s312
      %s314 = sphi 0, %s312
      %s315 = sphi 0, %s314
      %s329 = sphi 0, %s315
      %s333 = sphi 0, %s333
      %s335 = sphi 0, %s333
      %s336 = sphi 0, %s335
      %s350 = sphi 0, %s336
    $region4: #{_lambda_.1} parent=1 // loop_header_branch
      %24 = sbr.rel (%p22) target = $region8
    $region5: #{_lambda_.1} parent=1 // loop_body
      %s26 = ssub.s32 %s21, 1
      %s27 = ssub.s32 %s21, 2
      %s28 = sadd.s32 %s21, 1
      %s29 = ssub.s32 %s21, %s28
      %p30 = scmp.eq.s32.totalorder %s29, 0
      %s32 = sadd.s32 %s31, 1
      %s33 = scalar_select %p30, %s31, %s32
      %p36 = pneg %p30
      %p37 = scmp.eq.s32.totalorder %s21, 1
      %p38 = por %p36, %p37
      %p39 = scmp.ne.s32.totalorder %s31, %s34
      %p40 = scmp.eq.s32.totalorder %s21, 0
      %p41 = por %p39, %p40
      %p42 = scmp.ne.s32.totalorder %s31, %s34
      %p43 = scmp.eq.s32.totalorder %s26, 1
      %p44 = por %p42, %p43
      %p45 = scmp.ne.s32.totalorder %s34, %s35
      %p46 = scmp.eq.s32.totalorder %s26, 0
      %p47 = por %p45, %p46
      %p48 = scmp.ne.s32.totalorder %s34, %s35
      %p49 = scmp.eq.s32.totalorder %s27, 1
      %p50 = por %p48, %p49
      %p52 = scmp.ne.s32.totalorder %s35, %s51
      %p53 = scmp.eq.s32.totalorder %s27, 0
      %p54 = por %p52, %p53
      %s55 = ssub.s32 %s21, %s28
      %p56 = scmp.eq.s32.totalorder %s55, 0
      %s58 = sadd.s32 %s57, 1
      %s59 = scalar_select %p56, %s57, %s58
      %p62 = pneg %p56
      %p63 = scmp.eq.s32.totalorder %s21, 1
      %p64 = por %p62, %p63
      %p65 = scmp.ne.s32.totalorder %s57, %s60
      %p66 = scmp.eq.s32.totalorder %s21, 0
      %p67 = por %p65, %p66
      %p68 = scmp.ne.s32.totalorder %s57, %s60
      %p69 = scmp.eq.s32.totalorder %s26, 1
      %p70 = por %p68, %p69
      %p71 = scmp.ne.s32.totalorder %s60, %s61
      %p72 = scmp.eq.s32.totalorder %s26, 0
      %p73 = por %p71, %p72
      %p74 = scmp.ne.s32.totalorder %s60, %s61
      %p75 = scmp.eq.s32.totalorder %s27, 1
      %p76 = por %p74, %p75
      %p78 = scmp.ne.s32.totalorder %s61, %s77
      %p79 = scmp.eq.s32.totalorder %s27, 0
      %p80 = por %p78, %p79
      %s82 = sadd.s32 %s81, 1
      %p85 = scmp.eq.s32.totalorder %s21, 1
      %p86 = scmp.ne.s32.totalorder %s81, %s83
      %p87 = scmp.eq.s32.totalorder %s21, 0
      %p88 = por %p86, %p87
      %p89 = scmp.ne.s32.totalorder %s81, %s83
      %p90 = scmp.eq.s32.totalorder %s26, 1
      %p91 = por %p89, %p90
      %p92 = scmp.ne.s32.totalorder %s83, %s84
      %p93 = scmp.eq.s32.totalorder %s26, 0
      %p94 = por %p92, %p93
      %p95 = scmp.ne.s32.totalorder %s83, %s84
      %p96 = scmp.eq.s32.totalorder %s27, 1
      %p97 = por %p95, %p96
      %p99 = scmp.ne.s32.totalorder %s84, %s98
      %p100 = scmp.eq.s32.totalorder %s27, 0
      %p101 = por %p99, %p100
      %s103 = sadd.s32 %s102, 1
      %p106 = scmp.eq.s32.totalorder %s21, 1
      %p107 = scmp.ne.s32.totalorder %s102, %s104
      %p108 = scmp.eq.s32.totalorder %s21, 0
      %p109 = por %p107, %p108
      %p110 = scmp.ne.s32.totalorder %s102, %s104
      %p111 = scmp.eq.s32.totalorder %s26, 1
      %p112 = por %p110, %p111
      %p113 = scmp.ne.s32.totalorder %s104, %s105
      %p114 = scmp.eq.s32.totalorder %s26, 0
      %p115 = por %p113, %p114
      %p116 = scmp.ne.s32.totalorder %s104, %s105
      %p117 = scmp.eq.s32.totalorder %s27, 1
      %p118 = por %p116, %p117
      %p120 = scmp.ne.s32.totalorder %s105, %s119
      %p121 = scmp.eq.s32.totalorder %s27, 0
      %p122 = por %p120, %p121
      %s124 = sadd.s32 %s123, 1
      %p127 = scmp.eq.s32.totalorder %s21, 1
      %p128 = scmp.ne.s32.totalorder %s123, %s125
      %p129 = scmp.eq.s32.totalorder %s21, 0
      %p130 = por %p128, %p129
      %p131 = scmp.ne.s32.totalorder %s123, %s125
      %p132 = scmp.eq.s32.totalorder %s26, 1
      %p133 = por %p131, %p132
      %p134 = scmp.ne.s32.totalorder %s125, %s126
      %p135 = scmp.eq.s32.totalorder %s26, 0
      %p136 = por %p134, %p135
      %p137 = scmp.ne.s32.totalorder %s125, %s126
      %p138 = scmp.eq.s32.totalorder %s27, 1
      %p139 = por %p137, %p138
      %p141 = scmp.ne.s32.totalorder %s126, %s140
      %p142 = scmp.eq.s32.totalorder %s27, 0
      %p143 = por %p141, %p142
      %s145 = sadd.s32 %s144, 1
      %p148 = scmp.eq.s32.totalorder %s21, 1
      %p149 = scmp.ne.s32.totalorder %s144, %s146
      %p150 = scmp.eq.s32.totalorder %s21, 0
      %p151 = por %p149, %p150
      %p152 = scmp.ne.s32.totalorder %s144, %s146
      %p153 = scmp.eq.s32.totalorder %s26, 1
      %p154 = por %p152, %p153
      %p155 = scmp.ne.s32.totalorder %s146, %s147
      %p156 = scmp.eq.s32.totalorder %s26, 0
      %p157 = por %p155, %p156
      %p158 = scmp.ne.s32.totalorder %s146, %s147
      %p159 = scmp.eq.s32.totalorder %s27, 1
      %p160 = por %p158, %p159
      %p162 = scmp.ne.s32.totalorder %s147, %s161
      %p163 = scmp.eq.s32.totalorder %s27, 0
      %p164 = por %p162, %p163
      %s166 = sadd.s32 %s165, 1
      %p169 = scmp.eq.s32.totalorder %s21, 1
      %p170 = scmp.ne.s32.totalorder %s165, %s167
      %p171 = scmp.eq.s32.totalorder %s21, 0
      %p172 = por %p170, %p171
      %p173 = scmp.ne.s32.totalorder %s165, %s167
      %p174 = scmp.eq.s32.totalorder %s26, 1
      %p175 = por %p173, %p174
      %p176 = scmp.ne.s32.totalorder %s167, %s168
      %p177 = scmp.eq.s32.totalorder %s26, 0
      %p178 = por %p176, %p177
      %p179 = scmp.ne.s32.totalorder %s167, %s168
      %p180 = scmp.eq.s32.totalorder %s27, 1
      %p181 = por %p179, %p180
      %p183 = scmp.ne.s32.totalorder %s168, %s182
      %p184 = scmp.eq.s32.totalorder %s27, 0
      %p185 = por %p183, %p184
      %s187 = sadd.s32 %s186, 1
      %p190 = scmp.eq.s32.totalorder %s21, 1
      %p191 = scmp.ne.s32.totalorder %s186, %s188
      %p192 = scmp.eq.s32.totalorder %s21, 0
      %p193 = por %p191, %p192
      %p194 = scmp.ne.s32.totalorder %s186, %s188
      %p195 = scmp.eq.s32.totalorder %s26, 1
      %p196 = por %p194, %p195
      %p197 = scmp.ne.s32.totalorder %s188, %s189
      %p198 = scmp.eq.s32.totalorder %s26, 0
      %p199 = por %p197, %p198
      %p200 = scmp.ne.s32.totalorder %s188, %s189
      %p201 = scmp.eq.s32.totalorder %s27, 1
      %p202 = por %p200, %p201
      %p204 = scmp.ne.s32.totalorder %s189, %s203
      %p205 = scmp.eq.s32.totalorder %s27, 0
      %p206 = por %p204, %p205
      %s208 = sadd.s32 %s207, 1
      %p211 = scmp.eq.s32.totalorder %s21, 1
      %p212 = scmp.ne.s32.totalorder %s207, %s209
      %p213 = scmp.eq.s32.totalorder %s21, 0
      %p214 = por %p212, %p213
      %p215 = scmp.ne.s32.totalorder %s207, %s209
      %p216 = scmp.eq.s32.totalorder %s26, 1
      %p217 = por %p215, %p216
      %p218 = scmp.ne.s32.totalorder %s209, %s210
      %p219 = scmp.eq.s32.totalorder %s26, 0
      %p220 = por %p218, %p219
      %p221 = scmp.ne.s32.totalorder %s209, %s210
      %p222 = scmp.eq.s32.totalorder %s27, 1
      %p223 = por %p221, %p222
      %p225 = scmp.ne.s32.totalorder %s210, %s224
      %p226 = scmp.eq.s32.totalorder %s27, 0
      %p227 = por %p225, %p226
      %s229 = sadd.s32 %s228, 1
      %p232 = scmp.eq.s32.totalorder %s21, 1
      %p233 = scmp.ne.s32.totalorder %s228, %s230
      %p234 = scmp.eq.s32.totalorder %s21, 0
      %p235 = por %p233, %p234
      %p236 = scmp.ne.s32.totalorder %s228, %s230
      %p237 = scmp.eq.s32.totalorder %s26, 1
      %p238 = por %p236, %p237
      %p239 = scmp.ne.s32.totalorder %s230, %s231
      %p240 = scmp.eq.s32.totalorder %s26, 0
      %p241 = por %p239, %p240
      %p242 = scmp.ne.s32.totalorder %s230, %s231
      %p243 = scmp.eq.s32.totalorder %s27, 1
      %p244 = por %p242, %p243
      %p246 = scmp.ne.s32.totalorder %s231, %s245
      %p247 = scmp.eq.s32.totalorder %s27, 0
      %p248 = por %p246, %p247
      %s250 = sadd.s32 %s249, 1
      %p253 = scmp.eq.s32.totalorder %s21, 1
      %p254 = scmp.ne.s32.totalorder %s249, %s251
      %p255 = scmp.eq.s32.totalorder %s21, 0
      %p256 = por %p254, %p255
      %p257 = scmp.ne.s32.totalorder %s249, %s251
      %p258 = scmp.eq.s32.totalorder %s26, 1
      %p259 = por %p257, %p258
      %p260 = scmp.ne.s32.totalorder %s251, %s252
      %p261 = scmp.eq.s32.totalorder %s26, 0
      %p262 = por %p260, %p261
      %p263 = scmp.ne.s32.totalorder %s251, %s252
      %p264 = scmp.eq.s32.totalorder %s27, 1
      %p265 = por %p263, %p264
      %p267 = scmp.ne.s32.totalorder %s252, %s266
      %p268 = scmp.eq.s32.totalorder %s27, 0
      %p269 = por %p267, %p268
      %s271 = sadd.s32 %s270, 1
      %p274 = scmp.eq.s32.totalorder %s21, 1
      %p275 = scmp.ne.s32.totalorder %s270, %s272
      %p276 = scmp.eq.s32.totalorder %s21, 0
      %p277 = por %p275, %p276
      %p278 = scmp.ne.s32.totalorder %s270, %s272
      %p279 = scmp.eq.s32.totalorder %s26, 1
      %p280 = por %p278, %p279
      %p281 = scmp.ne.s32.totalorder %s272, %s273
      %p282 = scmp.eq.s32.totalorder %s26, 0
      %p283 = por %p281, %p282
      %p284 = scmp.ne.s32.totalorder %s272, %s273
      %p285 = scmp.eq.s32.totalorder %s27, 1
      %p286 = por %p284, %p285
      %p288 = scmp.ne.s32.totalorder %s273, %s287
      %p289 = scmp.eq.s32.totalorder %s27, 0
      %p290 = por %p288, %p289
      %s292 = sadd.s32 %s291, 1
      %p295 = scmp.eq.s32.totalorder %s21, 1
      %p296 = scmp.ne.s32.totalorder %s291, %s293
      %p297 = scmp.eq.s32.totalorder %s21, 0
      %p298 = por %p296, %p297
      %p299 = scmp.ne.s32.totalorder %s291, %s293
      %p300 = scmp.eq.s32.totalorder %s26, 1
      %p301 = por %p299, %p300
      %p302 = scmp.ne.s32.totalorder %s293, %s294
      %p303 = scmp.eq.s32.totalorder %s26, 0
      %p304 = por %p302, %p303
      %p305 = scmp.ne.s32.totalorder %s293, %s294
      %p306 = scmp.eq.s32.totalorder %s27, 1
      %p307 = por %p305, %p306
      %p309 = scmp.ne.s32.totalorder %s294, %s308
      %p310 = scmp.eq.s32.totalorder %s27, 0
      %p311 = por %p309, %p310
      %s313 = sadd.s32 %s312, 1
      %p316 = scmp.eq.s32.totalorder %s21, 1
      %p317 = scmp.ne.s32.totalorder %s312, %s314
      %p318 = scmp.eq.s32.totalorder %s21, 0
      %p319 = por %p317, %p318
      %p320 = scmp.ne.s32.totalorder %s312, %s314
      %p321 = scmp.eq.s32.totalorder %s26, 1
      %p322 = por %p320, %p321
      %p323 = scmp.ne.s32.totalorder %s314, %s315
      %p324 = scmp.eq.s32.totalorder %s26, 0
      %p325 = por %p323, %p324
      %p326 = scmp.ne.s32.totalorder %s314, %s315
      %p327 = scmp.eq.s32.totalorder %s27, 1
      %p328 = por %p326, %p327
      %p330 = scmp.ne.s32.totalorder %s315, %s329
      %p331 = scmp.eq.s32.totalorder %s27, 0
      %p332 = por %p330, %p331
      %s334 = sadd.s32 %s333, 1
      %p337 = scmp.eq.s32.totalorder %s21, 1
      %p338 = scmp.ne.s32.totalorder %s333, %s335
      %p339 = scmp.eq.s32.totalorder %s21, 0
      %p340 = por %p338, %p339
      %p341 = scmp.ne.s32.totalorder %s333, %s335
      %p342 = scmp.eq.s32.totalorder %s26, 1
      %p343 = por %p341, %p342
      %p344 = scmp.ne.s32.totalorder %s335, %s336
      %p345 = scmp.eq.s32.totalorder %s26, 0
      %p346 = por %p344, %p345
      %p347 = scmp.ne.s32.totalorder %s335, %s336
      %p348 = scmp.eq.s32.totalorder %s27, 1
      %p349 = por %p347, %p348
      %p351 = scmp.ne.s32.totalorder %s336, %s350
      %p352 = scmp.eq.s32.totalorder %s27, 0
      %p353 = por %p351, %p352
      %p354 = scmp.le.s32.totalorder 1, %s21
      %p355 = scmp.lt.s32.totalorder %s21, 3
      %p356 = pnand %p354, %p355
      %p357 = pneg %p356
      // Predicated region
      $region9: #{_lambda_.1} parent=5 // pred_check
        _
      $region10: #{_lambda_.1} parent=5 // pred_check_branch
        %359 = sbr.rel (%p356) target = $region12
      $region11: #{_lambda_.1} parent=5 // pred_region
        %s360 = ssub.s32 %s21, 1
        // Predicated region
        $region13: #{_lambda_.1} parent=11 // pred_check
          %p361 = pneg %p94
        $region14: #{_lambda_.1} parent=11 // pred_check_branch
          %363 = sbr.rel (%p361) target = $region16
        $region15: #{_lambda_.1} parent=11 // pred_region
          _
        $region16: #{_lambda_.1} parent=11 // pred_fallthru
          _
        // Predicated region
        $region17: #{_lambda_.1} parent=11 // pred_check
          %p364 = pneg %p115
        $region18: #{_lambda_.1} parent=11 // pred_check_branch
          %366 = sbr.rel (%p364) target = $region20
        $region19: #{_lambda_.1} parent=11 // pred_region
          _
        $region20: #{_lambda_.1} parent=11 // pred_fallthru
          _
        // Predicated region
        $region21: #{_lambda_.1} parent=11 // pred_check
          %p367 = pneg %p136
        $region22: #{_lambda_.1} parent=11 // pred_check_branch
          %369 = sbr.rel (%p367) target = $region24
        $region23: #{_lambda_.1} parent=11 // pred_region
          _
        $region24: #{_lambda_.1} parent=11 // pred_fallthru
          _
        // Predicated region
        $region25: #{_lambda_.1} parent=11 // pred_check
          %p370 = pneg %p157
        $region26: #{_lambda_.1} parent=11 // pred_check_branch
          %372 = sbr.rel (%p370) target = $region28
        $region27: #{_lambda_.1} parent=11 // pred_region
          _
        $region28: #{_lambda_.1} parent=11 // pred_fallthru
          _
        // Predicated region
        $region29: #{_lambda_.1} parent=11 // pred_check
          %p373 = pneg %p178
        $region30: #{_lambda_.1} parent=11 // pred_check_branch
          %375 = sbr.rel (%p373) target = $region32
        $region31: #{_lambda_.1} parent=11 // pred_region
          _
        $region32: #{_lambda_.1} parent=11 // pred_fallthru
          _
        // Predicated region
        $region33: #{_lambda_.1} parent=11 // pred_check
          %p376 = pneg %p199
        $region34: #{_lambda_.1} parent=11 // pred_check_branch
          %378 = sbr.rel (%p376) target = $region36
        $region35: #{_lambda_.1} parent=11 // pred_region
          _
        $region36: #{_lambda_.1} parent=11 // pred_fallthru
          _
        // Predicated region
        $region37: #{_lambda_.1} parent=11 // pred_check
          %p379 = pneg %p220
        $region38: #{_lambda_.1} parent=11 // pred_check_branch
          %381 = sbr.rel (%p379) target = $region40
        $region39: #{_lambda_.1} parent=11 // pred_region
          _
        $region40: #{_lambda_.1} parent=11 // pred_fallthru
          _
        // Predicated region
        $region41: #{_lambda_.1} parent=11 // pred_check
          %p382 = pneg %p241
        $region42: #{_lambda_.1} parent=11 // pred_check_branch
          %384 = sbr.rel (%p382) target = $region44
        $region43: #{_lambda_.1} parent=11 // pred_region
          _
        $region44: #{_lambda_.1} parent=11 // pred_fallthru
          _
        // Predicated region
        $region45: #{_lambda_.1} parent=11 // pred_check
          %p385 = pneg %p262
        $region46: #{_lambda_.1} parent=11 // pred_check_branch
          %387 = sbr.rel (%p385) target = $region48
        $region47: #{_lambda_.1} parent=11 // pred_region
          _
        $region48: #{_lambda_.1} parent=11 // pred_fallthru
          _
        // Predicated region
        $region49: #{_lambda_.1} parent=11 // pred_check
          %p388 = pneg %p283
        $region50: #{_lambda_.1} parent=11 // pred_check_branch
          %390 = sbr.rel (%p388) target = $region52
        $region51: #{_lambda_.1} parent=11 // pred_region
          _
        $region52: #{_lambda_.1} parent=11 // pred_fallthru
          _
        // Predicated region
        $region53: #{_lambda_.1} parent=11 // pred_check
          %p391 = pneg %p304
        $region54: #{_lambda_.1} parent=11 // pred_check_branch
          %393 = sbr.rel (%p391) target = $region56
        $region55: #{_lambda_.1} parent=11 // pred_region
          _
        $region56: #{_lambda_.1} parent=11 // pred_fallthru
          _
        // Predicated region
        $region57: #{_lambda_.1} parent=11 // pred_check
          %p394 = pneg %p325
        $region58: #{_lambda_.1} parent=11 // pred_check_branch
          %396 = sbr.rel (%p394) target = $region60
        $region59: #{_lambda_.1} parent=11 // pred_region
          _
        $region60: #{_lambda_.1} parent=11 // pred_fallthru
          _
      $region12: #{_lambda_.1} parent=5 // pred_fallthru
        _
      %p397 = scmp.lt.s32.totalorder %s21, 2
      // Predicated region
      $region61: #{_lambda_.1} parent=5 // pred_check
        %p398 = pneg %p397
      $region62: #{_lambda_.1} parent=5 // pred_check_branch
        %400 = sbr.rel (%p398) target = $region64
      $region63: #{_lambda_.1} parent=5 // pred_region
        // Predicated region
        $region65: #{_lambda_.1} parent=63 // pred_check
          %p401 = pneg %p41
        $region66: #{_lambda_.1} parent=63 // pred_check_branch
          %403 = sbr.rel (%p401) target = $region68
        $region67: #{_lambda_.1} parent=63 // pred_region
          %p404 = scmp.lt.s32.totalorder %s21, 1
          %s405 = scalar_select %p404, %s21, 1
          %s406 = smul.addr %s405, 2
          %s407 = smul.addr %s406, 8
          %s408 = scalar_lea.vmem %s0, %s407
        $region68: #{_lambda_.1} parent=63 // pred_fallthru
          _
        // Predicated region
        $region69: #{_lambda_.1} parent=63 // pred_check
          %p409 = pneg %p67
        $region70: #{_lambda_.1} parent=63 // pred_check_branch
          %411 = sbr.rel (%p409) target = $region72
        $region71: #{_lambda_.1} parent=63 // pred_region
          %p412 = scmp.lt.s32.totalorder %s21, 1
          %s413 = scalar_select %p412, %s21, 1
          %s414 = smul.addr %s413, 2
          %s415 = scalar_lea.vmem %s1, %s414
        $region72: #{_lambda_.1} parent=63 // pred_fallthru
          _
      $region64: #{_lambda_.1} parent=5 // pred_fallthru
        _
      %p416 = scmp.le.s32.totalorder 1, %s21
      %p417 = scmp.lt.s32.totalorder %s21, 3
      %p418 = pnand %p416, %p417
      %p419 = pneg %p418
      // Predicated region
      $region73: #{_lambda_.1} parent=5 // pred_check
        _
      $region74: #{_lambda_.1} parent=5 // pred_check_branch
        %421 = sbr.rel (%p418) target = $region76
      $region75: #{_lambda_.1} parent=5 // pred_region
        %s422 = ssub.s32 %s21, 1
        %p423 = scmp.lt.s32.totalorder %s26, 1
        %s424 = scalar_select %p423, %s26, 1
        %s425 = smul.addr %s424, 2
        %s426 = smul.addr %s425, 8
        %s427 = scalar_lea.vmem %s0, %s426
        %p428 = pneg %p47
        %p429 = pneg %p44
        %p430 = scmp.lt.s32.totalorder %s26, 1
        %s431 = scalar_select %p430, %s26, 1
        %s432 = smul.addr %s431, 2
        %s433 = scalar_lea.vmem %s1, %s432
        %p434 = pneg %p73
        %p435 = pneg %p70
        %p436 = pneg %p94
        %p437 = pneg %p91
        %p438 = pneg %p115
        %p439 = pneg %p112
        %p440 = pneg %p136
        %p441 = pneg %p133
        %p442 = pneg %p157
        %p443 = pneg %p154
        %p444 = pneg %p178
        %p445 = pneg %p175
        %p446 = pneg %p199
        %p447 = pneg %p196
        %p448 = pneg %p220
        %p449 = pneg %p217
        %p450 = pneg %p241
        %p451 = pneg %p238
        %p452 = pneg %p262
        %p453 = pneg %p259
        %p454 = pneg %p283
        %p455 = pneg %p280
        %p456 = pneg %p304
        %p457 = pneg %p301
        %p458 = pneg %p325
        %p459 = pneg %p322
        %p460 = pneg %p346
        %p461 = pneg %p343
        %p462 = scmp.lt.s32.totalorder %s26, 1
        %s463 = scalar_select %p462, %s26, 1
        %s464 = smul.addr %s463, 2
        %s465 = smul.addr %s464, 8
        %s466 = scalar_lea.vmem %s0, %s465
        %p467 = scmp.lt.s32.totalorder %s26, 1
        %s468 = scalar_select %p467, %s26, 1
        %s469 = smul.addr %s468, 2
        %s470 = scalar_lea.vmem %s1, %s469
        %v471 = vld [vmem:[%s466] sm:$0xff]
        %v472 = vld [vmem:[%s466 + $0x8] sm:$0xff]
        %s473 = smul.u32 %s26, 15
        %s474 = scalar_lea.vmem %s8, %s473
        %v475 = vld [vmem:[%s474] sm:$0x1]
        %s476 = sadd.s32 1, %s473
        %s477 = scalar_lea.vmem %s8, %s476
        %v478 = vld [vmem:[%s477] sm:$0x1]
        %vm479 = vcmask 261120
        %v480 = vsel %vm479, %v471, 0.0
        %481 = vadd.xlane.f32.xlu0 %v480
        %v482 = vpop.xlane.xlu0 %481
        %v483 = vsel %vm479, %v472, 0.0
        %484 = vadd.xlane.f32.xlu0 %v483
        %v485 = vpop.xlane.xlu0 %484
        %v486 = vrcp.pop 32.0
        %v487 = vmul.f32 %v482, %v486
        %v488 = vmul.f32 %v485, %v486
        %v489 = vsub.f32 %v471, %v487
        %v490 = vsub.f32 %v472, %v488
        %v491 = vmul.f32 %v489, %v489
        %v492 = vmul.f32 %v490, %v490
        %v493 = vsel %vm479, %v491, 0.0
        %494 = vadd.xlane.f32.xlu0 %v493
        %v495 = vpop.xlane.xlu0 %494
        %v496 = vsel %vm479, %v492, 0.0
        %497 = vadd.xlane.f32.xlu0 %v496
        %v498 = vpop.xlane.xlu0 %497
        %v499 = vmul.f32 %v495, %v486
        %v500 = vmul.f32 %v498, %v486
        %v501 = vadd.f32 %v499, 1e-12
        %v502 = vadd.f32 %v500, 1e-12
        %v503 = vrsqrt.pop %v501
        %v504 = vrsqrt.pop %v502
        %v505 = vmul.f32 %v489, %v503
        %v506 = vmul.f32 %v490, %v504
        %v508 = vlaneseq
        %v509 = vshrl.u32 %v508, 7
        %v510 = vsub.s32 0, %v509
        %v511 = vrot.slane %v475, %v510
        %v513 = vmul.f32 %v505, %v511
        %v514 = vmul.f32 %v506, %v511
        %v516 = vlaneseq
        %v517 = vshrl.u32 %v516, 7
        %v518 = vsub.s32 0, %v517
        %v519 = vrot.slane %v478, %v518
        %v521 = vadd.f32 %v513, %v519
        %v522 = vadd.f32 %v514, %v519
        %v523 = vld [vmem:[%s470] sm:$0x3]
        %v526 = vunpack.c.l.s4 1966171168
        %v527 = vunpack.c.0.s8 %v526
        %v528 = vlaneseq
        %v529 = vshrl.u32 %v528, 7
        %v530 = vsub.s32 %v527, %v529
        %v531 = vrot.slane %v523, %v530
        %v532 = vcombine.high %v531, %v531
        %v534 = vunpack.c.l.s4 1966171168
        %v535 = vunpack.c.0.s8 %v534
        %v536 = vlaneseq
        %v537 = vshrl.u32 %v536, 7
        %v538 = vsub.s32 %v535, %v537
        %v539 = vrot.slane %v531, %v538
        %v541 = vunpack.c.l.s4 1966171168
        %v542 = vunpack.c.0.s8 %v541
        %v543 = vlaneseq
        %v544 = vshrl.u32 %v543, 7
        %v545 = vsub.s32 %v542, %v544
        %v546 = vrot.slane %v532, %v545
        %s547 = smul.u32 %s26, 768
        %s548 = scalar_lea.vmem %s2, %s547
        %v549 = vld [vmem:[%s548] sm:$0xff]
        %v550 = vld [vmem:[%s548 + $0x8] sm:$0xff]
        %v551 = vld [vmem:[%s548 + $0x10] sm:$0xff]
        %v552 = vld [vmem:[%s548 + $0x18] sm:$0xff]
        %s553 = smul.u32 %s26, 24
        %s554 = scalar_lea.vmem %s3, %s553
        %v555 = vld [vmem:[%s554] sm:$0x1]
        %v557 = vlaneseq
        %v558 = vshrl.u32 %v557, 7
        %v559 = vsub.s32 0, %v558
        %v560 = vrot.slane %v555, %v559
        %v563 = vsel %vm479, %v521, 0
        %v566 = vsel %vm479, %v522, 0
        %568 = vmatprep.subr.mxu0 0.0
        %569 = vmatpush1.msra.mxu0 0.0
        %570 = vmatprep.subr.mxu0 0.0
        %571 = vmatpush1.msra.mxu0 0.0
        %572 = vmatprep.subr.mxu0 0.0
        %573 = vmatpush1.msra.mxu0 0.0
        %574 = vmatprep.subr.mxu0 0.0
        %575 = vmatpush1.msra.mxu0 0.0
        %576 = vmatprep.subr.mxu0 0.0
        %577 = vmatpush1.msra.mxu0 0.0
        %578 = vmatprep.subr.mxu0 0.0
        %579 = vmatpush1.msra.mxu0 0.0
        %580 = vmatprep.subr.mxu0 0.0
        %581 = vmatpush1.msra.mxu0 0.0
        %582 = vmatprep.subr.mxu0 0.0
        %583 = vmatpush1.msra.mxu0 0.0
        %584 = vmatprep.subr.mxu0 0.0
        %585 = vmatpush1.msra.mxu0 0.0
        %586 = vmatprep.subr.mxu0 0.0
        %587 = vmatpush1.msra.mxu0 0.0
        %588 = vmatprep.subr.mxu0 0.0
        %589 = vmatpush1.msra.mxu0 0.0
        %590 = vmatprep.subr.mxu0 0.0
        %591 = vmatpush1.msra.mxu0 0.0
        %592 = vmatprep.subr.mxu0 0.0
        %593 = vmatpush1.msra.mxu0 %v552
        %594 = vmatprep.subr.mxu0 0.0
        %595 = vmatpush1.msra.mxu0 %v551
        %596 = vmatprep.subr.mxu0 0.0
        %597 = vmatpush1.msra.mxu0 %v550
        %598 = vmatprep.subr.mxu0 0.0
        %599 = vmatpush1.msra.mxu0 %v549
        %600 = vmatprep.subr.mxu0 0.0
        %601 = vmatpush2.msra.mxu0 0.0
        %602 = vmatprep.subr.mxu0 0.0
        %603 = vmatpush2.msra.mxu0 0.0
        %604 = vmatprep.subr.mxu0 0.0
        %605 = vmatpush2.msra.mxu0 0.0
        %606 = vmatprep.subr.mxu0 0.0
        %607 = vmatpush2.msra.mxu0 0.0
        %608 = vmatprep.subr.mxu0 0.0
        %609 = vmatpush2.msra.mxu0 0.0
        %610 = vmatprep.subr.mxu0 0.0
        %611 = vmatpush2.msra.mxu0 0.0
        %612 = vmatprep.subr.mxu0 0.0
        %613 = vmatpush2.msra.mxu0 0.0
        %614 = vmatprep.subr.mxu0 0.0
        %615 = vmatpush2.msra.mxu0 0.0
        %616 = vmatprep.subr.mxu0 0.0
        %617 = vmatpush2.msra.mxu0 0.0
        %618 = vmatprep.subr.mxu0 0.0
        %619 = vmatpush2.msra.mxu0 0.0
        %620 = vmatprep.subr.mxu0 0.0
        %621 = vmatpush2.msra.mxu0 0.0
        %622 = vmatprep.subr.mxu0 0.0
        %623 = vmatpush2.msra.mxu0 0.0
        %624 = vmatprep.subr.mxu0 0.0
        %625 = vmatpush2.msra.mxu0 0.0
        %626 = vmatprep.subr.mxu0 0.0
        %627 = vmatpush2.msra.mxu0 0.0
        %628 = vmatprep.subr.mxu0 0.0
        %629 = vmatpush2.msra.mxu0 0.0
        %630 = vmatprep.subr.mxu0 0.0
        %631 = vmatpush2.msra.mxu0 0.0
        %632 = vmatprep.mubr.f32.mxu0 0.0
        %633 = vmatmul.mubr.f32.gmra.mxu0 %v563
        %v634 = vpop.f32.mrf.mxu0
        %v635 = vadd.f32 %v560, %v634
        %v636 = vpop.f32.mrf.mxu0
        %637 = vmatprep.mubr.f32.mxu0 0.0
        %638 = vmatmul.mubr.f32.gmra.mxu0 %v566
        %v639 = vpop.f32.mrf.mxu0
        %v640 = vadd.f32 %v560, %v639
        %v641 = vpop.f32.mrf.mxu0
        %642 = vdwg.mxu0
        %s643 = sadd.s32 128, %s547
        %s644 = scalar_lea.vmem %s2, %s643
        %v645 = vld [vmem:[%s644] sm:$0xff]
        %v646 = vld [vmem:[%s644 + $0x8] sm:$0xff]
        %v647 = vld [vmem:[%s644 + $0x10] sm:$0xff]
        %v648 = vld [vmem:[%s644 + $0x18] sm:$0xff]
        %s649 = sadd.s32 4, %s553
        %s650 = scalar_lea.vmem %s3, %s649
        %v651 = vld [vmem:[%s650] sm:$0x1]
        %v653 = vlaneseq
        %v654 = vshrl.u32 %v653, 7
        %v655 = vsub.s32 0, %v654
        %v656 = vrot.slane %v651, %v655
        %658 = vmatprep.subr.mxu0 0.0
        %659 = vmatpush1.msra.mxu0 0.0
        %660 = vmatprep.subr.mxu0 0.0
        %661 = vmatpush1.msra.mxu0 0.0
        %662 = vmatprep.subr.mxu0 0.0
        %663 = vmatpush1.msra.mxu0 0.0
        %664 = vmatprep.subr.mxu0 0.0
        %665 = vmatpush1.msra.mxu0 0.0
        %666 = vmatprep.subr.mxu0 0.0
        %667 = vmatpush1.msra.mxu0 0.0
        %668 = vmatprep.subr.mxu0 0.0
        %669 = vmatpush1.msra.mxu0 0.0
        %670 = vmatprep.subr.mxu0 0.0
        %671 = vmatpush1.msra.mxu0 0.0
        %672 = vmatprep.subr.mxu0 0.0
        %673 = vmatpush1.msra.mxu0 0.0
        %674 = vmatprep.subr.mxu0 0.0
        %675 = vmatpush1.msra.mxu0 0.0
        %676 = vmatprep.subr.mxu0 0.0
        %677 = vmatpush1.msra.mxu0 0.0
        %678 = vmatprep.subr.mxu0 0.0
        %679 = vmatpush1.msra.mxu0 0.0
        %680 = vmatprep.subr.mxu0 0.0
        %681 = vmatpush1.msra.mxu0 0.0
        %682 = vmatprep.subr.mxu0 0.0
        %683 = vmatpush1.msra.mxu0 %v648
        %684 = vmatprep.subr.mxu0 0.0
        %685 = vmatpush1.msra.mxu0 %v647
        %686 = vmatprep.subr.mxu0 0.0
        %687 = vmatpush1.msra.mxu0 %v646
        %688 = vmatprep.subr.mxu0 0.0
        %689 = vmatpush1.msra.mxu0 %v645
        %690 = vmatprep.subr.mxu0 0.0
        %691 = vmatpush2.msra.mxu0 0.0
        %692 = vmatprep.subr.mxu0 0.0
        %693 = vmatpush2.msra.mxu0 0.0
        %694 = vmatprep.subr.mxu0 0.0
        %695 = vmatpush2.msra.mxu0 0.0
        %696 = vmatprep.subr.mxu0 0.0
        %697 = vmatpush2.msra.mxu0 0.0
        %698 = vmatprep.subr.mxu0 0.0
        %699 = vmatpush2.msra.mxu0 0.0
        %700 = vmatprep.subr.mxu0 0.0
        %701 = vmatpush2.msra.mxu0 0.0
        %702 = vmatprep.subr.mxu0 0.0
        %703 = vmatpush2.msra.mxu0 0.0
        %704 = vmatprep.subr.mxu0 0.0
        %705 = vmatpush2.msra.mxu0 0.0
        %706 = vmatprep.subr.mxu0 0.0
        %707 = vmatpush2.msra.mxu0 0.0
        %708 = vmatprep.subr.mxu0 0.0
        %709 = vmatpush2.msra.mxu0 0.0
        %710 = vmatprep.subr.mxu0 0.0
        %711 = vmatpush2.msra.mxu0 0.0
        %712 = vmatprep.subr.mxu0 0.0
        %713 = vmatpush2.msra.mxu0 0.0
        %714 = vmatprep.subr.mxu0 0.0
        %715 = vmatpush2.msra.mxu0 0.0
        %716 = vmatprep.subr.mxu0 0.0
        %717 = vmatpush2.msra.mxu0 0.0
        %718 = vmatprep.subr.mxu0 0.0
        %719 = vmatpush2.msra.mxu0 0.0
        %720 = vmatprep.subr.mxu0 0.0
        %721 = vmatpush2.msra.mxu0 0.0
        %722 = vmatprep.mubr.f32.mxu0 0.0
        %723 = vmatmul.mubr.f32.gmra.mxu0 %v563
        %v724 = vpop.f32.mrf.mxu0
        %v725 = vadd.f32 %v656, %v724
        %v726 = vpop.f32.mrf.mxu0
        %727 = vmatprep.mubr.f32.mxu0 0.0
        %728 = vmatmul.mubr.f32.gmra.mxu0 %v566
        %v729 = vpop.f32.mrf.mxu0
        %v730 = vadd.f32 %v656, %v729
        %v731 = vpop.f32.mrf.mxu0
        %732 = vdwg.mxu0
        %s733 = sadd.s32 256, %s547
        %s734 = scalar_lea.vmem %s2, %s733
        %v735 = vld [vmem:[%s734] sm:$0xff]
        %v736 = vld [vmem:[%s734 + $0x8] sm:$0xff]
        %v737 = vld [vmem:[%s734 + $0x10] sm:$0xff]
        %v738 = vld [vmem:[%s734 + $0x18] sm:$0xff]
        %s739 = sadd.s32 8, %s553
        %s740 = scalar_lea.vmem %s3, %s739
        %v741 = vld [vmem:[%s740] sm:$0x1]
        %v743 = vlaneseq
        %v744 = vshrl.u32 %v743, 7
        %v745 = vsub.s32 0, %v744
        %v746 = vrot.slane %v741, %v745
        %748 = vmatprep.subr.mxu0 0.0
        %749 = vmatpush1.msra.mxu0 0.0
        %750 = vmatprep.subr.mxu0 0.0
        %751 = vmatpush1.msra.mxu0 0.0
        %752 = vmatprep.subr.mxu0 0.0
        %753 = vmatpush1.msra.mxu0 0.0
        %754 = vmatprep.subr.mxu0 0.0
        %755 = vmatpush1.msra.mxu0 0.0
        %756 = vmatprep.subr.mxu0 0.0
        %757 = vmatpush1.msra.mxu0 0.0
        %758 = vmatprep.subr.mxu0 0.0
        %759 = vmatpush1.msra.mxu0 0.0
        %760 = vmatprep.subr.mxu0 0.0
        %761 = vmatpush1.msra.mxu0 0.0
        %762 = vmatprep.subr.mxu0 0.0
        %763 = vmatpush1.msra.mxu0 0.0
        %764 = vmatprep.subr.mxu0 0.0
        %765 = vmatpush1.msra.mxu0 0.0
        %766 = vmatprep.subr.mxu0 0.0
        %767 = vmatpush1.msra.mxu0 0.0
        %768 = vmatprep.subr.mxu0 0.0
        %769 = vmatpush1.msra.mxu0 0.0
        %770 = vmatprep.subr.mxu0 0.0
        %771 = vmatpush1.msra.mxu0 0.0
        %772 = vmatprep.subr.mxu0 0.0
        %773 = vmatpush1.msra.mxu0 %v738
        %774 = vmatprep.subr.mxu0 0.0
        %775 = vmatpush1.msra.mxu0 %v737
        %776 = vmatprep.subr.mxu0 0.0
        %777 = vmatpush1.msra.mxu0 %v736
        %778 = vmatprep.subr.mxu0 0.0
        %779 = vmatpush1.msra.mxu0 %v735
        %780 = vmatprep.subr.mxu0 0.0
        %781 = vmatpush2.msra.mxu0 0.0
        %782 = vmatprep.subr.mxu0 0.0
        %783 = vmatpush2.msra.mxu0 0.0
        %784 = vmatprep.subr.mxu0 0.0
        %785 = vmatpush2.msra.mxu0 0.0
        %786 = vmatprep.subr.mxu0 0.0
        %787 = vmatpush2.msra.mxu0 0.0
        %788 = vmatprep.subr.mxu0 0.0
        %789 = vmatpush2.msra.mxu0 0.0
        %790 = vmatprep.subr.mxu0 0.0
        %791 = vmatpush2.msra.mxu0 0.0
        %792 = vmatprep.subr.mxu0 0.0
        %793 = vmatpush2.msra.mxu0 0.0
        %794 = vmatprep.subr.mxu0 0.0
        %795 = vmatpush2.msra.mxu0 0.0
        %796 = vmatprep.subr.mxu0 0.0
        %797 = vmatpush2.msra.mxu0 0.0
        %798 = vmatprep.subr.mxu0 0.0
        %799 = vmatpush2.msra.mxu0 0.0
        %800 = vmatprep.subr.mxu0 0.0
        %801 = vmatpush2.msra.mxu0 0.0
        %802 = vmatprep.subr.mxu0 0.0
        %803 = vmatpush2.msra.mxu0 0.0
        %804 = vmatprep.subr.mxu0 0.0
        %805 = vmatpush2.msra.mxu0 0.0
        %806 = vmatprep.subr.mxu0 0.0
        %807 = vmatpush2.msra.mxu0 0.0
        %808 = vmatprep.subr.mxu0 0.0
        %809 = vmatpush2.msra.mxu0 0.0
        %810 = vmatprep.subr.mxu0 0.0
        %811 = vmatpush2.msra.mxu0 0.0
        %812 = vmatprep.mubr.f32.mxu0 0.0
        %813 = vmatmul.mubr.f32.gmra.mxu0 %v563
        %v814 = vpop.f32.mrf.mxu0
        %v815 = vadd.f32 %v746, %v814
        %v816 = vpop.f32.mrf.mxu0
        %817 = vmatprep.mubr.f32.mxu0 0.0
        %818 = vmatmul.mubr.f32.gmra.mxu0 %v566
        %v819 = vpop.f32.mrf.mxu0
        %v820 = vadd.f32 %v746, %v819
        %v821 = vpop.f32.mrf.mxu0
        %822 = vdwg.mxu0
        %v823 = vlaneseq
        %v824 = vshrl.u32 %v823, 7
        %v825 = vsub.s32 0, %v824
        %v826 = vrot.slane %v539, %v825
        %v827 = vlaneseq
        %v828 = vshrl.u32 %v827, 7
        %v829 = vsub.s32 0, %v828
        %v830 = vrot.slane %v546, %v829
        %vm833 = vcmask 64512
        %v835 = vsel %vm833, %v635, 0
        %v838 = vsel %vm833, %v725, 0
        %840 = vmatprep.subr.mxu0 0.0
        %841 = vmatpush1.xpose.msra.mxu0 0.0
        %842 = vmatprep.subr.mxu0 0.0
        %843 = vmatpush1.xpose.msra.mxu0 0.0
        %844 = vmatprep.subr.mxu0 0.0
        %845 = vmatpush1.xpose.msra.mxu0 0.0
        %846 = vmatprep.subr.mxu0 0.0
        %847 = vmatpush1.xpose.msra.mxu0 0.0
        %848 = vmatprep.subr.mxu0 0.0
        %849 = vmatpush1.xpose.msra.mxu0 0.0
        %850 = vmatprep.subr.mxu0 0.0
        %851 = vmatpush1.xpose.msra.mxu0 0.0
        %852 = vmatprep.subr.mxu0 0.0
        %853 = vmatpush1.xpose.msra.mxu0 0.0
        %854 = vmatprep.subr.mxu0 0.0
        %855 = vmatpush1.xpose.msra.mxu0 0.0
        %856 = vmatprep.subr.mxu0 0.0
        %857 = vmatpush1.xpose.msra.mxu0 0.0
        %858 = vmatprep.subr.mxu0 0.0
        %859 = vmatpush1.xpose.msra.mxu0 0.0
        %860 = vmatprep.subr.mxu0 0.0
        %861 = vmatpush1.xpose.msra.mxu0 0.0
        %862 = vmatprep.subr.mxu0 0.0
        %863 = vmatpush1.xpose.msra.mxu0 0.0
        %864 = vmatprep.subr.mxu0 0.0
        %865 = vmatpush1.xpose.msra.mxu0 0.0
        %866 = vmatprep.subr.mxu0 0.0
        %867 = vmatpush1.xpose.msra.mxu0 0.0
        %868 = vmatprep.subr.mxu0 0.0
        %869 = vmatpush1.xpose.msra.mxu0 0.0
        %870 = vmatprep.subr.mxu0 0.0
        %871 = vmatpush1.xpose.msra.mxu0 %v838
        %872 = vmatprep.subr.mxu0 0.0
        %873 = vmatpush2.xpose.msra.mxu0 0.0
        %874 = vmatprep.subr.mxu0 0.0
        %875 = vmatpush2.xpose.msra.mxu0 0.0
        %876 = vmatprep.subr.mxu0 0.0
        %877 = vmatpush2.xpose.msra.mxu0 0.0
        %878 = vmatprep.subr.mxu0 0.0
        %879 = vmatpush2.xpose.msra.mxu0 0.0
        %880 = vmatprep.subr.mxu0 0.0
        %881 = vmatpush2.xpose.msra.mxu0 0.0
        %882 = vmatprep.subr.mxu0 0.0
        %883 = vmatpush2.xpose.msra.mxu0 0.0
        %884 = vmatprep.subr.mxu0 0.0
        %885 = vmatpush2.xpose.msra.mxu0 0.0
        %886 = vmatprep.subr.mxu0 0.0
        %887 = vmatpush2.xpose.msra.mxu0 0.0
        %888 = vmatprep.subr.mxu0 0.0
        %889 = vmatpush2.xpose.msra.mxu0 0.0
        %890 = vmatprep.subr.mxu0 0.0
        %891 = vmatpush2.xpose.msra.mxu0 0.0
        %892 = vmatprep.subr.mxu0 0.0
        %893 = vmatpush2.xpose.msra.mxu0 0.0
        %894 = vmatprep.subr.mxu0 0.0
        %895 = vmatpush2.xpose.msra.mxu0 0.0
        %896 = vmatprep.subr.mxu0 0.0
        %897 = vmatpush2.xpose.msra.mxu0 0.0
        %898 = vmatprep.subr.mxu0 0.0
        %899 = vmatpush2.xpose.msra.mxu0 0.0
        %900 = vmatprep.subr.mxu0 0.0
        %901 = vmatpush2.xpose.msra.mxu0 0.0
        %902 = vmatprep.subr.mxu0 0.0
        %903 = vmatpush2.xpose.msra.mxu0 0.0
        %904 = vmatprep.mubr.f32.mxu0 0.0
        %905 = vmatmul.mubr.f32.gmra.mxu0 %v835
        %v906 = vpop.f32.mrf.mxu0
        %v907 = vadd.f32 %v826, %v906
        %v908 = vpop.f32.mrf.mxu0
        %909 = vdwg.mxu0
        %v911 = vsel %vm833, %v640, 0
        %v914 = vsel %vm833, %v730, 0
        %916 = vmatprep.subr.mxu0 0.0
        %917 = vmatpush1.xpose.msra.mxu0 0.0
        %918 = vmatprep.subr.mxu0 0.0
        %919 = vmatpush1.xpose.msra.mxu0 0.0
        %920 = vmatprep.subr.mxu0 0.0
        %921 = vmatpush1.xpose.msra.mxu0 0.0
        %922 = vmatprep.subr.mxu0 0.0
        %923 = vmatpush1.xpose.msra.mxu0 0.0
        %924 = vmatprep.subr.mxu0 0.0
        %925 = vmatpush1.xpose.msra.mxu0 0.0
        %926 = vmatprep.subr.mxu0 0.0
        %927 = vmatpush1.xpose.msra.mxu0 0.0
        %928 = vmatprep.subr.mxu0 0.0
        %929 = vmatpush1.xpose.msra.mxu0 0.0
        %930 = vmatprep.subr.mxu0 0.0
        %931 = vmatpush1.xpose.msra.mxu0 0.0
        %932 = vmatprep.subr.mxu0 0.0
        %933 = vmatpush1.xpose.msra.mxu0 0.0
        %934 = vmatprep.subr.mxu0 0.0
        %935 = vmatpush1.xpose.msra.mxu0 0.0
        %936 = vmatprep.subr.mxu0 0.0
        %937 = vmatpush1.xpose.msra.mxu0 0.0
        %938 = vmatprep.subr.mxu0 0.0
        %939 = vmatpush1.xpose.msra.mxu0 0.0
        %940 = vmatprep.subr.mxu0 0.0
        %941 = vmatpush1.xpose.msra.mxu0 0.0
        %942 = vmatprep.subr.mxu0 0.0
        %943 = vmatpush1.xpose.msra.mxu0 0.0
        %944 = vmatprep.subr.mxu0 0.0
        %945 = vmatpush1.xpose.msra.mxu0 0.0
        %946 = vmatprep.subr.mxu0 0.0
        %947 = vmatpush1.xpose.msra.mxu0 %v914
        %948 = vmatprep.subr.mxu0 0.0
        %949 = vmatpush2.xpose.msra.mxu0 0.0
        %950 = vmatprep.subr.mxu0 0.0
        %951 = vmatpush2.xpose.msra.mxu0 0.0
        %952 = vmatprep.subr.mxu0 0.0
        %953 = vmatpush2.xpose.msra.mxu0 0.0
        %954 = vmatprep.subr.mxu0 0.0
        %955 = vmatpush2.xpose.msra.mxu0 0.0
        %956 = vmatprep.subr.mxu0 0.0
        %957 = vmatpush2.xpose.msra.mxu0 0.0
        %958 = vmatprep.subr.mxu0 0.0
        %959 = vmatpush2.xpose.msra.mxu0 0.0
        %960 = vmatprep.subr.mxu0 0.0
        %961 = vmatpush2.xpose.msra.mxu0 0.0
        %962 = vmatprep.subr.mxu0 0.0
        %963 = vmatpush2.xpose.msra.mxu0 0.0
        %964 = vmatprep.subr.mxu0 0.0
        %965 = vmatpush2.xpose.msra.mxu0 0.0
        %966 = vmatprep.subr.mxu0 0.0
        %967 = vmatpush2.xpose.msra.mxu0 0.0
        %968 = vmatprep.subr.mxu0 0.0
        %969 = vmatpush2.xpose.msra.mxu0 0.0
        %970 = vmatprep.subr.mxu0 0.0
        %971 = vmatpush2.xpose.msra.mxu0 0.0
        %972 = vmatprep.subr.mxu0 0.0
        %973 = vmatpush2.xpose.msra.mxu0 0.0
        %974 = vmatprep.subr.mxu0 0.0
        %975 = vmatpush2.xpose.msra.mxu0 0.0
        %976 = vmatprep.subr.mxu0 0.0
        %977 = vmatpush2.xpose.msra.mxu0 0.0
        %978 = vmatprep.subr.mxu0 0.0
        %979 = vmatpush2.xpose.msra.mxu0 0.0
        %980 = vmatprep.mubr.f32.mxu0 0.0
        %981 = vmatmul.mubr.f32.gmra.mxu0 %v911
        %v982 = vpop.f32.mrf.mxu0
        %v983 = vadd.f32 %v830, %v982
        %v984 = vpop.f32.mrf.mxu0
        %985 = vdwg.mxu0
        %v986 = vsel %vm833, %v907, -inf
        %987 = vmax.xlane.f32.xlu0 %v986
        %v988 = vpop.xlane.xlu0 %987
        %v989 = vsel %vm833, %v983, -inf
        %990 = vmax.xlane.f32.xlu0 %v989
        %v991 = vpop.xlane.xlu0 %990
        %v992 = vsub.f32 %v907, %v988
        %v993 = vsub.f32 %v983, %v991
        %v994 = vmul.f32 %v992, 1.442695
        %v995 = vpow.pop %v994
        %v996 = vmul.f32 %v993, 1.442695
        %v997 = vpow.pop %v996
        %v998 = vsel %vm833, %v995, 0.0
        %999 = vadd.xlane.f32.xlu0 %v998
        %v1000 = vpop.xlane.xlu0 %999
        %v1001 = vsel %vm833, %v997, 0.0
        %1002 = vadd.xlane.f32.xlu0 %v1001
        %v1003 = vpop.xlane.xlu0 %1002
        %v1004 = vrcp.pop %v1000
        %v1005 = vrcp.pop %v1003
        %v1006 = vmul.f32 %v995, %v1004
        %v1007 = vmul.f32 %v997, %v1005
        %v1009 = vsel %vm833, %v1006, 0
        %1011 = vmatprep.subr.mxu0 0.0
        %1012 = vmatpush1.msra.mxu0 0.0
        %1013 = vmatprep.subr.mxu0 0.0
        %1014 = vmatpush1.msra.mxu0 0.0
        %1015 = vmatprep.subr.mxu0 0.0
        %1016 = vmatpush1.msra.mxu0 0.0
        %1017 = vmatprep.subr.mxu0 0.0
        %1018 = vmatpush1.msra.mxu0 0.0
        %1019 = vmatprep.subr.mxu0 0.0
        %1020 = vmatpush1.msra.mxu0 0.0
        %1021 = vmatprep.subr.mxu0 0.0
        %1022 = vmatpush1.msra.mxu0 0.0
        %1023 = vmatprep.subr.mxu0 0.0
        %1024 = vmatpush1.msra.mxu0 0.0
        %1025 = vmatprep.subr.mxu0 0.0
        %1026 = vmatpush1.msra.mxu0 0.0
        %1027 = vmatprep.subr.mxu0 0.0
        %1028 = vmatpush1.msra.mxu0 0.0
        %1029 = vmatprep.subr.mxu0 0.0
        %1030 = vmatpush1.msra.mxu0 0.0
        %1031 = vmatprep.subr.mxu0 0.0
        %1032 = vmatpush1.msra.mxu0 0.0
        %1033 = vmatprep.subr.mxu0 0.0
        %1034 = vmatpush1.msra.mxu0 0.0
        %1035 = vmatprep.subr.mxu0 0.0
        %1036 = vmatpush1.msra.mxu0 0.0
        %1037 = vmatprep.subr.mxu0 0.0
        %1038 = vmatpush1.msra.mxu0 0.0
        %1039 = vmatprep.subr.mxu0 0.0
        %1040 = vmatpush1.msra.mxu0 0.0
        %1041 = vmatprep.subr.mxu0 0.0
        %1042 = vmatpush1.msra.mxu0 %v815
        %1043 = vmatprep.subr.mxu0 0.0
        %1044 = vmatpush2.msra.mxu0 0.0
        %1045 = vmatprep.subr.mxu0 0.0
        %1046 = vmatpush2.msra.mxu0 0.0
        %1047 = vmatprep.subr.mxu0 0.0
        %1048 = vmatpush2.msra.mxu0 0.0
        %1049 = vmatprep.subr.mxu0 0.0
        %1050 = vmatpush2.msra.mxu0 0.0
        %1051 = vmatprep.subr.mxu0 0.0
        %1052 = vmatpush2.msra.mxu0 0.0
        %1053 = vmatprep.subr.mxu0 0.0
        %1054 = vmatpush2.msra.mxu0 0.0
        %1055 = vmatprep.subr.mxu0 0.0
        %1056 = vmatpush2.msra.mxu0 0.0
        %1057 = vmatprep.subr.mxu0 0.0
        %1058 = vmatpush2.msra.mxu0 0.0
        %1059 = vmatprep.subr.mxu0 0.0
        %1060 = vmatpush2.msra.mxu0 0.0
        %1061 = vmatprep.subr.mxu0 0.0
        %1062 = vmatpush2.msra.mxu0 0.0
        %1063 = vmatprep.subr.mxu0 0.0
        %1064 = vmatpush2.msra.mxu0 0.0
        %1065 = vmatprep.subr.mxu0 0.0
        %1066 = vmatpush2.msra.mxu0 0.0
        %1067 = vmatprep.subr.mxu0 0.0
        %1068 = vmatpush2.msra.mxu0 0.0
        %1069 = vmatprep.subr.mxu0 0.0
        %1070 = vmatpush2.msra.mxu0 0.0
        %1071 = vmatprep.subr.mxu0 0.0
        %1072 = vmatpush2.msra.mxu0 0.0
        %1073 = vmatprep.subr.mxu0 0.0
        %1074 = vmatpush2.msra.mxu0 0.0
        %1075 = vmatprep.mubr.f32.mxu0 0.0
        %1076 = vmatmul.mubr.f32.gmra.mxu0 %v1009
        %v1077 = vpop.f32.mrf.mxu0
        %v1078 = vadd.f32 0.0, %v1077
        %v1079 = vpop.f32.mrf.mxu0
        %1080 = vdwg.mxu0
        %v1082 = vsel %vm833, %v1007, 0
        %1084 = vmatprep.subr.mxu0 0.0
        %1085 = vmatpush1.msra.mxu0 0.0
        %1086 = vmatprep.subr.mxu0 0.0
        %1087 = vmatpush1.msra.mxu0 0.0
        %1088 = vmatprep.subr.mxu0 0.0
        %1089 = vmatpush1.msra.mxu0 0.0
        %1090 = vmatprep.subr.mxu0 0.0
        %1091 = vmatpush1.msra.mxu0 0.0
        %1092 = vmatprep.subr.mxu0 0.0
        %1093 = vmatpush1.msra.mxu0 0.0
        %1094 = vmatprep.subr.mxu0 0.0
        %1095 = vmatpush1.msra.mxu0 0.0
        %1096 = vmatprep.subr.mxu0 0.0
        %1097 = vmatpush1.msra.mxu0 0.0
        %1098 = vmatprep.subr.mxu0 0.0
        %1099 = vmatpush1.msra.mxu0 0.0
        %1100 = vmatprep.subr.mxu0 0.0
        %1101 = vmatpush1.msra.mxu0 0.0
        %1102 = vmatprep.subr.mxu0 0.0
        %1103 = vmatpush1.msra.mxu0 0.0
        %1104 = vmatprep.subr.mxu0 0.0
        %1105 = vmatpush1.msra.mxu0 0.0
        %1106 = vmatprep.subr.mxu0 0.0
        %1107 = vmatpush1.msra.mxu0 0.0
        %1108 = vmatprep.subr.mxu0 0.0
        %1109 = vmatpush1.msra.mxu0 0.0
        %1110 = vmatprep.subr.mxu0 0.0
        %1111 = vmatpush1.msra.mxu0 0.0
        %1112 = vmatprep.subr.mxu0 0.0
        %1113 = vmatpush1.msra.mxu0 0.0
        %1114 = vmatprep.subr.mxu0 0.0
        %1115 = vmatpush1.msra.mxu0 %v820
        %1116 = vmatprep.subr.mxu0 0.0
        %1117 = vmatpush2.msra.mxu0 0.0
        %1118 = vmatprep.subr.mxu0 0.0
        %1119 = vmatpush2.msra.mxu0 0.0
        %1120 = vmatprep.subr.mxu0 0.0
        %1121 = vmatpush2.msra.mxu0 0.0
        %1122 = vmatprep.subr.mxu0 0.0
        %1123 = vmatpush2.msra.mxu0 0.0
        %1124 = vmatprep.subr.mxu0 0.0
        %1125 = vmatpush2.msra.mxu0 0.0
        %1126 = vmatprep.subr.mxu0 0.0
        %1127 = vmatpush2.msra.mxu0 0.0
        %1128 = vmatprep.subr.mxu0 0.0
        %1129 = vmatpush2.msra.mxu0 0.0
        %1130 = vmatprep.subr.mxu0 0.0
        %1131 = vmatpush2.msra.mxu0 0.0
        %1132 = vmatprep.subr.mxu0 0.0
        %1133 = vmatpush2.msra.mxu0 0.0
        %1134 = vmatprep.subr.mxu0 0.0
        %1135 = vmatpush2.msra.mxu0 0.0
        %1136 = vmatprep.subr.mxu0 0.0
        %1137 = vmatpush2.msra.mxu0 0.0
        %1138 = vmatprep.subr.mxu0 0.0
        %1139 = vmatpush2.msra.mxu0 0.0
        %1140 = vmatprep.subr.mxu0 0.0
        %1141 = vmatpush2.msra.mxu0 0.0
        %1142 = vmatprep.subr.mxu0 0.0
        %1143 = vmatpush2.msra.mxu0 0.0
        %1144 = vmatprep.subr.mxu0 0.0
        %1145 = vmatpush2.msra.mxu0 0.0
        %1146 = vmatprep.subr.mxu0 0.0
        %1147 = vmatpush2.msra.mxu0 0.0
        %1148 = vmatprep.mubr.f32.mxu0 0.0
        %1149 = vmatmul.mubr.f32.gmra.mxu0 %v1082
        %v1150 = vpop.f32.mrf.mxu0
        %v1151 = vadd.f32 0.0, %v1150
        %v1152 = vpop.f32.mrf.mxu0
        %1153 = vdwg.mxu0
        %s1154 = smul.u32 %s26, 64
        %s1155 = scalar_lea.vmem %s4, %s1154
        %v1156 = vld [vmem:[%s1155] sm:$0xff]
        %s1157 = sadd.s32 32, %s547
        %s1158 = scalar_lea.vmem %s2, %s1157
        %v1159 = vld [vmem:[%s1158] sm:$0xff]
        %v1160 = vld [vmem:[%s1158 + $0x8] sm:$0xff]
        %v1161 = vld [vmem:[%s1158 + $0x10] sm:$0xff]
        %v1162 = vld [vmem:[%s1158 + $0x18] sm:$0xff]
        %s1163 = sadd.s32 1, %s553
        %s1164 = scalar_lea.vmem %s3, %s1163
        %v1165 = vld [vmem:[%s1164] sm:$0x1]
        %v1167 = vlaneseq
        %v1168 = vshrl.u32 %v1167, 7
        %v1169 = vsub.s32 0, %v1168
        %v1170 = vrot.slane %v1165, %v1169
        %1172 = vmatprep.subr.mxu0 0.0
        %1173 = vmatpush1.msra.mxu0 0.0
        %1174 = vmatprep.subr.mxu0 0.0
        %1175 = vmatpush1.msra.mxu0 0.0
        %1176 = vmatprep.subr.mxu0 0.0
        %1177 = vmatpush1.msra.mxu0 0.0
        %1178 = vmatprep.subr.mxu0 0.0
        %1179 = vmatpush1.msra.mxu0 0.0
        %1180 = vmatprep.subr.mxu0 0.0
        %1181 = vmatpush1.msra.mxu0 0.0
        %1182 = vmatprep.subr.mxu0 0.0
        %1183 = vmatpush1.msra.mxu0 0.0
        %1184 = vmatprep.subr.mxu0 0.0
        %1185 = vmatpush1.msra.mxu0 0.0
        %1186 = vmatprep.subr.mxu0 0.0
        %1187 = vmatpush1.msra.mxu0 0.0
        %1188 = vmatprep.subr.mxu0 0.0
        %1189 = vmatpush1.msra.mxu0 0.0
        %1190 = vmatprep.subr.mxu0 0.0
        %1191 = vmatpush1.msra.mxu0 0.0
        %1192 = vmatprep.subr.mxu0 0.0
        %1193 = vmatpush1.msra.mxu0 0.0
        %1194 = vmatprep.subr.mxu0 0.0
        %1195 = vmatpush1.msra.mxu0 0.0
        %1196 = vmatprep.subr.mxu0 0.0
        %1197 = vmatpush1.msra.mxu0 %v1162
        %1198 = vmatprep.subr.mxu0 0.0
        %1199 = vmatpush1.msra.mxu0 %v1161
        %1200 = vmatprep.subr.mxu0 0.0
        %1201 = vmatpush1.msra.mxu0 %v1160
        %1202 = vmatprep.subr.mxu0 0.0
        %1203 = vmatpush1.msra.mxu0 %v1159
        %1204 = vmatprep.subr.mxu0 0.0
        %1205 = vmatpush2.msra.mxu0 0.0
        %1206 = vmatprep.subr.mxu0 0.0
        %1207 = vmatpush2.msra.mxu0 0.0
        %1208 = vmatprep.subr.mxu0 0.0
        %1209 = vmatpush2.msra.mxu0 0.0
        %1210 = vmatprep.subr.mxu0 0.0
        %1211 = vmatpush2.msra.mxu0 0.0
        %1212 = vmatprep.subr.mxu0 0.0
        %1213 = vmatpush2.msra.mxu0 0.0
        %1214 = vmatprep.subr.mxu0 0.0
        %1215 = vmatpush2.msra.mxu0 0.0
        %1216 = vmatprep.subr.mxu0 0.0
        %1217 = vmatpush2.msra.mxu0 0.0
        %1218 = vmatprep.subr.mxu0 0.0
        %1219 = vmatpush2.msra.mxu0 0.0
        %1220 = vmatprep.subr.mxu0 0.0
        %1221 = vmatpush2.msra.mxu0 0.0
        %1222 = vmatprep.subr.mxu0 0.0
        %1223 = vmatpush2.msra.mxu0 0.0
        %1224 = vmatprep.subr.mxu0 0.0
        %1225 = vmatpush2.msra.mxu0 0.0
        %1226 = vmatprep.subr.mxu0 0.0
        %1227 = vmatpush2.msra.mxu0 0.0
        %1228 = vmatprep.subr.mxu0 0.0
        %1229 = vmatpush2.msra.mxu0 0.0
        %1230 = vmatprep.subr.mxu0 0.0
        %1231 = vmatpush2.msra.mxu0 0.0
        %1232 = vmatprep.subr.mxu0 0.0
        %1233 = vmatpush2.msra.mxu0 0.0
        %1234 = vmatprep.subr.mxu0 0.0
        %1235 = vmatpush2.msra.mxu0 0.0
        %1236 = vmatprep.mubr.f32.mxu0 0.0
        %1237 = vmatmul.mubr.f32.gmra.mxu0 %v563
        %v1238 = vpop.f32.mrf.mxu0
        %v1239 = vadd.f32 %v1170, %v1238
        %v1240 = vpop.f32.mrf.mxu0
        %1241 = vmatprep.mubr.f32.mxu0 0.0
        %1242 = vmatmul.mubr.f32.gmra.mxu0 %v566
        %v1243 = vpop.f32.mrf.mxu0
        %v1244 = vadd.f32 %v1170, %v1243
        %v1245 = vpop.f32.mrf.mxu0
        %1246 = vdwg.mxu0
        %s1247 = sadd.s32 160, %s547
        %s1248 = scalar_lea.vmem %s2, %s1247
        %v1249 = vld [vmem:[%s1248] sm:$0xff]
        %v1250 = vld [vmem:[%s1248 + $0x8] sm:$0xff]
        %v1251 = vld [vmem:[%s1248 + $0x10] sm:$0xff]
        %v1252 = vld [vmem:[%s1248 + $0x18] sm:$0xff]
        %s1253 = sadd.s32 5, %s553
        %s1254 = scalar_lea.vmem %s3, %s1253
        %v1255 = vld [vmem:[%s1254] sm:$0x1]
        %v1257 = vlaneseq
        %v1258 = vshrl.u32 %v1257, 7
        %v1259 = vsub.s32 0, %v1258
        %v1260 = vrot.slane %v1255, %v1259
        %1262 = vmatprep.subr.mxu0 0.0
        %1263 = vmatpush1.msra.mxu0 0.0
        %1264 = vmatprep.subr.mxu0 0.0
        %1265 = vmatpush1.msra.mxu0 0.0
        %1266 = vmatprep.subr.mxu0 0.0
        %1267 = vmatpush1.msra.mxu0 0.0
        %1268 = vmatprep.subr.mxu0 0.0
        %1269 = vmatpush1.msra.mxu0 0.0
        %1270 = vmatprep.subr.mxu0 0.0
        %1271 = vmatpush1.msra.mxu0 0.0
        %1272 = vmatprep.subr.mxu0 0.0
        %1273 = vmatpush1.msra.mxu0 0.0
        %1274 = vmatprep.subr.mxu0 0.0
        %1275 = vmatpush1.msra.mxu0 0.0
        %1276 = vmatprep.subr.mxu0 0.0
        %1277 = vmatpush1.msra.mxu0 0.0
        %1278 = vmatprep.subr.mxu0 0.0
        %1279 = vmatpush1.msra.mxu0 0.0
        %1280 = vmatprep.subr.mxu0 0.0
        %1281 = vmatpush1.msra.mxu0 0.0
        %1282 = vmatprep.subr.mxu0 0.0
        %1283 = vmatpush1.msra.mxu0 0.0
        %1284 = vmatprep.subr.mxu0 0.0
        %1285 = vmatpush1.msra.mxu0 0.0
        %1286 = vmatprep.subr.mxu0 0.0
        %1287 = vmatpush1.msra.mxu0 %v1252
        %1288 = vmatprep.subr.mxu0 0.0
        %1289 = vmatpush1.msra.mxu0 %v1251
        %1290 = vmatprep.subr.mxu0 0.0
        %1291 = vmatpush1.msra.mxu0 %v1250
        %1292 = vmatprep.subr.mxu0 0.0
        %1293 = vmatpush1.msra.mxu0 %v1249
        %1294 = vmatprep.subr.mxu0 0.0
        %1295 = vmatpush2.msra.mxu0 0.0
        %1296 = vmatprep.subr.mxu0 0.0
        %1297 = vmatpush2.msra.mxu0 0.0
        %1298 = vmatprep.subr.mxu0 0.0
        %1299 = vmatpush2.msra.mxu0 0.0
        %1300 = vmatprep.subr.mxu0 0.0
        %1301 = vmatpush2.msra.mxu0 0.0
        %1302 = vmatprep.subr.mxu0 0.0
        %1303 = vmatpush2.msra.mxu0 0.0
        %1304 = vmatprep.subr.mxu0 0.0
        %1305 = vmatpush2.msra.mxu0 0.0
        %1306 = vmatprep.subr.mxu0 0.0
        %1307 = vmatpush2.msra.mxu0 0.0
        %1308 = vmatprep.subr.mxu0 0.0
        %1309 = vmatpush2.msra.mxu0 0.0
        %1310 = vmatprep.subr.mxu0 0.0
        %1311 = vmatpush2.msra.mxu0 0.0
        %1312 = vmatprep.subr.mxu0 0.0
        %1313 = vmatpush2.msra.mxu0 0.0
        %1314 = vmatprep.subr.mxu0 0.0
        %1315 = vmatpush2.msra.mxu0 0.0
        %1316 = vmatprep.subr.mxu0 0.0
        %1317 = vmatpush2.msra.mxu0 0.0
        %1318 = vmatprep.subr.mxu0 0.0
        %1319 = vmatpush2.msra.mxu0 0.0
        %1320 = vmatprep.subr.mxu0 0.0
        %1321 = vmatpush2.msra.mxu0 0.0
        %1322 = vmatprep.subr.mxu0 0.0
        %1323 = vmatpush2.msra.mxu0 0.0
        %1324 = vmatprep.subr.mxu0 0.0
        %1325 = vmatpush2.msra.mxu0 0.0
        %1326 = vmatprep.mubr.f32.mxu0 0.0
        %1327 = vmatmul.mubr.f32.gmra.mxu0 %v563
        %v1328 = vpop.f32.mrf.mxu0
        %v1329 = vadd.f32 %v1260, %v1328
        %v1330 = vpop.f32.mrf.mxu0
        %1331 = vmatprep.mubr.f32.mxu0 0.0
        %1332 = vmatmul.mubr.f32.gmra.mxu0 %v566
        %v1333 = vpop.f32.mrf.mxu0
        %v1334 = vadd.f32 %v1260, %v1333
        %v1335 = vpop.f32.mrf.mxu0
        %1336 = vdwg.mxu0
        %s1337 = sadd.s32 288, %s547
        %s1338 = scalar_lea.vmem %s2, %s1337
        %v1339 = vld [vmem:[%s1338] sm:$0xff]
        %v1340 = vld [vmem:[%s1338 + $0x8] sm:$0xff]
        %v1341 = vld [vmem:[%s1338 + $0x10] sm:$0xff]
        %v1342 = vld [vmem:[%s1338 + $0x18] sm:$0xff]
        %s1343 = sadd.s32 9, %s553
        %s1344 = scalar_lea.vmem %s3, %s1343
        %v1345 = vld [vmem:[%s1344] sm:$0x1]
        %v1347 = vlaneseq
        %v1348 = vshrl.u32 %v1347, 7
        %v1349 = vsub.s32 0, %v1348
        %v1350 = vrot.slane %v1345, %v1349
        %1352 = vmatprep.subr.mxu0 0.0
        %1353 = vmatpush1.msra.mxu0 0.0
        %1354 = vmatprep.subr.mxu0 0.0
        %1355 = vmatpush1.msra.mxu0 0.0
        %1356 = vmatprep.subr.mxu0 0.0
        %1357 = vmatpush1.msra.mxu0 0.0
        %1358 = vmatprep.subr.mxu0 0.0
        %1359 = vmatpush1.msra.mxu0 0.0
        %1360 = vmatprep.subr.mxu0 0.0
        %1361 = vmatpush1.msra.mxu0 0.0
        %1362 = vmatprep.subr.mxu0 0.0
        %1363 = vmatpush1.msra.mxu0 0.0
        %1364 = vmatprep.subr.mxu0 0.0
        %1365 = vmatpush1.msra.mxu0 0.0
        %1366 = vmatprep.subr.mxu0 0.0
        %1367 = vmatpush1.msra.mxu0 0.0
        %1368 = vmatprep.subr.mxu0 0.0
        %1369 = vmatpush1.msra.mxu0 0.0
        %1370 = vmatprep.subr.mxu0 0.0
        %1371 = vmatpush1.msra.mxu0 0.0
        %1372 = vmatprep.subr.mxu0 0.0
        %1373 = vmatpush1.msra.mxu0 0.0
        %1374 = vmatprep.subr.mxu0 0.0
        %1375 = vmatpush1.msra.mxu0 0.0
        %1376 = vmatprep.subr.mxu0 0.0
        %1377 = vmatpush1.msra.mxu0 %v1342
        %1378 = vmatprep.subr.mxu0 0.0
        %1379 = vmatpush1.msra.mxu0 %v1341
        %1380 = vmatprep.subr.mxu0 0.0
        %1381 = vmatpush1.msra.mxu0 %v1340
        %1382 = vmatprep.subr.mxu0 0.0
        %1383 = vmatpush1.msra.mxu0 %v1339
        %1384 = vmatprep.subr.mxu0 0.0
        %1385 = vmatpush2.msra.mxu0 0.0
        %1386 = vmatprep.subr.mxu0 0.0
        %1387 = vmatpush2.msra.mxu0 0.0
        %1388 = vmatprep.subr.mxu0 0.0
        %1389 = vmatpush2.msra.mxu0 0.0
        %1390 = vmatprep.subr.mxu0 0.0
        %1391 = vmatpush2.msra.mxu0 0.0
        %1392 = vmatprep.subr.mxu0 0.0
        %1393 = vmatpush2.msra.mxu0 0.0
        %1394 = vmatprep.subr.mxu0 0.0
        %1395 = vmatpush2.msra.mxu0 0.0
        %1396 = vmatprep.subr.mxu0 0.0
        %1397 = vmatpush2.msra.mxu0 0.0
        %1398 = vmatprep.subr.mxu0 0.0
        %1399 = vmatpush2.msra.mxu0 0.0
        %1400 = vmatprep.subr.mxu0 0.0
        %1401 = vmatpush2.msra.mxu0 0.0
        %1402 = vmatprep.subr.mxu0 0.0
        %1403 = vmatpush2.msra.mxu0 0.0
        %1404 = vmatprep.subr.mxu0 0.0
        %1405 = vmatpush2.msra.mxu0 0.0
        %1406 = vmatprep.subr.mxu0 0.0
        %1407 = vmatpush2.msra.mxu0 0.0
        %1408 = vmatprep.subr.mxu0 0.0
        %1409 = vmatpush2.msra.mxu0 0.0
        %1410 = vmatprep.subr.mxu0 0.0
        %1411 = vmatpush2.msra.mxu0 0.0
        %1412 = vmatprep.subr.mxu0 0.0
        %1413 = vmatpush2.msra.mxu0 0.0
        %1414 = vmatprep.subr.mxu0 0.0
        %1415 = vmatpush2.msra.mxu0 0.0
        %1416 = vmatprep.mubr.f32.mxu0 0.0
        %1417 = vmatmul.mubr.f32.gmra.mxu0 %v563
        %v1418 = vpop.f32.mrf.mxu0
        %v1419 = vadd.f32 %v1350, %v1418
        %v1420 = vpop.f32.mrf.mxu0
        %1421 = vmatprep.mubr.f32.mxu0 0.0
        %1422 = vmatmul.mubr.f32.gmra.mxu0 %v566
        %v1423 = vpop.f32.mrf.mxu0
        %v1424 = vadd.f32 %v1350, %v1423
        %v1425 = vpop.f32.mrf.mxu0
        %1426 = vdwg.mxu0
        %v1428 = vsel %vm833, %v1239, 0
        %v1431 = vsel %vm833, %v1329, 0
        %1433 = vmatprep.subr.mxu0 0.0
        %1434 = vmatpush1.xpose.msra.mxu0 0.0
        %1435 = vmatprep.subr.mxu0 0.0
        %1436 = vmatpush1.xpose.msra.mxu0 0.0
        %1437 = vmatprep.subr.mxu0 0.0
        %1438 = vmatpush1.xpose.msra.mxu0 0.0
        %1439 = vmatprep.subr.mxu0 0.0
        %1440 = vmatpush1.xpose.msra.mxu0 0.0
        %1441 = vmatprep.subr.mxu0 0.0
        %1442 = vmatpush1.xpose.msra.mxu0 0.0
        %1443 = vmatprep.subr.mxu0 0.0
        %1444 = vmatpush1.xpose.msra.mxu0 0.0
        %1445 = vmatprep.subr.mxu0 0.0
        %1446 = vmatpush1.xpose.msra.mxu0 0.0
        %1447 = vmatprep.subr.mxu0 0.0
        %1448 = vmatpush1.xpose.msra.mxu0 0.0
        %1449 = vmatprep.subr.mxu0 0.0
        %1450 = vmatpush1.xpose.msra.mxu0 0.0
        %1451 = vmatprep.subr.mxu0 0.0
        %1452 = vmatpush1.xpose.msra.mxu0 0.0
        %1453 = vmatprep.subr.mxu0 0.0
        %1454 = vmatpush1.xpose.msra.mxu0 0.0
        %1455 = vmatprep.subr.mxu0 0.0
        %1456 = vmatpush1.xpose.msra.mxu0 0.0
        %1457 = vmatprep.subr.mxu0 0.0
        %1458 = vmatpush1.xpose.msra.mxu0 0.0
        %1459 = vmatprep.subr.mxu0 0.0
        %1460 = vmatpush1.xpose.msra.mxu0 0.0
        %1461 = vmatprep.subr.mxu0 0.0
        %1462 = vmatpush1.xpose.msra.mxu0 0.0
        %1463 = vmatprep.subr.mxu0 0.0
        %1464 = vmatpush1.xpose.msra.mxu0 %v1431
        %1465 = vmatprep.subr.mxu0 0.0
        %1466 = vmatpush2.xpose.msra.mxu0 0.0
        %1467 = vmatprep.subr.mxu0 0.0
        %1468 = vmatpush2.xpose.msra.mxu0 0.0
        %1469 = vmatprep.subr.mxu0 0.0
        %1470 = vmatpush2.xpose.msra.mxu0 0.0
        %1471 = vmatprep.subr.mxu0 0.0
        %1472 = vmatpush2.xpose.msra.mxu0 0.0
        %1473 = vmatprep.subr.mxu0 0.0
        %1474 = vmatpush2.xpose.msra.mxu0 0.0
        %1475 = vmatprep.subr.mxu0 0.0
        %1476 = vmatpush2.xpose.msra.mxu0 0.0
        %1477 = vmatprep.subr.mxu0 0.0
        %1478 = vmatpush2.xpose.msra.mxu0 0.0
        %1479 = vmatprep.subr.mxu0 0.0
        %1480 = vmatpush2.xpose.msra.mxu0 0.0
        %1481 = vmatprep.subr.mxu0 0.0
        %1482 = vmatpush2.xpose.msra.mxu0 0.0
        %1483 = vmatprep.subr.mxu0 0.0
        %1484 = vmatpush2.xpose.msra.mxu0 0.0
        %1485 = vmatprep.subr.mxu0 0.0
        %1486 = vmatpush2.xpose.msra.mxu0 0.0
        %1487 = vmatprep.subr.mxu0 0.0
        %1488 = vmatpush2.xpose.msra.mxu0 0.0
        %1489 = vmatprep.subr.mxu0 0.0
        %1490 = vmatpush2.xpose.msra.mxu0 0.0
        %1491 = vmatprep.subr.mxu0 0.0
        %1492 = vmatpush2.xpose.msra.mxu0 0.0
        %1493 = vmatprep.subr.mxu0 0.0
        %1494 = vmatpush2.xpose.msra.mxu0 0.0
        %1495 = vmatprep.subr.mxu0 0.0
        %1496 = vmatpush2.xpose.msra.mxu0 0.0
        %1497 = vmatprep.mubr.f32.mxu0 0.0
        %1498 = vmatmul.mubr.f32.gmra.mxu0 %v1428
        %v1499 = vpop.f32.mrf.mxu0
        %v1500 = vadd.f32 %v826, %v1499
        %v1501 = vpop.f32.mrf.mxu0
        %1502 = vdwg.mxu0
        %v1504 = vsel %vm833, %v1244, 0
        %v1507 = vsel %vm833, %v1334, 0
        %1509 = vmatprep.subr.mxu0 0.0
        %1510 = vmatpush1.xpose.msra.mxu0 0.0
        %1511 = vmatprep.subr.mxu0 0.0
        %1512 = vmatpush1.xpose.msra.mxu0 0.0
        %1513 = vmatprep.subr.mxu0 0.0
        %1514 = vmatpush1.xpose.msra.mxu0 0.0
        %1515 = vmatprep.subr.mxu0 0.0
        %1516 = vmatpush1.xpose.msra.mxu0 0.0
        %1517 = vmatprep.subr.mxu0 0.0
        %1518 = vmatpush1.xpose.msra.mxu0 0.0
        %1519 = vmatprep.subr.mxu0 0.0
        %1520 = vmatpush1.xpose.msra.mxu0 0.0
        %1521 = vmatprep.subr.mxu0 0.0
        %1522 = vmatpush1.xpose.msra.mxu0 0.0
        %1523 = vmatprep.subr.mxu0 0.0
        %1524 = vmatpush1.xpose.msra.mxu0 0.0
        %1525 = vmatprep.subr.mxu0 0.0
        %1526 = vmatpush1.xpose.msra.mxu0 0.0
        %1527 = vmatprep.subr.mxu0 0.0
        %1528 = vmatpush1.xpose.msra.mxu0 0.0
        %1529 = vmatprep.subr.mxu0 0.0
        %1530 = vmatpush1.xpose.msra.mxu0 0.0
        %1531 = vmatprep.subr.mxu0 0.0
        %1532 = vmatpush1.xpose.msra.mxu0 0.0
        %1533 = vmatprep.subr.mxu0 0.0
        %1534 = vmatpush1.xpose.msra.mxu0 0.0
        %1535 = vmatprep.subr.mxu0 0.0
        %1536 = vmatpush1.xpose.msra.mxu0 0.0
        %1537 = vmatprep.subr.mxu0 0.0
        %1538 = vmatpush1.xpose.msra.mxu0 0.0
        %1539 = vmatprep.subr.mxu0 0.0
        %1540 = vmatpush1.xpose.msra.mxu0 %v1507
        %1541 = vmatprep.subr.mxu0 0.0
        %1542 = vmatpush2.xpose.msra.mxu0 0.0
        %1543 = vmatprep.subr.mxu0 0.0
        %1544 = vmatpush2.xpose.msra.mxu0 0.0
        %1545 = vmatprep.subr.mxu0 0.0
        %1546 = vmatpush2.xpose.msra.mxu0 0.0
        %1547 = vmatprep.subr.mxu0 0.0
        %1548 = vmatpush2.xpose.msra.mxu0 0.0
        %1549 = vmatprep.subr.mxu0 0.0
        %1550 = vmatpush2.xpose.msra.mxu0 0.0
        %1551 = vmatprep.subr.mxu0 0.0
        %1552 = vmatpush2.xpose.msra.mxu0 0.0
        %1553 = vmatprep.subr.mxu0 0.0
        %1554 = vmatpush2.xpose.msra.mxu0 0.0
        %1555 = vmatprep.subr.mxu0 0.0
        %1556 = vmatpush2.xpose.msra.mxu0 0.0
        %1557 = vmatprep.subr.mxu0 0.0
        %1558 = vmatpush2.xpose.msra.mxu0 0.0
        %1559 = vmatprep.subr.mxu0 0.0
        %1560 = vmatpush2.xpose.msra.mxu0 0.0
        %1561 = vmatprep.subr.mxu0 0.0
        %1562 = vmatpush2.xpose.msra.mxu0 0.0
        %1563 = vmatprep.subr.mxu0 0.0
        %1564 = vmatpush2.xpose.msra.mxu0 0.0
        %1565 = vmatprep.subr.mxu0 0.0
        %1566 = vmatpush2.xpose.msra.mxu0 0.0
        %1567 = vmatprep.subr.mxu0 0.0
        %1568 = vmatpush2.xpose.msra.mxu0 0.0
        %1569 = vmatprep.subr.mxu0 0.0
        %1570 = vmatpush2.xpose.msra.mxu0 0.0
        %1571 = vmatprep.subr.mxu0 0.0
        %1572 = vmatpush2.xpose.msra.mxu0 0.0
        %1573 = vmatprep.mubr.f32.mxu0 0.0
        %1574 = vmatmul.mubr.f32.gmra.mxu0 %v1504
        %v1575 = vpop.f32.mrf.mxu0
        %v1576 = vadd.f32 %v830, %v1575
        %v1577 = vpop.f32.mrf.mxu0
        %1578 = vdwg.mxu0
        %v1579 = vsel %vm833, %v1500, -inf
        %1580 = vmax.xlane.f32.xlu0 %v1579
        %v1581 = vpop.xlane.xlu0 %1580
        %v1582 = vsel %vm833, %v1576, -inf
        %1583 = vmax.xlane.f32.xlu0 %v1582
        %v1584 = vpop.xlane.xlu0 %1583
        %v1585 = vsub.f32 %v1500, %v1581
        %v1586 = vsub.f32 %v1576, %v1584
        %v1587 = vmul.f32 %v1585, 1.442695
        %v1588 = vpow.pop %v1587
        %v1589 = vmul.f32 %v1586, 1.442695
        %v1590 = vpow.pop %v1589
        %v1591 = vsel %vm833, %v1588, 0.0
        %1592 = vadd.xlane.f32.xlu0 %v1591
        %v1593 = vpop.xlane.xlu0 %1592
        %v1594 = vsel %vm833, %v1590, 0.0
        %1595 = vadd.xlane.f32.xlu0 %v1594
        %v1596 = vpop.xlane.xlu0 %1595
        %v1597 = vrcp.pop %v1593
        %v1598 = vrcp.pop %v1596
        %v1599 = vmul.f32 %v1588, %v1597
        %v1600 = vmul.f32 %v1590, %v1598
        %v1602 = vsel %vm833, %v1599, 0
        %1604 = vmatprep.subr.mxu0 0.0
        %1605 = vmatpush1.msra.mxu0 0.0
        %1606 = vmatprep.subr.mxu0 0.0
        %1607 = vmatpush1.msra.mxu0 0.0
        %1608 = vmatprep.subr.mxu0 0.0
        %1609 = vmatpush1.msra.mxu0 0.0
        %1610 = vmatprep.subr.mxu0 0.0
        %1611 = vmatpush1.msra.mxu0 0.0
        %1612 = vmatprep.subr.mxu0 0.0
        %1613 = vmatpush1.msra.mxu0 0.0
        %1614 = vmatprep.subr.mxu0 0.0
        %1615 = vmatpush1.msra.mxu0 0.0
        %1616 = vmatprep.subr.mxu0 0.0
        %1617 = vmatpush1.msra.mxu0 0.0
        %1618 = vmatprep.subr.mxu0 0.0
        %1619 = vmatpush1.msra.mxu0 0.0
        %1620 = vmatprep.subr.mxu0 0.0
        %1621 = vmatpush1.msra.mxu0 0.0
        %1622 = vmatprep.subr.mxu0 0.0
        %1623 = vmatpush1.msra.mxu0 0.0
        %1624 = vmatprep.subr.mxu0 0.0
        %1625 = vmatpush1.msra.mxu0 0.0
        %1626 = vmatprep.subr.mxu0 0.0
        %1627 = vmatpush1.msra.mxu0 0.0
        %1628 = vmatprep.subr.mxu0 0.0
        %1629 = vmatpush1.msra.mxu0 0.0
        %1630 = vmatprep.subr.mxu0 0.0
        %1631 = vmatpush1.msra.mxu0 0.0
        %1632 = vmatprep.subr.mxu0 0.0
        %1633 = vmatpush1.msra.mxu0 0.0
        %1634 = vmatprep.subr.mxu0 0.0
        %1635 = vmatpush1.msra.mxu0 %v1419
        %1636 = vmatprep.subr.mxu0 0.0
        %1637 = vmatpush2.msra.mxu0 0.0
        %1638 = vmatprep.subr.mxu0 0.0
        %1639 = vmatpush2.msra.mxu0 0.0
        %1640 = vmatprep.subr.mxu0 0.0
        %1641 = vmatpush2.msra.mxu0 0.0
        %1642 = vmatprep.subr.mxu0 0.0
        %1643 = vmatpush2.msra.mxu0 0.0
        %1644 = vmatprep.subr.mxu0 0.0
        %1645 = vmatpush2.msra.mxu0 0.0
        %1646 = vmatprep.subr.mxu0 0.0
        %1647 = vmatpush2.msra.mxu0 0.0
        %1648 = vmatprep.subr.mxu0 0.0
        %1649 = vmatpush2.msra.mxu0 0.0
        %1650 = vmatprep.subr.mxu0 0.0
        %1651 = vmatpush2.msra.mxu0 0.0
        %1652 = vmatprep.subr.mxu0 0.0
        %1653 = vmatpush2.msra.mxu0 0.0
        %1654 = vmatprep.subr.mxu0 0.0
        %1655 = vmatpush2.msra.mxu0 0.0
        %1656 = vmatprep.subr.mxu0 0.0
        %1657 = vmatpush2.msra.mxu0 0.0
        %1658 = vmatprep.subr.mxu0 0.0
        %1659 = vmatpush2.msra.mxu0 0.0
        %1660 = vmatprep.subr.mxu0 0.0
        %1661 = vmatpush2.msra.mxu0 0.0
        %1662 = vmatprep.subr.mxu0 0.0
        %1663 = vmatpush2.msra.mxu0 0.0
        %1664 = vmatprep.subr.mxu0 0.0
        %1665 = vmatpush2.msra.mxu0 0.0
        %1666 = vmatprep.subr.mxu0 0.0
        %1667 = vmatpush2.msra.mxu0 0.0
        %1668 = vmatprep.mubr.f32.mxu0 0.0
        %1669 = vmatmul.mubr.f32.gmra.mxu0 %v1602
        %v1670 = vpop.f32.mrf.mxu0
        %v1671 = vadd.f32 0.0, %v1670
        %v1672 = vpop.f32.mrf.mxu0
        %1673 = vdwg.mxu0
        %v1675 = vsel %vm833, %v1600, 0
        %1677 = vmatprep.subr.mxu0 0.0
        %1678 = vmatpush1.msra.mxu0 0.0
        %1679 = vmatprep.subr.mxu0 0.0
        %1680 = vmatpush1.msra.mxu0 0.0
        %1681 = vmatprep.subr.mxu0 0.0
        %1682 = vmatpush1.msra.mxu0 0.0
        %1683 = vmatprep.subr.mxu0 0.0
        %1684 = vmatpush1.msra.mxu0 0.0
        %1685 = vmatprep.subr.mxu0 0.0
        %1686 = vmatpush1.msra.mxu0 0.0
        %1687 = vmatprep.subr.mxu0 0.0
        %1688 = vmatpush1.msra.mxu0 0.0
        %1689 = vmatprep.subr.mxu0 0.0
        %1690 = vmatpush1.msra.mxu0 0.0
        %1691 = vmatprep.subr.mxu0 0.0
        %1692 = vmatpush1.msra.mxu0 0.0
        %1693 = vmatprep.subr.mxu0 0.0
        %1694 = vmatpush1.msra.mxu0 0.0
        %1695 = vmatprep.subr.mxu0 0.0
        %1696 = vmatpush1.msra.mxu0 0.0
        %1697 = vmatprep.subr.mxu0 0.0
        %1698 = vmatpush1.msra.mxu0 0.0
        %1699 = vmatprep.subr.mxu0 0.0
        %1700 = vmatpush1.msra.mxu0 0.0
        %1701 = vmatprep.subr.mxu0 0.0
        %1702 = vmatpush1.msra.mxu0 0.0
        %1703 = vmatprep.subr.mxu0 0.0
        %1704 = vmatpush1.msra.mxu0 0.0
        %1705 = vmatprep.subr.mxu0 0.0
        %1706 = vmatpush1.msra.mxu0 0.0
        %1707 = vmatprep.subr.mxu0 0.0
        %1708 = vmatpush1.msra.mxu0 %v1424
        %1709 = vmatprep.subr.mxu0 0.0
        %1710 = vmatpush2.msra.mxu0 0.0
        %1711 = vmatprep.subr.mxu0 0.0
        %1712 = vmatpush2.msra.mxu0 0.0
        %1713 = vmatprep.subr.mxu0 0.0
        %1714 = vmatpush2.msra.mxu0 0.0
        %1715 = vmatprep.subr.mxu0 0.0
        %1716 = vmatpush2.msra.mxu0 0.0
        %1717 = vmatprep.subr.mxu0 0.0
        %1718 = vmatpush2.msra.mxu0 0.0
        %1719 = vmatprep.subr.mxu0 0.0
        %1720 = vmatpush2.msra.mxu0 0.0
        %1721 = vmatprep.subr.mxu0 0.0
        %1722 = vmatpush2.msra.mxu0 0.0
        %1723 = vmatprep.subr.mxu0 0.0
        %1724 = vmatpush2.msra.mxu0 0.0
        %1725 = vmatprep.subr.mxu0 0.0
        %1726 = vmatpush2.msra.mxu0 0.0
        %1727 = vmatprep.subr.mxu0 0.0
        %1728 = vmatpush2.msra.mxu0 0.0
        %1729 = vmatprep.subr.mxu0 0.0
        %1730 = vmatpush2.msra.mxu0 0.0
        %1731 = vmatprep.subr.mxu0 0.0
        %1732 = vmatpush2.msra.mxu0 0.0
        %1733 = vmatprep.subr.mxu0 0.0
        %1734 = vmatpush2.msra.mxu0 0.0
        %1735 = vmatprep.subr.mxu0 0.0
        %1736 = vmatpush2.msra.mxu0 0.0
        %1737 = vmatprep.subr.mxu0 0.0
        %1738 = vmatpush2.msra.mxu0 0.0
        %1739 = vmatprep.subr.mxu0 0.0
        %1740 = vmatpush2.msra.mxu0 0.0
        %1741 = vmatprep.mubr.f32.mxu0 0.0
        %1742 = vmatmul.mubr.f32.gmra.mxu0 %v1675
        %v1743 = vpop.f32.mrf.mxu0
        %v1744 = vadd.f32 0.0, %v1743
        %v1745 = vpop.f32.mrf.mxu0
        %1746 = vdwg.mxu0
        %s1747 = sadd.s32 8, %s1154
        %s1748 = scalar_lea.vmem %s4, %s1747
        %v1749 = vld [vmem:[%s1748] sm:$0xff]
        %v1751 = vsel %vm833, %v1671, 0
        %v1754 = vsel %vm833, %v1744, 0
        %1756 = vmatprep.subr.mxu0 0.0
        %1757 = vmatpush1.msra.mxu0 0.0
        %1758 = vmatprep.subr.mxu0 0.0
        %1759 = vmatpush1.msra.mxu0 0.0
        %1760 = vmatprep.subr.mxu0 0.0
        %1761 = vmatpush1.msra.mxu0 0.0
        %1762 = vmatprep.subr.mxu0 0.0
        %1763 = vmatpush1.msra.mxu0 0.0
        %1764 = vmatprep.subr.mxu0 0.0
        %1765 = vmatpush1.msra.mxu0 0.0
        %1766 = vmatprep.subr.mxu0 0.0
        %1767 = vmatpush1.msra.mxu0 0.0
        %1768 = vmatprep.subr.mxu0 0.0
        %1769 = vmatpush1.msra.mxu0 0.0
        %1770 = vmatprep.subr.mxu0 0.0
        %1771 = vmatpush1.msra.mxu0 0.0
        %1772 = vmatprep.subr.mxu0 0.0
        %1773 = vmatpush1.msra.mxu0 0.0
        %1774 = vmatprep.subr.mxu0 0.0
        %1775 = vmatpush1.msra.mxu0 0.0
        %1776 = vmatprep.subr.mxu0 0.0
        %1777 = vmatpush1.msra.mxu0 0.0
        %1778 = vmatprep.subr.mxu0 0.0
        %1779 = vmatpush1.msra.mxu0 0.0
        %1780 = vmatprep.subr.mxu0 0.0
        %1781 = vmatpush1.msra.mxu0 0.0
        %1782 = vmatprep.subr.mxu0 0.0
        %1783 = vmatpush1.msra.mxu0 0.0
        %1784 = vmatprep.subr.mxu0 0.0
        %1785 = vmatpush1.msra.mxu0 0.0
        %1786 = vmatprep.subr.mxu0 0.0
        %1787 = vmatpush1.msra.mxu0 %v1749
        %1788 = vmatprep.subr.mxu0 0.0
        %1789 = vmatpush2.msra.mxu0 0.0
        %1790 = vmatprep.subr.mxu0 0.0
        %1791 = vmatpush2.msra.mxu0 0.0
        %1792 = vmatprep.subr.mxu0 0.0
        %1793 = vmatpush2.msra.mxu0 0.0
        %1794 = vmatprep.subr.mxu0 0.0
        %1795 = vmatpush2.msra.mxu0 0.0
        %1796 = vmatprep.subr.mxu0 0.0
        %1797 = vmatpush2.msra.mxu0 0.0
        %1798 = vmatprep.subr.mxu0 0.0
        %1799 = vmatpush2.msra.mxu0 0.0
        %1800 = vmatprep.subr.mxu0 0.0
        %1801 = vmatpush2.msra.mxu0 0.0
        %1802 = vmatprep.subr.mxu0 0.0
        %1803 = vmatpush2.msra.mxu0 0.0
        %1804 = vmatprep.subr.mxu0 0.0
        %1805 = vmatpush2.msra.mxu0 0.0
        %1806 = vmatprep.subr.mxu0 0.0
        %1807 = vmatpush2.msra.mxu0 0.0
        %1808 = vmatprep.subr.mxu0 0.0
        %1809 = vmatpush2.msra.mxu0 0.0
        %1810 = vmatprep.subr.mxu0 0.0
        %1811 = vmatpush2.msra.mxu0 0.0
        %1812 = vmatprep.subr.mxu0 0.0
        %1813 = vmatpush2.msra.mxu0 0.0
        %1814 = vmatprep.subr.mxu0 0.0
        %1815 = vmatpush2.msra.mxu0 0.0
        %1816 = vmatprep.subr.mxu0 0.0
        %1817 = vmatpush2.msra.mxu0 0.0
        %1818 = vmatprep.subr.mxu0 0.0
        %1819 = vmatpush2.msra.mxu0 0.0
        %1820 = vmatprep.mubr.f32.mxu0 0.0
        %1821 = vmatmul.mubr.f32.gmra.mxu0 %v1751
        %v1822 = vpop.f32.mrf.mxu0
        %v1823 = vadd.f32 0.0, %v1822
        %v1824 = vpop.f32.mrf.mxu0
        %1825 = vmatprep.mubr.f32.mxu0 0.0
        %1826 = vmatmul.mubr.f32.gmra.mxu0 %v1754
        %v1827 = vpop.f32.mrf.mxu0
        %v1828 = vadd.f32 0.0, %v1827
        %v1829 = vpop.f32.mrf.mxu0
        %1830 = vdwg.mxu0
        %v1832 = vsel %vm833, %v1078, 0
        %v1835 = vsel %vm833, %v1151, 0
        %1837 = vmatprep.subr.mxu0 0.0
        %1838 = vmatpush1.msra.mxu0 0.0
        %1839 = vmatprep.subr.mxu0 0.0
        %1840 = vmatpush1.msra.mxu0 0.0
        %1841 = vmatprep.subr.mxu0 0.0
        %1842 = vmatpush1.msra.mxu0 0.0
        %1843 = vmatprep.subr.mxu0 0.0
        %1844 = vmatpush1.msra.mxu0 0.0
        %1845 = vmatprep.subr.mxu0 0.0
        %1846 = vmatpush1.msra.mxu0 0.0
        %1847 = vmatprep.subr.mxu0 0.0
        %1848 = vmatpush1.msra.mxu0 0.0
        %1849 = vmatprep.subr.mxu0 0.0
        %1850 = vmatpush1.msra.mxu0 0.0
        %1851 = vmatprep.subr.mxu0 0.0
        %1852 = vmatpush1.msra.mxu0 0.0
        %1853 = vmatprep.subr.mxu0 0.0
        %1854 = vmatpush1.msra.mxu0 0.0
        %1855 = vmatprep.subr.mxu0 0.0
        %1856 = vmatpush1.msra.mxu0 0.0
        %1857 = vmatprep.subr.mxu0 0.0
        %1858 = vmatpush1.msra.mxu0 0.0
        %1859 = vmatprep.subr.mxu0 0.0
        %1860 = vmatpush1.msra.mxu0 0.0
        %1861 = vmatprep.subr.mxu0 0.0
        %1862 = vmatpush1.msra.mxu0 0.0
        %1863 = vmatprep.subr.mxu0 0.0
        %1864 = vmatpush1.msra.mxu0 0.0
        %1865 = vmatprep.subr.mxu0 0.0
        %1866 = vmatpush1.msra.mxu0 0.0
        %1867 = vmatprep.subr.mxu0 0.0
        %1868 = vmatpush1.msra.mxu0 %v1156
        %1869 = vmatprep.subr.mxu0 0.0
        %1870 = vmatpush2.msra.mxu0 0.0
        %1871 = vmatprep.subr.mxu0 0.0
        %1872 = vmatpush2.msra.mxu0 0.0
        %1873 = vmatprep.subr.mxu0 0.0
        %1874 = vmatpush2.msra.mxu0 0.0
        %1875 = vmatprep.subr.mxu0 0.0
        %1876 = vmatpush2.msra.mxu0 0.0
        %1877 = vmatprep.subr.mxu0 0.0
        %1878 = vmatpush2.msra.mxu0 0.0
        %1879 = vmatprep.subr.mxu0 0.0
        %1880 = vmatpush2.msra.mxu0 0.0
        %1881 = vmatprep.subr.mxu0 0.0
        %1882 = vmatpush2.msra.mxu0 0.0
        %1883 = vmatprep.subr.mxu0 0.0
        %1884 = vmatpush2.msra.mxu0 0.0
        %1885 = vmatprep.subr.mxu0 0.0
        %1886 = vmatpush2.msra.mxu0 0.0
        %1887 = vmatprep.subr.mxu0 0.0
        %1888 = vmatpush2.msra.mxu0 0.0
        %1889 = vmatprep.subr.mxu0 0.0
        %1890 = vmatpush2.msra.mxu0 0.0
        %1891 = vmatprep.subr.mxu0 0.0
        %1892 = vmatpush2.msra.mxu0 0.0
        %1893 = vmatprep.subr.mxu0 0.0
        %1894 = vmatpush2.msra.mxu0 0.0
        %1895 = vmatprep.subr.mxu0 0.0
        %1896 = vmatpush2.msra.mxu0 0.0
        %1897 = vmatprep.subr.mxu0 0.0
        %1898 = vmatpush2.msra.mxu0 0.0
        %1899 = vmatprep.subr.mxu0 0.0
        %1900 = vmatpush2.msra.mxu0 0.0
        %1901 = vmatprep.mubr.f32.mxu0 0.0
        %1902 = vmatmul.mubr.f32.gmra.mxu0 %v1832
        %v1903 = vpop.f32.mrf.mxu0
        %v1904 = vadd.f32 %v1823, %v1903
        %v1905 = vpop.f32.mrf.mxu0
        %1906 = vmatprep.mubr.f32.mxu0 0.0
        %1907 = vmatmul.mubr.f32.gmra.mxu0 %v1835
        %v1908 = vpop.f32.mrf.mxu0
        %v1909 = vadd.f32 %v1828, %v1908
        %v1910 = vpop.f32.mrf.mxu0
        %1911 = vdwg.mxu0
        %s1912 = sadd.s32 64, %s547
        %s1913 = scalar_lea.vmem %s2, %s1912
        %v1914 = vld [vmem:[%s1913] sm:$0xff]
        %v1915 = vld [vmem:[%s1913 + $0x8] sm:$0xff]
        %v1916 = vld [vmem:[%s1913 + $0x10] sm:$0xff]
        %v1917 = vld [vmem:[%s1913 + $0x18] sm:$0xff]
        %s1918 = sadd.s32 2, %s553
        %s1919 = scalar_lea.vmem %s3, %s1918
        %v1920 = vld [vmem:[%s1919] sm:$0x1]
        %v1922 = vlaneseq
        %v1923 = vshrl.u32 %v1922, 7
        %v1924 = vsub.s32 0, %v1923
        %v1925 = vrot.slane %v1920, %v1924
        %1927 = vmatprep.subr.mxu0 0.0
        %1928 = vmatpush1.msra.mxu0 0.0
        %1929 = vmatprep.subr.mxu0 0.0
        %1930 = vmatpush1.msra.mxu0 0.0
        %1931 = vmatprep.subr.mxu0 0.0
        %1932 = vmatpush1.msra.mxu0 0.0
        %1933 = vmatprep.subr.mxu0 0.0
        %1934 = vmatpush1.msra.mxu0 0.0
        %1935 = vmatprep.subr.mxu0 0.0
        %1936 = vmatpush1.msra.mxu0 0.0
        %1937 = vmatprep.subr.mxu0 0.0
        %1938 = vmatpush1.msra.mxu0 0.0
        %1939 = vmatprep.subr.mxu0 0.0
        %1940 = vmatpush1.msra.mxu0 0.0
        %1941 = vmatprep.subr.mxu0 0.0
        %1942 = vmatpush1.msra.mxu0 0.0
        %1943 = vmatprep.subr.mxu0 0.0
        %1944 = vmatpush1.msra.mxu0 0.0
        %1945 = vmatprep.subr.mxu0 0.0
        %1946 = vmatpush1.msra.mxu0 0.0
        %1947 = vmatprep.subr.mxu0 0.0
        %1948 = vmatpush1.msra.mxu0 0.0
        %1949 = vmatprep.subr.mxu0 0.0
        %1950 = vmatpush1.msra.mxu0 0.0
        %1951 = vmatprep.subr.mxu0 0.0
        %1952 = vmatpush1.msra.mxu0 %v1917
        %1953 = vmatprep.subr.mxu0 0.0
        %1954 = vmatpush1.msra.mxu0 %v1916
        %1955 = vmatprep.subr.mxu0 0.0
        %1956 = vmatpush1.msra.mxu0 %v1915
        %1957 = vmatprep.subr.mxu0 0.0
        %1958 = vmatpush1.msra.mxu0 %v1914
        %1959 = vmatprep.subr.mxu0 0.0
        %1960 = vmatpush2.msra.mxu0 0.0
        %1961 = vmatprep.subr.mxu0 0.0
        %1962 = vmatpush2.msra.mxu0 0.0
        %1963 = vmatprep.subr.mxu0 0.0
        %1964 = vmatpush2.msra.mxu0 0.0
        %1965 = vmatprep.subr.mxu0 0.0
        %1966 = vmatpush2.msra.mxu0 0.0
        %1967 = vmatprep.subr.mxu0 0.0
        %1968 = vmatpush2.msra.mxu0 0.0
        %1969 = vmatprep.subr.mxu0 0.0
        %1970 = vmatpush2.msra.mxu0 0.0
        %1971 = vmatprep.subr.mxu0 0.0
        %1972 = vmatpush2.msra.mxu0 0.0
        %1973 = vmatprep.subr.mxu0 0.0
        %1974 = vmatpush2.msra.mxu0 0.0
        %1975 = vmatprep.subr.mxu0 0.0
        %1976 = vmatpush2.msra.mxu0 0.0
        %1977 = vmatprep.subr.mxu0 0.0
        %1978 = vmatpush2.msra.mxu0 0.0
        %1979 = vmatprep.subr.mxu0 0.0
        %1980 = vmatpush2.msra.mxu0 0.0
        %1981 = vmatprep.subr.mxu0 0.0
        %1982 = vmatpush2.msra.mxu0 0.0
        %1983 = vmatprep.subr.mxu0 0.0
        %1984 = vmatpush2.msra.mxu0 0.0
        %1985 = vmatprep.subr.mxu0 0.0
        %1986 = vmatpush2.msra.mxu0 0.0
        %1987 = vmatprep.subr.mxu0 0.0
        %1988 = vmatpush2.msra.mxu0 0.0
        %1989 = vmatprep.subr.mxu0 0.0
        %1990 = vmatpush2.msra.mxu0 0.0
        %1991 = vmatprep.mubr.f32.mxu0 0.0
        %1992 = vmatmul.mubr.f32.gmra.mxu0 %v563
        %v1993 = vpop.f32.mrf.mxu0
        %v1994 = vadd.f32 %v1925, %v1993
        %v1995 = vpop.f32.mrf.mxu0
        %1996 = vmatprep.mubr.f32.mxu0 0.0
        %1997 = vmatmul.mubr.f32.gmra.mxu0 %v566
        %v1998 = vpop.f32.mrf.mxu0
        %v1999 = vadd.f32 %v1925, %v1998
        %v2000 = vpop.f32.mrf.mxu0
        %2001 = vdwg.mxu0
        %s2002 = sadd.s32 192, %s547
        %s2003 = scalar_lea.vmem %s2, %s2002
        %v2004 = vld [vmem:[%s2003] sm:$0xff]
        %v2005 = vld [vmem:[%s2003 + $0x8] sm:$0xff]
        %v2006 = vld [vmem:[%s2003 + $0x10] sm:$0xff]
        %v2007 = vld [vmem:[%s2003 + $0x18] sm:$0xff]
        %s2008 = sadd.s32 6, %s553
        %s2009 = scalar_lea.vmem %s3, %s2008
        %v2010 = vld [vmem:[%s2009] sm:$0x1]
        %v2012 = vlaneseq
        %v2013 = vshrl.u32 %v2012, 7
        %v2014 = vsub.s32 0, %v2013
        %v2015 = vrot.slane %v2010, %v2014
        %2017 = vmatprep.subr.mxu0 0.0
        %2018 = vmatpush1.msra.mxu0 0.0
        %2019 = vmatprep.subr.mxu0 0.0
        %2020 = vmatpush1.msra.mxu0 0.0
        %2021 = vmatprep.subr.mxu0 0.0
        %2022 = vmatpush1.msra.mxu0 0.0
        %2023 = vmatprep.subr.mxu0 0.0
        %2024 = vmatpush1.msra.mxu0 0.0
        %2025 = vmatprep.subr.mxu0 0.0
        %2026 = vmatpush1.msra.mxu0 0.0
        %2027 = vmatprep.subr.mxu0 0.0
        %2028 = vmatpush1.msra.mxu0 0.0
        %2029 = vmatprep.subr.mxu0 0.0
        %2030 = vmatpush1.msra.mxu0 0.0
        %2031 = vmatprep.subr.mxu0 0.0
        %2032 = vmatpush1.msra.mxu0 0.0
        %2033 = vmatprep.subr.mxu0 0.0
        %2034 = vmatpush1.msra.mxu0 0.0
        %2035 = vmatprep.subr.mxu0 0.0
        %2036 = vmatpush1.msra.mxu0 0.0
        %2037 = vmatprep.subr.mxu0 0.0
        %2038 = vmatpush1.msra.mxu0 0.0
        %2039 = vmatprep.subr.mxu0 0.0
        %2040 = vmatpush1.msra.mxu0 0.0
        %2041 = vmatprep.subr.mxu0 0.0
        %2042 = vmatpush1.msra.mxu0 %v2007
        %2043 = vmatprep.subr.mxu0 0.0
        %2044 = vmatpush1.msra.mxu0 %v2006
        %2045 = vmatprep.subr.mxu0 0.0
        %2046 = vmatpush1.msra.mxu0 %v2005
        %2047 = vmatprep.subr.mxu0 0.0
        %2048 = vmatpush1.msra.mxu0 %v2004
        %2049 = vmatprep.subr.mxu0 0.0
        %2050 = vmatpush2.msra.mxu0 0.0
        %2051 = vmatprep.subr.mxu0 0.0
        %2052 = vmatpush2.msra.mxu0 0.0
        %2053 = vmatprep.subr.mxu0 0.0
        %2054 = vmatpush2.msra.mxu0 0.0
        %2055 = vmatprep.subr.mxu0 0.0
        %2056 = vmatpush2.msra.mxu0 0.0
        %2057 = vmatprep.subr.mxu0 0.0
        %2058 = vmatpush2.msra.mxu0 0.0
        %2059 = vmatprep.subr.mxu0 0.0
        %2060 = vmatpush2.msra.mxu0 0.0
        %2061 = vmatprep.subr.mxu0 0.0
        %2062 = vmatpush2.msra.mxu0 0.0
        %2063 = vmatprep.subr.mxu0 0.0
        %2064 = vmatpush2.msra.mxu0 0.0
        %2065 = vmatprep.subr.mxu0 0.0
        %2066 = vmatpush2.msra.mxu0 0.0
        %2067 = vmatprep.subr.mxu0 0.0
        %2068 = vmatpush2.msra.mxu0 0.0
        %2069 = vmatprep.subr.mxu0 0.0
        %2070 = vmatpush2.msra.mxu0 0.0
        %2071 = vmatprep.subr.mxu0 0.0
        %2072 = vmatpush2.msra.mxu0 0.0
        %2073 = vmatprep.subr.mxu0 0.0
        %2074 = vmatpush2.msra.mxu0 0.0
        %2075 = vmatprep.subr.mxu0 0.0
        %2076 = vmatpush2.msra.mxu0 0.0
        %2077 = vmatprep.subr.mxu0 0.0
        %2078 = vmatpush2.msra.mxu0 0.0
        %2079 = vmatprep.subr.mxu0 0.0
        %2080 = vmatpush2.msra.mxu0 0.0
        %2081 = vmatprep.mubr.f32.mxu0 0.0
        %2082 = vmatmul.mubr.f32.gmra.mxu0 %v563
        %v2083 = vpop.f32.mrf.mxu0
        %v2084 = vadd.f32 %v2015, %v2083
        %v2085 = vpop.f32.mrf.mxu0
        %2086 = vmatprep.mubr.f32.mxu0 0.0
        %2087 = vmatmul.mubr.f32.gmra.mxu0 %v566
        %v2088 = vpop.f32.mrf.mxu0
        %v2089 = vadd.f32 %v2015, %v2088
        %v2090 = vpop.f32.mrf.mxu0
        %2091 = vdwg.mxu0
        %s2092 = sadd.s32 320, %s547
        %s2093 = scalar_lea.vmem %s2, %s2092
        %v2094 = vld [vmem:[%s2093] sm:$0xff]
        %v2095 = vld [vmem:[%s2093 + $0x8] sm:$0xff]
        %v2096 = vld [vmem:[%s2093 + $0x10] sm:$0xff]
        %v2097 = vld [vmem:[%s2093 + $0x18] sm:$0xff]
        %s2098 = sadd.s32 10, %s553
        %s2099 = scalar_lea.vmem %s3, %s2098
        %v2100 = vld [vmem:[%s2099] sm:$0x1]
        %v2102 = vlaneseq
        %v2103 = vshrl.u32 %v2102, 7
        %v2104 = vsub.s32 0, %v2103
        %v2105 = vrot.slane %v2100, %v2104
        %2107 = vmatprep.subr.mxu0 0.0
        %2108 = vmatpush1.msra.mxu0 0.0
        %2109 = vmatprep.subr.mxu0 0.0
        %2110 = vmatpush1.msra.mxu0 0.0
        %2111 = vmatprep.subr.mxu0 0.0
        %2112 = vmatpush1.msra.mxu0 0.0
        %2113 = vmatprep.subr.mxu0 0.0
        %2114 = vmatpush1.msra.mxu0 0.0
        %2115 = vmatprep.subr.mxu0 0.0
        %2116 = vmatpush1.msra.mxu0 0.0
        %2117 = vmatprep.subr.mxu0 0.0
        %2118 = vmatpush1.msra.mxu0 0.0
        %2119 = vmatprep.subr.mxu0 0.0
        %2120 = vmatpush1.msra.mxu0 0.0
        %2121 = vmatprep.subr.mxu0 0.0
        %2122 = vmatpush1.msra.mxu0 0.0
        %2123 = vmatprep.subr.mxu0 0.0
        %2124 = vmatpush1.msra.mxu0 0.0
        %2125 = vmatprep.subr.mxu0 0.0
        %2126 = vmatpush1.msra.mxu0 0.0
        %2127 = vmatprep.subr.mxu0 0.0
        %2128 = vmatpush1.msra.mxu0 0.0
        %2129 = vmatprep.subr.mxu0 0.0
        %2130 = vmatpush1.msra.mxu0 0.0
        %2131 = vmatprep.subr.mxu0 0.0
        %2132 = vmatpush1.msra.mxu0 %v2097
        %2133 = vmatprep.subr.mxu0 0.0
        %2134 = vmatpush1.msra.mxu0 %v2096
        %2135 = vmatprep.subr.mxu0 0.0
        %2136 = vmatpush1.msra.mxu0 %v2095
        %2137 = vmatprep.subr.mxu0 0.0
        %2138 = vmatpush1.msra.mxu0 %v2094
        %2139 = vmatprep.subr.mxu0 0.0
        %2140 = vmatpush2.msra.mxu0 0.0
        %2141 = vmatprep.subr.mxu0 0.0
        %2142 = vmatpush2.msra.mxu0 0.0
        %2143 = vmatprep.subr.mxu0 0.0
        %2144 = vmatpush2.msra.mxu0 0.0
        %2145 = vmatprep.subr.mxu0 0.0
        %2146 = vmatpush2.msra.mxu0 0.0
        %2147 = vmatprep.subr.mxu0 0.0
        %2148 = vmatpush2.msra.mxu0 0.0
        %2149 = vmatprep.subr.mxu0 0.0
        %2150 = vmatpush2.msra.mxu0 0.0
        %2151 = vmatprep.subr.mxu0 0.0
        %2152 = vmatpush2.msra.mxu0 0.0
        %2153 = vmatprep.subr.mxu0 0.0
        %2154 = vmatpush2.msra.mxu0 0.0
        %2155 = vmatprep.subr.mxu0 0.0
        %2156 = vmatpush2.msra.mxu0 0.0
        %2157 = vmatprep.subr.mxu0 0.0
        %2158 = vmatpush2.msra.mxu0 0.0
        %2159 = vmatprep.subr.mxu0 0.0
        %2160 = vmatpush2.msra.mxu0 0.0
        %2161 = vmatprep.subr.mxu0 0.0
        %2162 = vmatpush2.msra.mxu0 0.0
        %2163 = vmatprep.subr.mxu0 0.0
        %2164 = vmatpush2.msra.mxu0 0.0
        %2165 = vmatprep.subr.mxu0 0.0
        %2166 = vmatpush2.msra.mxu0 0.0
        %2167 = vmatprep.subr.mxu0 0.0
        %2168 = vmatpush2.msra.mxu0 0.0
        %2169 = vmatprep.subr.mxu0 0.0
        %2170 = vmatpush2.msra.mxu0 0.0
        %2171 = vmatprep.mubr.f32.mxu0 0.0
        %2172 = vmatmul.mubr.f32.gmra.mxu0 %v563
        %v2173 = vpop.f32.mrf.mxu0
        %v2174 = vadd.f32 %v2105, %v2173
        %v2175 = vpop.f32.mrf.mxu0
        %2176 = vmatprep.mubr.f32.mxu0 0.0
        %2177 = vmatmul.mubr.f32.gmra.mxu0 %v566
        %v2178 = vpop.f32.mrf.mxu0
        %v2179 = vadd.f32 %v2105, %v2178
        %v2180 = vpop.f32.mrf.mxu0
        %2181 = vdwg.mxu0
        %v2183 = vsel %vm833, %v1994, 0
        %v2186 = vsel %vm833, %v2084, 0
        %2188 = vmatprep.subr.mxu0 0.0
        %2189 = vmatpush1.xpose.msra.mxu0 0.0
        %2190 = vmatprep.subr.mxu0 0.0
        %2191 = vmatpush1.xpose.msra.mxu0 0.0
        %2192 = vmatprep.subr.mxu0 0.0
        %2193 = vmatpush1.xpose.msra.mxu0 0.0
        %2194 = vmatprep.subr.mxu0 0.0
        %2195 = vmatpush1.xpose.msra.mxu0 0.0
        %2196 = vmatprep.subr.mxu0 0.0
        %2197 = vmatpush1.xpose.msra.mxu0 0.0
        %2198 = vmatprep.subr.mxu0 0.0
        %2199 = vmatpush1.xpose.msra.mxu0 0.0
        %2200 = vmatprep.subr.mxu0 0.0
        %2201 = vmatpush1.xpose.msra.mxu0 0.0
        %2202 = vmatprep.subr.mxu0 0.0
        %2203 = vmatpush1.xpose.msra.mxu0 0.0
        %2204 = vmatprep.subr.mxu0 0.0
        %2205 = vmatpush1.xpose.msra.mxu0 0.0
        %2206 = vmatprep.subr.mxu0 0.0
        %2207 = vmatpush1.xpose.msra.mxu0 0.0
        %2208 = vmatprep.subr.mxu0 0.0
        %2209 = vmatpush1.xpose.msra.mxu0 0.0
        %2210 = vmatprep.subr.mxu0 0.0
        %2211 = vmatpush1.xpose.msra.mxu0 0.0
        %2212 = vmatprep.subr.mxu0 0.0
        %2213 = vmatpush1.xpose.msra.mxu0 0.0
        %2214 = vmatprep.subr.mxu0 0.0
        %2215 = vmatpush1.xpose.msra.mxu0 0.0
        %2216 = vmatprep.subr.mxu0 0.0
        %2217 = vmatpush1.xpose.msra.mxu0 0.0
        %2218 = vmatprep.subr.mxu0 0.0
        %2219 = vmatpush1.xpose.msra.mxu0 %v2186
        %2220 = vmatprep.subr.mxu0 0.0
        %2221 = vmatpush2.xpose.msra.mxu0 0.0
        %2222 = vmatprep.subr.mxu0 0.0
        %2223 = vmatpush2.xpose.msra.mxu0 0.0
        %2224 = vmatprep.subr.mxu0 0.0
        %2225 = vmatpush2.xpose.msra.mxu0 0.0
        %2226 = vmatprep.subr.mxu0 0.0
        %2227 = vmatpush2.xpose.msra.mxu0 0.0
        %2228 = vmatprep.subr.mxu0 0.0
        %2229 = vmatpush2.xpose.msra.mxu0 0.0
        %2230 = vmatprep.subr.mxu0 0.0
        %2231 = vmatpush2.xpose.msra.mxu0 0.0
        %2232 = vmatprep.subr.mxu0 0.0
        %2233 = vmatpush2.xpose.msra.mxu0 0.0
        %2234 = vmatprep.subr.mxu0 0.0
        %2235 = vmatpush2.xpose.msra.mxu0 0.0
        %2236 = vmatprep.subr.mxu0 0.0
        %2237 = vmatpush2.xpose.msra.mxu0 0.0
        %2238 = vmatprep.subr.mxu0 0.0
        %2239 = vmatpush2.xpose.msra.mxu0 0.0
        %2240 = vmatprep.subr.mxu0 0.0
        %2241 = vmatpush2.xpose.msra.mxu0 0.0
        %2242 = vmatprep.subr.mxu0 0.0
        %2243 = vmatpush2.xpose.msra.mxu0 0.0
        %2244 = vmatprep.subr.mxu0 0.0
        %2245 = vmatpush2.xpose.msra.mxu0 0.0
        %2246 = vmatprep.subr.mxu0 0.0
        %2247 = vmatpush2.xpose.msra.mxu0 0.0
        %2248 = vmatprep.subr.mxu0 0.0
        %2249 = vmatpush2.xpose.msra.mxu0 0.0
        %2250 = vmatprep.subr.mxu0 0.0
        %2251 = vmatpush2.xpose.msra.mxu0 0.0
        %2252 = vmatprep.mubr.f32.mxu0 0.0
        %2253 = vmatmul.mubr.f32.gmra.mxu0 %v2183
        %v2254 = vpop.f32.mrf.mxu0
        %v2255 = vadd.f32 %v826, %v2254
        %v2256 = vpop.f32.mrf.mxu0
        %2257 = vdwg.mxu0
        %v2259 = vsel %vm833, %v1999, 0
        %v2262 = vsel %vm833, %v2089, 0
        %2264 = vmatprep.subr.mxu0 0.0
        %2265 = vmatpush1.xpose.msra.mxu0 0.0
        %2266 = vmatprep.subr.mxu0 0.0
        %2267 = vmatpush1.xpose.msra.mxu0 0.0
        %2268 = vmatprep.subr.mxu0 0.0
        %2269 = vmatpush1.xpose.msra.mxu0 0.0
        %2270 = vmatprep.subr.mxu0 0.0
        %2271 = vmatpush1.xpose.msra.mxu0 0.0
        %2272 = vmatprep.subr.mxu0 0.0
        %2273 = vmatpush1.xpose.msra.mxu0 0.0
        %2274 = vmatprep.subr.mxu0 0.0
        %2275 = vmatpush1.xpose.msra.mxu0 0.0
        %2276 = vmatprep.subr.mxu0 0.0
        %2277 = vmatpush1.xpose.msra.mxu0 0.0
        %2278 = vmatprep.subr.mxu0 0.0
        %2279 = vmatpush1.xpose.msra.mxu0 0.0
        %2280 = vmatprep.subr.mxu0 0.0
        %2281 = vmatpush1.xpose.msra.mxu0 0.0
        %2282 = vmatprep.subr.mxu0 0.0
        %2283 = vmatpush1.xpose.msra.mxu0 0.0
        %2284 = vmatprep.subr.mxu0 0.0
        %2285 = vmatpush1.xpose.msra.mxu0 0.0
        %2286 = vmatprep.subr.mxu0 0.0
        %2287 = vmatpush1.xpose.msra.mxu0 0.0
        %2288 = vmatprep.subr.mxu0 0.0
        %2289 = vmatpush1.xpose.msra.mxu0 0.0
        %2290 = vmatprep.subr.mxu0 0.0
        %2291 = vmatpush1.xpose.msra.mxu0 0.0
        %2292 = vmatprep.subr.mxu0 0.0
        %2293 = vmatpush1.xpose.msra.mxu0 0.0
        %2294 = vmatprep.subr.mxu0 0.0
        %2295 = vmatpush1.xpose.msra.mxu0 %v2262
        %2296 = vmatprep.subr.mxu0 0.0
        %2297 = vmatpush2.xpose.msra.mxu0 0.0
        %2298 = vmatprep.subr.mxu0 0.0
        %2299 = vmatpush2.xpose.msra.mxu0 0.0
        %2300 = vmatprep.subr.mxu0 0.0
        %2301 = vmatpush2.xpose.msra.mxu0 0.0
        %2302 = vmatprep.subr.mxu0 0.0
        %2303 = vmatpush2.xpose.msra.mxu0 0.0
        %2304 = vmatprep.subr.mxu0 0.0
        %2305 = vmatpush2.xpose.msra.mxu0 0.0
        %2306 = vmatprep.subr.mxu0 0.0
        %2307 = vmatpush2.xpose.msra.mxu0 0.0
        %2308 = vmatprep.subr.mxu0 0.0
        %2309 = vmatpush2.xpose.msra.mxu0 0.0
        %2310 = vmatprep.subr.mxu0 0.0
        %2311 = vmatpush2.xpose.msra.mxu0 0.0
        %2312 = vmatprep.subr.mxu0 0.0
        %2313 = vmatpush2.xpose.msra.mxu0 0.0
        %2314 = vmatprep.subr.mxu0 0.0
        %2315 = vmatpush2.xpose.msra.mxu0 0.0
        %2316 = vmatprep.subr.mxu0 0.0
        %2317 = vmatpush2.xpose.msra.mxu0 0.0
        %2318 = vmatprep.subr.mxu0 0.0
        %2319 = vmatpush2.xpose.msra.mxu0 0.0
        %2320 = vmatprep.subr.mxu0 0.0
        %2321 = vmatpush2.xpose.msra.mxu0 0.0
        %2322 = vmatprep.subr.mxu0 0.0
        %2323 = vmatpush2.xpose.msra.mxu0 0.0
        %2324 = vmatprep.subr.mxu0 0.0
        %2325 = vmatpush2.xpose.msra.mxu0 0.0
        %2326 = vmatprep.subr.mxu0 0.0
        %2327 = vmatpush2.xpose.msra.mxu0 0.0
        %2328 = vmatprep.mubr.f32.mxu0 0.0
        %2329 = vmatmul.mubr.f32.gmra.mxu0 %v2259
        %v2330 = vpop.f32.mrf.mxu0
        %v2331 = vadd.f32 %v830, %v2330
        %v2332 = vpop.f32.mrf.mxu0
        %2333 = vdwg.mxu0
        %v2334 = vsel %vm833, %v2255, -inf
        %2335 = vmax.xlane.f32.xlu0 %v2334
        %v2336 = vpop.xlane.xlu0 %2335
        %v2337 = vsel %vm833, %v2331, -inf
        %2338 = vmax.xlane.f32.xlu0 %v2337
        %v2339 = vpop.xlane.xlu0 %2338
        %v2340 = vsub.f32 %v2255, %v2336
        %v2341 = vsub.f32 %v2331, %v2339
        %v2342 = vmul.f32 %v2340, 1.442695
        %v2343 = vpow.pop %v2342
        %v2344 = vmul.f32 %v2341, 1.442695
        %v2345 = vpow.pop %v2344
        %v2346 = vsel %vm833, %v2343, 0.0
        %2347 = vadd.xlane.f32.xlu0 %v2346
        %v2348 = vpop.xlane.xlu0 %2347
        %v2349 = vsel %vm833, %v2345, 0.0
        %2350 = vadd.xlane.f32.xlu0 %v2349
        %v2351 = vpop.xlane.xlu0 %2350
        %v2352 = vrcp.pop %v2348
        %v2353 = vrcp.pop %v2351
        %v2354 = vmul.f32 %v2343, %v2352
        %v2355 = vmul.f32 %v2345, %v2353
        %v2357 = vsel %vm833, %v2354, 0
        %2359 = vmatprep.subr.mxu0 0.0
        %2360 = vmatpush1.msra.mxu0 0.0
        %2361 = vmatprep.subr.mxu0 0.0
        %2362 = vmatpush1.msra.mxu0 0.0
        %2363 = vmatprep.subr.mxu0 0.0
        %2364 = vmatpush1.msra.mxu0 0.0
        %2365 = vmatprep.subr.mxu0 0.0
        %2366 = vmatpush1.msra.mxu0 0.0
        %2367 = vmatprep.subr.mxu0 0.0
        %2368 = vmatpush1.msra.mxu0 0.0
        %2369 = vmatprep.subr.mxu0 0.0
        %2370 = vmatpush1.msra.mxu0 0.0
        %2371 = vmatprep.subr.mxu0 0.0
        %2372 = vmatpush1.msra.mxu0 0.0
        %2373 = vmatprep.subr.mxu0 0.0
        %2374 = vmatpush1.msra.mxu0 0.0
        %2375 = vmatprep.subr.mxu0 0.0
        %2376 = vmatpush1.msra.mxu0 0.0
        %2377 = vmatprep.subr.mxu0 0.0
        %2378 = vmatpush1.msra.mxu0 0.0
        %2379 = vmatprep.subr.mxu0 0.0
        %2380 = vmatpush1.msra.mxu0 0.0
        %2381 = vmatprep.subr.mxu0 0.0
        %2382 = vmatpush1.msra.mxu0 0.0
        %2383 = vmatprep.subr.mxu0 0.0
        %2384 = vmatpush1.msra.mxu0 0.0
        %2385 = vmatprep.subr.mxu0 0.0
        %2386 = vmatpush1.msra.mxu0 0.0
        %2387 = vmatprep.subr.mxu0 0.0
        %2388 = vmatpush1.msra.mxu0 0.0
        %2389 = vmatprep.subr.mxu0 0.0
        %2390 = vmatpush1.msra.mxu0 %v2174
        %2391 = vmatprep.subr.mxu0 0.0
        %2392 = vmatpush2.msra.mxu0 0.0
        %2393 = vmatprep.subr.mxu0 0.0
        %2394 = vmatpush2.msra.mxu0 0.0
        %2395 = vmatprep.subr.mxu0 0.0
        %2396 = vmatpush2.msra.mxu0 0.0
        %2397 = vmatprep.subr.mxu0 0.0
        %2398 = vmatpush2.msra.mxu0 0.0
        %2399 = vmatprep.subr.mxu0 0.0
        %2400 = vmatpush2.msra.mxu0 0.0
        %2401 = vmatprep.subr.mxu0 0.0
        %2402 = vmatpush2.msra.mxu0 0.0
        %2403 = vmatprep.subr.mxu0 0.0
        %2404 = vmatpush2.msra.mxu0 0.0
        %2405 = vmatprep.subr.mxu0 0.0
        %2406 = vmatpush2.msra.mxu0 0.0
        %2407 = vmatprep.subr.mxu0 0.0
        %2408 = vmatpush2.msra.mxu0 0.0
        %2409 = vmatprep.subr.mxu0 0.0
        %2410 = vmatpush2.msra.mxu0 0.0
        %2411 = vmatprep.subr.mxu0 0.0
        %2412 = vmatpush2.msra.mxu0 0.0
        %2413 = vmatprep.subr.mxu0 0.0
        %2414 = vmatpush2.msra.mxu0 0.0
        %2415 = vmatprep.subr.mxu0 0.0
        %2416 = vmatpush2.msra.mxu0 0.0
        %2417 = vmatprep.subr.mxu0 0.0
        %2418 = vmatpush2.msra.mxu0 0.0
        %2419 = vmatprep.subr.mxu0 0.0
        %2420 = vmatpush2.msra.mxu0 0.0
        %2421 = vmatprep.subr.mxu0 0.0
        %2422 = vmatpush2.msra.mxu0 0.0
        %2423 = vmatprep.mubr.f32.mxu0 0.0
        %2424 = vmatmul.mubr.f32.gmra.mxu0 %v2357
        %v2425 = vpop.f32.mrf.mxu0
        %v2426 = vadd.f32 0.0, %v2425
        %v2427 = vpop.f32.mrf.mxu0
        %2428 = vdwg.mxu0
        %v2430 = vsel %vm833, %v2355, 0
        %2432 = vmatprep.subr.mxu0 0.0
        %2433 = vmatpush1.msra.mxu0 0.0
        %2434 = vmatprep.subr.mxu0 0.0
        %2435 = vmatpush1.msra.mxu0 0.0
        %2436 = vmatprep.subr.mxu0 0.0
        %2437 = vmatpush1.msra.mxu0 0.0
        %2438 = vmatprep.subr.mxu0 0.0
        %2439 = vmatpush1.msra.mxu0 0.0
        %2440 = vmatprep.subr.mxu0 0.0
        %2441 = vmatpush1.msra.mxu0 0.0
        %2442 = vmatprep.subr.mxu0 0.0
        %2443 = vmatpush1.msra.mxu0 0.0
        %2444 = vmatprep.subr.mxu0 0.0
        %2445 = vmatpush1.msra.mxu0 0.0
        %2446 = vmatprep.subr.mxu0 0.0
        %2447 = vmatpush1.msra.mxu0 0.0
        %2448 = vmatprep.subr.mxu0 0.0
        %2449 = vmatpush1.msra.mxu0 0.0
        %2450 = vmatprep.subr.mxu0 0.0
        %2451 = vmatpush1.msra.mxu0 0.0
        %2452 = vmatprep.subr.mxu0 0.0
        %2453 = vmatpush1.msra.mxu0 0.0
        %2454 = vmatprep.subr.mxu0 0.0
        %2455 = vmatpush1.msra.mxu0 0.0
        %2456 = vmatprep.subr.mxu0 0.0
        %2457 = vmatpush1.msra.mxu0 0.0
        %2458 = vmatprep.subr.mxu0 0.0
        %2459 = vmatpush1.msra.mxu0 0.0
        %2460 = vmatprep.subr.mxu0 0.0
        %2461 = vmatpush1.msra.mxu0 0.0
        %2462 = vmatprep.subr.mxu0 0.0
        %2463 = vmatpush1.msra.mxu0 %v2179
        %2464 = vmatprep.subr.mxu0 0.0
        %2465 = vmatpush2.msra.mxu0 0.0
        %2466 = vmatprep.subr.mxu0 0.0
        %2467 = vmatpush2.msra.mxu0 0.0
        %2468 = vmatprep.subr.mxu0 0.0
        %2469 = vmatpush2.msra.mxu0 0.0
        %2470 = vmatprep.subr.mxu0 0.0
        %2471 = vmatpush2.msra.mxu0 0.0
        %2472 = vmatprep.subr.mxu0 0.0
        %2473 = vmatpush2.msra.mxu0 0.0
        %2474 = vmatprep.subr.mxu0 0.0
        %2475 = vmatpush2.msra.mxu0 0.0
        %2476 = vmatprep.subr.mxu0 0.0
        %2477 = vmatpush2.msra.mxu0 0.0
        %2478 = vmatprep.subr.mxu0 0.0
        %2479 = vmatpush2.msra.mxu0 0.0
        %2480 = vmatprep.subr.mxu0 0.0
        %2481 = vmatpush2.msra.mxu0 0.0
        %2482 = vmatprep.subr.mxu0 0.0
        %2483 = vmatpush2.msra.mxu0 0.0
        %2484 = vmatprep.subr.mxu0 0.0
        %2485 = vmatpush2.msra.mxu0 0.0
        %2486 = vmatprep.subr.mxu0 0.0
        %2487 = vmatpush2.msra.mxu0 0.0
        %2488 = vmatprep.subr.mxu0 0.0
        %2489 = vmatpush2.msra.mxu0 0.0
        %2490 = vmatprep.subr.mxu0 0.0
        %2491 = vmatpush2.msra.mxu0 0.0
        %2492 = vmatprep.subr.mxu0 0.0
        %2493 = vmatpush2.msra.mxu0 0.0
        %2494 = vmatprep.subr.mxu0 0.0
        %2495 = vmatpush2.msra.mxu0 0.0
        %2496 = vmatprep.mubr.f32.mxu0 0.0
        %2497 = vmatmul.mubr.f32.gmra.mxu0 %v2430
        %v2498 = vpop.f32.mrf.mxu0
        %v2499 = vadd.f32 0.0, %v2498
        %v2500 = vpop.f32.mrf.mxu0
        %2501 = vdwg.mxu0
        %s2502 = sadd.s32 16, %s1154
        %s2503 = scalar_lea.vmem %s4, %s2502
        %v2504 = vld [vmem:[%s2503] sm:$0xff]
        %v2506 = vsel %vm833, %v2426, 0
        %v2509 = vsel %vm833, %v2499, 0
        %2511 = vmatprep.subr.mxu0 0.0
        %2512 = vmatpush1.msra.mxu0 0.0
        %2513 = vmatprep.subr.mxu0 0.0
        %2514 = vmatpush1.msra.mxu0 0.0
        %2515 = vmatprep.subr.mxu0 0.0
        %2516 = vmatpush1.msra.mxu0 0.0
        %2517 = vmatprep.subr.mxu0 0.0
        %2518 = vmatpush1.msra.mxu0 0.0
        %2519 = vmatprep.subr.mxu0 0.0
        %2520 = vmatpush1.msra.mxu0 0.0
        %2521 = vmatprep.subr.mxu0 0.0
        %2522 = vmatpush1.msra.mxu0 0.0
        %2523 = vmatprep.subr.mxu0 0.0
        %2524 = vmatpush1.msra.mxu0 0.0
        %2525 = vmatprep.subr.mxu0 0.0
        %2526 = vmatpush1.msra.mxu0 0.0
        %2527 = vmatprep.subr.mxu0 0.0
        %2528 = vmatpush1.msra.mxu0 0.0
        %2529 = vmatprep.subr.mxu0 0.0
        %2530 = vmatpush1.msra.mxu0 0.0
        %2531 = vmatprep.subr.mxu0 0.0
        %2532 = vmatpush1.msra.mxu0 0.0
        %2533 = vmatprep.subr.mxu0 0.0
        %2534 = vmatpush1.msra.mxu0 0.0
        %2535 = vmatprep.subr.mxu0 0.0
        %2536 = vmatpush1.msra.mxu0 0.0
        %2537 = vmatprep.subr.mxu0 0.0
        %2538 = vmatpush1.msra.mxu0 0.0
        %2539 = vmatprep.subr.mxu0 0.0
        %2540 = vmatpush1.msra.mxu0 0.0
        %2541 = vmatprep.subr.mxu0 0.0
        %2542 = vmatpush1.msra.mxu0 %v2504
        %2543 = vmatprep.subr.mxu0 0.0
        %2544 = vmatpush2.msra.mxu0 0.0
        %2545 = vmatprep.subr.mxu0 0.0
        %2546 = vmatpush2.msra.mxu0 0.0
        %2547 = vmatprep.subr.mxu0 0.0
        %2548 = vmatpush2.msra.mxu0 0.0
        %2549 = vmatprep.subr.mxu0 0.0
        %2550 = vmatpush2.msra.mxu0 0.0
        %2551 = vmatprep.subr.mxu0 0.0
        %2552 = vmatpush2.msra.mxu0 0.0
        %2553 = vmatprep.subr.mxu0 0.0
        %2554 = vmatpush2.msra.mxu0 0.0
        %2555 = vmatprep.subr.mxu0 0.0
        %2556 = vmatpush2.msra.mxu0 0.0
        %2557 = vmatprep.subr.mxu0 0.0
        %2558 = vmatpush2.msra.mxu0 0.0
        %2559 = vmatprep.subr.mxu0 0.0
        %2560 = vmatpush2.msra.mxu0 0.0
        %2561 = vmatprep.subr.mxu0 0.0
        %2562 = vmatpush2.msra.mxu0 0.0
        %2563 = vmatprep.subr.mxu0 0.0
        %2564 = vmatpush2.msra.mxu0 0.0
        %2565 = vmatprep.subr.mxu0 0.0
        %2566 = vmatpush2.msra.mxu0 0.0
        %2567 = vmatprep.subr.mxu0 0.0
        %2568 = vmatpush2.msra.mxu0 0.0
        %2569 = vmatprep.subr.mxu0 0.0
        %2570 = vmatpush2.msra.mxu0 0.0
        %2571 = vmatprep.subr.mxu0 0.0
        %2572 = vmatpush2.msra.mxu0 0.0
        %2573 = vmatprep.subr.mxu0 0.0
        %2574 = vmatpush2.msra.mxu0 0.0
        %2575 = vmatprep.mubr.f32.mxu0 0.0
        %2576 = vmatmul.mubr.f32.gmra.mxu0 %v2506
        %v2577 = vpop.f32.mrf.mxu0
        %v2578 = vadd.f32 0.0, %v2577
        %v2579 = vpop.f32.mrf.mxu0
        %2580 = vmatprep.mubr.f32.mxu0 0.0
        %2581 = vmatmul.mubr.f32.gmra.mxu0 %v2509
        %v2582 = vpop.f32.mrf.mxu0
        %v2583 = vadd.f32 0.0, %v2582
        %v2584 = vpop.f32.mrf.mxu0
        %2585 = vdwg.mxu0
        %v2586 = vadd.f32 %v1904, %v2578
        %v2587 = vadd.f32 %v1909, %v2583
        %s2588 = sadd.s32 96, %s547
        %s2589 = scalar_lea.vmem %s2, %s2588
        %v2590 = vld [vmem:[%s2589] sm:$0xff]
        %v2591 = vld [vmem:[%s2589 + $0x8] sm:$0xff]
        %v2592 = vld [vmem:[%s2589 + $0x10] sm:$0xff]
        %v2593 = vld [vmem:[%s2589 + $0x18] sm:$0xff]
        %s2594 = sadd.s32 3, %s553
        %s2595 = scalar_lea.vmem %s3, %s2594
        %v2596 = vld [vmem:[%s2595] sm:$0x1]
        %v2598 = vlaneseq
        %v2599 = vshrl.u32 %v2598, 7
        %v2600 = vsub.s32 0, %v2599
        %v2601 = vrot.slane %v2596, %v2600
        %2603 = vmatprep.subr.mxu0 0.0
        %2604 = vmatpush1.msra.mxu0 0.0
        %2605 = vmatprep.subr.mxu0 0.0
        %2606 = vmatpush1.msra.mxu0 0.0
        %2607 = vmatprep.subr.mxu0 0.0
        %2608 = vmatpush1.msra.mxu0 0.0
        %2609 = vmatprep.subr.mxu0 0.0
        %2610 = vmatpush1.msra.mxu0 0.0
        %2611 = vmatprep.subr.mxu0 0.0
        %2612 = vmatpush1.msra.mxu0 0.0
        %2613 = vmatprep.subr.mxu0 0.0
        %2614 = vmatpush1.msra.mxu0 0.0
        %2615 = vmatprep.subr.mxu0 0.0
        %2616 = vmatpush1.msra.mxu0 0.0
        %2617 = vmatprep.subr.mxu0 0.0
        %2618 = vmatpush1.msra.mxu0 0.0
        %2619 = vmatprep.subr.mxu0 0.0
        %2620 = vmatpush1.msra.mxu0 0.0
        %2621 = vmatprep.subr.mxu0 0.0
        %2622 = vmatpush1.msra.mxu0 0.0
        %2623 = vmatprep.subr.mxu0 0.0
        %2624 = vmatpush1.msra.mxu0 0.0
        %2625 = vmatprep.subr.mxu0 0.0
        %2626 = vmatpush1.msra.mxu0 0.0
        %2627 = vmatprep.subr.mxu0 0.0
        %2628 = vmatpush1.msra.mxu0 %v2593
        %2629 = vmatprep.subr.mxu0 0.0
        %2630 = vmatpush1.msra.mxu0 %v2592
        %2631 = vmatprep.subr.mxu0 0.0
        %2632 = vmatpush1.msra.mxu0 %v2591
        %2633 = vmatprep.subr.mxu0 0.0
        %2634 = vmatpush1.msra.mxu0 %v2590
        %2635 = vmatprep.subr.mxu0 0.0
        %2636 = vmatpush2.msra.mxu0 0.0
        %2637 = vmatprep.subr.mxu0 0.0
        %2638 = vmatpush2.msra.mxu0 0.0
        %2639 = vmatprep.subr.mxu0 0.0
        %2640 = vmatpush2.msra.mxu0 0.0
        %2641 = vmatprep.subr.mxu0 0.0
        %2642 = vmatpush2.msra.mxu0 0.0
        %2643 = vmatprep.subr.mxu0 0.0
        %2644 = vmatpush2.msra.mxu0 0.0
        %2645 = vmatprep.subr.mxu0 0.0
        %2646 = vmatpush2.msra.mxu0 0.0
        %2647 = vmatprep.subr.mxu0 0.0
        %2648 = vmatpush2.msra.mxu0 0.0
        %2649 = vmatprep.subr.mxu0 0.0
        %2650 = vmatpush2.msra.mxu0 0.0
        %2651 = vmatprep.subr.mxu0 0.0
        %2652 = vmatpush2.msra.mxu0 0.0
        %2653 = vmatprep.subr.mxu0 0.0
        %2654 = vmatpush2.msra.mxu0 0.0
        %2655 = vmatprep.subr.mxu0 0.0
        %2656 = vmatpush2.msra.mxu0 0.0
        %2657 = vmatprep.subr.mxu0 0.0
        %2658 = vmatpush2.msra.mxu0 0.0
        %2659 = vmatprep.subr.mxu0 0.0
        %2660 = vmatpush2.msra.mxu0 0.0
        %2661 = vmatprep.subr.mxu0 0.0
        %2662 = vmatpush2.msra.mxu0 0.0
        %2663 = vmatprep.subr.mxu0 0.0
        %2664 = vmatpush2.msra.mxu0 0.0
        %2665 = vmatprep.subr.mxu0 0.0
        %2666 = vmatpush2.msra.mxu0 0.0
        %2667 = vmatprep.mubr.f32.mxu0 0.0
        %2668 = vmatmul.mubr.f32.gmra.mxu0 %v563
        %v2669 = vpop.f32.mrf.mxu0
        %v2670 = vadd.f32 %v2601, %v2669
        %v2671 = vpop.f32.mrf.mxu0
        %2672 = vmatprep.mubr.f32.mxu0 0.0
        %2673 = vmatmul.mubr.f32.gmra.mxu0 %v566
        %v2674 = vpop.f32.mrf.mxu0
        %v2675 = vadd.f32 %v2601, %v2674
        %v2676 = vpop.f32.mrf.mxu0
        %2677 = vdwg.mxu0
        %s2678 = sadd.s32 224, %s547
        %s2679 = scalar_lea.vmem %s2, %s2678
        %v2680 = vld [vmem:[%s2679] sm:$0xff]
        %v2681 = vld [vmem:[%s2679 + $0x8] sm:$0xff]
        %v2682 = vld [vmem:[%s2679 + $0x10] sm:$0xff]
        %v2683 = vld [vmem:[%s2679 + $0x18] sm:$0xff]
        %s2684 = sadd.s32 7, %s553
        %s2685 = scalar_lea.vmem %s3, %s2684
        %v2686 = vld [vmem:[%s2685] sm:$0x1]
        %v2688 = vlaneseq
        %v2689 = vshrl.u32 %v2688, 7
        %v2690 = vsub.s32 0, %v2689
        %v2691 = vrot.slane %v2686, %v2690
        %2693 = vmatprep.subr.mxu0 0.0
        %2694 = vmatpush1.msra.mxu0 0.0
        %2695 = vmatprep.subr.mxu0 0.0
        %2696 = vmatpush1.msra.mxu0 0.0
        %2697 = vmatprep.subr.mxu0 0.0
        %2698 = vmatpush1.msra.mxu0 0.0
        %2699 = vmatprep.subr.mxu0 0.0
        %2700 = vmatpush1.msra.mxu0 0.0
        %2701 = vmatprep.subr.mxu0 0.0
        %2702 = vmatpush1.msra.mxu0 0.0
        %2703 = vmatprep.subr.mxu0 0.0
        %2704 = vmatpush1.msra.mxu0 0.0
        %2705 = vmatprep.subr.mxu0 0.0
        %2706 = vmatpush1.msra.mxu0 0.0
        %2707 = vmatprep.subr.mxu0 0.0
        %2708 = vmatpush1.msra.mxu0 0.0
        %2709 = vmatprep.subr.mxu0 0.0
        %2710 = vmatpush1.msra.mxu0 0.0
        %2711 = vmatprep.subr.mxu0 0.0
        %2712 = vmatpush1.msra.mxu0 0.0
        %2713 = vmatprep.subr.mxu0 0.0
        %2714 = vmatpush1.msra.mxu0 0.0
        %2715 = vmatprep.subr.mxu0 0.0
        %2716 = vmatpush1.msra.mxu0 0.0
        %2717 = vmatprep.subr.mxu0 0.0
        %2718 = vmatpush1.msra.mxu0 %v2683
        %2719 = vmatprep.subr.mxu0 0.0
        %2720 = vmatpush1.msra.mxu0 %v2682
        %2721 = vmatprep.subr.mxu0 0.0
        %2722 = vmatpush1.msra.mxu0 %v2681
        %2723 = vmatprep.subr.mxu0 0.0
        %2724 = vmatpush1.msra.mxu0 %v2680
        %2725 = vmatprep.subr.mxu0 0.0
        %2726 = vmatpush2.msra.mxu0 0.0
        %2727 = vmatprep.subr.mxu0 0.0
        %2728 = vmatpush2.msra.mxu0 0.0
        %2729 = vmatprep.subr.mxu0 0.0
        %2730 = vmatpush2.msra.mxu0 0.0
        %2731 = vmatprep.subr.mxu0 0.0
        %2732 = vmatpush2.msra.mxu0 0.0
        %2733 = vmatprep.subr.mxu0 0.0
        %2734 = vmatpush2.msra.mxu0 0.0
        %2735 = vmatprep.subr.mxu0 0.0
        %2736 = vmatpush2.msra.mxu0 0.0
        %2737 = vmatprep.subr.mxu0 0.0
        %2738 = vmatpush2.msra.mxu0 0.0
        %2739 = vmatprep.subr.mxu0 0.0
        %2740 = vmatpush2.msra.mxu0 0.0
        %2741 = vmatprep.subr.mxu0 0.0
        %2742 = vmatpush2.msra.mxu0 0.0
        %2743 = vmatprep.subr.mxu0 0.0
        %2744 = vmatpush2.msra.mxu0 0.0
        %2745 = vmatprep.subr.mxu0 0.0
        %2746 = vmatpush2.msra.mxu0 0.0
        %2747 = vmatprep.subr.mxu0 0.0
        %2748 = vmatpush2.msra.mxu0 0.0
        %2749 = vmatprep.subr.mxu0 0.0
        %2750 = vmatpush2.msra.mxu0 0.0
        %2751 = vmatprep.subr.mxu0 0.0
        %2752 = vmatpush2.msra.mxu0 0.0
        %2753 = vmatprep.subr.mxu0 0.0
        %2754 = vmatpush2.msra.mxu0 0.0
        %2755 = vmatprep.subr.mxu0 0.0
        %2756 = vmatpush2.msra.mxu0 0.0
        %2757 = vmatprep.mubr.f32.mxu0 0.0
        %2758 = vmatmul.mubr.f32.gmra.mxu0 %v563
        %v2759 = vpop.f32.mrf.mxu0
        %v2760 = vadd.f32 %v2691, %v2759
        %v2761 = vpop.f32.mrf.mxu0
        %2762 = vmatprep.mubr.f32.mxu0 0.0
        %2763 = vmatmul.mubr.f32.gmra.mxu0 %v566
        %v2764 = vpop.f32.mrf.mxu0
        %v2765 = vadd.f32 %v2691, %v2764
        %v2766 = vpop.f32.mrf.mxu0
        %2767 = vdwg.mxu0
        %s2768 = sadd.s32 352, %s547
        %s2769 = scalar_lea.vmem %s2, %s2768
        %v2770 = vld [vmem:[%s2769] sm:$0xff]
        %v2771 = vld [vmem:[%s2769 + $0x8] sm:$0xff]
        %v2772 = vld [vmem:[%s2769 + $0x10] sm:$0xff]
        %v2773 = vld [vmem:[%s2769 + $0x18] sm:$0xff]
        %s2774 = sadd.s32 11, %s553
        %s2775 = scalar_lea.vmem %s3, %s2774
        %v2776 = vld [vmem:[%s2775] sm:$0x1]
        %v2778 = vlaneseq
        %v2779 = vshrl.u32 %v2778, 7
        %v2780 = vsub.s32 0, %v2779
        %v2781 = vrot.slane %v2776, %v2780
        %2783 = vmatprep.subr.mxu0 0.0
        %2784 = vmatpush1.msra.mxu0 0.0
        %2785 = vmatprep.subr.mxu0 0.0
        %2786 = vmatpush1.msra.mxu0 0.0
        %2787 = vmatprep.subr.mxu0 0.0
        %2788 = vmatpush1.msra.mxu0 0.0
        %2789 = vmatprep.subr.mxu0 0.0
        %2790 = vmatpush1.msra.mxu0 0.0
        %2791 = vmatprep.subr.mxu0 0.0
        %2792 = vmatpush1.msra.mxu0 0.0
        %2793 = vmatprep.subr.mxu0 0.0
        %2794 = vmatpush1.msra.mxu0 0.0
        %2795 = vmatprep.subr.mxu0 0.0
        %2796 = vmatpush1.msra.mxu0 0.0
        %2797 = vmatprep.subr.mxu0 0.0
        %2798 = vmatpush1.msra.mxu0 0.0
        %2799 = vmatprep.subr.mxu0 0.0
        %2800 = vmatpush1.msra.mxu0 0.0
        %2801 = vmatprep.subr.mxu0 0.0
        %2802 = vmatpush1.msra.mxu0 0.0
        %2803 = vmatprep.subr.mxu0 0.0
        %2804 = vmatpush1.msra.mxu0 0.0
        %2805 = vmatprep.subr.mxu0 0.0
        %2806 = vmatpush1.msra.mxu0 0.0
        %2807 = vmatprep.subr.mxu0 0.0
        %2808 = vmatpush1.msra.mxu0 %v2773
        %2809 = vmatprep.subr.mxu0 0.0
        %2810 = vmatpush1.msra.mxu0 %v2772
        %2811 = vmatprep.subr.mxu0 0.0
        %2812 = vmatpush1.msra.mxu0 %v2771
        %2813 = vmatprep.subr.mxu0 0.0
        %2814 = vmatpush1.msra.mxu0 %v2770
        %2815 = vmatprep.subr.mxu0 0.0
        %2816 = vmatpush2.msra.mxu0 0.0
        %2817 = vmatprep.subr.mxu0 0.0
        %2818 = vmatpush2.msra.mxu0 0.0
        %2819 = vmatprep.subr.mxu0 0.0
        %2820 = vmatpush2.msra.mxu0 0.0
        %2821 = vmatprep.subr.mxu0 0.0
        %2822 = vmatpush2.msra.mxu0 0.0
        %2823 = vmatprep.subr.mxu0 0.0
        %2824 = vmatpush2.msra.mxu0 0.0
        %2825 = vmatprep.subr.mxu0 0.0
        %2826 = vmatpush2.msra.mxu0 0.0
        %2827 = vmatprep.subr.mxu0 0.0
        %2828 = vmatpush2.msra.mxu0 0.0
        %2829 = vmatprep.subr.mxu0 0.0
        %2830 = vmatpush2.msra.mxu0 0.0
        %2831 = vmatprep.subr.mxu0 0.0
        %2832 = vmatpush2.msra.mxu0 0.0
        %2833 = vmatprep.subr.mxu0 0.0
        %2834 = vmatpush2.msra.mxu0 0.0
        %2835 = vmatprep.subr.mxu0 0.0
        %2836 = vmatpush2.msra.mxu0 0.0
        %2837 = vmatprep.subr.mxu0 0.0
        %2838 = vmatpush2.msra.mxu0 0.0
        %2839 = vmatprep.subr.mxu0 0.0
        %2840 = vmatpush2.msra.mxu0 0.0
        %2841 = vmatprep.subr.mxu0 0.0
        %2842 = vmatpush2.msra.mxu0 0.0
        %2843 = vmatprep.subr.mxu0 0.0
        %2844 = vmatpush2.msra.mxu0 0.0
        %2845 = vmatprep.subr.mxu0 0.0
        %2846 = vmatpush2.msra.mxu0 0.0
        %2847 = vmatprep.mubr.f32.mxu0 0.0
        %2848 = vmatmul.mubr.f32.gmra.mxu0 %v563
        %v2849 = vpop.f32.mrf.mxu0
        %v2850 = vadd.f32 %v2781, %v2849
        %v2851 = vpop.f32.mrf.mxu0
        %2852 = vmatprep.mubr.f32.mxu0 0.0
        %2853 = vmatmul.mubr.f32.gmra.mxu0 %v566
        %v2854 = vpop.f32.mrf.mxu0
        %v2855 = vadd.f32 %v2781, %v2854
        %v2856 = vpop.f32.mrf.mxu0
        %2857 = vdwg.mxu0
        %v2859 = vsel %vm833, %v2670, 0
        %v2862 = vsel %vm833, %v2760, 0
        %2864 = vmatprep.subr.mxu0 0.0
        %2865 = vmatpush1.xpose.msra.mxu0 0.0
        %2866 = vmatprep.subr.mxu0 0.0
        %2867 = vmatpush1.xpose.msra.mxu0 0.0
        %2868 = vmatprep.subr.mxu0 0.0
        %2869 = vmatpush1.xpose.msra.mxu0 0.0
        %2870 = vmatprep.subr.mxu0 0.0
        %2871 = vmatpush1.xpose.msra.mxu0 0.0
        %2872 = vmatprep.subr.mxu0 0.0
        %2873 = vmatpush1.xpose.msra.mxu0 0.0
        %2874 = vmatprep.subr.mxu0 0.0
        %2875 = vmatpush1.xpose.msra.mxu0 0.0
        %2876 = vmatprep.subr.mxu0 0.0
        %2877 = vmatpush1.xpose.msra.mxu0 0.0
        %2878 = vmatprep.subr.mxu0 0.0
        %2879 = vmatpush1.xpose.msra.mxu0 0.0
        %2880 = vmatprep.subr.mxu0 0.0
        %2881 = vmatpush1.xpose.msra.mxu0 0.0
        %2882 = vmatprep.subr.mxu0 0.0
        %2883 = vmatpush1.xpose.msra.mxu0 0.0
        %2884 = vmatprep.subr.mxu0 0.0
        %2885 = vmatpush1.xpose.msra.mxu0 0.0
        %2886 = vmatprep.subr.mxu0 0.0
        %2887 = vmatpush1.xpose.msra.mxu0 0.0
        %2888 = vmatprep.subr.mxu0 0.0
        %2889 = vmatpush1.xpose.msra.mxu0 0.0
        %2890 = vmatprep.subr.mxu0 0.0
        %2891 = vmatpush1.xpose.msra.mxu0 0.0
        %2892 = vmatprep.subr.mxu0 0.0
        %2893 = vmatpush1.xpose.msra.mxu0 0.0
        %2894 = vmatprep.subr.mxu0 0.0
        %2895 = vmatpush1.xpose.msra.mxu0 %v2862
        %2896 = vmatprep.subr.mxu0 0.0
        %2897 = vmatpush2.xpose.msra.mxu0 0.0
        %2898 = vmatprep.subr.mxu0 0.0
        %2899 = vmatpush2.xpose.msra.mxu0 0.0
        %2900 = vmatprep.subr.mxu0 0.0
        %2901 = vmatpush2.xpose.msra.mxu0 0.0
        %2902 = vmatprep.subr.mxu0 0.0
        %2903 = vmatpush2.xpose.msra.mxu0 0.0
        %2904 = vmatprep.subr.mxu0 0.0
        %2905 = vmatpush2.xpose.msra.mxu0 0.0
        %2906 = vmatprep.subr.mxu0 0.0
        %2907 = vmatpush2.xpose.msra.mxu0 0.0
        %2908 = vmatprep.subr.mxu0 0.0
        %2909 = vmatpush2.xpose.msra.mxu0 0.0
        %2910 = vmatprep.subr.mxu0 0.0
        %2911 = vmatpush2.xpose.msra.mxu0 0.0
        %2912 = vmatprep.subr.mxu0 0.0
        %2913 = vmatpush2.xpose.msra.mxu0 0.0
        %2914 = vmatprep.subr.mxu0 0.0
        %2915 = vmatpush2.xpose.msra.mxu0 0.0
        %2916 = vmatprep.subr.mxu0 0.0
        %2917 = vmatpush2.xpose.msra.mxu0 0.0
        %2918 = vmatprep.subr.mxu0 0.0
        %2919 = vmatpush2.xpose.msra.mxu0 0.0
        %2920 = vmatprep.subr.mxu0 0.0
        %2921 = vmatpush2.xpose.msra.mxu0 0.0
        %2922 = vmatprep.subr.mxu0 0.0
        %2923 = vmatpush2.xpose.msra.mxu0 0.0
        %2924 = vmatprep.subr.mxu0 0.0
        %2925 = vmatpush2.xpose.msra.mxu0 0.0
        %2926 = vmatprep.subr.mxu0 0.0
        %2927 = vmatpush2.xpose.msra.mxu0 0.0
        %2928 = vmatprep.mubr.f32.mxu0 0.0
        %2929 = vmatmul.mubr.f32.gmra.mxu0 %v2859
        %v2930 = vpop.f32.mrf.mxu0
        %v2931 = vadd.f32 %v826, %v2930
        %v2932 = vpop.f32.mrf.mxu0
        %2933 = vdwg.mxu0
        %v2935 = vsel %vm833, %v2675, 0
        %v2938 = vsel %vm833, %v2765, 0
        %2940 = vmatprep.subr.mxu0 0.0
        %2941 = vmatpush1.xpose.msra.mxu0 0.0
        %2942 = vmatprep.subr.mxu0 0.0
        %2943 = vmatpush1.xpose.msra.mxu0 0.0
        %2944 = vmatprep.subr.mxu0 0.0
        %2945 = vmatpush1.xpose.msra.mxu0 0.0
        %2946 = vmatprep.subr.mxu0 0.0
        %2947 = vmatpush1.xpose.msra.mxu0 0.0
        %2948 = vmatprep.subr.mxu0 0.0
        %2949 = vmatpush1.xpose.msra.mxu0 0.0
        %2950 = vmatprep.subr.mxu0 0.0
        %2951 = vmatpush1.xpose.msra.mxu0 0.0
        %2952 = vmatprep.subr.mxu0 0.0
        %2953 = vmatpush1.xpose.msra.mxu0 0.0
        %2954 = vmatprep.subr.mxu0 0.0
        %2955 = vmatpush1.xpose.msra.mxu0 0.0
        %2956 = vmatprep.subr.mxu0 0.0
        %2957 = vmatpush1.xpose.msra.mxu0 0.0
        %2958 = vmatprep.subr.mxu0 0.0
        %2959 = vmatpush1.xpose.msra.mxu0 0.0
        %2960 = vmatprep.subr.mxu0 0.0
        %2961 = vmatpush1.xpose.msra.mxu0 0.0
        %2962 = vmatprep.subr.mxu0 0.0
        %2963 = vmatpush1.xpose.msra.mxu0 0.0
        %2964 = vmatprep.subr.mxu0 0.0
        %2965 = vmatpush1.xpose.msra.mxu0 0.0
        %2966 = vmatprep.subr.mxu0 0.0
        %2967 = vmatpush1.xpose.msra.mxu0 0.0
        %2968 = vmatprep.subr.mxu0 0.0
        %2969 = vmatpush1.xpose.msra.mxu0 0.0
        %2970 = vmatprep.subr.mxu0 0.0
        %2971 = vmatpush1.xpose.msra.mxu0 %v2938
        %2972 = vmatprep.subr.mxu0 0.0
        %2973 = vmatpush2.xpose.msra.mxu0 0.0
        %2974 = vmatprep.subr.mxu0 0.0
        %2975 = vmatpush2.xpose.msra.mxu0 0.0
        %2976 = vmatprep.subr.mxu0 0.0
        %2977 = vmatpush2.xpose.msra.mxu0 0.0
        %2978 = vmatprep.subr.mxu0 0.0
        %2979 = vmatpush2.xpose.msra.mxu0 0.0
        %2980 = vmatprep.subr.mxu0 0.0
        %2981 = vmatpush2.xpose.msra.mxu0 0.0
        %2982 = vmatprep.subr.mxu0 0.0
        %2983 = vmatpush2.xpose.msra.mxu0 0.0
        %2984 = vmatprep.subr.mxu0 0.0
        %2985 = vmatpush2.xpose.msra.mxu0 0.0
        %2986 = vmatprep.subr.mxu0 0.0
        %2987 = vmatpush2.xpose.msra.mxu0 0.0
        %2988 = vmatprep.subr.mxu0 0.0
        %2989 = vmatpush2.xpose.msra.mxu0 0.0
        %2990 = vmatprep.subr.mxu0 0.0
        %2991 = vmatpush2.xpose.msra.mxu0 0.0
        %2992 = vmatprep.subr.mxu0 0.0
        %2993 = vmatpush2.xpose.msra.mxu0 0.0
        %2994 = vmatprep.subr.mxu0 0.0
        %2995 = vmatpush2.xpose.msra.mxu0 0.0
        %2996 = vmatprep.subr.mxu0 0.0
        %2997 = vmatpush2.xpose.msra.mxu0 0.0
        %2998 = vmatprep.subr.mxu0 0.0
        %2999 = vmatpush2.xpose.msra.mxu0 0.0
        %3000 = vmatprep.subr.mxu0 0.0
        %3001 = vmatpush2.xpose.msra.mxu0 0.0
        %3002 = vmatprep.subr.mxu0 0.0
        %3003 = vmatpush2.xpose.msra.mxu0 0.0
        %3004 = vmatprep.mubr.f32.mxu0 0.0
        %3005 = vmatmul.mubr.f32.gmra.mxu0 %v2935
        %v3006 = vpop.f32.mrf.mxu0
        %v3007 = vadd.f32 %v830, %v3006
        %v3008 = vpop.f32.mrf.mxu0
        %3009 = vdwg.mxu0
        %v3010 = vsel %vm833, %v2931, -inf
        %3011 = vmax.xlane.f32.xlu0 %v3010
        %v3012 = vpop.xlane.xlu0 %3011
        %v3013 = vsel %vm833, %v3007, -inf
        %3014 = vmax.xlane.f32.xlu0 %v3013
        %v3015 = vpop.xlane.xlu0 %3014
        %v3016 = vsub.f32 %v2931, %v3012
        %v3017 = vsub.f32 %v3007, %v3015
        %v3018 = vmul.f32 %v3016, 1.442695
        %v3019 = vpow.pop %v3018
        %v3020 = vmul.f32 %v3017, 1.442695
        %v3021 = vpow.pop %v3020
        %v3022 = vsel %vm833, %v3019, 0.0
        %3023 = vadd.xlane.f32.xlu0 %v3022
        %v3024 = vpop.xlane.xlu0 %3023
        %v3025 = vsel %vm833, %v3021, 0.0
        %3026 = vadd.xlane.f32.xlu0 %v3025
        %v3027 = vpop.xlane.xlu0 %3026
        %v3028 = vrcp.pop %v3024
        %v3029 = vrcp.pop %v3027
        %v3030 = vmul.f32 %v3019, %v3028
        %v3031 = vmul.f32 %v3021, %v3029
        %v3033 = vsel %vm833, %v3030, 0
        %3035 = vmatprep.subr.mxu0 0.0
        %3036 = vmatpush1.msra.mxu0 0.0
        %3037 = vmatprep.subr.mxu0 0.0
        %3038 = vmatpush1.msra.mxu0 0.0
        %3039 = vmatprep.subr.mxu0 0.0
        %3040 = vmatpush1.msra.mxu0 0.0
        %3041 = vmatprep.subr.mxu0 0.0
        %3042 = vmatpush1.msra.mxu0 0.0
        %3043 = vmatprep.subr.mxu0 0.0
        %3044 = vmatpush1.msra.mxu0 0.0
        %3045 = vmatprep.subr.mxu0 0.0
        %3046 = vmatpush1.msra.mxu0 0.0
        %3047 = vmatprep.subr.mxu0 0.0
        %3048 = vmatpush1.msra.mxu0 0.0
        %3049 = vmatprep.subr.mxu0 0.0
        %3050 = vmatpush1.msra.mxu0 0.0
        %3051 = vmatprep.subr.mxu0 0.0
        %3052 = vmatpush1.msra.mxu0 0.0
        %3053 = vmatprep.subr.mxu0 0.0
        %3054 = vmatpush1.msra.mxu0 0.0
        %3055 = vmatprep.subr.mxu0 0.0
        %3056 = vmatpush1.msra.mxu0 0.0
        %3057 = vmatprep.subr.mxu0 0.0
        %3058 = vmatpush1.msra.mxu0 0.0
        %3059 = vmatprep.subr.mxu0 0.0
        %3060 = vmatpush1.msra.mxu0 0.0
        %3061 = vmatprep.subr.mxu0 0.0
        %3062 = vmatpush1.msra.mxu0 0.0
        %3063 = vmatprep.subr.mxu0 0.0
        %3064 = vmatpush1.msra.mxu0 0.0
        %3065 = vmatprep.subr.mxu0 0.0
        %3066 = vmatpush1.msra.mxu0 %v2850
        %3067 = vmatprep.subr.mxu0 0.0
        %3068 = vmatpush2.msra.mxu0 0.0
        %3069 = vmatprep.subr.mxu0 0.0
        %3070 = vmatpush2.msra.mxu0 0.0
        %3071 = vmatprep.subr.mxu0 0.0
        %3072 = vmatpush2.msra.mxu0 0.0
        %3073 = vmatprep.subr.mxu0 0.0
        %3074 = vmatpush2.msra.mxu0 0.0
        %3075 = vmatprep.subr.mxu0 0.0
        %3076 = vmatpush2.msra.mxu0 0.0
        %3077 = vmatprep.subr.mxu0 0.0
        %3078 = vmatpush2.msra.mxu0 0.0
        %3079 = vmatprep.subr.mxu0 0.0
        %3080 = vmatpush2.msra.mxu0 0.0
        %3081 = vmatprep.subr.mxu0 0.0
        %3082 = vmatpush2.msra.mxu0 0.0
        %3083 = vmatprep.subr.mxu0 0.0
        %3084 = vmatpush2.msra.mxu0 0.0
        %3085 = vmatprep.subr.mxu0 0.0
        %3086 = vmatpush2.msra.mxu0 0.0
        %3087 = vmatprep.subr.mxu0 0.0
        %3088 = vmatpush2.msra.mxu0 0.0
        %3089 = vmatprep.subr.mxu0 0.0
        %3090 = vmatpush2.msra.mxu0 0.0
        %3091 = vmatprep.subr.mxu0 0.0
        %3092 = vmatpush2.msra.mxu0 0.0
        %3093 = vmatprep.subr.mxu0 0.0
        %3094 = vmatpush2.msra.mxu0 0.0
        %3095 = vmatprep.subr.mxu0 0.0
        %3096 = vmatpush2.msra.mxu0 0.0
        %3097 = vmatprep.subr.mxu0 0.0
        %3098 = vmatpush2.msra.mxu0 0.0
        %3099 = vmatprep.mubr.f32.mxu0 0.0
        %3100 = vmatmul.mubr.f32.gmra.mxu0 %v3033
        %v3101 = vpop.f32.mrf.mxu0
        %v3102 = vadd.f32 0.0, %v3101
        %v3103 = vpop.f32.mrf.mxu0
        %3104 = vdwg.mxu0
        %v3106 = vsel %vm833, %v3031, 0
        %3108 = vmatprep.subr.mxu0 0.0
        %3109 = vmatpush1.msra.mxu0 0.0
        %3110 = vmatprep.subr.mxu0 0.0
        %3111 = vmatpush1.msra.mxu0 0.0
        %3112 = vmatprep.subr.mxu0 0.0
        %3113 = vmatpush1.msra.mxu0 0.0
        %3114 = vmatprep.subr.mxu0 0.0
        %3115 = vmatpush1.msra.mxu0 0.0
        %3116 = vmatprep.subr.mxu0 0.0
        %3117 = vmatpush1.msra.mxu0 0.0
        %3118 = vmatprep.subr.mxu0 0.0
        %3119 = vmatpush1.msra.mxu0 0.0
        %3120 = vmatprep.subr.mxu0 0.0
        %3121 = vmatpush1.msra.mxu0 0.0
        %3122 = vmatprep.subr.mxu0 0.0
        %3123 = vmatpush1.msra.mxu0 0.0
        %3124 = vmatprep.subr.mxu0 0.0
        %3125 = vmatpush1.msra.mxu0 0.0
        %3126 = vmatprep.subr.mxu0 0.0
        %3127 = vmatpush1.msra.mxu0 0.0
        %3128 = vmatprep.subr.mxu0 0.0
        %3129 = vmatpush1.msra.mxu0 0.0
        %3130 = vmatprep.subr.mxu0 0.0
        %3131 = vmatpush1.msra.mxu0 0.0
        %3132 = vmatprep.subr.mxu0 0.0
        %3133 = vmatpush1.msra.mxu0 0.0
        %3134 = vmatprep.subr.mxu0 0.0
        %3135 = vmatpush1.msra.mxu0 0.0
        %3136 = vmatprep.subr.mxu0 0.0
        %3137 = vmatpush1.msra.mxu0 0.0
        %3138 = vmatprep.subr.mxu0 0.0
        %3139 = vmatpush1.msra.mxu0 %v2855
        %3140 = vmatprep.subr.mxu0 0.0
        %3141 = vmatpush2.msra.mxu0 0.0
        %3142 = vmatprep.subr.mxu0 0.0
        %3143 = vmatpush2.msra.mxu0 0.0
        %3144 = vmatprep.subr.mxu0 0.0
        %3145 = vmatpush2.msra.mxu0 0.0
        %3146 = vmatprep.subr.mxu0 0.0
        %3147 = vmatpush2.msra.mxu0 0.0
        %3148 = vmatprep.subr.mxu0 0.0
        %3149 = vmatpush2.msra.mxu0 0.0
        %3150 = vmatprep.subr.mxu0 0.0
        %3151 = vmatpush2.msra.mxu0 0.0
        %3152 = vmatprep.subr.mxu0 0.0
        %3153 = vmatpush2.msra.mxu0 0.0
        %3154 = vmatprep.subr.mxu0 0.0
        %3155 = vmatpush2.msra.mxu0 0.0
        %3156 = vmatprep.subr.mxu0 0.0
        %3157 = vmatpush2.msra.mxu0 0.0
        %3158 = vmatprep.subr.mxu0 0.0
        %3159 = vmatpush2.msra.mxu0 0.0
        %3160 = vmatprep.subr.mxu0 0.0
        %3161 = vmatpush2.msra.mxu0 0.0
        %3162 = vmatprep.subr.mxu0 0.0
        %3163 = vmatpush2.msra.mxu0 0.0
        %3164 = vmatprep.subr.mxu0 0.0
        %3165 = vmatpush2.msra.mxu0 0.0
        %3166 = vmatprep.subr.mxu0 0.0
        %3167 = vmatpush2.msra.mxu0 0.0
        %3168 = vmatprep.subr.mxu0 0.0
        %3169 = vmatpush2.msra.mxu0 0.0
        %3170 = vmatprep.subr.mxu0 0.0
        %3171 = vmatpush2.msra.mxu0 0.0
        %3172 = vmatprep.mubr.f32.mxu0 0.0
        %3173 = vmatmul.mubr.f32.gmra.mxu0 %v3106
        %v3174 = vpop.f32.mrf.mxu0
        %v3175 = vadd.f32 0.0, %v3174
        %v3176 = vpop.f32.mrf.mxu0
        %3177 = vdwg.mxu0
        %s3178 = sadd.s32 24, %s1154
        %s3179 = scalar_lea.vmem %s4, %s3178
        %v3180 = vld [vmem:[%s3179] sm:$0xff]
        %v3182 = vsel %vm833, %v3102, 0
        %v3185 = vsel %vm833, %v3175, 0
        %3187 = vmatprep.subr.mxu0 0.0
        %3188 = vmatpush1.msra.mxu0 0.0
        %3189 = vmatprep.subr.mxu0 0.0
        %3190 = vmatpush1.msra.mxu0 0.0
        %3191 = vmatprep.subr.mxu0 0.0
        %3192 = vmatpush1.msra.mxu0 0.0
        %3193 = vmatprep.subr.mxu0 0.0
        %3194 = vmatpush1.msra.mxu0 0.0
        %3195 = vmatprep.subr.mxu0 0.0
        %3196 = vmatpush1.msra.mxu0 0.0
        %3197 = vmatprep.subr.mxu0 0.0
        %3198 = vmatpush1.msra.mxu0 0.0
        %3199 = vmatprep.subr.mxu0 0.0
        %3200 = vmatpush1.msra.mxu0 0.0
        %3201 = vmatprep.subr.mxu0 0.0
        %3202 = vmatpush1.msra.mxu0 0.0
        %3203 = vmatprep.subr.mxu0 0.0
        %3204 = vmatpush1.msra.mxu0 0.0
        %3205 = vmatprep.subr.mxu0 0.0
        %3206 = vmatpush1.msra.mxu0 0.0
        %3207 = vmatprep.subr.mxu0 0.0
        %3208 = vmatpush1.msra.mxu0 0.0
        %3209 = vmatprep.subr.mxu0 0.0
        %3210 = vmatpush1.msra.mxu0 0.0
        %3211 = vmatprep.subr.mxu0 0.0
        %3212 = vmatpush1.msra.mxu0 0.0
        %3213 = vmatprep.subr.mxu0 0.0
        %3214 = vmatpush1.msra.mxu0 0.0
        %3215 = vmatprep.subr.mxu0 0.0
        %3216 = vmatpush1.msra.mxu0 0.0
        %3217 = vmatprep.subr.mxu0 0.0
        %3218 = vmatpush1.msra.mxu0 %v3180
        %3219 = vmatprep.subr.mxu0 0.0
        %3220 = vmatpush2.msra.mxu0 0.0
        %3221 = vmatprep.subr.mxu0 0.0
        %3222 = vmatpush2.msra.mxu0 0.0
        %3223 = vmatprep.subr.mxu0 0.0
        %3224 = vmatpush2.msra.mxu0 0.0
        %3225 = vmatprep.subr.mxu0 0.0
        %3226 = vmatpush2.msra.mxu0 0.0
        %3227 = vmatprep.subr.mxu0 0.0
        %3228 = vmatpush2.msra.mxu0 0.0
        %3229 = vmatprep.subr.mxu0 0.0
        %3230 = vmatpush2.msra.mxu0 0.0
        %3231 = vmatprep.subr.mxu0 0.0
        %3232 = vmatpush2.msra.mxu0 0.0
        %3233 = vmatprep.subr.mxu0 0.0
        %3234 = vmatpush2.msra.mxu0 0.0
        %3235 = vmatprep.subr.mxu0 0.0
        %3236 = vmatpush2.msra.mxu0 0.0
        %3237 = vmatprep.subr.mxu0 0.0
        %3238 = vmatpush2.msra.mxu0 0.0
        %3239 = vmatprep.subr.mxu0 0.0
        %3240 = vmatpush2.msra.mxu0 0.0
        %3241 = vmatprep.subr.mxu0 0.0
        %3242 = vmatpush2.msra.mxu0 0.0
        %3243 = vmatprep.subr.mxu0 0.0
        %3244 = vmatpush2.msra.mxu0 0.0
        %3245 = vmatprep.subr.mxu0 0.0
        %3246 = vmatpush2.msra.mxu0 0.0
        %3247 = vmatprep.subr.mxu0 0.0
        %3248 = vmatpush2.msra.mxu0 0.0
        %3249 = vmatprep.subr.mxu0 0.0
        %3250 = vmatpush2.msra.mxu0 0.0
        %3251 = vmatprep.mubr.f32.mxu0 0.0
        %3252 = vmatmul.mubr.f32.gmra.mxu0 %v3182
        %v3253 = vpop.f32.mrf.mxu0
        %v3254 = vadd.f32 0.0, %v3253
        %v3255 = vpop.f32.mrf.mxu0
        %3256 = vmatprep.mubr.f32.mxu0 0.0
        %3257 = vmatmul.mubr.f32.gmra.mxu0 %v3185
        %v3258 = vpop.f32.mrf.mxu0
        %v3259 = vadd.f32 0.0, %v3258
        %v3260 = vpop.f32.mrf.mxu0
        %3261 = vdwg.mxu0
        %v3262 = vadd.f32 %v2586, %v3254
        %v3263 = vadd.f32 %v2587, %v3259
        %s3264 = sadd.s32 2, %s473
        %s3265 = scalar_lea.vmem %s8, %s3264
        %v3266 = vld [vmem:[%s3265] sm:$0x1]
        %v3268 = vlaneseq
        %v3269 = vshrl.u32 %v3268, 7
        %v3270 = vsub.s32 0, %v3269
        %v3271 = vrot.slane %v3266, %v3270
        %v3273 = vadd.f32 %v3262, %v3271
        %v3274 = vadd.f32 %v3263, %v3271
        %v3275 = vadd.f32 %v3273, %v521
        %v3276 = vadd.f32 %v3274, %v522
        %s3277 = sadd.s32 3, %s473
        %s3278 = scalar_lea.vmem %s8, %s3277
        %v3279 = vld [vmem:[%s3278] sm:$0x1]
        %s3280 = sadd.s32 4, %s473
        %s3281 = scalar_lea.vmem %s8, %s3280
        %v3282 = vld [vmem:[%s3281] sm:$0x1]
        %v3283 = vsel %vm479, %v3275, 0.0
        %3284 = vadd.xlane.f32.xlu0 %v3283
        %v3285 = vpop.xlane.xlu0 %3284
        %v3286 = vsel %vm479, %v3276, 0.0
        %3287 = vadd.xlane.f32.xlu0 %v3286
        %v3288 = vpop.xlane.xlu0 %3287
        %v3289 = vmul.f32 %v3285, %v486
        %v3290 = vmul.f32 %v3288, %v486
        %v3291 = vsub.f32 %v3275, %v3289
        %v3292 = vsub.f32 %v3276, %v3290
        %v3293 = vmul.f32 %v3291, %v3291
        %v3294 = vmul.f32 %v3292, %v3292
        %v3295 = vsel %vm479, %v3293, 0.0
        %3296 = vadd.xlane.f32.xlu0 %v3295
        %v3297 = vpop.xlane.xlu0 %3296
        %v3298 = vsel %vm479, %v3294, 0.0
        %3299 = vadd.xlane.f32.xlu0 %v3298
        %v3300 = vpop.xlane.xlu0 %3299
        %v3301 = vmul.f32 %v3297, %v486
        %v3302 = vmul.f32 %v3300, %v486
        %v3303 = vadd.f32 %v3301, 1e-12
        %v3304 = vadd.f32 %v3302, 1e-12
        %v3305 = vrsqrt.pop %v3303
        %v3306 = vrsqrt.pop %v3304
        %v3307 = vmul.f32 %v3291, %v3305
        %v3308 = vmul.f32 %v3292, %v3306
        %v3310 = vlaneseq
        %v3311 = vshrl.u32 %v3310, 7
        %v3312 = vsub.s32 0, %v3311
        %v3313 = vrot.slane %v3279, %v3312
        %v3315 = vmul.f32 %v3307, %v3313
        %v3316 = vmul.f32 %v3308, %v3313
        %v3318 = vlaneseq
        %v3319 = vshrl.u32 %v3318, 7
        %v3320 = vsub.s32 0, %v3319
        %v3321 = vrot.slane %v3282, %v3320
        %v3323 = vadd.f32 %v3315, %v3321
        %v3324 = vadd.f32 %v3316, %v3321
        %s3325 = scalar_lea.vmem %s5, %s1154
        %v3326 = vld [vmem:[%s3325] sm:$0xff]
        %v3327 = vld [vmem:[%s3325 + $0x8] sm:$0xff]
        %v3328 = vld [vmem:[%s3325 + $0x10] sm:$0xff]
        %v3329 = vld [vmem:[%s3325 + $0x18] sm:$0xff]
        %s3330 = smul.u32 %s26, 2
        %s3331 = scalar_lea.vmem %s6, %s3330
        %v3332 = vld [vmem:[%s3331] sm:$0x1]
        %v3334 = vlaneseq
        %v3335 = vshrl.u32 %v3334, 7
        %v3336 = vsub.s32 0, %v3335
        %v3337 = vrot.slane %v3332, %v3336
        %v3340 = vsel %vm479, %v3323, 0
        %v3343 = vsel %vm479, %v3324, 0
        %3345 = vmatprep.subr.mxu0 0.0
        %3346 = vmatpush1.msra.mxu0 0.0
        %3347 = vmatprep.subr.mxu0 0.0
        %3348 = vmatpush1.msra.mxu0 0.0
        %3349 = vmatprep.subr.mxu0 0.0
        %3350 = vmatpush1.msra.mxu0 0.0
        %3351 = vmatprep.subr.mxu0 0.0
        %3352 = vmatpush1.msra.mxu0 0.0
        %3353 = vmatprep.subr.mxu0 0.0
        %3354 = vmatpush1.msra.mxu0 0.0
        %3355 = vmatprep.subr.mxu0 0.0
        %3356 = vmatpush1.msra.mxu0 0.0
        %3357 = vmatprep.subr.mxu0 0.0
        %3358 = vmatpush1.msra.mxu0 0.0
        %3359 = vmatprep.subr.mxu0 0.0
        %3360 = vmatpush1.msra.mxu0 0.0
        %3361 = vmatprep.subr.mxu0 0.0
        %3362 = vmatpush1.msra.mxu0 0.0
        %3363 = vmatprep.subr.mxu0 0.0
        %3364 = vmatpush1.msra.mxu0 0.0
        %3365 = vmatprep.subr.mxu0 0.0
        %3366 = vmatpush1.msra.mxu0 0.0
        %3367 = vmatprep.subr.mxu0 0.0
        %3368 = vmatpush1.msra.mxu0 0.0
        %3369 = vmatprep.subr.mxu0 0.0
        %3370 = vmatpush1.msra.mxu0 %v3329
        %3371 = vmatprep.subr.mxu0 0.0
        %3372 = vmatpush1.msra.mxu0 %v3328
        %3373 = vmatprep.subr.mxu0 0.0
        %3374 = vmatpush1.msra.mxu0 %v3327
        %3375 = vmatprep.subr.mxu0 0.0
        %3376 = vmatpush1.msra.mxu0 %v3326
        %3377 = vmatprep.subr.mxu0 0.0
        %3378 = vmatpush2.msra.mxu0 0.0
        %3379 = vmatprep.subr.mxu0 0.0
        %3380 = vmatpush2.msra.mxu0 0.0
        %3381 = vmatprep.subr.mxu0 0.0
        %3382 = vmatpush2.msra.mxu0 0.0
        %3383 = vmatprep.subr.mxu0 0.0
        %3384 = vmatpush2.msra.mxu0 0.0
        %3385 = vmatprep.subr.mxu0 0.0
        %3386 = vmatpush2.msra.mxu0 0.0
        %3387 = vmatprep.subr.mxu0 0.0
        %3388 = vmatpush2.msra.mxu0 0.0
        %3389 = vmatprep.subr.mxu0 0.0
        %3390 = vmatpush2.msra.mxu0 0.0
        %3391 = vmatprep.subr.mxu0 0.0
        %3392 = vmatpush2.msra.mxu0 0.0
        %3393 = vmatprep.subr.mxu0 0.0
        %3394 = vmatpush2.msra.mxu0 0.0
        %3395 = vmatprep.subr.mxu0 0.0
        %3396 = vmatpush2.msra.mxu0 0.0
        %3397 = vmatprep.subr.mxu0 0.0
        %3398 = vmatpush2.msra.mxu0 0.0
        %3399 = vmatprep.subr.mxu0 0.0
        %3400 = vmatpush2.msra.mxu0 0.0
        %3401 = vmatprep.subr.mxu0 0.0
        %3402 = vmatpush2.msra.mxu0 0.0
        %3403 = vmatprep.subr.mxu0 0.0
        %3404 = vmatpush2.msra.mxu0 0.0
        %3405 = vmatprep.subr.mxu0 0.0
        %3406 = vmatpush2.msra.mxu0 0.0
        %3407 = vmatprep.subr.mxu0 0.0
        %3408 = vmatpush2.msra.mxu0 0.0
        %3409 = vmatprep.mubr.f32.mxu0 0.0
        %3410 = vmatmul.mubr.f32.gmra.mxu0 %v3340
        %v3411 = vpop.f32.mrf.mxu0
        %v3412 = vadd.f32 %v3337, %v3411
        %v3413 = vpop.f32.mrf.mxu0
        %3414 = vmatprep.mubr.f32.mxu0 0.0
        %3415 = vmatmul.mubr.f32.gmra.mxu0 %v3343
        %v3416 = vpop.f32.mrf.mxu0
        %v3417 = vadd.f32 %v3337, %v3416
        %v3418 = vpop.f32.mrf.mxu0
        %3419 = vdwg.mxu0
        %v3420 = vmul.f32 %v3412, %v3412
        %v3421 = vmul.f32 %v3417, %v3417
        %v3422 = vmul.f32 %v3412, %v3420
        %v3423 = vmul.f32 %v3417, %v3421
        %v3424 = vmul.f32 %v3422, 0.044715
        %v3425 = vmul.f32 %v3423, 0.044715
        %v3426 = vadd.f32 %v3412, %v3424
        %v3427 = vadd.f32 %v3417, %v3425
        %v3428 = vmul.f32 %v3426, 0.7978846
        %v3429 = vmul.f32 %v3427, 0.7978846
        %v3430 = vtanh.pop %v3428
        %v3431 = vtanh.pop %v3429
        %v3432 = vadd.f32 %v3430, 1.0
        %v3433 = vadd.f32 %v3431, 1.0
        %v3434 = vmul.f32 %v3432, 0.5
        %v3435 = vmul.f32 %v3433, 0.5
        %v3436 = vmul.f32 %v3412, %v3434
        %v3437 = vmul.f32 %v3417, %v3435
        %s3438 = smul.u32 %s26, 128
        %s3439 = scalar_lea.vmem %s7, %s3438
        %v3440 = vld [vmem:[%s3439] sm:$0xff]
        %v3441 = vld [vmem:[%s3439 + $0x8] sm:$0xff]
        %v3442 = vld [vmem:[%s3439 + $0x10] sm:$0xff]
        %v3443 = vld [vmem:[%s3439 + $0x18] sm:$0xff]
        %v3444 = vld [vmem:[%s3439 + $0x20] sm:$0xff]
        %v3445 = vld [vmem:[%s3439 + $0x28] sm:$0xff]
        %v3446 = vld [vmem:[%s3439 + $0x30] sm:$0xff]
        %v3447 = vld [vmem:[%s3439 + $0x38] sm:$0xff]
        %s3448 = sadd.s32 5, %s473
        %s3449 = scalar_lea.vmem %s8, %s3448
        %v3450 = vld [vmem:[%s3449] sm:$0x1]
        %v3452 = vlaneseq
        %v3453 = vshrl.u32 %v3452, 7
        %v3454 = vsub.s32 0, %v3453
        %v3455 = vrot.slane %v3450, %v3454
        %vm3457 = vcmask 523264
        %v3459 = vsel %vm3457, %v3436, 0
        %v3462 = vsel %vm3457, %v3437, 0
        %3464 = vmatprep.subr.mxu0 0.0
        %3465 = vmatpush1.msra.mxu0 0.0
        %3466 = vmatprep.subr.mxu0 0.0
        %3467 = vmatpush1.msra.mxu0 0.0
        %3468 = vmatprep.subr.mxu0 0.0
        %3469 = vmatpush1.msra.mxu0 0.0
        %3470 = vmatprep.subr.mxu0 0.0
        %3471 = vmatpush1.msra.mxu0 0.0
        %3472 = vmatprep.subr.mxu0 0.0
        %3473 = vmatpush1.msra.mxu0 0.0
        %3474 = vmatprep.subr.mxu0 0.0
        %3475 = vmatpush1.msra.mxu0 0.0
        %3476 = vmatprep.subr.mxu0 0.0
        %3477 = vmatpush1.msra.mxu0 0.0
        %3478 = vmatprep.subr.mxu0 0.0
        %3479 = vmatpush1.msra.mxu0 0.0
        %3480 = vmatprep.subr.mxu0 0.0
        %3481 = vmatpush1.msra.mxu0 %v3447
        %3482 = vmatprep.subr.mxu0 0.0
        %3483 = vmatpush1.msra.mxu0 %v3446
        %3484 = vmatprep.subr.mxu0 0.0
        %3485 = vmatpush1.msra.mxu0 %v3445
        %3486 = vmatprep.subr.mxu0 0.0
        %3487 = vmatpush1.msra.mxu0 %v3444
        %3488 = vmatprep.subr.mxu0 0.0
        %3489 = vmatpush1.msra.mxu0 %v3443
        %3490 = vmatprep.subr.mxu0 0.0
        %3491 = vmatpush1.msra.mxu0 %v3442
        %3492 = vmatprep.subr.mxu0 0.0
        %3493 = vmatpush1.msra.mxu0 %v3441
        %3494 = vmatprep.subr.mxu0 0.0
        %3495 = vmatpush1.msra.mxu0 %v3440
        %3496 = vmatprep.subr.mxu0 0.0
        %3497 = vmatpush2.msra.mxu0 0.0
        %3498 = vmatprep.subr.mxu0 0.0
        %3499 = vmatpush2.msra.mxu0 0.0
        %3500 = vmatprep.subr.mxu0 0.0
        %3501 = vmatpush2.msra.mxu0 0.0
        %3502 = vmatprep.subr.mxu0 0.0
        %3503 = vmatpush2.msra.mxu0 0.0
        %3504 = vmatprep.subr.mxu0 0.0
        %3505 = vmatpush2.msra.mxu0 0.0
        %3506 = vmatprep.subr.mxu0 0.0
        %3507 = vmatpush2.msra.mxu0 0.0
        %3508 = vmatprep.subr.mxu0 0.0
        %3509 = vmatpush2.msra.mxu0 0.0
        %3510 = vmatprep.subr.mxu0 0.0
        %3511 = vmatpush2.msra.mxu0 0.0
        %3512 = vmatprep.subr.mxu0 0.0
        %3513 = vmatpush2.msra.mxu0 0.0
        %3514 = vmatprep.subr.mxu0 0.0
        %3515 = vmatpush2.msra.mxu0 0.0
        %3516 = vmatprep.subr.mxu0 0.0
        %3517 = vmatpush2.msra.mxu0 0.0
        %3518 = vmatprep.subr.mxu0 0.0
        %3519 = vmatpush2.msra.mxu0 0.0
        %3520 = vmatprep.subr.mxu0 0.0
        %3521 = vmatpush2.msra.mxu0 0.0
        %3522 = vmatprep.subr.mxu0 0.0
        %3523 = vmatpush2.msra.mxu0 0.0
        %3524 = vmatprep.subr.mxu0 0.0
        %3525 = vmatpush2.msra.mxu0 0.0
        %3526 = vmatprep.subr.mxu0 0.0
        %3527 = vmatpush2.msra.mxu0 0.0
        %3528 = vmatprep.mubr.f32.mxu0 0.0
        %3529 = vmatmul.mubr.f32.gmra.mxu0 %v3459
        %v3530 = vpop.f32.mrf.mxu0
        %v3531 = vadd.f32 %v3455, %v3530
        %v3532 = vpop.f32.mrf.mxu0
        %3533 = vmatprep.mubr.f32.mxu0 0.0
        %3534 = vmatmul.mubr.f32.gmra.mxu0 %v3462
        %v3535 = vpop.f32.mrf.mxu0
        %v3536 = vadd.f32 %v3455, %v3535
        %v3537 = vpop.f32.mrf.mxu0
        %3538 = vdwg.mxu0
        %v3539 = vadd.f32 %v3531, %v3323
        %v3540 = vadd.f32 %v3536, %v3324
        %s3541 = sadd.s32 6, %s473
        %s3542 = scalar_lea.vmem %s8, %s3541
        %v3543 = vld [vmem:[%s3542] sm:$0x1]
        %s3544 = sadd.s32 7, %s473
        %s3545 = scalar_lea.vmem %s8, %s3544
        %v3546 = vld [vmem:[%s3545] sm:$0x1]
        %v3547 = vsel %vm479, %v3539, 0.0
        %3548 = vadd.xlane.f32.xlu0 %v3547
        %v3549 = vpop.xlane.xlu0 %3548
        %v3550 = vsel %vm479, %v3540, 0.0
        %3551 = vadd.xlane.f32.xlu0 %v3550
        %v3552 = vpop.xlane.xlu0 %3551
        %v3553 = vmul.f32 %v3549, %v486
        %v3554 = vmul.f32 %v3552, %v486
        %v3555 = vsub.f32 %v3539, %v3553
        %v3556 = vsub.f32 %v3540, %v3554
        %v3557 = vmul.f32 %v3555, %v3555
        %v3558 = vmul.f32 %v3556, %v3556
        %v3559 = vsel %vm479, %v3557, 0.0
        %3560 = vadd.xlane.f32.xlu0 %v3559
        %v3561 = vpop.xlane.xlu0 %3560
        %v3562 = vsel %vm479, %v3558, 0.0
        %3563 = vadd.xlane.f32.xlu0 %v3562
        %v3564 = vpop.xlane.xlu0 %3563
        %v3565 = vmul.f32 %v3561, %v486
        %v3566 = vmul.f32 %v3564, %v486
        %v3567 = vadd.f32 %v3565, 1e-12
        %v3568 = vadd.f32 %v3566, 1e-12
        %v3569 = vrsqrt.pop %v3567
        %v3570 = vrsqrt.pop %v3568
        %v3571 = vmul.f32 %v3555, %v3569
        %v3572 = vmul.f32 %v3556, %v3570
        %v3574 = vlaneseq
        %v3575 = vshrl.u32 %v3574, 7
        %v3576 = vsub.s32 0, %v3575
        %v3577 = vrot.slane %v3543, %v3576
        %v3579 = vmul.f32 %v3571, %v3577
        %v3580 = vmul.f32 %v3572, %v3577
        %v3582 = vlaneseq
        %v3583 = vshrl.u32 %v3582, 7
        %v3584 = vsub.s32 0, %v3583
        %v3585 = vrot.slane %v3546, %v3584
        %v3587 = vadd.f32 %v3579, %v3585
        %v3588 = vadd.f32 %v3580, %v3585
        %s3589 = sadd.s32 384, %s547
        %s3590 = scalar_lea.vmem %s2, %s3589
        %v3591 = vld [vmem:[%s3590] sm:$0xff]
        %v3592 = vld [vmem:[%s3590 + $0x8] sm:$0xff]
        %v3593 = vld [vmem:[%s3590 + $0x10] sm:$0xff]
        %v3594 = vld [vmem:[%s3590 + $0x18] sm:$0xff]
        %s3595 = sadd.s32 12, %s553
        %s3596 = scalar_lea.vmem %s3, %s3595
        %v3597 = vld [vmem:[%s3596] sm:$0x1]
        %v3599 = vlaneseq
        %v3600 = vshrl.u32 %v3599, 7
        %v3601 = vsub.s32 0, %v3600
        %v3602 = vrot.slane %v3597, %v3601
        %v3605 = vsel %vm479, %v3587, 0
        %v3608 = vsel %vm479, %v3588, 0
        %3610 = vmatprep.subr.mxu0 0.0
        %3611 = vmatpush1.msra.mxu0 0.0
        %3612 = vmatprep.subr.mxu0 0.0
        %3613 = vmatpush1.msra.mxu0 0.0
        %3614 = vmatprep.subr.mxu0 0.0
        %3615 = vmatpush1.msra.mxu0 0.0
        %3616 = vmatprep.subr.mxu0 0.0
        %3617 = vmatpush1.msra.mxu0 0.0
        %3618 = vmatprep.subr.mxu0 0.0
        %3619 = vmatpush1.msra.mxu0 0.0
        %3620 = vmatprep.subr.mxu0 0.0
        %3621 = vmatpush1.msra.mxu0 0.0
        %3622 = vmatprep.subr.mxu0 0.0
        %3623 = vmatpush1.msra.mxu0 0.0
        %3624 = vmatprep.subr.mxu0 0.0
        %3625 = vmatpush1.msra.mxu0 0.0
        %3626 = vmatprep.subr.mxu0 0.0
        %3627 = vmatpush1.msra.mxu0 0.0
        %3628 = vmatprep.subr.mxu0 0.0
        %3629 = vmatpush1.msra.mxu0 0.0
        %3630 = vmatprep.subr.mxu0 0.0
        %3631 = vmatpush1.msra.mxu0 0.0
        %3632 = vmatprep.subr.mxu0 0.0
        %3633 = vmatpush1.msra.mxu0 0.0
        %3634 = vmatprep.subr.mxu0 0.0
        %3635 = vmatpush1.msra.mxu0 %v3594
        %3636 = vmatprep.subr.mxu0 0.0
        %3637 = vmatpush1.msra.mxu0 %v3593
        %3638 = vmatprep.subr.mxu0 0.0
        %3639 = vmatpush1.msra.mxu0 %v3592
        %3640 = vmatprep.subr.mxu0 0.0
        %3641 = vmatpush1.msra.mxu0 %v3591
        %3642 = vmatprep.subr.mxu0 0.0
        %3643 = vmatpush2.msra.mxu0 0.0
        %3644 = vmatprep.subr.mxu0 0.0
        %3645 = vmatpush2.msra.mxu0 0.0
        %3646 = vmatprep.subr.mxu0 0.0
        %3647 = vmatpush2.msra.mxu0 0.0
        %3648 = vmatprep.subr.mxu0 0.0
        %3649 = vmatpush2.msra.mxu0 0.0
        %3650 = vmatprep.subr.mxu0 0.0
        %3651 = vmatpush2.msra.mxu0 0.0
        %3652 = vmatprep.subr.mxu0 0.0
        %3653 = vmatpush2.msra.mxu0 0.0
        %3654 = vmatprep.subr.mxu0 0.0
        %3655 = vmatpush2.msra.mxu0 0.0
        %3656 = vmatprep.subr.mxu0 0.0
        %3657 = vmatpush2.msra.mxu0 0.0
        %3658 = vmatprep.subr.mxu0 0.0
        %3659 = vmatpush2.msra.mxu0 0.0
        %3660 = vmatprep.subr.mxu0 0.0
        %3661 = vmatpush2.msra.mxu0 0.0
        %3662 = vmatprep.subr.mxu0 0.0
        %3663 = vmatpush2.msra.mxu0 0.0
        %3664 = vmatprep.subr.mxu0 0.0
        %3665 = vmatpush2.msra.mxu0 0.0
        %3666 = vmatprep.subr.mxu0 0.0
        %3667 = vmatpush2.msra.mxu0 0.0
        %3668 = vmatprep.subr.mxu0 0.0
        %3669 = vmatpush2.msra.mxu0 0.0
        %3670 = vmatprep.subr.mxu0 0.0
        %3671 = vmatpush2.msra.mxu0 0.0
        %3672 = vmatprep.subr.mxu0 0.0
        %3673 = vmatpush2.msra.mxu0 0.0
        %3674 = vmatprep.mubr.f32.mxu0 0.0
        %3675 = vmatmul.mubr.f32.gmra.mxu0 %v3605
        %v3676 = vpop.f32.mrf.mxu0
        %v3677 = vadd.f32 %v3602, %v3676
        %v3678 = vpop.f32.mrf.mxu0
        %3679 = vmatprep.mubr.f32.mxu0 0.0
        %3680 = vmatmul.mubr.f32.gmra.mxu0 %v3608
        %v3681 = vpop.f32.mrf.mxu0
        %v3682 = vadd.f32 %v3602, %v3681
        %v3683 = vpop.f32.mrf.mxu0
        %3684 = vdwg.mxu0
        %s3685 = sadd.s32 512, %s547
        %s3686 = scalar_lea.vmem %s2, %s3685
        %v3687 = vld [vmem:[%s3686] sm:$0xff]
        %v3688 = vld [vmem:[%s3686 + $0x8] sm:$0xff]
        %v3689 = vld [vmem:[%s3686 + $0x10] sm:$0xff]
        %v3690 = vld [vmem:[%s3686 + $0x18] sm:$0xff]
        %s3691 = sadd.s32 16, %s553
        %s3692 = scalar_lea.vmem %s3, %s3691
        %v3693 = vld [vmem:[%s3692] sm:$0x1]
        %v3695 = vlaneseq
        %v3696 = vshrl.u32 %v3695, 7
        %v3697 = vsub.s32 0, %v3696
        %v3698 = vrot.slane %v3693, %v3697
        %3700 = vmatprep.subr.mxu0 0.0
        %3701 = vmatpush1.msra.mxu0 0.0
        %3702 = vmatprep.subr.mxu0 0.0
        %3703 = vmatpush1.msra.mxu0 0.0
        %3704 = vmatprep.subr.mxu0 0.0
        %3705 = vmatpush1.msra.mxu0 0.0
        %3706 = vmatprep.subr.mxu0 0.0
        %3707 = vmatpush1.msra.mxu0 0.0
        %3708 = vmatprep.subr.mxu0 0.0
        %3709 = vmatpush1.msra.mxu0 0.0
        %3710 = vmatprep.subr.mxu0 0.0
        %3711 = vmatpush1.msra.mxu0 0.0
        %3712 = vmatprep.subr.mxu0 0.0
        %3713 = vmatpush1.msra.mxu0 0.0
        %3714 = vmatprep.subr.mxu0 0.0
        %3715 = vmatpush1.msra.mxu0 0.0
        %3716 = vmatprep.subr.mxu0 0.0
        %3717 = vmatpush1.msra.mxu0 0.0
        %3718 = vmatprep.subr.mxu0 0.0
        %3719 = vmatpush1.msra.mxu0 0.0
        %3720 = vmatprep.subr.mxu0 0.0
        %3721 = vmatpush1.msra.mxu0 0.0
        %3722 = vmatprep.subr.mxu0 0.0
        %3723 = vmatpush1.msra.mxu0 0.0
        %3724 = vmatprep.subr.mxu0 0.0
        %3725 = vmatpush1.msra.mxu0 %v3690
        %3726 = vmatprep.subr.mxu0 0.0
        %3727 = vmatpush1.msra.mxu0 %v3689
        %3728 = vmatprep.subr.mxu0 0.0
        %3729 = vmatpush1.msra.mxu0 %v3688
        %3730 = vmatprep.subr.mxu0 0.0
        %3731 = vmatpush1.msra.mxu0 %v3687
        %3732 = vmatprep.subr.mxu0 0.0
        %3733 = vmatpush2.msra.mxu0 0.0
        %3734 = vmatprep.subr.mxu0 0.0
        %3735 = vmatpush2.msra.mxu0 0.0
        %3736 = vmatprep.subr.mxu0 0.0
        %3737 = vmatpush2.msra.mxu0 0.0
        %3738 = vmatprep.subr.mxu0 0.0
        %3739 = vmatpush2.msra.mxu0 0.0
        %3740 = vmatprep.subr.mxu0 0.0
        %3741 = vmatpush2.msra.mxu0 0.0
        %3742 = vmatprep.subr.mxu0 0.0
        %3743 = vmatpush2.msra.mxu0 0.0
        %3744 = vmatprep.subr.mxu0 0.0
        %3745 = vmatpush2.msra.mxu0 0.0
        %3746 = vmatprep.subr.mxu0 0.0
        %3747 = vmatpush2.msra.mxu0 0.0
        %3748 = vmatprep.subr.mxu0 0.0
        %3749 = vmatpush2.msra.mxu0 0.0
        %3750 = vmatprep.subr.mxu0 0.0
        %3751 = vmatpush2.msra.mxu0 0.0
        %3752 = vmatprep.subr.mxu0 0.0
        %3753 = vmatpush2.msra.mxu0 0.0
        %3754 = vmatprep.subr.mxu0 0.0
        %3755 = vmatpush2.msra.mxu0 0.0
        %3756 = vmatprep.subr.mxu0 0.0
        %3757 = vmatpush2.msra.mxu0 0.0
        %3758 = vmatprep.subr.mxu0 0.0
        %3759 = vmatpush2.msra.mxu0 0.0
        %3760 = vmatprep.subr.mxu0 0.0
        %3761 = vmatpush2.msra.mxu0 0.0
        %3762 = vmatprep.subr.mxu0 0.0
        %3763 = vmatpush2.msra.mxu0 0.0
        %3764 = vmatprep.mubr.f32.mxu0 0.0
        %3765 = vmatmul.mubr.f32.gmra.mxu0 %v3605
        %v3766 = vpop.f32.mrf.mxu0
        %v3767 = vadd.f32 %v3698, %v3766
        %v3768 = vpop.f32.mrf.mxu0
        %3769 = vmatprep.mubr.f32.mxu0 0.0
        %3770 = vmatmul.mubr.f32.gmra.mxu0 %v3608
        %v3771 = vpop.f32.mrf.mxu0
        %v3772 = vadd.f32 %v3698, %v3771
        %v3773 = vpop.f32.mrf.mxu0
        %3774 = vdwg.mxu0
        %s3775 = sadd.s32 640, %s547
        %s3776 = scalar_lea.vmem %s2, %s3775
        %v3777 = vld [vmem:[%s3776] sm:$0xff]
        %v3778 = vld [vmem:[%s3776 + $0x8] sm:$0xff]
        %v3779 = vld [vmem:[%s3776 + $0x10] sm:$0xff]
        %v3780 = vld [vmem:[%s3776 + $0x18] sm:$0xff]
        %s3781 = sadd.s32 20, %s553
        %s3782 = scalar_lea.vmem %s3, %s3781
        %v3783 = vld [vmem:[%s3782] sm:$0x1]
        %v3785 = vlaneseq
        %v3786 = vshrl.u32 %v3785, 7
        %v3787 = vsub.s32 0, %v3786
        %v3788 = vrot.slane %v3783, %v3787
        %3790 = vmatprep.subr.mxu0 0.0
        %3791 = vmatpush1.msra.mxu0 0.0
        %3792 = vmatprep.subr.mxu0 0.0
        %3793 = vmatpush1.msra.mxu0 0.0
        %3794 = vmatprep.subr.mxu0 0.0
        %3795 = vmatpush1.msra.mxu0 0.0
        %3796 = vmatprep.subr.mxu0 0.0
        %3797 = vmatpush1.msra.mxu0 0.0
        %3798 = vmatprep.subr.mxu0 0.0
        %3799 = vmatpush1.msra.mxu0 0.0
        %3800 = vmatprep.subr.mxu0 0.0
        %3801 = vmatpush1.msra.mxu0 0.0
        %3802 = vmatprep.subr.mxu0 0.0
        %3803 = vmatpush1.msra.mxu0 0.0
        %3804 = vmatprep.subr.mxu0 0.0
        %3805 = vmatpush1.msra.mxu0 0.0
        %3806 = vmatprep.subr.mxu0 0.0
        %3807 = vmatpush1.msra.mxu0 0.0
        %3808 = vmatprep.subr.mxu0 0.0
        %3809 = vmatpush1.msra.mxu0 0.0
        %3810 = vmatprep.subr.mxu0 0.0
        %3811 = vmatpush1.msra.mxu0 0.0
        %3812 = vmatprep.subr.mxu0 0.0
        %3813 = vmatpush1.msra.mxu0 0.0
        %3814 = vmatprep.subr.mxu0 0.0
        %3815 = vmatpush1.msra.mxu0 %v3780
        %3816 = vmatprep.subr.mxu0 0.0
        %3817 = vmatpush1.msra.mxu0 %v3779
        %3818 = vmatprep.subr.mxu0 0.0
        %3819 = vmatpush1.msra.mxu0 %v3778
        %3820 = vmatprep.subr.mxu0 0.0
        %3821 = vmatpush1.msra.mxu0 %v3777
        %3822 = vmatprep.subr.mxu0 0.0
        %3823 = vmatpush2.msra.mxu0 0.0
        %3824 = vmatprep.subr.mxu0 0.0
        %3825 = vmatpush2.msra.mxu0 0.0
        %3826 = vmatprep.subr.mxu0 0.0
        %3827 = vmatpush2.msra.mxu0 0.0
        %3828 = vmatprep.subr.mxu0 0.0
        %3829 = vmatpush2.msra.mxu0 0.0
        %3830 = vmatprep.subr.mxu0 0.0
        %3831 = vmatpush2.msra.mxu0 0.0
        %3832 = vmatprep.subr.mxu0 0.0
        %3833 = vmatpush2.msra.mxu0 0.0
        %3834 = vmatprep.subr.mxu0 0.0
        %3835 = vmatpush2.msra.mxu0 0.0
        %3836 = vmatprep.subr.mxu0 0.0
        %3837 = vmatpush2.msra.mxu0 0.0
        %3838 = vmatprep.subr.mxu0 0.0
        %3839 = vmatpush2.msra.mxu0 0.0
        %3840 = vmatprep.subr.mxu0 0.0
        %3841 = vmatpush2.msra.mxu0 0.0
        %3842 = vmatprep.subr.mxu0 0.0
        %3843 = vmatpush2.msra.mxu0 0.0
        %3844 = vmatprep.subr.mxu0 0.0
        %3845 = vmatpush2.msra.mxu0 0.0
        %3846 = vmatprep.subr.mxu0 0.0
        %3847 = vmatpush2.msra.mxu0 0.0
        %3848 = vmatprep.subr.mxu0 0.0
        %3849 = vmatpush2.msra.mxu0 0.0
        %3850 = vmatprep.subr.mxu0 0.0
        %3851 = vmatpush2.msra.mxu0 0.0
        %3852 = vmatprep.subr.mxu0 0.0
        %3853 = vmatpush2.msra.mxu0 0.0
        %3854 = vmatprep.mubr.f32.mxu0 0.0
        %3855 = vmatmul.mubr.f32.gmra.mxu0 %v3605
        %v3856 = vpop.f32.mrf.mxu0
        %v3857 = vadd.f32 %v3788, %v3856
        %v3858 = vpop.f32.mrf.mxu0
        %3859 = vmatprep.mubr.f32.mxu0 0.0
        %3860 = vmatmul.mubr.f32.gmra.mxu0 %v3608
        %v3861 = vpop.f32.mrf.mxu0
        %v3862 = vadd.f32 %v3788, %v3861
        %v3863 = vpop.f32.mrf.mxu0
        %3864 = vdwg.mxu0
        %v3866 = vsel %vm833, %v3677, 0
        %v3869 = vsel %vm833, %v3767, 0
        %3871 = vmatprep.subr.mxu0 0.0
        %3872 = vmatpush1.xpose.msra.mxu0 0.0
        %3873 = vmatprep.subr.mxu0 0.0
        %3874 = vmatpush1.xpose.msra.mxu0 0.0
        %3875 = vmatprep.subr.mxu0 0.0
        %3876 = vmatpush1.xpose.msra.mxu0 0.0
        %3877 = vmatprep.subr.mxu0 0.0
        %3878 = vmatpush1.xpose.msra.mxu0 0.0
        %3879 = vmatprep.subr.mxu0 0.0
        %3880 = vmatpush1.xpose.msra.mxu0 0.0
        %3881 = vmatprep.subr.mxu0 0.0
        %3882 = vmatpush1.xpose.msra.mxu0 0.0
        %3883 = vmatprep.subr.mxu0 0.0
        %3884 = vmatpush1.xpose.msra.mxu0 0.0
        %3885 = vmatprep.subr.mxu0 0.0
        %3886 = vmatpush1.xpose.msra.mxu0 0.0
        %3887 = vmatprep.subr.mxu0 0.0
        %3888 = vmatpush1.xpose.msra.mxu0 0.0
        %3889 = vmatprep.subr.mxu0 0.0
        %3890 = vmatpush1.xpose.msra.mxu0 0.0
        %3891 = vmatprep.subr.mxu0 0.0
        %3892 = vmatpush1.xpose.msra.mxu0 0.0
        %3893 = vmatprep.subr.mxu0 0.0
        %3894 = vmatpush1.xpose.msra.mxu0 0.0
        %3895 = vmatprep.subr.mxu0 0.0
        %3896 = vmatpush1.xpose.msra.mxu0 0.0
        %3897 = vmatprep.subr.mxu0 0.0
        %3898 = vmatpush1.xpose.msra.mxu0 0.0
        %3899 = vmatprep.subr.mxu0 0.0
        %3900 = vmatpush1.xpose.msra.mxu0 0.0
        %3901 = vmatprep.subr.mxu0 0.0
        %3902 = vmatpush1.xpose.msra.mxu0 %v3869
        %3903 = vmatprep.subr.mxu0 0.0
        %3904 = vmatpush2.xpose.msra.mxu0 0.0
        %3905 = vmatprep.subr.mxu0 0.0
        %3906 = vmatpush2.xpose.msra.mxu0 0.0
        %3907 = vmatprep.subr.mxu0 0.0
        %3908 = vmatpush2.xpose.msra.mxu0 0.0
        %3909 = vmatprep.subr.mxu0 0.0
        %3910 = vmatpush2.xpose.msra.mxu0 0.0
        %3911 = vmatprep.subr.mxu0 0.0
        %3912 = vmatpush2.xpose.msra.mxu0 0.0
        %3913 = vmatprep.subr.mxu0 0.0
        %3914 = vmatpush2.xpose.msra.mxu0 0.0
        %3915 = vmatprep.subr.mxu0 0.0
        %3916 = vmatpush2.xpose.msra.mxu0 0.0
        %3917 = vmatprep.subr.mxu0 0.0
        %3918 = vmatpush2.xpose.msra.mxu0 0.0
        %3919 = vmatprep.subr.mxu0 0.0
        %3920 = vmatpush2.xpose.msra.mxu0 0.0
        %3921 = vmatprep.subr.mxu0 0.0
        %3922 = vmatpush2.xpose.msra.mxu0 0.0
        %3923 = vmatprep.subr.mxu0 0.0
        %3924 = vmatpush2.xpose.msra.mxu0 0.0
        %3925 = vmatprep.subr.mxu0 0.0
        %3926 = vmatpush2.xpose.msra.mxu0 0.0
        %3927 = vmatprep.subr.mxu0 0.0
        %3928 = vmatpush2.xpose.msra.mxu0 0.0
        %3929 = vmatprep.subr.mxu0 0.0
        %3930 = vmatpush2.xpose.msra.mxu0 0.0
        %3931 = vmatprep.subr.mxu0 0.0
        %3932 = vmatpush2.xpose.msra.mxu0 0.0
        %3933 = vmatprep.subr.mxu0 0.0
        %3934 = vmatpush2.xpose.msra.mxu0 0.0
        %3935 = vmatprep.mubr.f32.mxu0 0.0
        %3936 = vmatmul.mubr.f32.gmra.mxu0 %v3866
        %v3937 = vpop.f32.mrf.mxu0
        %v3938 = vadd.f32 %v826, %v3937
        %v3939 = vpop.f32.mrf.mxu0
        %3940 = vdwg.mxu0
        %v3942 = vsel %vm833, %v3682, 0
        %v3945 = vsel %vm833, %v3772, 0
        %3947 = vmatprep.subr.mxu0 0.0
        %3948 = vmatpush1.xpose.msra.mxu0 0.0
        %3949 = vmatprep.subr.mxu0 0.0
        %3950 = vmatpush1.xpose.msra.mxu0 0.0
        %3951 = vmatprep.subr.mxu0 0.0
        %3952 = vmatpush1.xpose.msra.mxu0 0.0
        %3953 = vmatprep.subr.mxu0 0.0
        %3954 = vmatpush1.xpose.msra.mxu0 0.0
        %3955 = vmatprep.subr.mxu0 0.0
        %3956 = vmatpush1.xpose.msra.mxu0 0.0
        %3957 = vmatprep.subr.mxu0 0.0
        %3958 = vmatpush1.xpose.msra.mxu0 0.0
        %3959 = vmatprep.subr.mxu0 0.0
        %3960 = vmatpush1.xpose.msra.mxu0 0.0
        %3961 = vmatprep.subr.mxu0 0.0
        %3962 = vmatpush1.xpose.msra.mxu0 0.0
        %3963 = vmatprep.subr.mxu0 0.0
        %3964 = vmatpush1.xpose.msra.mxu0 0.0
        %3965 = vmatprep.subr.mxu0 0.0
        %3966 = vmatpush1.xpose.msra.mxu0 0.0
        %3967 = vmatprep.subr.mxu0 0.0
        %3968 = vmatpush1.xpose.msra.mxu0 0.0
        %3969 = vmatprep.subr.mxu0 0.0
        %3970 = vmatpush1.xpose.msra.mxu0 0.0
        %3971 = vmatprep.subr.mxu0 0.0
        %3972 = vmatpush1.xpose.msra.mxu0 0.0
        %3973 = vmatprep.subr.mxu0 0.0
        %3974 = vmatpush1.xpose.msra.mxu0 0.0
        %3975 = vmatprep.subr.mxu0 0.0
        %3976 = vmatpush1.xpose.msra.mxu0 0.0
        %3977 = vmatprep.subr.mxu0 0.0
        %3978 = vmatpush1.xpose.msra.mxu0 %v3945
        %3979 = vmatprep.subr.mxu0 0.0
        %3980 = vmatpush2.xpose.msra.mxu0 0.0
        %3981 = vmatprep.subr.mxu0 0.0
        %3982 = vmatpush2.xpose.msra.mxu0 0.0
        %3983 = vmatprep.subr.mxu0 0.0
        %3984 = vmatpush2.xpose.msra.mxu0 0.0
        %3985 = vmatprep.subr.mxu0 0.0
        %3986 = vmatpush2.xpose.msra.mxu0 0.0
        %3987 = vmatprep.subr.mxu0 0.0
        %3988 = vmatpush2.xpose.msra.mxu0 0.0
        %3989 = vmatprep.subr.mxu0 0.0
        %3990 = vmatpush2.xpose.msra.mxu0 0.0
        %3991 = vmatprep.subr.mxu0 0.0
        %3992 = vmatpush2.xpose.msra.mxu0 0.0
        %3993 = vmatprep.subr.mxu0 0.0
        %3994 = vmatpush2.xpose.msra.mxu0 0.0
        %3995 = vmatprep.subr.mxu0 0.0
        %3996 = vmatpush2.xpose.msra.mxu0 0.0
        %3997 = vmatprep.subr.mxu0 0.0
        %3998 = vmatpush2.xpose.msra.mxu0 0.0
        %3999 = vmatprep.subr.mxu0 0.0
        %4000 = vmatpush2.xpose.msra.mxu0 0.0
        %4001 = vmatprep.subr.mxu0 0.0
        %4002 = vmatpush2.xpose.msra.mxu0 0.0
        %4003 = vmatprep.subr.mxu0 0.0
        %4004 = vmatpush2.xpose.msra.mxu0 0.0
        %4005 = vmatprep.subr.mxu0 0.0
        %4006 = vmatpush2.xpose.msra.mxu0 0.0
        %4007 = vmatprep.subr.mxu0 0.0
        %4008 = vmatpush2.xpose.msra.mxu0 0.0
        %4009 = vmatprep.subr.mxu0 0.0
        %4010 = vmatpush2.xpose.msra.mxu0 0.0
        %4011 = vmatprep.mubr.f32.mxu0 0.0
        %4012 = vmatmul.mubr.f32.gmra.mxu0 %v3942
        %v4013 = vpop.f32.mrf.mxu0
        %v4014 = vadd.f32 %v830, %v4013
        %v4015 = vpop.f32.mrf.mxu0
        %4016 = vdwg.mxu0
        %v4017 = vsel %vm833, %v3938, -inf
        %4018 = vmax.xlane.f32.xlu0 %v4017
        %v4019 = vpop.xlane.xlu0 %4018
        %v4020 = vsel %vm833, %v4014, -inf
        %4021 = vmax.xlane.f32.xlu0 %v4020
        %v4022 = vpop.xlane.xlu0 %4021
        %v4023 = vsub.f32 %v3938, %v4019
        %v4024 = vsub.f32 %v4014, %v4022
        %v4025 = vmul.f32 %v4023, 1.442695
        %v4026 = vpow.pop %v4025
        %v4027 = vmul.f32 %v4024, 1.442695
        %v4028 = vpow.pop %v4027
        %v4029 = vsel %vm833, %v4026, 0.0
        %4030 = vadd.xlane.f32.xlu0 %v4029
        %v4031 = vpop.xlane.xlu0 %4030
        %v4032 = vsel %vm833, %v4028, 0.0
        %4033 = vadd.xlane.f32.xlu0 %v4032
        %v4034 = vpop.xlane.xlu0 %4033
        %v4035 = vrcp.pop %v4031
        %v4036 = vrcp.pop %v4034
        %v4037 = vmul.f32 %v4026, %v4035
        %v4038 = vmul.f32 %v4028, %v4036
        %v4040 = vsel %vm833, %v4037, 0
        %4042 = vmatprep.subr.mxu0 0.0
        %4043 = vmatpush1.msra.mxu0 0.0
        %4044 = vmatprep.subr.mxu0 0.0
        %4045 = vmatpush1.msra.mxu0 0.0
        %4046 = vmatprep.subr.mxu0 0.0
        %4047 = vmatpush1.msra.mxu0 0.0
        %4048 = vmatprep.subr.mxu0 0.0
        %4049 = vmatpush1.msra.mxu0 0.0
        %4050 = vmatprep.subr.mxu0 0.0
        %4051 = vmatpush1.msra.mxu0 0.0
        %4052 = vmatprep.subr.mxu0 0.0
        %4053 = vmatpush1.msra.mxu0 0.0
        %4054 = vmatprep.subr.mxu0 0.0
        %4055 = vmatpush1.msra.mxu0 0.0
        %4056 = vmatprep.subr.mxu0 0.0
        %4057 = vmatpush1.msra.mxu0 0.0
        %4058 = vmatprep.subr.mxu0 0.0
        %4059 = vmatpush1.msra.mxu0 0.0
        %4060 = vmatprep.subr.mxu0 0.0
        %4061 = vmatpush1.msra.mxu0 0.0
        %4062 = vmatprep.subr.mxu0 0.0
        %4063 = vmatpush1.msra.mxu0 0.0
        %4064 = vmatprep.subr.mxu0 0.0
        %4065 = vmatpush1.msra.mxu0 0.0
        %4066 = vmatprep.subr.mxu0 0.0
        %4067 = vmatpush1.msra.mxu0 0.0
        %4068 = vmatprep.subr.mxu0 0.0
        %4069 = vmatpush1.msra.mxu0 0.0
        %4070 = vmatprep.subr.mxu0 0.0
        %4071 = vmatpush1.msra.mxu0 0.0
        %4072 = vmatprep.subr.mxu0 0.0
        %4073 = vmatpush1.msra.mxu0 %v3857
        %4074 = vmatprep.subr.mxu0 0.0
        %4075 = vmatpush2.msra.mxu0 0.0
        %4076 = vmatprep.subr.mxu0 0.0
        %4077 = vmatpush2.msra.mxu0 0.0
        %4078 = vmatprep.subr.mxu0 0.0
        %4079 = vmatpush2.msra.mxu0 0.0
        %4080 = vmatprep.subr.mxu0 0.0
        %4081 = vmatpush2.msra.mxu0 0.0
        %4082 = vmatprep.subr.mxu0 0.0
        %4083 = vmatpush2.msra.mxu0 0.0
        %4084 = vmatprep.subr.mxu0 0.0
        %4085 = vmatpush2.msra.mxu0 0.0
        %4086 = vmatprep.subr.mxu0 0.0
        %4087 = vmatpush2.msra.mxu0 0.0
        %4088 = vmatprep.subr.mxu0 0.0
        %4089 = vmatpush2.msra.mxu0 0.0
        %4090 = vmatprep.subr.mxu0 0.0
        %4091 = vmatpush2.msra.mxu0 0.0
        %4092 = vmatprep.subr.mxu0 0.0
        %4093 = vmatpush2.msra.mxu0 0.0
        %4094 = vmatprep.subr.mxu0 0.0
        %4095 = vmatpush2.msra.mxu0 0.0
        %4096 = vmatprep.subr.mxu0 0.0
        %4097 = vmatpush2.msra.mxu0 0.0
        %4098 = vmatprep.subr.mxu0 0.0
        %4099 = vmatpush2.msra.mxu0 0.0
        %4100 = vmatprep.subr.mxu0 0.0
        %4101 = vmatpush2.msra.mxu0 0.0
        %4102 = vmatprep.subr.mxu0 0.0
        %4103 = vmatpush2.msra.mxu0 0.0
        %4104 = vmatprep.subr.mxu0 0.0
        %4105 = vmatpush2.msra.mxu0 0.0
        %4106 = vmatprep.mubr.f32.mxu0 0.0
        %4107 = vmatmul.mubr.f32.gmra.mxu0 %v4040
        %v4108 = vpop.f32.mrf.mxu0
        %v4109 = vadd.f32 0.0, %v4108
        %v4110 = vpop.f32.mrf.mxu0
        %4111 = vdwg.mxu0
        %v4113 = vsel %vm833, %v4038, 0
        %4115 = vmatprep.subr.mxu0 0.0
        %4116 = vmatpush1.msra.mxu0 0.0
        %4117 = vmatprep.subr.mxu0 0.0
        %4118 = vmatpush1.msra.mxu0 0.0
        %4119 = vmatprep.subr.mxu0 0.0
        %4120 = vmatpush1.msra.mxu0 0.0
        %4121 = vmatprep.subr.mxu0 0.0
        %4122 = vmatpush1.msra.mxu0 0.0
        %4123 = vmatprep.subr.mxu0 0.0
        %4124 = vmatpush1.msra.mxu0 0.0
        %4125 = vmatprep.subr.mxu0 0.0
        %4126 = vmatpush1.msra.mxu0 0.0
        %4127 = vmatprep.subr.mxu0 0.0
        %4128 = vmatpush1.msra.mxu0 0.0
        %4129 = vmatprep.subr.mxu0 0.0
        %4130 = vmatpush1.msra.mxu0 0.0
        %4131 = vmatprep.subr.mxu0 0.0
        %4132 = vmatpush1.msra.mxu0 0.0
        %4133 = vmatprep.subr.mxu0 0.0
        %4134 = vmatpush1.msra.mxu0 0.0
        %4135 = vmatprep.subr.mxu0 0.0
        %4136 = vmatpush1.msra.mxu0 0.0
        %4137 = vmatprep.subr.mxu0 0.0
        %4138 = vmatpush1.msra.mxu0 0.0
        %4139 = vmatprep.subr.mxu0 0.0
        %4140 = vmatpush1.msra.mxu0 0.0
        %4141 = vmatprep.subr.mxu0 0.0
        %4142 = vmatpush1.msra.mxu0 0.0
        %4143 = vmatprep.subr.mxu0 0.0
        %4144 = vmatpush1.msra.mxu0 0.0
        %4145 = vmatprep.subr.mxu0 0.0
        %4146 = vmatpush1.msra.mxu0 %v3862
        %4147 = vmatprep.subr.mxu0 0.0
        %4148 = vmatpush2.msra.mxu0 0.0
        %4149 = vmatprep.subr.mxu0 0.0
        %4150 = vmatpush2.msra.mxu0 0.0
        %4151 = vmatprep.subr.mxu0 0.0
        %4152 = vmatpush2.msra.mxu0 0.0
        %4153 = vmatprep.subr.mxu0 0.0
        %4154 = vmatpush2.msra.mxu0 0.0
        %4155 = vmatprep.subr.mxu0 0.0
        %4156 = vmatpush2.msra.mxu0 0.0
        %4157 = vmatprep.subr.mxu0 0.0
        %4158 = vmatpush2.msra.mxu0 0.0
        %4159 = vmatprep.subr.mxu0 0.0
        %4160 = vmatpush2.msra.mxu0 0.0
        %4161 = vmatprep.subr.mxu0 0.0
        %4162 = vmatpush2.msra.mxu0 0.0
        %4163 = vmatprep.subr.mxu0 0.0
        %4164 = vmatpush2.msra.mxu0 0.0
        %4165 = vmatprep.subr.mxu0 0.0
        %4166 = vmatpush2.msra.mxu0 0.0
        %4167 = vmatprep.subr.mxu0 0.0
        %4168 = vmatpush2.msra.mxu0 0.0
        %4169 = vmatprep.subr.mxu0 0.0
        %4170 = vmatpush2.msra.mxu0 0.0
        %4171 = vmatprep.subr.mxu0 0.0
        %4172 = vmatpush2.msra.mxu0 0.0
        %4173 = vmatprep.subr.mxu0 0.0
        %4174 = vmatpush2.msra.mxu0 0.0
        %4175 = vmatprep.subr.mxu0 0.0
        %4176 = vmatpush2.msra.mxu0 0.0
        %4177 = vmatprep.subr.mxu0 0.0
        %4178 = vmatpush2.msra.mxu0 0.0
        %4179 = vmatprep.mubr.f32.mxu0 0.0
        %4180 = vmatmul.mubr.f32.gmra.mxu0 %v4113
        %v4181 = vpop.f32.mrf.mxu0
        %v4182 = vadd.f32 0.0, %v4181
        %v4183 = vpop.f32.mrf.mxu0
        %4184 = vdwg.mxu0
        %s4185 = sadd.s32 32, %s1154
        %s4186 = scalar_lea.vmem %s4, %s4185
        %v4187 = vld [vmem:[%s4186] sm:$0xff]
        %s4188 = sadd.s32 416, %s547
        %s4189 = scalar_lea.vmem %s2, %s4188
        %v4190 = vld [vmem:[%s4189] sm:$0xff]
        %v4191 = vld [vmem:[%s4189 + $0x8] sm:$0xff]
        %v4192 = vld [vmem:[%s4189 + $0x10] sm:$0xff]
        %v4193 = vld [vmem:[%s4189 + $0x18] sm:$0xff]
        %s4194 = sadd.s32 13, %s553
        %s4195 = scalar_lea.vmem %s3, %s4194
        %v4196 = vld [vmem:[%s4195] sm:$0x1]
        %v4198 = vlaneseq
        %v4199 = vshrl.u32 %v4198, 7
        %v4200 = vsub.s32 0, %v4199
        %v4201 = vrot.slane %v4196, %v4200
        %4203 = vmatprep.subr.mxu0 0.0
        %4204 = vmatpush1.msra.mxu0 0.0
        %4205 = vmatprep.subr.mxu0 0.0
        %4206 = vmatpush1.msra.mxu0 0.0
        %4207 = vmatprep.subr.mxu0 0.0
        %4208 = vmatpush1.msra.mxu0 0.0
        %4209 = vmatprep.subr.mxu0 0.0
        %4210 = vmatpush1.msra.mxu0 0.0
        %4211 = vmatprep.subr.mxu0 0.0
        %4212 = vmatpush1.msra.mxu0 0.0
        %4213 = vmatprep.subr.mxu0 0.0
        %4214 = vmatpush1.msra.mxu0 0.0
        %4215 = vmatprep.subr.mxu0 0.0
        %4216 = vmatpush1.msra.mxu0 0.0
        %4217 = vmatprep.subr.mxu0 0.0
        %4218 = vmatpush1.msra.mxu0 0.0
        %4219 = vmatprep.subr.mxu0 0.0
        %4220 = vmatpush1.msra.mxu0 0.0
        %4221 = vmatprep.subr.mxu0 0.0
        %4222 = vmatpush1.msra.mxu0 0.0
        %4223 = vmatprep.subr.mxu0 0.0
        %4224 = vmatpush1.msra.mxu0 0.0
        %4225 = vmatprep.subr.mxu0 0.0
        %4226 = vmatpush1.msra.mxu0 0.0
        %4227 = vmatprep.subr.mxu0 0.0
        %4228 = vmatpush1.msra.mxu0 %v4193
        %4229 = vmatprep.subr.mxu0 0.0
        %4230 = vmatpush1.msra.mxu0 %v4192
        %4231 = vmatprep.subr.mxu0 0.0
        %4232 = vmatpush1.msra.mxu0 %v4191
        %4233 = vmatprep.subr.mxu0 0.0
        %4234 = vmatpush1.msra.mxu0 %v4190
        %4235 = vmatprep.subr.mxu0 0.0
        %4236 = vmatpush2.msra.mxu0 0.0
        %4237 = vmatprep.subr.mxu0 0.0
        %4238 = vmatpush2.msra.mxu0 0.0
        %4239 = vmatprep.subr.mxu0 0.0
        %4240 = vmatpush2.msra.mxu0 0.0
        %4241 = vmatprep.subr.mxu0 0.0
        %4242 = vmatpush2.msra.mxu0 0.0
        %4243 = vmatprep.subr.mxu0 0.0
        %4244 = vmatpush2.msra.mxu0 0.0
        %4245 = vmatprep.subr.mxu0 0.0
        %4246 = vmatpush2.msra.mxu0 0.0
        %4247 = vmatprep.subr.mxu0 0.0
        %4248 = vmatpush2.msra.mxu0 0.0
        %4249 = vmatprep.subr.mxu0 0.0
        %4250 = vmatpush2.msra.mxu0 0.0
        %4251 = vmatprep.subr.mxu0 0.0
        %4252 = vmatpush2.msra.mxu0 0.0
        %4253 = vmatprep.subr.mxu0 0.0
        %4254 = vmatpush2.msra.mxu0 0.0
        %4255 = vmatprep.subr.mxu0 0.0
        %4256 = vmatpush2.msra.mxu0 0.0
        %4257 = vmatprep.subr.mxu0 0.0
        %4258 = vmatpush2.msra.mxu0 0.0
        %4259 = vmatprep.subr.mxu0 0.0
        %4260 = vmatpush2.msra.mxu0 0.0
        %4261 = vmatprep.subr.mxu0 0.0
        %4262 = vmatpush2.msra.mxu0 0.0
        %4263 = vmatprep.subr.mxu0 0.0
        %4264 = vmatpush2.msra.mxu0 0.0
        %4265 = vmatprep.subr.mxu0 0.0
        %4266 = vmatpush2.msra.mxu0 0.0
        %4267 = vmatprep.mubr.f32.mxu0 0.0
        %4268 = vmatmul.mubr.f32.gmra.mxu0 %v3605
        %v4269 = vpop.f32.mrf.mxu0
        %v4270 = vadd.f32 %v4201, %v4269
        %v4271 = vpop.f32.mrf.mxu0
        %4272 = vmatprep.mubr.f32.mxu0 0.0
        %4273 = vmatmul.mubr.f32.gmra.mxu0 %v3608
        %v4274 = vpop.f32.mrf.mxu0
        %v4275 = vadd.f32 %v4201, %v4274
        %v4276 = vpop.f32.mrf.mxu0
        %4277 = vdwg.mxu0
        %s4278 = sadd.s32 544, %s547
        %s4279 = scalar_lea.vmem %s2, %s4278
        %v4280 = vld [vmem:[%s4279] sm:$0xff]
        %v4281 = vld [vmem:[%s4279 + $0x8] sm:$0xff]
        %v4282 = vld [vmem:[%s4279 + $0x10] sm:$0xff]
        %v4283 = vld [vmem:[%s4279 + $0x18] sm:$0xff]
        %s4284 = sadd.s32 17, %s553
        %s4285 = scalar_lea.vmem %s3, %s4284
        %v4286 = vld [vmem:[%s4285] sm:$0x1]
        %v4288 = vlaneseq
        %v4289 = vshrl.u32 %v4288, 7
        %v4290 = vsub.s32 0, %v4289
        %v4291 = vrot.slane %v4286, %v4290
        %4293 = vmatprep.subr.mxu0 0.0
        %4294 = vmatpush1.msra.mxu0 0.0
        %4295 = vmatprep.subr.mxu0 0.0
        %4296 = vmatpush1.msra.mxu0 0.0
        %4297 = vmatprep.subr.mxu0 0.0
        %4298 = vmatpush1.msra.mxu0 0.0
        %4299 = vmatprep.subr.mxu0 0.0
        %4300 = vmatpush1.msra.mxu0 0.0
        %4301 = vmatprep.subr.mxu0 0.0
        %4302 = vmatpush1.msra.mxu0 0.0
        %4303 = vmatprep.subr.mxu0 0.0
        %4304 = vmatpush1.msra.mxu0 0.0
        %4305 = vmatprep.subr.mxu0 0.0
        %4306 = vmatpush1.msra.mxu0 0.0
        %4307 = vmatprep.subr.mxu0 0.0
        %4308 = vmatpush1.msra.mxu0 0.0
        %4309 = vmatprep.subr.mxu0 0.0
        %4310 = vmatpush1.msra.mxu0 0.0
        %4311 = vmatprep.subr.mxu0 0.0
        %4312 = vmatpush1.msra.mxu0 0.0
        %4313 = vmatprep.subr.mxu0 0.0
        %4314 = vmatpush1.msra.mxu0 0.0
        %4315 = vmatprep.subr.mxu0 0.0
        %4316 = vmatpush1.msra.mxu0 0.0
        %4317 = vmatprep.subr.mxu0 0.0
        %4318 = vmatpush1.msra.mxu0 %v4283
        %4319 = vmatprep.subr.mxu0 0.0
        %4320 = vmatpush1.msra.mxu0 %v4282
        %4321 = vmatprep.subr.mxu0 0.0
        %4322 = vmatpush1.msra.mxu0 %v4281
        %4323 = vmatprep.subr.mxu0 0.0
        %4324 = vmatpush1.msra.mxu0 %v4280
        %4325 = vmatprep.subr.mxu0 0.0
        %4326 = vmatpush2.msra.mxu0 0.0
        %4327 = vmatprep.subr.mxu0 0.0
        %4328 = vmatpush2.msra.mxu0 0.0
        %4329 = vmatprep.subr.mxu0 0.0
        %4330 = vmatpush2.msra.mxu0 0.0
        %4331 = vmatprep.subr.mxu0 0.0
        %4332 = vmatpush2.msra.mxu0 0.0
        %4333 = vmatprep.subr.mxu0 0.0
        %4334 = vmatpush2.msra.mxu0 0.0
        %4335 = vmatprep.subr.mxu0 0.0
        %4336 = vmatpush2.msra.mxu0 0.0
        %4337 = vmatprep.subr.mxu0 0.0
        %4338 = vmatpush2.msra.mxu0 0.0
        %4339 = vmatprep.subr.mxu0 0.0
        %4340 = vmatpush2.msra.mxu0 0.0
        %4341 = vmatprep.subr.mxu0 0.0
        %4342 = vmatpush2.msra.mxu0 0.0
        %4343 = vmatprep.subr.mxu0 0.0
        %4344 = vmatpush2.msra.mxu0 0.0
        %4345 = vmatprep.subr.mxu0 0.0
        %4346 = vmatpush2.msra.mxu0 0.0
        %4347 = vmatprep.subr.mxu0 0.0
        %4348 = vmatpush2.msra.mxu0 0.0
        %4349 = vmatprep.subr.mxu0 0.0
        %4350 = vmatpush2.msra.mxu0 0.0
        %4351 = vmatprep.subr.mxu0 0.0
        %4352 = vmatpush2.msra.mxu0 0.0
        %4353 = vmatprep.subr.mxu0 0.0
        %4354 = vmatpush2.msra.mxu0 0.0
        %4355 = vmatprep.subr.mxu0 0.0
        %4356 = vmatpush2.msra.mxu0 0.0
        %4357 = vmatprep.mubr.f32.mxu0 0.0
        %4358 = vmatmul.mubr.f32.gmra.mxu0 %v3605
        %v4359 = vpop.f32.mrf.mxu0
        %v4360 = vadd.f32 %v4291, %v4359
        %v4361 = vpop.f32.mrf.mxu0
        %4362 = vmatprep.mubr.f32.mxu0 0.0
        %4363 = vmatmul.mubr.f32.gmra.mxu0 %v3608
        %v4364 = vpop.f32.mrf.mxu0
        %v4365 = vadd.f32 %v4291, %v4364
        %v4366 = vpop.f32.mrf.mxu0
        %4367 = vdwg.mxu0
        %s4368 = sadd.s32 672, %s547
        %s4369 = scalar_lea.vmem %s2, %s4368
        %v4370 = vld [vmem:[%s4369] sm:$0xff]
        %v4371 = vld [vmem:[%s4369 + $0x8] sm:$0xff]
        %v4372 = vld [vmem:[%s4369 + $0x10] sm:$0xff]
        %v4373 = vld [vmem:[%s4369 + $0x18] sm:$0xff]
        %s4374 = sadd.s32 21, %s553
        %s4375 = scalar_lea.vmem %s3, %s4374
        %v4376 = vld [vmem:[%s4375] sm:$0x1]
        %v4378 = vlaneseq
        %v4379 = vshrl.u32 %v4378, 7
        %v4380 = vsub.s32 0, %v4379
        %v4381 = vrot.slane %v4376, %v4380
        %4383 = vmatprep.subr.mxu0 0.0
        %4384 = vmatpush1.msra.mxu0 0.0
        %4385 = vmatprep.subr.mxu0 0.0
        %4386 = vmatpush1.msra.mxu0 0.0
        %4387 = vmatprep.subr.mxu0 0.0
        %4388 = vmatpush1.msra.mxu0 0.0
        %4389 = vmatprep.subr.mxu0 0.0
        %4390 = vmatpush1.msra.mxu0 0.0
        %4391 = vmatprep.subr.mxu0 0.0
        %4392 = vmatpush1.msra.mxu0 0.0
        %4393 = vmatprep.subr.mxu0 0.0
        %4394 = vmatpush1.msra.mxu0 0.0
        %4395 = vmatprep.subr.mxu0 0.0
        %4396 = vmatpush1.msra.mxu0 0.0
        %4397 = vmatprep.subr.mxu0 0.0
        %4398 = vmatpush1.msra.mxu0 0.0
        %4399 = vmatprep.subr.mxu0 0.0
        %4400 = vmatpush1.msra.mxu0 0.0
        %4401 = vmatprep.subr.mxu0 0.0
        %4402 = vmatpush1.msra.mxu0 0.0
        %4403 = vmatprep.subr.mxu0 0.0
        %4404 = vmatpush1.msra.mxu0 0.0
        %4405 = vmatprep.subr.mxu0 0.0
        %4406 = vmatpush1.msra.mxu0 0.0
        %4407 = vmatprep.subr.mxu0 0.0
        %4408 = vmatpush1.msra.mxu0 %v4373
        %4409 = vmatprep.subr.mxu0 0.0
        %4410 = vmatpush1.msra.mxu0 %v4372
        %4411 = vmatprep.subr.mxu0 0.0
        %4412 = vmatpush1.msra.mxu0 %v4371
        %4413 = vmatprep.subr.mxu0 0.0
        %4414 = vmatpush1.msra.mxu0 %v4370
        %4415 = vmatprep.subr.mxu0 0.0
        %4416 = vmatpush2.msra.mxu0 0.0
        %4417 = vmatprep.subr.mxu0 0.0
        %4418 = vmatpush2.msra.mxu0 0.0
        %4419 = vmatprep.subr.mxu0 0.0
        %4420 = vmatpush2.msra.mxu0 0.0
        %4421 = vmatprep.subr.mxu0 0.0
        %4422 = vmatpush2.msra.mxu0 0.0
        %4423 = vmatprep.subr.mxu0 0.0
        %4424 = vmatpush2.msra.mxu0 0.0
        %4425 = vmatprep.subr.mxu0 0.0
        %4426 = vmatpush2.msra.mxu0 0.0
        %4427 = vmatprep.subr.mxu0 0.0
        %4428 = vmatpush2.msra.mxu0 0.0
        %4429 = vmatprep.subr.mxu0 0.0
        %4430 = vmatpush2.msra.mxu0 0.0
        %4431 = vmatprep.subr.mxu0 0.0
        %4432 = vmatpush2.msra.mxu0 0.0
        %4433 = vmatprep.subr.mxu0 0.0
        %4434 = vmatpush2.msra.mxu0 0.0
        %4435 = vmatprep.subr.mxu0 0.0
        %4436 = vmatpush2.msra.mxu0 0.0
        %4437 = vmatprep.subr.mxu0 0.0
        %4438 = vmatpush2.msra.mxu0 0.0
        %4439 = vmatprep.subr.mxu0 0.0
        %4440 = vmatpush2.msra.mxu0 0.0
        %4441 = vmatprep.subr.mxu0 0.0
        %4442 = vmatpush2.msra.mxu0 0.0
        %4443 = vmatprep.subr.mxu0 0.0
        %4444 = vmatpush2.msra.mxu0 0.0
        %4445 = vmatprep.subr.mxu0 0.0
        %4446 = vmatpush2.msra.mxu0 0.0
        %4447 = vmatprep.mubr.f32.mxu0 0.0
        %4448 = vmatmul.mubr.f32.gmra.mxu0 %v3605
        %v4449 = vpop.f32.mrf.mxu0
        %v4450 = vadd.f32 %v4381, %v4449
        %v4451 = vpop.f32.mrf.mxu0
        %4452 = vmatprep.mubr.f32.mxu0 0.0
        %4453 = vmatmul.mubr.f32.gmra.mxu0 %v3608
        %v4454 = vpop.f32.mrf.mxu0
        %v4455 = vadd.f32 %v4381, %v4454
        %v4456 = vpop.f32.mrf.mxu0
        %4457 = vdwg.mxu0
        %v4459 = vsel %vm833, %v4270, 0
        %v4462 = vsel %vm833, %v4360, 0
        %4464 = vmatprep.subr.mxu0 0.0
        %4465 = vmatpush1.xpose.msra.mxu0 0.0
        %4466 = vmatprep.subr.mxu0 0.0
        %4467 = vmatpush1.xpose.msra.mxu0 0.0
        %4468 = vmatprep.subr.mxu0 0.0
        %4469 = vmatpush1.xpose.msra.mxu0 0.0
        %4470 = vmatprep.subr.mxu0 0.0
        %4471 = vmatpush1.xpose.msra.mxu0 0.0
        %4472 = vmatprep.subr.mxu0 0.0
        %4473 = vmatpush1.xpose.msra.mxu0 0.0
        %4474 = vmatprep.subr.mxu0 0.0
        %4475 = vmatpush1.xpose.msra.mxu0 0.0
        %4476 = vmatprep.subr.mxu0 0.0
        %4477 = vmatpush1.xpose.msra.mxu0 0.0
        %4478 = vmatprep.subr.mxu0 0.0
        %4479 = vmatpush1.xpose.msra.mxu0 0.0
        %4480 = vmatprep.subr.mxu0 0.0
        %4481 = vmatpush1.xpose.msra.mxu0 0.0
        %4482 = vmatprep.subr.mxu0 0.0
        %4483 = vmatpush1.xpose.msra.mxu0 0.0
        %4484 = vmatprep.subr.mxu0 0.0
        %4485 = vmatpush1.xpose.msra.mxu0 0.0
        %4486 = vmatprep.subr.mxu0 0.0
        %4487 = vmatpush1.xpose.msra.mxu0 0.0
        %4488 = vmatprep.subr.mxu0 0.0
        %4489 = vmatpush1.xpose.msra.mxu0 0.0
        %4490 = vmatprep.subr.mxu0 0.0
        %4491 = vmatpush1.xpose.msra.mxu0 0.0
        %4492 = vmatprep.subr.mxu0 0.0
        %4493 = vmatpush1.xpose.msra.mxu0 0.0
        %4494 = vmatprep.subr.mxu0 0.0
        %4495 = vmatpush1.xpose.msra.mxu0 %v4462
        %4496 = vmatprep.subr.mxu0 0.0
        %4497 = vmatpush2.xpose.msra.mxu0 0.0
        %4498 = vmatprep.subr.mxu0 0.0
        %4499 = vmatpush2.xpose.msra.mxu0 0.0
        %4500 = vmatprep.subr.mxu0 0.0
        %4501 = vmatpush2.xpose.msra.mxu0 0.0
        %4502 = vmatprep.subr.mxu0 0.0
        %4503 = vmatpush2.xpose.msra.mxu0 0.0
        %4504 = vmatprep.subr.mxu0 0.0
        %4505 = vmatpush2.xpose.msra.mxu0 0.0
        %4506 = vmatprep.subr.mxu0 0.0
        %4507 = vmatpush2.xpose.msra.mxu0 0.0
        %4508 = vmatprep.subr.mxu0 0.0
        %4509 = vmatpush2.xpose.msra.mxu0 0.0
        %4510 = vmatprep.subr.mxu0 0.0
        %4511 = vmatpush2.xpose.msra.mxu0 0.0
        %4512 = vmatprep.subr.mxu0 0.0
        %4513 = vmatpush2.xpose.msra.mxu0 0.0
        %4514 = vmatprep.subr.mxu0 0.0
        %4515 = vmatpush2.xpose.msra.mxu0 0.0
        %4516 = vmatprep.subr.mxu0 0.0
        %4517 = vmatpush2.xpose.msra.mxu0 0.0
        %4518 = vmatprep.subr.mxu0 0.0
        %4519 = vmatpush2.xpose.msra.mxu0 0.0
        %4520 = vmatprep.subr.mxu0 0.0
        %4521 = vmatpush2.xpose.msra.mxu0 0.0
        %4522 = vmatprep.subr.mxu0 0.0
        %4523 = vmatpush2.xpose.msra.mxu0 0.0
        %4524 = vmatprep.subr.mxu0 0.0
        %4525 = vmatpush2.xpose.msra.mxu0 0.0
        %4526 = vmatprep.subr.mxu0 0.0
        %4527 = vmatpush2.xpose.msra.mxu0 0.0
        %4528 = vmatprep.mubr.f32.mxu0 0.0
        %4529 = vmatmul.mubr.f32.gmra.mxu0 %v4459
        %v4530 = vpop.f32.mrf.mxu0
        %v4531 = vadd.f32 %v826, %v4530
        %v4532 = vpop.f32.mrf.mxu0
        %4533 = vdwg.mxu0
        %v4535 = vsel %vm833, %v4275, 0
        %v4538 = vsel %vm833, %v4365, 0
        %4540 = vmatprep.subr.mxu0 0.0
        %4541 = vmatpush1.xpose.msra.mxu0 0.0
        %4542 = vmatprep.subr.mxu0 0.0
        %4543 = vmatpush1.xpose.msra.mxu0 0.0
        %4544 = vmatprep.subr.mxu0 0.0
        %4545 = vmatpush1.xpose.msra.mxu0 0.0
        %4546 = vmatprep.subr.mxu0 0.0
        %4547 = vmatpush1.xpose.msra.mxu0 0.0
        %4548 = vmatprep.subr.mxu0 0.0
        %4549 = vmatpush1.xpose.msra.mxu0 0.0
        %4550 = vmatprep.subr.mxu0 0.0
        %4551 = vmatpush1.xpose.msra.mxu0 0.0
        %4552 = vmatprep.subr.mxu0 0.0
        %4553 = vmatpush1.xpose.msra.mxu0 0.0
        %4554 = vmatprep.subr.mxu0 0.0
        %4555 = vmatpush1.xpose.msra.mxu0 0.0
        %4556 = vmatprep.subr.mxu0 0.0
        %4557 = vmatpush1.xpose.msra.mxu0 0.0
        %4558 = vmatprep.subr.mxu0 0.0
        %4559 = vmatpush1.xpose.msra.mxu0 0.0
        %4560 = vmatprep.subr.mxu0 0.0
        %4561 = vmatpush1.xpose.msra.mxu0 0.0
        %4562 = vmatprep.subr.mxu0 0.0
        %4563 = vmatpush1.xpose.msra.mxu0 0.0
        %4564 = vmatprep.subr.mxu0 0.0
        %4565 = vmatpush1.xpose.msra.mxu0 0.0
        %4566 = vmatprep.subr.mxu0 0.0
        %4567 = vmatpush1.xpose.msra.mxu0 0.0
        %4568 = vmatprep.subr.mxu0 0.0
        %4569 = vmatpush1.xpose.msra.mxu0 0.0
        %4570 = vmatprep.subr.mxu0 0.0
        %4571 = vmatpush1.xpose.msra.mxu0 %v4538
        %4572 = vmatprep.subr.mxu0 0.0
        %4573 = vmatpush2.xpose.msra.mxu0 0.0
        %4574 = vmatprep.subr.mxu0 0.0
        %4575 = vmatpush2.xpose.msra.mxu0 0.0
        %4576 = vmatprep.subr.mxu0 0.0
        %4577 = vmatpush2.xpose.msra.mxu0 0.0
        %4578 = vmatprep.subr.mxu0 0.0
        %4579 = vmatpush2.xpose.msra.mxu0 0.0
        %4580 = vmatprep.subr.mxu0 0.0
        %4581 = vmatpush2.xpose.msra.mxu0 0.0
        %4582 = vmatprep.subr.mxu0 0.0
        %4583 = vmatpush2.xpose.msra.mxu0 0.0
        %4584 = vmatprep.subr.mxu0 0.0
        %4585 = vmatpush2.xpose.msra.mxu0 0.0
        %4586 = vmatprep.subr.mxu0 0.0
        %4587 = vmatpush2.xpose.msra.mxu0 0.0
        %4588 = vmatprep.subr.mxu0 0.0
        %4589 = vmatpush2.xpose.msra.mxu0 0.0
        %4590 = vmatprep.subr.mxu0 0.0
        %4591 = vmatpush2.xpose.msra.mxu0 0.0
        %4592 = vmatprep.subr.mxu0 0.0
        %4593 = vmatpush2.xpose.msra.mxu0 0.0
        %4594 = vmatprep.subr.mxu0 0.0
        %4595 = vmatpush2.xpose.msra.mxu0 0.0
        %4596 = vmatprep.subr.mxu0 0.0
        %4597 = vmatpush2.xpose.msra.mxu0 0.0
        %4598 = vmatprep.subr.mxu0 0.0
        %4599 = vmatpush2.xpose.msra.mxu0 0.0
        %4600 = vmatprep.subr.mxu0 0.0
        %4601 = vmatpush2.xpose.msra.mxu0 0.0
        %4602 = vmatprep.subr.mxu0 0.0
        %4603 = vmatpush2.xpose.msra.mxu0 0.0
        %4604 = vmatprep.mubr.f32.mxu0 0.0
        %4605 = vmatmul.mubr.f32.gmra.mxu0 %v4535
        %v4606 = vpop.f32.mrf.mxu0
        %v4607 = vadd.f32 %v830, %v4606
        %v4608 = vpop.f32.mrf.mxu0
        %4609 = vdwg.mxu0
        %v4610 = vsel %vm833, %v4531, -inf
        %4611 = vmax.xlane.f32.xlu0 %v4610
        %v4612 = vpop.xlane.xlu0 %4611
        %v4613 = vsel %vm833, %v4607, -inf
        %4614 = vmax.xlane.f32.xlu0 %v4613
        %v4615 = vpop.xlane.xlu0 %4614
        %v4616 = vsub.f32 %v4531, %v4612
        %v4617 = vsub.f32 %v4607, %v4615
        %v4618 = vmul.f32 %v4616, 1.442695
        %v4619 = vpow.pop %v4618
        %v4620 = vmul.f32 %v4617, 1.442695
        %v4621 = vpow.pop %v4620
        %v4622 = vsel %vm833, %v4619, 0.0
        %4623 = vadd.xlane.f32.xlu0 %v4622
        %v4624 = vpop.xlane.xlu0 %4623
        %v4625 = vsel %vm833, %v4621, 0.0
        %4626 = vadd.xlane.f32.xlu0 %v4625
        %v4627 = vpop.xlane.xlu0 %4626
        %v4628 = vrcp.pop %v4624
        %v4629 = vrcp.pop %v4627
        %v4630 = vmul.f32 %v4619, %v4628
        %v4631 = vmul.f32 %v4621, %v4629
        %v4633 = vsel %vm833, %v4630, 0
        %4635 = vmatprep.subr.mxu0 0.0
        %4636 = vmatpush1.msra.mxu0 0.0
        %4637 = vmatprep.subr.mxu0 0.0
        %4638 = vmatpush1.msra.mxu0 0.0
        %4639 = vmatprep.subr.mxu0 0.0
        %4640 = vmatpush1.msra.mxu0 0.0
        %4641 = vmatprep.subr.mxu0 0.0
        %4642 = vmatpush1.msra.mxu0 0.0
        %4643 = vmatprep.subr.mxu0 0.0
        %4644 = vmatpush1.msra.mxu0 0.0
        %4645 = vmatprep.subr.mxu0 0.0
        %4646 = vmatpush1.msra.mxu0 0.0
        %4647 = vmatprep.subr.mxu0 0.0
        %4648 = vmatpush1.msra.mxu0 0.0
        %4649 = vmatprep.subr.mxu0 0.0
        %4650 = vmatpush1.msra.mxu0 0.0
        %4651 = vmatprep.subr.mxu0 0.0
        %4652 = vmatpush1.msra.mxu0 0.0
        %4653 = vmatprep.subr.mxu0 0.0
        %4654 = vmatpush1.msra.mxu0 0.0
        %4655 = vmatprep.subr.mxu0 0.0
        %4656 = vmatpush1.msra.mxu0 0.0
        %4657 = vmatprep.subr.mxu0 0.0
        %4658 = vmatpush1.msra.mxu0 0.0
        %4659 = vmatprep.subr.mxu0 0.0
        %4660 = vmatpush1.msra.mxu0 0.0
        %4661 = vmatprep.subr.mxu0 0.0
        %4662 = vmatpush1.msra.mxu0 0.0
        %4663 = vmatprep.subr.mxu0 0.0
        %4664 = vmatpush1.msra.mxu0 0.0
        %4665 = vmatprep.subr.mxu0 0.0
        %4666 = vmatpush1.msra.mxu0 %v4450
        %4667 = vmatprep.subr.mxu0 0.0
        %4668 = vmatpush2.msra.mxu0 0.0
        %4669 = vmatprep.subr.mxu0 0.0
        %4670 = vmatpush2.msra.mxu0 0.0
        %4671 = vmatprep.subr.mxu0 0.0
        %4672 = vmatpush2.msra.mxu0 0.0
        %4673 = vmatprep.subr.mxu0 0.0
        %4674 = vmatpush2.msra.mxu0 0.0
        %4675 = vmatprep.subr.mxu0 0.0
        %4676 = vmatpush2.msra.mxu0 0.0
        %4677 = vmatprep.subr.mxu0 0.0
        %4678 = vmatpush2.msra.mxu0 0.0
        %4679 = vmatprep.subr.mxu0 0.0
        %4680 = vmatpush2.msra.mxu0 0.0
        %4681 = vmatprep.subr.mxu0 0.0
        %4682 = vmatpush2.msra.mxu0 0.0
        %4683 = vmatprep.subr.mxu0 0.0
        %4684 = vmatpush2.msra.mxu0 0.0
        %4685 = vmatprep.subr.mxu0 0.0
        %4686 = vmatpush2.msra.mxu0 0.0
        %4687 = vmatprep.subr.mxu0 0.0
        %4688 = vmatpush2.msra.mxu0 0.0
        %4689 = vmatprep.subr.mxu0 0.0
        %4690 = vmatpush2.msra.mxu0 0.0
        %4691 = vmatprep.subr.mxu0 0.0
        %4692 = vmatpush2.msra.mxu0 0.0
        %4693 = vmatprep.subr.mxu0 0.0
        %4694 = vmatpush2.msra.mxu0 0.0
        %4695 = vmatprep.subr.mxu0 0.0
        %4696 = vmatpush2.msra.mxu0 0.0
        %4697 = vmatprep.subr.mxu0 0.0
        %4698 = vmatpush2.msra.mxu0 0.0
        %4699 = vmatprep.mubr.f32.mxu0 0.0
        %4700 = vmatmul.mubr.f32.gmra.mxu0 %v4633
        %v4701 = vpop.f32.mrf.mxu0
        %v4702 = vadd.f32 0.0, %v4701
        %v4703 = vpop.f32.mrf.mxu0
        %4704 = vdwg.mxu0
        %v4706 = vsel %vm833, %v4631, 0
        %4708 = vmatprep.subr.mxu0 0.0
        %4709 = vmatpush1.msra.mxu0 0.0
        %4710 = vmatprep.subr.mxu0 0.0
        %4711 = vmatpush1.msra.mxu0 0.0
        %4712 = vmatprep.subr.mxu0 0.0
        %4713 = vmatpush1.msra.mxu0 0.0
        %4714 = vmatprep.subr.mxu0 0.0
        %4715 = vmatpush1.msra.mxu0 0.0
        %4716 = vmatprep.subr.mxu0 0.0
        %4717 = vmatpush1.msra.mxu0 0.0
        %4718 = vmatprep.subr.mxu0 0.0
        %4719 = vmatpush1.msra.mxu0 0.0
        %4720 = vmatprep.subr.mxu0 0.0
        %4721 = vmatpush1.msra.mxu0 0.0
        %4722 = vmatprep.subr.mxu0 0.0
        %4723 = vmatpush1.msra.mxu0 0.0
        %4724 = vmatprep.subr.mxu0 0.0
        %4725 = vmatpush1.msra.mxu0 0.0
        %4726 = vmatprep.subr.mxu0 0.0
        %4727 = vmatpush1.msra.mxu0 0.0
        %4728 = vmatprep.subr.mxu0 0.0
        %4729 = vmatpush1.msra.mxu0 0.0
        %4730 = vmatprep.subr.mxu0 0.0
        %4731 = vmatpush1.msra.mxu0 0.0
        %4732 = vmatprep.subr.mxu0 0.0
        %4733 = vmatpush1.msra.mxu0 0.0
        %4734 = vmatprep.subr.mxu0 0.0
        %4735 = vmatpush1.msra.mxu0 0.0
        %4736 = vmatprep.subr.mxu0 0.0
        %4737 = vmatpush1.msra.mxu0 0.0
        %4738 = vmatprep.subr.mxu0 0.0
        %4739 = vmatpush1.msra.mxu0 %v4455
        %4740 = vmatprep.subr.mxu0 0.0
        %4741 = vmatpush2.msra.mxu0 0.0
        %4742 = vmatprep.subr.mxu0 0.0
        %4743 = vmatpush2.msra.mxu0 0.0
        %4744 = vmatprep.subr.mxu0 0.0
        %4745 = vmatpush2.msra.mxu0 0.0
        %4746 = vmatprep.subr.mxu0 0.0
        %4747 = vmatpush2.msra.mxu0 0.0
        %4748 = vmatprep.subr.mxu0 0.0
        %4749 = vmatpush2.msra.mxu0 0.0
        %4750 = vmatprep.subr.mxu0 0.0
        %4751 = vmatpush2.msra.mxu0 0.0
        %4752 = vmatprep.subr.mxu0 0.0
        %4753 = vmatpush2.msra.mxu0 0.0
        %4754 = vmatprep.subr.mxu0 0.0
        %4755 = vmatpush2.msra.mxu0 0.0
        %4756 = vmatprep.subr.mxu0 0.0
        %4757 = vmatpush2.msra.mxu0 0.0
        %4758 = vmatprep.subr.mxu0 0.0
        %4759 = vmatpush2.msra.mxu0 0.0
        %4760 = vmatprep.subr.mxu0 0.0
        %4761 = vmatpush2.msra.mxu0 0.0
        %4762 = vmatprep.subr.mxu0 0.0
        %4763 = vmatpush2.msra.mxu0 0.0
        %4764 = vmatprep.subr.mxu0 0.0
        %4765 = vmatpush2.msra.mxu0 0.0
        %4766 = vmatprep.subr.mxu0 0.0
        %4767 = vmatpush2.msra.mxu0 0.0
        %4768 = vmatprep.subr.mxu0 0.0
        %4769 = vmatpush2.msra.mxu0 0.0
        %4770 = vmatprep.subr.mxu0 0.0
        %4771 = vmatpush2.msra.mxu0 0.0
        %4772 = vmatprep.mubr.f32.mxu0 0.0
        %4773 = vmatmul.mubr.f32.gmra.mxu0 %v4706
        %v4774 = vpop.f32.mrf.mxu0
        %v4775 = vadd.f32 0.0, %v4774
        %v4776 = vpop.f32.mrf.mxu0
        %4777 = vdwg.mxu0
        %s4778 = sadd.s32 40, %s1154
        %s4779 = scalar_lea.vmem %s4, %s4778
        %v4780 = vld [vmem:[%s4779] sm:$0xff]
        %v4782 = vsel %vm833, %v4702, 0
        %v4785 = vsel %vm833, %v4775, 0
        %4787 = vmatprep.subr.mxu0 0.0
        %4788 = vmatpush1.msra.mxu0 0.0
        %4789 = vmatprep.subr.mxu0 0.0
        %4790 = vmatpush1.msra.mxu0 0.0
        %4791 = vmatprep.subr.mxu0 0.0
        %4792 = vmatpush1.msra.mxu0 0.0
        %4793 = vmatprep.subr.mxu0 0.0
        %4794 = vmatpush1.msra.mxu0 0.0
        %4795 = vmatprep.subr.mxu0 0.0
        %4796 = vmatpush1.msra.mxu0 0.0
        %4797 = vmatprep.subr.mxu0 0.0
        %4798 = vmatpush1.msra.mxu0 0.0
        %4799 = vmatprep.subr.mxu0 0.0
        %4800 = vmatpush1.msra.mxu0 0.0
        %4801 = vmatprep.subr.mxu0 0.0
        %4802 = vmatpush1.msra.mxu0 0.0
        %4803 = vmatprep.subr.mxu0 0.0
        %4804 = vmatpush1.msra.mxu0 0.0
        %4805 = vmatprep.subr.mxu0 0.0
        %4806 = vmatpush1.msra.mxu0 0.0
        %4807 = vmatprep.subr.mxu0 0.0
        %4808 = vmatpush1.msra.mxu0 0.0
        %4809 = vmatprep.subr.mxu0 0.0
        %4810 = vmatpush1.msra.mxu0 0.0
        %4811 = vmatprep.subr.mxu0 0.0
        %4812 = vmatpush1.msra.mxu0 0.0
        %4813 = vmatprep.subr.mxu0 0.0
        %4814 = vmatpush1.msra.mxu0 0.0
        %4815 = vmatprep.subr.mxu0 0.0
        %4816 = vmatpush1.msra.mxu0 0.0
        %4817 = vmatprep.subr.mxu0 0.0
        %4818 = vmatpush1.msra.mxu0 %v4780
        %4819 = vmatprep.subr.mxu0 0.0
        %4820 = vmatpush2.msra.mxu0 0.0
        %4821 = vmatprep.subr.mxu0 0.0
        %4822 = vmatpush2.msra.mxu0 0.0
        %4823 = vmatprep.subr.mxu0 0.0
        %4824 = vmatpush2.msra.mxu0 0.0
        %4825 = vmatprep.subr.mxu0 0.0
        %4826 = vmatpush2.msra.mxu0 0.0
        %4827 = vmatprep.subr.mxu0 0.0
        %4828 = vmatpush2.msra.mxu0 0.0
        %4829 = vmatprep.subr.mxu0 0.0
        %4830 = vmatpush2.msra.mxu0 0.0
        %4831 = vmatprep.subr.mxu0 0.0
        %4832 = vmatpush2.msra.mxu0 0.0
        %4833 = vmatprep.subr.mxu0 0.0
        %4834 = vmatpush2.msra.mxu0 0.0
        %4835 = vmatprep.subr.mxu0 0.0
        %4836 = vmatpush2.msra.mxu0 0.0
        %4837 = vmatprep.subr.mxu0 0.0
        %4838 = vmatpush2.msra.mxu0 0.0
        %4839 = vmatprep.subr.mxu0 0.0
        %4840 = vmatpush2.msra.mxu0 0.0
        %4841 = vmatprep.subr.mxu0 0.0
        %4842 = vmatpush2.msra.mxu0 0.0
        %4843 = vmatprep.subr.mxu0 0.0
        %4844 = vmatpush2.msra.mxu0 0.0
        %4845 = vmatprep.subr.mxu0 0.0
        %4846 = vmatpush2.msra.mxu0 0.0
        %4847 = vmatprep.subr.mxu0 0.0
        %4848 = vmatpush2.msra.mxu0 0.0
        %4849 = vmatprep.subr.mxu0 0.0
        %4850 = vmatpush2.msra.mxu0 0.0
        %4851 = vmatprep.mubr.f32.mxu0 0.0
        %4852 = vmatmul.mubr.f32.gmra.mxu0 %v4782
        %v4853 = vpop.f32.mrf.mxu0
        %v4854 = vadd.f32 0.0, %v4853
        %v4855 = vpop.f32.mrf.mxu0
        %4856 = vmatprep.mubr.f32.mxu0 0.0
        %4857 = vmatmul.mubr.f32.gmra.mxu0 %v4785
        %v4858 = vpop.f32.mrf.mxu0
        %v4859 = vadd.f32 0.0, %v4858
        %v4860 = vpop.f32.mrf.mxu0
        %4861 = vdwg.mxu0
        %v4863 = vsel %vm833, %v4109, 0
        %v4866 = vsel %vm833, %v4182, 0
        %4868 = vmatprep.subr.mxu0 0.0
        %4869 = vmatpush1.msra.mxu0 0.0
        %4870 = vmatprep.subr.mxu0 0.0
        %4871 = vmatpush1.msra.mxu0 0.0
        %4872 = vmatprep.subr.mxu0 0.0
        %4873 = vmatpush1.msra.mxu0 0.0
        %4874 = vmatprep.subr.mxu0 0.0
        %4875 = vmatpush1.msra.mxu0 0.0
        %4876 = vmatprep.subr.mxu0 0.0
        %4877 = vmatpush1.msra.mxu0 0.0
        %4878 = vmatprep.subr.mxu0 0.0
        %4879 = vmatpush1.msra.mxu0 0.0
        %4880 = vmatprep.subr.mxu0 0.0
        %4881 = vmatpush1.msra.mxu0 0.0
        %4882 = vmatprep.subr.mxu0 0.0
        %4883 = vmatpush1.msra.mxu0 0.0
        %4884 = vmatprep.subr.mxu0 0.0
        %4885 = vmatpush1.msra.mxu0 0.0
        %4886 = vmatprep.subr.mxu0 0.0
        %4887 = vmatpush1.msra.mxu0 0.0
        %4888 = vmatprep.subr.mxu0 0.0
        %4889 = vmatpush1.msra.mxu0 0.0
        %4890 = vmatprep.subr.mxu0 0.0
        %4891 = vmatpush1.msra.mxu0 0.0
        %4892 = vmatprep.subr.mxu0 0.0
        %4893 = vmatpush1.msra.mxu0 0.0
        %4894 = vmatprep.subr.mxu0 0.0
        %4895 = vmatpush1.msra.mxu0 0.0
        %4896 = vmatprep.subr.mxu0 0.0
        %4897 = vmatpush1.msra.mxu0 0.0
        %4898 = vmatprep.subr.mxu0 0.0
        %4899 = vmatpush1.msra.mxu0 %v4187
        %4900 = vmatprep.subr.mxu0 0.0
        %4901 = vmatpush2.msra.mxu0 0.0
        %4902 = vmatprep.subr.mxu0 0.0
        %4903 = vmatpush2.msra.mxu0 0.0
        %4904 = vmatprep.subr.mxu0 0.0
        %4905 = vmatpush2.msra.mxu0 0.0
        %4906 = vmatprep.subr.mxu0 0.0
        %4907 = vmatpush2.msra.mxu0 0.0
        %4908 = vmatprep.subr.mxu0 0.0
        %4909 = vmatpush2.msra.mxu0 0.0
        %4910 = vmatprep.subr.mxu0 0.0
        %4911 = vmatpush2.msra.mxu0 0.0
        %4912 = vmatprep.subr.mxu0 0.0
        %4913 = vmatpush2.msra.mxu0 0.0
        %4914 = vmatprep.subr.mxu0 0.0
        %4915 = vmatpush2.msra.mxu0 0.0
        %4916 = vmatprep.subr.mxu0 0.0
        %4917 = vmatpush2.msra.mxu0 0.0
        %4918 = vmatprep.subr.mxu0 0.0
        %4919 = vmatpush2.msra.mxu0 0.0
        %4920 = vmatprep.subr.mxu0 0.0
        %4921 = vmatpush2.msra.mxu0 0.0
        %4922 = vmatprep.subr.mxu0 0.0
        %4923 = vmatpush2.msra.mxu0 0.0
        %4924 = vmatprep.subr.mxu0 0.0
        %4925 = vmatpush2.msra.mxu0 0.0
        %4926 = vmatprep.subr.mxu0 0.0
        %4927 = vmatpush2.msra.mxu0 0.0
        %4928 = vmatprep.subr.mxu0 0.0
        %4929 = vmatpush2.msra.mxu0 0.0
        %4930 = vmatprep.subr.mxu0 0.0
        %4931 = vmatpush2.msra.mxu0 0.0
        %4932 = vmatprep.mubr.f32.mxu0 0.0
        %4933 = vmatmul.mubr.f32.gmra.mxu0 %v4863
        %v4934 = vpop.f32.mrf.mxu0
        %v4935 = vadd.f32 %v4854, %v4934
        %v4936 = vpop.f32.mrf.mxu0
        %4937 = vmatprep.mubr.f32.mxu0 0.0
        %4938 = vmatmul.mubr.f32.gmra.mxu0 %v4866
        %v4939 = vpop.f32.mrf.mxu0
        %v4940 = vadd.f32 %v4859, %v4939
        %v4941 = vpop.f32.mrf.mxu0
        %4942 = vdwg.mxu0
        %s4943 = sadd.s32 448, %s547
        %s4944 = scalar_lea.vmem %s2, %s4943
        %v4945 = vld [vmem:[%s4944] sm:$0xff]
        %v4946 = vld [vmem:[%s4944 + $0x8] sm:$0xff]
        %v4947 = vld [vmem:[%s4944 + $0x10] sm:$0xff]
        %v4948 = vld [vmem:[%s4944 + $0x18] sm:$0xff]
        %s4949 = sadd.s32 14, %s553
        %s4950 = scalar_lea.vmem %s3, %s4949
        %v4951 = vld [vmem:[%s4950] sm:$0x1]
        %v4953 = vlaneseq
        %v4954 = vshrl.u32 %v4953, 7
        %v4955 = vsub.s32 0, %v4954
        %v4956 = vrot.slane %v4951, %v4955
        %4958 = vmatprep.subr.mxu0 0.0
        %4959 = vmatpush1.msra.mxu0 0.0
        %4960 = vmatprep.subr.mxu0 0.0
        %4961 = vmatpush1.msra.mxu0 0.0
        %4962 = vmatprep.subr.mxu0 0.0
        %4963 = vmatpush1.msra.mxu0 0.0
        %4964 = vmatprep.subr.mxu0 0.0
        %4965 = vmatpush1.msra.mxu0 0.0
        %4966 = vmatprep.subr.mxu0 0.0
        %4967 = vmatpush1.msra.mxu0 0.0
        %4968 = vmatprep.subr.mxu0 0.0
        %4969 = vmatpush1.msra.mxu0 0.0
        %4970 = vmatprep.subr.mxu0 0.0
        %4971 = vmatpush1.msra.mxu0 0.0
        %4972 = vmatprep.subr.mxu0 0.0
        %4973 = vmatpush1.msra.mxu0 0.0
        %4974 = vmatprep.subr.mxu0 0.0
        %4975 = vmatpush1.msra.mxu0 0.0
        %4976 = vmatprep.subr.mxu0 0.0
        %4977 = vmatpush1.msra.mxu0 0.0
        %4978 = vmatprep.subr.mxu0 0.0
        %4979 = vmatpush1.msra.mxu0 0.0
        %4980 = vmatprep.subr.mxu0 0.0
        %4981 = vmatpush1.msra.mxu0 0.0
        %4982 = vmatprep.subr.mxu0 0.0
        %4983 = vmatpush1.msra.mxu0 %v4948
        %4984 = vmatprep.subr.mxu0 0.0
        %4985 = vmatpush1.msra.mxu0 %v4947
        %4986 = vmatprep.subr.mxu0 0.0
        %4987 = vmatpush1.msra.mxu0 %v4946
        %4988 = vmatprep.subr.mxu0 0.0
        %4989 = vmatpush1.msra.mxu0 %v4945
        %4990 = vmatprep.subr.mxu0 0.0
        %4991 = vmatpush2.msra.mxu0 0.0
        %4992 = vmatprep.subr.mxu0 0.0
        %4993 = vmatpush2.msra.mxu0 0.0
        %4994 = vmatprep.subr.mxu0 0.0
        %4995 = vmatpush2.msra.mxu0 0.0
        %4996 = vmatprep.subr.mxu0 0.0
        %4997 = vmatpush2.msra.mxu0 0.0
        %4998 = vmatprep.subr.mxu0 0.0
        %4999 = vmatpush2.msra.mxu0 0.0
        %5000 = vmatprep.subr.mxu0 0.0
        %5001 = vmatpush2.msra.mxu0 0.0
        %5002 = vmatprep.subr.mxu0 0.0
        %5003 = vmatpush2.msra.mxu0 0.0
        %5004 = vmatprep.subr.mxu0 0.0
        %5005 = vmatpush2.msra.mxu0 0.0
        %5006 = vmatprep.subr.mxu0 0.0
        %5007 = vmatpush2.msra.mxu0 0.0
        %5008 = vmatprep.subr.mxu0 0.0
        %5009 = vmatpush2.msra.mxu0 0.0
        %5010 = vmatprep.subr.mxu0 0.0
        %5011 = vmatpush2.msra.mxu0 0.0
        %5012 = vmatprep.subr.mxu0 0.0
        %5013 = vmatpush2.msra.mxu0 0.0
        %5014 = vmatprep.subr.mxu0 0.0
        %5015 = vmatpush2.msra.mxu0 0.0
        %5016 = vmatprep.subr.mxu0 0.0
        %5017 = vmatpush2.msra.mxu0 0.0
        %5018 = vmatprep.subr.mxu0 0.0
        %5019 = vmatpush2.msra.mxu0 0.0
        %5020 = vmatprep.subr.mxu0 0.0
        %5021 = vmatpush2.msra.mxu0 0.0
        %5022 = vmatprep.mubr.f32.mxu0 0.0
        %5023 = vmatmul.mubr.f32.gmra.mxu0 %v3605
        %v5024 = vpop.f32.mrf.mxu0
        %v5025 = vadd.f32 %v4956, %v5024
        %v5026 = vpop.f32.mrf.mxu0
        %5027 = vmatprep.mubr.f32.mxu0 0.0
        %5028 = vmatmul.mubr.f32.gmra.mxu0 %v3608
        %v5029 = vpop.f32.mrf.mxu0
        %v5030 = vadd.f32 %v4956, %v5029
        %v5031 = vpop.f32.mrf.mxu0
        %5032 = vdwg.mxu0
        %s5033 = sadd.s32 576, %s547
        %s5034 = scalar_lea.vmem %s2, %s5033
        %v5035 = vld [vmem:[%s5034] sm:$0xff]
        %v5036 = vld [vmem:[%s5034 + $0x8] sm:$0xff]
        %v5037 = vld [vmem:[%s5034 + $0x10] sm:$0xff]
        %v5038 = vld [vmem:[%s5034 + $0x18] sm:$0xff]
        %s5039 = sadd.s32 18, %s553
        %s5040 = scalar_lea.vmem %s3, %s5039
        %v5041 = vld [vmem:[%s5040] sm:$0x1]
        %v5043 = vlaneseq
        %v5044 = vshrl.u32 %v5043, 7
        %v5045 = vsub.s32 0, %v5044
        %v5046 = vrot.slane %v5041, %v5045
        %5048 = vmatprep.subr.mxu0 0.0
        %5049 = vmatpush1.msra.mxu0 0.0
        %5050 = vmatprep.subr.mxu0 0.0
        %5051 = vmatpush1.msra.mxu0 0.0
        %5052 = vmatprep.subr.mxu0 0.0
        %5053 = vmatpush1.msra.mxu0 0.0
        %5054 = vmatprep.subr.mxu0 0.0
        %5055 = vmatpush1.msra.mxu0 0.0
        %5056 = vmatprep.subr.mxu0 0.0
        %5057 = vmatpush1.msra.mxu0 0.0
        %5058 = vmatprep.subr.mxu0 0.0
        %5059 = vmatpush1.msra.mxu0 0.0
        %5060 = vmatprep.subr.mxu0 0.0
        %5061 = vmatpush1.msra.mxu0 0.0
        %5062 = vmatprep.subr.mxu0 0.0
        %5063 = vmatpush1.msra.mxu0 0.0
        %5064 = vmatprep.subr.mxu0 0.0
        %5065 = vmatpush1.msra.mxu0 0.0
        %5066 = vmatprep.subr.mxu0 0.0
        %5067 = vmatpush1.msra.mxu0 0.0
        %5068 = vmatprep.subr.mxu0 0.0
        %5069 = vmatpush1.msra.mxu0 0.0
        %5070 = vmatprep.subr.mxu0 0.0
        %5071 = vmatpush1.msra.mxu0 0.0
        %5072 = vmatprep.subr.mxu0 0.0
        %5073 = vmatpush1.msra.mxu0 %v5038
        %5074 = vmatprep.subr.mxu0 0.0
        %5075 = vmatpush1.msra.mxu0 %v5037
        %5076 = vmatprep.subr.mxu0 0.0
        %5077 = vmatpush1.msra.mxu0 %v5036
        %5078 = vmatprep.subr.mxu0 0.0
        %5079 = vmatpush1.msra.mxu0 %v5035
        %5080 = vmatprep.subr.mxu0 0.0
        %5081 = vmatpush2.msra.mxu0 0.0
        %5082 = vmatprep.subr.mxu0 0.0
        %5083 = vmatpush2.msra.mxu0 0.0
        %5084 = vmatprep.subr.mxu0 0.0
        %5085 = vmatpush2.msra.mxu0 0.0
        %5086 = vmatprep.subr.mxu0 0.0
        %5087 = vmatpush2.msra.mxu0 0.0
        %5088 = vmatprep.subr.mxu0 0.0
        %5089 = vmatpush2.msra.mxu0 0.0
        %5090 = vmatprep.subr.mxu0 0.0
        %5091 = vmatpush2.msra.mxu0 0.0
        %5092 = vmatprep.subr.mxu0 0.0
        %5093 = vmatpush2.msra.mxu0 0.0
        %5094 = vmatprep.subr.mxu0 0.0
        %5095 = vmatpush2.msra.mxu0 0.0
        %5096 = vmatprep.subr.mxu0 0.0
        %5097 = vmatpush2.msra.mxu0 0.0
        %5098 = vmatprep.subr.mxu0 0.0
        %5099 = vmatpush2.msra.mxu0 0.0
        %5100 = vmatprep.subr.mxu0 0.0
        %5101 = vmatpush2.msra.mxu0 0.0
        %5102 = vmatprep.subr.mxu0 0.0
        %5103 = vmatpush2.msra.mxu0 0.0
        %5104 = vmatprep.subr.mxu0 0.0
        %5105 = vmatpush2.msra.mxu0 0.0
        %5106 = vmatprep.subr.mxu0 0.0
        %5107 = vmatpush2.msra.mxu0 0.0
        %5108 = vmatprep.subr.mxu0 0.0
        %5109 = vmatpush2.msra.mxu0 0.0
        %5110 = vmatprep.subr.mxu0 0.0
        %5111 = vmatpush2.msra.mxu0 0.0
        %5112 = vmatprep.mubr.f32.mxu0 0.0
        %5113 = vmatmul.mubr.f32.gmra.mxu0 %v3605
        %v5114 = vpop.f32.mrf.mxu0
        %v5115 = vadd.f32 %v5046, %v5114
        %v5116 = vpop.f32.mrf.mxu0
        %5117 = vmatprep.mubr.f32.mxu0 0.0
        %5118 = vmatmul.mubr.f32.gmra.mxu0 %v3608
        %v5119 = vpop.f32.mrf.mxu0
        %v5120 = vadd.f32 %v5046, %v5119
        %v5121 = vpop.f32.mrf.mxu0
        %5122 = vdwg.mxu0
        %s5123 = sadd.s32 704, %s547
        %s5124 = scalar_lea.vmem %s2, %s5123
        %v5125 = vld [vmem:[%s5124] sm:$0xff]
        %v5126 = vld [vmem:[%s5124 + $0x8] sm:$0xff]
        %v5127 = vld [vmem:[%s5124 + $0x10] sm:$0xff]
        %v5128 = vld [vmem:[%s5124 + $0x18] sm:$0xff]
        %s5129 = sadd.s32 22, %s553
        %s5130 = scalar_lea.vmem %s3, %s5129
        %v5131 = vld [vmem:[%s5130] sm:$0x1]
        %v5133 = vlaneseq
        %v5134 = vshrl.u32 %v5133, 7
        %v5135 = vsub.s32 0, %v5134
        %v5136 = vrot.slane %v5131, %v5135
        %5138 = vmatprep.subr.mxu0 0.0
        %5139 = vmatpush1.msra.mxu0 0.0
        %5140 = vmatprep.subr.mxu0 0.0
        %5141 = vmatpush1.msra.mxu0 0.0
        %5142 = vmatprep.subr.mxu0 0.0
        %5143 = vmatpush1.msra.mxu0 0.0
        %5144 = vmatprep.subr.mxu0 0.0
        %5145 = vmatpush1.msra.mxu0 0.0
        %5146 = vmatprep.subr.mxu0 0.0
        %5147 = vmatpush1.msra.mxu0 0.0
        %5148 = vmatprep.subr.mxu0 0.0
        %5149 = vmatpush1.msra.mxu0 0.0
        %5150 = vmatprep.subr.mxu0 0.0
        %5151 = vmatpush1.msra.mxu0 0.0
        %5152 = vmatprep.subr.mxu0 0.0
        %5153 = vmatpush1.msra.mxu0 0.0
        %5154 = vmatprep.subr.mxu0 0.0
        %5155 = vmatpush1.msra.mxu0 0.0
        %5156 = vmatprep.subr.mxu0 0.0
        %5157 = vmatpush1.msra.mxu0 0.0
        %5158 = vmatprep.subr.mxu0 0.0
        %5159 = vmatpush1.msra.mxu0 0.0
        %5160 = vmatprep.subr.mxu0 0.0
        %5161 = vmatpush1.msra.mxu0 0.0
        %5162 = vmatprep.subr.mxu0 0.0
        %5163 = vmatpush1.msra.mxu0 %v5128
        %5164 = vmatprep.subr.mxu0 0.0
        %5165 = vmatpush1.msra.mxu0 %v5127
        %5166 = vmatprep.subr.mxu0 0.0
        %5167 = vmatpush1.msra.mxu0 %v5126
        %5168 = vmatprep.subr.mxu0 0.0
        %5169 = vmatpush1.msra.mxu0 %v5125
        %5170 = vmatprep.subr.mxu0 0.0
        %5171 = vmatpush2.msra.mxu0 0.0
        %5172 = vmatprep.subr.mxu0 0.0
        %5173 = vmatpush2.msra.mxu0 0.0
        %5174 = vmatprep.subr.mxu0 0.0
        %5175 = vmatpush2.msra.mxu0 0.0
        %5176 = vmatprep.subr.mxu0 0.0
        %5177 = vmatpush2.msra.mxu0 0.0
        %5178 = vmatprep.subr.mxu0 0.0
        %5179 = vmatpush2.msra.mxu0 0.0
        %5180 = vmatprep.subr.mxu0 0.0
        %5181 = vmatpush2.msra.mxu0 0.0
        %5182 = vmatprep.subr.mxu0 0.0
        %5183 = vmatpush2.msra.mxu0 0.0
        %5184 = vmatprep.subr.mxu0 0.0
        %5185 = vmatpush2.msra.mxu0 0.0
        %5186 = vmatprep.subr.mxu0 0.0
        %5187 = vmatpush2.msra.mxu0 0.0
        %5188 = vmatprep.subr.mxu0 0.0
        %5189 = vmatpush2.msra.mxu0 0.0
        %5190 = vmatprep.subr.mxu0 0.0
        %5191 = vmatpush2.msra.mxu0 0.0
        %5192 = vmatprep.subr.mxu0 0.0
        %5193 = vmatpush2.msra.mxu0 0.0
        %5194 = vmatprep.subr.mxu0 0.0
        %5195 = vmatpush2.msra.mxu0 0.0
        %5196 = vmatprep.subr.mxu0 0.0
        %5197 = vmatpush2.msra.mxu0 0.0
        %5198 = vmatprep.subr.mxu0 0.0
        %5199 = vmatpush2.msra.mxu0 0.0
        %5200 = vmatprep.subr.mxu0 0.0
        %5201 = vmatpush2.msra.mxu0 0.0
        %5202 = vmatprep.mubr.f32.mxu0 0.0
        %5203 = vmatmul.mubr.f32.gmra.mxu0 %v3605
        %v5204 = vpop.f32.mrf.mxu0
        %v5205 = vadd.f32 %v5136, %v5204
        %v5206 = vpop.f32.mrf.mxu0
        %5207 = vmatprep.mubr.f32.mxu0 0.0
        %5208 = vmatmul.mubr.f32.gmra.mxu0 %v3608
        %v5209 = vpop.f32.mrf.mxu0
        %v5210 = vadd.f32 %v5136, %v5209
        %v5211 = vpop.f32.mrf.mxu0
        %5212 = vdwg.mxu0
        %v5214 = vsel %vm833, %v5025, 0
        %v5217 = vsel %vm833, %v5115, 0
        %5219 = vmatprep.subr.mxu0 0.0
        %5220 = vmatpush1.xpose.msra.mxu0 0.0
        %5221 = vmatprep.subr.mxu0 0.0
        %5222 = vmatpush1.xpose.msra.mxu0 0.0
        %5223 = vmatprep.subr.mxu0 0.0
        %5224 = vmatpush1.xpose.msra.mxu0 0.0
        %5225 = vmatprep.subr.mxu0 0.0
        %5226 = vmatpush1.xpose.msra.mxu0 0.0
        %5227 = vmatprep.subr.mxu0 0.0
        %5228 = vmatpush1.xpose.msra.mxu0 0.0
        %5229 = vmatprep.subr.mxu0 0.0
        %5230 = vmatpush1.xpose.msra.mxu0 0.0
        %5231 = vmatprep.subr.mxu0 0.0
        %5232 = vmatpush1.xpose.msra.mxu0 0.0
        %5233 = vmatprep.subr.mxu0 0.0
        %5234 = vmatpush1.xpose.msra.mxu0 0.0
        %5235 = vmatprep.subr.mxu0 0.0
        %5236 = vmatpush1.xpose.msra.mxu0 0.0
        %5237 = vmatprep.subr.mxu0 0.0
        %5238 = vmatpush1.xpose.msra.mxu0 0.0
        %5239 = vmatprep.subr.mxu0 0.0
        %5240 = vmatpush1.xpose.msra.mxu0 0.0
        %5241 = vmatprep.subr.mxu0 0.0
        %5242 = vmatpush1.xpose.msra.mxu0 0.0
        %5243 = vmatprep.subr.mxu0 0.0
        %5244 = vmatpush1.xpose.msra.mxu0 0.0
        %5245 = vmatprep.subr.mxu0 0.0
        %5246 = vmatpush1.xpose.msra.mxu0 0.0
        %5247 = vmatprep.subr.mxu0 0.0
        %5248 = vmatpush1.xpose.msra.mxu0 0.0
        %5249 = vmatprep.subr.mxu0 0.0
        %5250 = vmatpush1.xpose.msra.mxu0 %v5217
        %5251 = vmatprep.subr.mxu0 0.0
        %5252 = vmatpush2.xpose.msra.mxu0 0.0
        %5253 = vmatprep.subr.mxu0 0.0
        %5254 = vmatpush2.xpose.msra.mxu0 0.0
        %5255 = vmatprep.subr.mxu0 0.0
        %5256 = vmatpush2.xpose.msra.mxu0 0.0
        %5257 = vmatprep.subr.mxu0 0.0
        %5258 = vmatpush2.xpose.msra.mxu0 0.0
        %5259 = vmatprep.subr.mxu0 0.0
        %5260 = vmatpush2.xpose.msra.mxu0 0.0
        %5261 = vmatprep.subr.mxu0 0.0
        %5262 = vmatpush2.xpose.msra.mxu0 0.0
        %5263 = vmatprep.subr.mxu0 0.0
        %5264 = vmatpush2.xpose.msra.mxu0 0.0
        %5265 = vmatprep.subr.mxu0 0.0
        %5266 = vmatpush2.xpose.msra.mxu0 0.0
        %5267 = vmatprep.subr.mxu0 0.0
        %5268 = vmatpush2.xpose.msra.mxu0 0.0
        %5269 = vmatprep.subr.mxu0 0.0
        %5270 = vmatpush2.xpose.msra.mxu0 0.0
        %5271 = vmatprep.subr.mxu0 0.0
        %5272 = vmatpush2.xpose.msra.mxu0 0.0
        %5273 = vmatprep.subr.mxu0 0.0
        %5274 = vmatpush2.xpose.msra.mxu0 0.0
        %5275 = vmatprep.subr.mxu0 0.0
        %5276 = vmatpush2.xpose.msra.mxu0 0.0
        %5277 = vmatprep.subr.mxu0 0.0
        %5278 = vmatpush2.xpose.msra.mxu0 0.0
        %5279 = vmatprep.subr.mxu0 0.0
        %5280 = vmatpush2.xpose.msra.mxu0 0.0
        %5281 = vmatprep.subr.mxu0 0.0
        %5282 = vmatpush2.xpose.msra.mxu0 0.0
        %5283 = vmatprep.mubr.f32.mxu0 0.0
        %5284 = vmatmul.mubr.f32.gmra.mxu0 %v5214
        %v5285 = vpop.f32.mrf.mxu0
        %v5286 = vadd.f32 %v826, %v5285
        %v5287 = vpop.f32.mrf.mxu0
        %5288 = vdwg.mxu0
        %v5290 = vsel %vm833, %v5030, 0
        %v5293 = vsel %vm833, %v5120, 0
        %5295 = vmatprep.subr.mxu0 0.0
        %5296 = vmatpush1.xpose.msra.mxu0 0.0
        %5297 = vmatprep.subr.mxu0 0.0
        %5298 = vmatpush1.xpose.msra.mxu0 0.0
        %5299 = vmatprep.subr.mxu0 0.0
        %5300 = vmatpush1.xpose.msra.mxu0 0.0
        %5301 = vmatprep.subr.mxu0 0.0
        %5302 = vmatpush1.xpose.msra.mxu0 0.0
        %5303 = vmatprep.subr.mxu0 0.0
        %5304 = vmatpush1.xpose.msra.mxu0 0.0
        %5305 = vmatprep.subr.mxu0 0.0
        %5306 = vmatpush1.xpose.msra.mxu0 0.0
        %5307 = vmatprep.subr.mxu0 0.0
        %5308 = vmatpush1.xpose.msra.mxu0 0.0
        %5309 = vmatprep.subr.mxu0 0.0
        %5310 = vmatpush1.xpose.msra.mxu0 0.0
        %5311 = vmatprep.subr.mxu0 0.0
        %5312 = vmatpush1.xpose.msra.mxu0 0.0
        %5313 = vmatprep.subr.mxu0 0.0
        %5314 = vmatpush1.xpose.msra.mxu0 0.0
        %5315 = vmatprep.subr.mxu0 0.0
        %5316 = vmatpush1.xpose.msra.mxu0 0.0
        %5317 = vmatprep.subr.mxu0 0.0
        %5318 = vmatpush1.xpose.msra.mxu0 0.0
        %5319 = vmatprep.subr.mxu0 0.0
        %5320 = vmatpush1.xpose.msra.mxu0 0.0
        %5321 = vmatprep.subr.mxu0 0.0
        %5322 = vmatpush1.xpose.msra.mxu0 0.0
        %5323 = vmatprep.subr.mxu0 0.0
        %5324 = vmatpush1.xpose.msra.mxu0 0.0
        %5325 = vmatprep.subr.mxu0 0.0
        %5326 = vmatpush1.xpose.msra.mxu0 %v5293
        %5327 = vmatprep.subr.mxu0 0.0
        %5328 = vmatpush2.xpose.msra.mxu0 0.0
        %5329 = vmatprep.subr.mxu0 0.0
        %5330 = vmatpush2.xpose.msra.mxu0 0.0
        %5331 = vmatprep.subr.mxu0 0.0
        %5332 = vmatpush2.xpose.msra.mxu0 0.0
        %5333 = vmatprep.subr.mxu0 0.0
        %5334 = vmatpush2.xpose.msra.mxu0 0.0
        %5335 = vmatprep.subr.mxu0 0.0
        %5336 = vmatpush2.xpose.msra.mxu0 0.0
        %5337 = vmatprep.subr.mxu0 0.0
        %5338 = vmatpush2.xpose.msra.mxu0 0.0
        %5339 = vmatprep.subr.mxu0 0.0
        %5340 = vmatpush2.xpose.msra.mxu0 0.0
        %5341 = vmatprep.subr.mxu0 0.0
        %5342 = vmatpush2.xpose.msra.mxu0 0.0
        %5343 = vmatprep.subr.mxu0 0.0
        %5344 = vmatpush2.xpose.msra.mxu0 0.0
        %5345 = vmatprep.subr.mxu0 0.0
        %5346 = vmatpush2.xpose.msra.mxu0 0.0
        %5347 = vmatprep.subr.mxu0 0.0
        %5348 = vmatpush2.xpose.msra.mxu0 0.0
        %5349 = vmatprep.subr.mxu0 0.0
        %5350 = vmatpush2.xpose.msra.mxu0 0.0
        %5351 = vmatprep.subr.mxu0 0.0
        %5352 = vmatpush2.xpose.msra.mxu0 0.0
        %5353 = vmatprep.subr.mxu0 0.0
        %5354 = vmatpush2.xpose.msra.mxu0 0.0
        %5355 = vmatprep.subr.mxu0 0.0
        %5356 = vmatpush2.xpose.msra.mxu0 0.0
        %5357 = vmatprep.subr.mxu0 0.0
        %5358 = vmatpush2.xpose.msra.mxu0 0.0
        %5359 = vmatprep.mubr.f32.mxu0 0.0
        %5360 = vmatmul.mubr.f32.gmra.mxu0 %v5290
        %v5361 = vpop.f32.mrf.mxu0
        %v5362 = vadd.f32 %v830, %v5361
        %v5363 = vpop.f32.mrf.mxu0
        %5364 = vdwg.mxu0
        %v5365 = vsel %vm833, %v5286, -inf
        %5366 = vmax.xlane.f32.xlu0 %v5365
        %v5367 = vpop.xlane.xlu0 %5366
        %v5368 = vsel %vm833, %v5362, -inf
        %5369 = vmax.xlane.f32.xlu0 %v5368
        %v5370 = vpop.xlane.xlu0 %5369
        %v5371 = vsub.f32 %v5286, %v5367
        %v5372 = vsub.f32 %v5362, %v5370
        %v5373 = vmul.f32 %v5371, 1.442695
        %v5374 = vpow.pop %v5373
        %v5375 = vmul.f32 %v5372, 1.442695
        %v5376 = vpow.pop %v5375
        %v5377 = vsel %vm833, %v5374, 0.0
        %5378 = vadd.xlane.f32.xlu0 %v5377
        %v5379 = vpop.xlane.xlu0 %5378
        %v5380 = vsel %vm833, %v5376, 0.0
        %5381 = vadd.xlane.f32.xlu0 %v5380
        %v5382 = vpop.xlane.xlu0 %5381
        %v5383 = vrcp.pop %v5379
        %v5384 = vrcp.pop %v5382
        %v5385 = vmul.f32 %v5374, %v5383
        %v5386 = vmul.f32 %v5376, %v5384
        %v5388 = vsel %vm833, %v5385, 0
        %5390 = vmatprep.subr.mxu0 0.0
        %5391 = vmatpush1.msra.mxu0 0.0
        %5392 = vmatprep.subr.mxu0 0.0
        %5393 = vmatpush1.msra.mxu0 0.0
        %5394 = vmatprep.subr.mxu0 0.0
        %5395 = vmatpush1.msra.mxu0 0.0
        %5396 = vmatprep.subr.mxu0 0.0
        %5397 = vmatpush1.msra.mxu0 0.0
        %5398 = vmatprep.subr.mxu0 0.0
        %5399 = vmatpush1.msra.mxu0 0.0
        %5400 = vmatprep.subr.mxu0 0.0
        %5401 = vmatpush1.msra.mxu0 0.0
        %5402 = vmatprep.subr.mxu0 0.0
        %5403 = vmatpush1.msra.mxu0 0.0
        %5404 = vmatprep.subr.mxu0 0.0
        %5405 = vmatpush1.msra.mxu0 0.0
        %5406 = vmatprep.subr.mxu0 0.0
        %5407 = vmatpush1.msra.mxu0 0.0
        %5408 = vmatprep.subr.mxu0 0.0
        %5409 = vmatpush1.msra.mxu0 0.0
        %5410 = vmatprep.subr.mxu0 0.0
        %5411 = vmatpush1.msra.mxu0 0.0
        %5412 = vmatprep.subr.mxu0 0.0
        %5413 = vmatpush1.msra.mxu0 0.0
        %5414 = vmatprep.subr.mxu0 0.0
        %5415 = vmatpush1.msra.mxu0 0.0
        %5416 = vmatprep.subr.mxu0 0.0
        %5417 = vmatpush1.msra.mxu0 0.0
        %5418 = vmatprep.subr.mxu0 0.0
        %5419 = vmatpush1.msra.mxu0 0.0
        %5420 = vmatprep.subr.mxu0 0.0
        %5421 = vmatpush1.msra.mxu0 %v5205
        %5422 = vmatprep.subr.mxu0 0.0
        %5423 = vmatpush2.msra.mxu0 0.0
        %5424 = vmatprep.subr.mxu0 0.0
        %5425 = vmatpush2.msra.mxu0 0.0
        %5426 = vmatprep.subr.mxu0 0.0
        %5427 = vmatpush2.msra.mxu0 0.0
        %5428 = vmatprep.subr.mxu0 0.0
        %5429 = vmatpush2.msra.mxu0 0.0
        %5430 = vmatprep.subr.mxu0 0.0
        %5431 = vmatpush2.msra.mxu0 0.0
        %5432 = vmatprep.subr.mxu0 0.0
        %5433 = vmatpush2.msra.mxu0 0.0
        %5434 = vmatprep.subr.mxu0 0.0
        %5435 = vmatpush2.msra.mxu0 0.0
        %5436 = vmatprep.subr.mxu0 0.0
        %5437 = vmatpush2.msra.mxu0 0.0
        %5438 = vmatprep.subr.mxu0 0.0
        %5439 = vmatpush2.msra.mxu0 0.0
        %5440 = vmatprep.subr.mxu0 0.0
        %5441 = vmatpush2.msra.mxu0 0.0
        %5442 = vmatprep.subr.mxu0 0.0
        %5443 = vmatpush2.msra.mxu0 0.0
        %5444 = vmatprep.subr.mxu0 0.0
        %5445 = vmatpush2.msra.mxu0 0.0
        %5446 = vmatprep.subr.mxu0 0.0
        %5447 = vmatpush2.msra.mxu0 0.0
        %5448 = vmatprep.subr.mxu0 0.0
        %5449 = vmatpush2.msra.mxu0 0.0
        %5450 = vmatprep.subr.mxu0 0.0
        %5451 = vmatpush2.msra.mxu0 0.0
        %5452 = vmatprep.subr.mxu0 0.0
        %5453 = vmatpush2.msra.mxu0 0.0
        %5454 = vmatprep.mubr.f32.mxu0 0.0
        %5455 = vmatmul.mubr.f32.gmra.mxu0 %v5388
        %v5456 = vpop.f32.mrf.mxu0
        %v5457 = vadd.f32 0.0, %v5456
        %v5458 = vpop.f32.mrf.mxu0
        %5459 = vdwg.mxu0
        %v5461 = vsel %vm833, %v5386, 0
        %5463 = vmatprep.subr.mxu0 0.0
        %5464 = vmatpush1.msra.mxu0 0.0
        %5465 = vmatprep.subr.mxu0 0.0
        %5466 = vmatpush1.msra.mxu0 0.0
        %5467 = vmatprep.subr.mxu0 0.0
        %5468 = vmatpush1.msra.mxu0 0.0
        %5469 = vmatprep.subr.mxu0 0.0
        %5470 = vmatpush1.msra.mxu0 0.0
        %5471 = vmatprep.subr.mxu0 0.0
        %5472 = vmatpush1.msra.mxu0 0.0
        %5473 = vmatprep.subr.mxu0 0.0
        %5474 = vmatpush1.msra.mxu0 0.0
        %5475 = vmatprep.subr.mxu0 0.0
        %5476 = vmatpush1.msra.mxu0 0.0
        %5477 = vmatprep.subr.mxu0 0.0
        %5478 = vmatpush1.msra.mxu0 0.0
        %5479 = vmatprep.subr.mxu0 0.0
        %5480 = vmatpush1.msra.mxu0 0.0
        %5481 = vmatprep.subr.mxu0 0.0
        %5482 = vmatpush1.msra.mxu0 0.0
        %5483 = vmatprep.subr.mxu0 0.0
        %5484 = vmatpush1.msra.mxu0 0.0
        %5485 = vmatprep.subr.mxu0 0.0
        %5486 = vmatpush1.msra.mxu0 0.0
        %5487 = vmatprep.subr.mxu0 0.0
        %5488 = vmatpush1.msra.mxu0 0.0
        %5489 = vmatprep.subr.mxu0 0.0
        %5490 = vmatpush1.msra.mxu0 0.0
        %5491 = vmatprep.subr.mxu0 0.0
        %5492 = vmatpush1.msra.mxu0 0.0
        %5493 = vmatprep.subr.mxu0 0.0
        %5494 = vmatpush1.msra.mxu0 %v5210
        %5495 = vmatprep.subr.mxu0 0.0
        %5496 = vmatpush2.msra.mxu0 0.0
        %5497 = vmatprep.subr.mxu0 0.0
        %5498 = vmatpush2.msra.mxu0 0.0
        %5499 = vmatprep.subr.mxu0 0.0
        %5500 = vmatpush2.msra.mxu0 0.0
        %5501 = vmatprep.subr.mxu0 0.0
        %5502 = vmatpush2.msra.mxu0 0.0
        %5503 = vmatprep.subr.mxu0 0.0
        %5504 = vmatpush2.msra.mxu0 0.0
        %5505 = vmatprep.subr.mxu0 0.0
        %5506 = vmatpush2.msra.mxu0 0.0
        %5507 = vmatprep.subr.mxu0 0.0
        %5508 = vmatpush2.msra.mxu0 0.0
        %5509 = vmatprep.subr.mxu0 0.0
        %5510 = vmatpush2.msra.mxu0 0.0
        %5511 = vmatprep.subr.mxu0 0.0
        %5512 = vmatpush2.msra.mxu0 0.0
        %5513 = vmatprep.subr.mxu0 0.0
        %5514 = vmatpush2.msra.mxu0 0.0
        %5515 = vmatprep.subr.mxu0 0.0
        %5516 = vmatpush2.msra.mxu0 0.0
        %5517 = vmatprep.subr.mxu0 0.0
        %5518 = vmatpush2.msra.mxu0 0.0
        %5519 = vmatprep.subr.mxu0 0.0
        %5520 = vmatpush2.msra.mxu0 0.0
        %5521 = vmatprep.subr.mxu0 0.0
        %5522 = vmatpush2.msra.mxu0 0.0
        %5523 = vmatprep.subr.mxu0 0.0
        %5524 = vmatpush2.msra.mxu0 0.0
        %5525 = vmatprep.subr.mxu0 0.0
        %5526 = vmatpush2.msra.mxu0 0.0
        %5527 = vmatprep.mubr.f32.mxu0 0.0
        %5528 = vmatmul.mubr.f32.gmra.mxu0 %v5461
        %v5529 = vpop.f32.mrf.mxu0
        %v5530 = vadd.f32 0.0, %v5529
        %v5531 = vpop.f32.mrf.mxu0
        %5532 = vdwg.mxu0
        %s5533 = sadd.s32 48, %s1154
        %s5534 = scalar_lea.vmem %s4, %s5533
        %v5535 = vld [vmem:[%s5534] sm:$0xff]
        %v5537 = vsel %vm833, %v5457, 0
        %v5540 = vsel %vm833, %v5530, 0
        %5542 = vmatprep.subr.mxu0 0.0
        %5543 = vmatpush1.msra.mxu0 0.0
        %5544 = vmatprep.subr.mxu0 0.0
        %5545 = vmatpush1.msra.mxu0 0.0
        %5546 = vmatprep.subr.mxu0 0.0
        %5547 = vmatpush1.msra.mxu0 0.0
        %5548 = vmatprep.subr.mxu0 0.0
        %5549 = vmatpush1.msra.mxu0 0.0
        %5550 = vmatprep.subr.mxu0 0.0
        %5551 = vmatpush1.msra.mxu0 0.0
        %5552 = vmatprep.subr.mxu0 0.0
        %5553 = vmatpush1.msra.mxu0 0.0
        %5554 = vmatprep.subr.mxu0 0.0
        %5555 = vmatpush1.msra.mxu0 0.0
        %5556 = vmatprep.subr.mxu0 0.0
        %5557 = vmatpush1.msra.mxu0 0.0
        %5558 = vmatprep.subr.mxu0 0.0
        %5559 = vmatpush1.msra.mxu0 0.0
        %5560 = vmatprep.subr.mxu0 0.0
        %5561 = vmatpush1.msra.mxu0 0.0
        %5562 = vmatprep.subr.mxu0 0.0
        %5563 = vmatpush1.msra.mxu0 0.0
        %5564 = vmatprep.subr.mxu0 0.0
        %5565 = vmatpush1.msra.mxu0 0.0
        %5566 = vmatprep.subr.mxu0 0.0
        %5567 = vmatpush1.msra.mxu0 0.0
        %5568 = vmatprep.subr.mxu0 0.0
        %5569 = vmatpush1.msra.mxu0 0.0
        %5570 = vmatprep.subr.mxu0 0.0
        %5571 = vmatpush1.msra.mxu0 0.0
        %5572 = vmatprep.subr.mxu0 0.0
        %5573 = vmatpush1.msra.mxu0 %v5535
        %5574 = vmatprep.subr.mxu0 0.0
        %5575 = vmatpush2.msra.mxu0 0.0
        %5576 = vmatprep.subr.mxu0 0.0
        %5577 = vmatpush2.msra.mxu0 0.0
        %5578 = vmatprep.subr.mxu0 0.0
        %5579 = vmatpush2.msra.mxu0 0.0
        %5580 = vmatprep.subr.mxu0 0.0
        %5581 = vmatpush2.msra.mxu0 0.0
        %5582 = vmatprep.subr.mxu0 0.0
        %5583 = vmatpush2.msra.mxu0 0.0
        %5584 = vmatprep.subr.mxu0 0.0
        %5585 = vmatpush2.msra.mxu0 0.0
        %5586 = vmatprep.subr.mxu0 0.0
        %5587 = vmatpush2.msra.mxu0 0.0
        %5588 = vmatprep.subr.mxu0 0.0
        %5589 = vmatpush2.msra.mxu0 0.0
        %5590 = vmatprep.subr.mxu0 0.0
        %5591 = vmatpush2.msra.mxu0 0.0
        %5592 = vmatprep.subr.mxu0 0.0
        %5593 = vmatpush2.msra.mxu0 0.0
        %5594 = vmatprep.subr.mxu0 0.0
        %5595 = vmatpush2.msra.mxu0 0.0
        %5596 = vmatprep.subr.mxu0 0.0
        %5597 = vmatpush2.msra.mxu0 0.0
        %5598 = vmatprep.subr.mxu0 0.0
        %5599 = vmatpush2.msra.mxu0 0.0
        %5600 = vmatprep.subr.mxu0 0.0
        %5601 = vmatpush2.msra.mxu0 0.0
        %5602 = vmatprep.subr.mxu0 0.0
        %5603 = vmatpush2.msra.mxu0 0.0
        %5604 = vmatprep.subr.mxu0 0.0
        %5605 = vmatpush2.msra.mxu0 0.0
        %5606 = vmatprep.mubr.f32.mxu0 0.0
        %5607 = vmatmul.mubr.f32.gmra.mxu0 %v5537
        %v5608 = vpop.f32.mrf.mxu0
        %v5609 = vadd.f32 0.0, %v5608
        %v5610 = vpop.f32.mrf.mxu0
        %5611 = vmatprep.mubr.f32.mxu0 0.0
        %5612 = vmatmul.mubr.f32.gmra.mxu0 %v5540
        %v5613 = vpop.f32.mrf.mxu0
        %v5614 = vadd.f32 0.0, %v5613
        %v5615 = vpop.f32.mrf.mxu0
        %5616 = vdwg.mxu0
        %v5617 = vadd.f32 %v4935, %v5609
        %v5618 = vadd.f32 %v4940, %v5614
        %s5619 = sadd.s32 480, %s547
        %s5620 = scalar_lea.vmem %s2, %s5619
        %v5621 = vld [vmem:[%s5620] sm:$0xff]
        %v5622 = vld [vmem:[%s5620 + $0x8] sm:$0xff]
        %v5623 = vld [vmem:[%s5620 + $0x10] sm:$0xff]
        %v5624 = vld [vmem:[%s5620 + $0x18] sm:$0xff]
        %s5625 = sadd.s32 15, %s553
        %s5626 = scalar_lea.vmem %s3, %s5625
        %v5627 = vld [vmem:[%s5626] sm:$0x1]
        %v5629 = vlaneseq
        %v5630 = vshrl.u32 %v5629, 7
        %v5631 = vsub.s32 0, %v5630
        %v5632 = vrot.slane %v5627, %v5631
        %5634 = vmatprep.subr.mxu0 0.0
        %5635 = vmatpush1.msra.mxu0 0.0
        %5636 = vmatprep.subr.mxu0 0.0
        %5637 = vmatpush1.msra.mxu0 0.0
        %5638 = vmatprep.subr.mxu0 0.0
        %5639 = vmatpush1.msra.mxu0 0.0
        %5640 = vmatprep.subr.mxu0 0.0
        %5641 = vmatpush1.msra.mxu0 0.0
        %5642 = vmatprep.subr.mxu0 0.0
        %5643 = vmatpush1.msra.mxu0 0.0
        %5644 = vmatprep.subr.mxu0 0.0
        %5645 = vmatpush1.msra.mxu0 0.0
        %5646 = vmatprep.subr.mxu0 0.0
        %5647 = vmatpush1.msra.mxu0 0.0
        %5648 = vmatprep.subr.mxu0 0.0
        %5649 = vmatpush1.msra.mxu0 0.0
        %5650 = vmatprep.subr.mxu0 0.0
        %5651 = vmatpush1.msra.mxu0 0.0
        %5652 = vmatprep.subr.mxu0 0.0
        %5653 = vmatpush1.msra.mxu0 0.0
        %5654 = vmatprep.subr.mxu0 0.0
        %5655 = vmatpush1.msra.mxu0 0.0
        %5656 = vmatprep.subr.mxu0 0.0
        %5657 = vmatpush1.msra.mxu0 0.0
        %5658 = vmatprep.subr.mxu0 0.0
        %5659 = vmatpush1.msra.mxu0 %v5624
        %5660 = vmatprep.subr.mxu0 0.0
        %5661 = vmatpush1.msra.mxu0 %v5623
        %5662 = vmatprep.subr.mxu0 0.0
        %5663 = vmatpush1.msra.mxu0 %v5622
        %5664 = vmatprep.subr.mxu0 0.0
        %5665 = vmatpush1.msra.mxu0 %v5621
        %5666 = vmatprep.subr.mxu0 0.0
        %5667 = vmatpush2.msra.mxu0 0.0
        %5668 = vmatprep.subr.mxu0 0.0
        %5669 = vmatpush2.msra.mxu0 0.0
        %5670 = vmatprep.subr.mxu0 0.0
        %5671 = vmatpush2.msra.mxu0 0.0
        %5672 = vmatprep.subr.mxu0 0.0
        %5673 = vmatpush2.msra.mxu0 0.0
        %5674 = vmatprep.subr.mxu0 0.0
        %5675 = vmatpush2.msra.mxu0 0.0
        %5676 = vmatprep.subr.mxu0 0.0
        %5677 = vmatpush2.msra.mxu0 0.0
        %5678 = vmatprep.subr.mxu0 0.0
        %5679 = vmatpush2.msra.mxu0 0.0
        %5680 = vmatprep.subr.mxu0 0.0
        %5681 = vmatpush2.msra.mxu0 0.0
        %5682 = vmatprep.subr.mxu0 0.0
        %5683 = vmatpush2.msra.mxu0 0.0
        %5684 = vmatprep.subr.mxu0 0.0
        %5685 = vmatpush2.msra.mxu0 0.0
        %5686 = vmatprep.subr.mxu0 0.0
        %5687 = vmatpush2.msra.mxu0 0.0
        %5688 = vmatprep.subr.mxu0 0.0
        %5689 = vmatpush2.msra.mxu0 0.0
        %5690 = vmatprep.subr.mxu0 0.0
        %5691 = vmatpush2.msra.mxu0 0.0
        %5692 = vmatprep.subr.mxu0 0.0
        %5693 = vmatpush2.msra.mxu0 0.0
        %5694 = vmatprep.subr.mxu0 0.0
        %5695 = vmatpush2.msra.mxu0 0.0
        %5696 = vmatprep.subr.mxu0 0.0
        %5697 = vmatpush2.msra.mxu0 0.0
        %5698 = vmatprep.mubr.f32.mxu0 0.0
        %5699 = vmatmul.mubr.f32.gmra.mxu0 %v3605
        %v5700 = vpop.f32.mrf.mxu0
        %v5701 = vadd.f32 %v5632, %v5700
        %v5702 = vpop.f32.mrf.mxu0
        %5703 = vmatprep.mubr.f32.mxu0 0.0
        %5704 = vmatmul.mubr.f32.gmra.mxu0 %v3608
        %v5705 = vpop.f32.mrf.mxu0
        %v5706 = vadd.f32 %v5632, %v5705
        %v5707 = vpop.f32.mrf.mxu0
        %5708 = vdwg.mxu0
        %s5709 = sadd.s32 608, %s547
        %s5710 = scalar_lea.vmem %s2, %s5709
        %v5711 = vld [vmem:[%s5710] sm:$0xff]
        %v5712 = vld [vmem:[%s5710 + $0x8] sm:$0xff]
        %v5713 = vld [vmem:[%s5710 + $0x10] sm:$0xff]
        %v5714 = vld [vmem:[%s5710 + $0x18] sm:$0xff]
        %s5715 = sadd.s32 19, %s553
        %s5716 = scalar_lea.vmem %s3, %s5715
        %v5717 = vld [vmem:[%s5716] sm:$0x1]
        %v5719 = vlaneseq
        %v5720 = vshrl.u32 %v5719, 7
        %v5721 = vsub.s32 0, %v5720
        %v5722 = vrot.slane %v5717, %v5721
        %5724 = vmatprep.subr.mxu0 0.0
        %5725 = vmatpush1.msra.mxu0 0.0
        %5726 = vmatprep.subr.mxu0 0.0
        %5727 = vmatpush1.msra.mxu0 0.0
        %5728 = vmatprep.subr.mxu0 0.0
        %5729 = vmatpush1.msra.mxu0 0.0
        %5730 = vmatprep.subr.mxu0 0.0
        %5731 = vmatpush1.msra.mxu0 0.0
        %5732 = vmatprep.subr.mxu0 0.0
        %5733 = vmatpush1.msra.mxu0 0.0
        %5734 = vmatprep.subr.mxu0 0.0
        %5735 = vmatpush1.msra.mxu0 0.0
        %5736 = vmatprep.subr.mxu0 0.0
        %5737 = vmatpush1.msra.mxu0 0.0
        %5738 = vmatprep.subr.mxu0 0.0
        %5739 = vmatpush1.msra.mxu0 0.0
        %5740 = vmatprep.subr.mxu0 0.0
        %5741 = vmatpush1.msra.mxu0 0.0
        %5742 = vmatprep.subr.mxu0 0.0
        %5743 = vmatpush1.msra.mxu0 0.0
        %5744 = vmatprep.subr.mxu0 0.0
        %5745 = vmatpush1.msra.mxu0 0.0
        %5746 = vmatprep.subr.mxu0 0.0
        %5747 = vmatpush1.msra.mxu0 0.0
        %5748 = vmatprep.subr.mxu0 0.0
        %5749 = vmatpush1.msra.mxu0 %v5714
        %5750 = vmatprep.subr.mxu0 0.0
        %5751 = vmatpush1.msra.mxu0 %v5713
        %5752 = vmatprep.subr.mxu0 0.0
        %5753 = vmatpush1.msra.mxu0 %v5712
        %5754 = vmatprep.subr.mxu0 0.0
        %5755 = vmatpush1.msra.mxu0 %v5711
        %5756 = vmatprep.subr.mxu0 0.0
        %5757 = vmatpush2.msra.mxu0 0.0
        %5758 = vmatprep.subr.mxu0 0.0
        %5759 = vmatpush2.msra.mxu0 0.0
        %5760 = vmatprep.subr.mxu0 0.0
        %5761 = vmatpush2.msra.mxu0 0.0
        %5762 = vmatprep.subr.mxu0 0.0
        %5763 = vmatpush2.msra.mxu0 0.0
        %5764 = vmatprep.subr.mxu0 0.0
        %5765 = vmatpush2.msra.mxu0 0.0
        %5766 = vmatprep.subr.mxu0 0.0
        %5767 = vmatpush2.msra.mxu0 0.0
        %5768 = vmatprep.subr.mxu0 0.0
        %5769 = vmatpush2.msra.mxu0 0.0
        %5770 = vmatprep.subr.mxu0 0.0
        %5771 = vmatpush2.msra.mxu0 0.0
        %5772 = vmatprep.subr.mxu0 0.0
        %5773 = vmatpush2.msra.mxu0 0.0
        %5774 = vmatprep.subr.mxu0 0.0
        %5775 = vmatpush2.msra.mxu0 0.0
        %5776 = vmatprep.subr.mxu0 0.0
        %5777 = vmatpush2.msra.mxu0 0.0
        %5778 = vmatprep.subr.mxu0 0.0
        %5779 = vmatpush2.msra.mxu0 0.0
        %5780 = vmatprep.subr.mxu0 0.0
        %5781 = vmatpush2.msra.mxu0 0.0
        %5782 = vmatprep.subr.mxu0 0.0
        %5783 = vmatpush2.msra.mxu0 0.0
        %5784 = vmatprep.subr.mxu0 0.0
        %5785 = vmatpush2.msra.mxu0 0.0
        %5786 = vmatprep.subr.mxu0 0.0
        %5787 = vmatpush2.msra.mxu0 0.0
        %5788 = vmatprep.mubr.f32.mxu0 0.0
        %5789 = vmatmul.mubr.f32.gmra.mxu0 %v3605
        %v5790 = vpop.f32.mrf.mxu0
        %v5791 = vadd.f32 %v5722, %v5790
        %v5792 = vpop.f32.mrf.mxu0
        %5793 = vmatprep.mubr.f32.mxu0 0.0
        %5794 = vmatmul.mubr.f32.gmra.mxu0 %v3608
        %v5795 = vpop.f32.mrf.mxu0
        %v5796 = vadd.f32 %v5722, %v5795
        %v5797 = vpop.f32.mrf.mxu0
        %5798 = vdwg.mxu0
        %s5799 = sadd.s32 736, %s547
        %s5800 = scalar_lea.vmem %s2, %s5799
        %v5801 = vld [vmem:[%s5800] sm:$0xff]
        %v5802 = vld [vmem:[%s5800 + $0x8] sm:$0xff]
        %v5803 = vld [vmem:[%s5800 + $0x10] sm:$0xff]
        %v5804 = vld [vmem:[%s5800 + $0x18] sm:$0xff]
        %s5805 = sadd.s32 23, %s553
        %s5806 = scalar_lea.vmem %s3, %s5805
        %v5807 = vld [vmem:[%s5806] sm:$0x1]
        %v5809 = vlaneseq
        %v5810 = vshrl.u32 %v5809, 7
        %v5811 = vsub.s32 0, %v5810
        %v5812 = vrot.slane %v5807, %v5811
        %5814 = vmatprep.subr.mxu0 0.0
        %5815 = vmatpush1.msra.mxu0 0.0
        %5816 = vmatprep.subr.mxu0 0.0
        %5817 = vmatpush1.msra.mxu0 0.0
        %5818 = vmatprep.subr.mxu0 0.0
        %5819 = vmatpush1.msra.mxu0 0.0
        %5820 = vmatprep.subr.mxu0 0.0
        %5821 = vmatpush1.msra.mxu0 0.0
        %5822 = vmatprep.subr.mxu0 0.0
        %5823 = vmatpush1.msra.mxu0 0.0
        %5824 = vmatprep.subr.mxu0 0.0
        %5825 = vmatpush1.msra.mxu0 0.0
        %5826 = vmatprep.subr.mxu0 0.0
        %5827 = vmatpush1.msra.mxu0 0.0
        %5828 = vmatprep.subr.mxu0 0.0
        %5829 = vmatpush1.msra.mxu0 0.0
        %5830 = vmatprep.subr.mxu0 0.0
        %5831 = vmatpush1.msra.mxu0 0.0
        %5832 = vmatprep.subr.mxu0 0.0
        %5833 = vmatpush1.msra.mxu0 0.0
        %5834 = vmatprep.subr.mxu0 0.0
        %5835 = vmatpush1.msra.mxu0 0.0
        %5836 = vmatprep.subr.mxu0 0.0
        %5837 = vmatpush1.msra.mxu0 0.0
        %5838 = vmatprep.subr.mxu0 0.0
        %5839 = vmatpush1.msra.mxu0 %v5804
        %5840 = vmatprep.subr.mxu0 0.0
        %5841 = vmatpush1.msra.mxu0 %v5803
        %5842 = vmatprep.subr.mxu0 0.0
        %5843 = vmatpush1.msra.mxu0 %v5802
        %5844 = vmatprep.subr.mxu0 0.0
        %5845 = vmatpush1.msra.mxu0 %v5801
        %5846 = vmatprep.subr.mxu0 0.0
        %5847 = vmatpush2.msra.mxu0 0.0
        %5848 = vmatprep.subr.mxu0 0.0
        %5849 = vmatpush2.msra.mxu0 0.0
        %5850 = vmatprep.subr.mxu0 0.0
        %5851 = vmatpush2.msra.mxu0 0.0
        %5852 = vmatprep.subr.mxu0 0.0
        %5853 = vmatpush2.msra.mxu0 0.0
        %5854 = vmatprep.subr.mxu0 0.0
        %5855 = vmatpush2.msra.mxu0 0.0
        %5856 = vmatprep.subr.mxu0 0.0
        %5857 = vmatpush2.msra.mxu0 0.0
        %5858 = vmatprep.subr.mxu0 0.0
        %5859 = vmatpush2.msra.mxu0 0.0
        %5860 = vmatprep.subr.mxu0 0.0
        %5861 = vmatpush2.msra.mxu0 0.0
        %5862 = vmatprep.subr.mxu0 0.0
        %5863 = vmatpush2.msra.mxu0 0.0
        %5864 = vmatprep.subr.mxu0 0.0
        %5865 = vmatpush2.msra.mxu0 0.0
        %5866 = vmatprep.subr.mxu0 0.0
        %5867 = vmatpush2.msra.mxu0 0.0
        %5868 = vmatprep.subr.mxu0 0.0
        %5869 = vmatpush2.msra.mxu0 0.0
        %5870 = vmatprep.subr.mxu0 0.0
        %5871 = vmatpush2.msra.mxu0 0.0
        %5872 = vmatprep.subr.mxu0 0.0
        %5873 = vmatpush2.msra.mxu0 0.0
        %5874 = vmatprep.subr.mxu0 0.0
        %5875 = vmatpush2.msra.mxu0 0.0
        %5876 = vmatprep.subr.mxu0 0.0
        %5877 = vmatpush2.msra.mxu0 0.0
        %5878 = vmatprep.mubr.f32.mxu0 0.0
        %5879 = vmatmul.mubr.f32.gmra.mxu0 %v3605
        %v5880 = vpop.f32.mrf.mxu0
        %v5881 = vadd.f32 %v5812, %v5880
        %v5882 = vpop.f32.mrf.mxu0
        %5883 = vmatprep.mubr.f32.mxu0 0.0
        %5884 = vmatmul.mubr.f32.gmra.mxu0 %v3608
        %v5885 = vpop.f32.mrf.mxu0
        %v5886 = vadd.f32 %v5812, %v5885
        %v5887 = vpop.f32.mrf.mxu0
        %5888 = vdwg.mxu0
        %v5890 = vsel %vm833, %v5701, 0
        %v5893 = vsel %vm833, %v5791, 0
        %5895 = vmatprep.subr.mxu0 0.0
        %5896 = vmatpush1.xpose.msra.mxu0 0.0
        %5897 = vmatprep.subr.mxu0 0.0
        %5898 = vmatpush1.xpose.msra.mxu0 0.0
        %5899 = vmatprep.subr.mxu0 0.0
        %5900 = vmatpush1.xpose.msra.mxu0 0.0
        %5901 = vmatprep.subr.mxu0 0.0
        %5902 = vmatpush1.xpose.msra.mxu0 0.0
        %5903 = vmatprep.subr.mxu0 0.0
        %5904 = vmatpush1.xpose.msra.mxu0 0.0
        %5905 = vmatprep.subr.mxu0 0.0
        %5906 = vmatpush1.xpose.msra.mxu0 0.0
        %5907 = vmatprep.subr.mxu0 0.0
        %5908 = vmatpush1.xpose.msra.mxu0 0.0
        %5909 = vmatprep.subr.mxu0 0.0
        %5910 = vmatpush1.xpose.msra.mxu0 0.0
        %5911 = vmatprep.subr.mxu0 0.0
        %5912 = vmatpush1.xpose.msra.mxu0 0.0
        %5913 = vmatprep.subr.mxu0 0.0
        %5914 = vmatpush1.xpose.msra.mxu0 0.0
        %5915 = vmatprep.subr.mxu0 0.0
        %5916 = vmatpush1.xpose.msra.mxu0 0.0
        %5917 = vmatprep.subr.mxu0 0.0
        %5918 = vmatpush1.xpose.msra.mxu0 0.0
        %5919 = vmatprep.subr.mxu0 0.0
        %5920 = vmatpush1.xpose.msra.mxu0 0.0
        %5921 = vmatprep.subr.mxu0 0.0
        %5922 = vmatpush1.xpose.msra.mxu0 0.0
        %5923 = vmatprep.subr.mxu0 0.0
        %5924 = vmatpush1.xpose.msra.mxu0 0.0
        %5925 = vmatprep.subr.mxu0 0.0
        %5926 = vmatpush1.xpose.msra.mxu0 %v5893
        %5927 = vmatprep.subr.mxu0 0.0
        %5928 = vmatpush2.xpose.msra.mxu0 0.0
        %5929 = vmatprep.subr.mxu0 0.0
        %5930 = vmatpush2.xpose.msra.mxu0 0.0
        %5931 = vmatprep.subr.mxu0 0.0
        %5932 = vmatpush2.xpose.msra.mxu0 0.0
        %5933 = vmatprep.subr.mxu0 0.0
        %5934 = vmatpush2.xpose.msra.mxu0 0.0
        %5935 = vmatprep.subr.mxu0 0.0
        %5936 = vmatpush2.xpose.msra.mxu0 0.0
        %5937 = vmatprep.subr.mxu0 0.0
        %5938 = vmatpush2.xpose.msra.mxu0 0.0
        %5939 = vmatprep.subr.mxu0 0.0
        %5940 = vmatpush2.xpose.msra.mxu0 0.0
        %5941 = vmatprep.subr.mxu0 0.0
        %5942 = vmatpush2.xpose.msra.mxu0 0.0
        %5943 = vmatprep.subr.mxu0 0.0
        %5944 = vmatpush2.xpose.msra.mxu0 0.0
        %5945 = vmatprep.subr.mxu0 0.0
        %5946 = vmatpush2.xpose.msra.mxu0 0.0
        %5947 = vmatprep.subr.mxu0 0.0
        %5948 = vmatpush2.xpose.msra.mxu0 0.0
        %5949 = vmatprep.subr.mxu0 0.0
        %5950 = vmatpush2.xpose.msra.mxu0 0.0
        %5951 = vmatprep.subr.mxu0 0.0
        %5952 = vmatpush2.xpose.msra.mxu0 0.0
        %5953 = vmatprep.subr.mxu0 0.0
        %5954 = vmatpush2.xpose.msra.mxu0 0.0
        %5955 = vmatprep.subr.mxu0 0.0
        %5956 = vmatpush2.xpose.msra.mxu0 0.0
        %5957 = vmatprep.subr.mxu0 0.0
        %5958 = vmatpush2.xpose.msra.mxu0 0.0
        %5959 = vmatprep.mubr.f32.mxu0 0.0
        %5960 = vmatmul.mubr.f32.gmra.mxu0 %v5890
        %v5961 = vpop.f32.mrf.mxu0
        %v5962 = vadd.f32 %v826, %v5961
        %v5963 = vpop.f32.mrf.mxu0
        %5964 = vdwg.mxu0
        %v5966 = vsel %vm833, %v5706, 0
        %v5969 = vsel %vm833, %v5796, 0
        %5971 = vmatprep.subr.mxu0 0.0
        %5972 = vmatpush1.xpose.msra.mxu0 0.0
        %5973 = vmatprep.subr.mxu0 0.0
        %5974 = vmatpush1.xpose.msra.mxu0 0.0
        %5975 = vmatprep.subr.mxu0 0.0
        %5976 = vmatpush1.xpose.msra.mxu0 0.0
        %5977 = vmatprep.subr.mxu0 0.0
        %5978 = vmatpush1.xpose.msra.mxu0 0.0
        %5979 = vmatprep.subr.mxu0 0.0
        %5980 = vmatpush1.xpose.msra.mxu0 0.0
        %5981 = vmatprep.subr.mxu0 0.0
        %5982 = vmatpush1.xpose.msra.mxu0 0.0
        %5983 = vmatprep.subr.mxu0 0.0
        %5984 = vmatpush1.xpose.msra.mxu0 0.0
        %5985 = vmatprep.subr.mxu0 0.0
        %5986 = vmatpush1.xpose.msra.mxu0 0.0
        %5987 = vmatprep.subr.mxu0 0.0
        %5988 = vmatpush1.xpose.msra.mxu0 0.0
        %5989 = vmatprep.subr.mxu0 0.0
        %5990 = vmatpush1.xpose.msra.mxu0 0.0
        %5991 = vmatprep.subr.mxu0 0.0
        %5992 = vmatpush1.xpose.msra.mxu0 0.0
        %5993 = vmatprep.subr.mxu0 0.0
        %5994 = vmatpush1.xpose.msra.mxu0 0.0
        %5995 = vmatprep.subr.mxu0 0.0
        %5996 = vmatpush1.xpose.msra.mxu0 0.0
        %5997 = vmatprep.subr.mxu0 0.0
        %5998 = vmatpush1.xpose.msra.mxu0 0.0
        %5999 = vmatprep.subr.mxu0 0.0
        %6000 = vmatpush1.xpose.msra.mxu0 0.0
        %6001 = vmatprep.subr.mxu0 0.0
        %6002 = vmatpush1.xpose.msra.mxu0 %v5969
        %6003 = vmatprep.subr.mxu0 0.0
        %6004 = vmatpush2.xpose.msra.mxu0 0.0
        %6005 = vmatprep.subr.mxu0 0.0
        %6006 = vmatpush2.xpose.msra.mxu0 0.0
        %6007 = vmatprep.subr.mxu0 0.0
        %6008 = vmatpush2.xpose.msra.mxu0 0.0
        %6009 = vmatprep.subr.mxu0 0.0
        %6010 = vmatpush2.xpose.msra.mxu0 0.0
        %6011 = vmatprep.subr.mxu0 0.0
        %6012 = vmatpush2.xpose.msra.mxu0 0.0
        %6013 = vmatprep.subr.mxu0 0.0
        %6014 = vmatpush2.xpose.msra.mxu0 0.0
        %6015 = vmatprep.subr.mxu0 0.0
        %6016 = vmatpush2.xpose.msra.mxu0 0.0
        %6017 = vmatprep.subr.mxu0 0.0
        %6018 = vmatpush2.xpose.msra.mxu0 0.0
        %6019 = vmatprep.subr.mxu0 0.0
        %6020 = vmatpush2.xpose.msra.mxu0 0.0
        %6021 = vmatprep.subr.mxu0 0.0
        %6022 = vmatpush2.xpose.msra.mxu0 0.0
        %6023 = vmatprep.subr.mxu0 0.0
        %6024 = vmatpush2.xpose.msra.mxu0 0.0
        %6025 = vmatprep.subr.mxu0 0.0
        %6026 = vmatpush2.xpose.msra.mxu0 0.0
        %6027 = vmatprep.subr.mxu0 0.0
        %6028 = vmatpush2.xpose.msra.mxu0 0.0
        %6029 = vmatprep.subr.mxu0 0.0
        %6030 = vmatpush2.xpose.msra.mxu0 0.0
        %6031 = vmatprep.subr.mxu0 0.0
        %6032 = vmatpush2.xpose.msra.mxu0 0.0
        %6033 = vmatprep.subr.mxu0 0.0
        %6034 = vmatpush2.xpose.msra.mxu0 0.0
        %6035 = vmatprep.mubr.f32.mxu0 0.0
        %6036 = vmatmul.mubr.f32.gmra.mxu0 %v5966
        %v6037 = vpop.f32.mrf.mxu0
        %v6038 = vadd.f32 %v830, %v6037
        %v6039 = vpop.f32.mrf.mxu0
        %6040 = vdwg.mxu0
        %v6041 = vsel %vm833, %v5962, -inf
        %6042 = vmax.xlane.f32.xlu0 %v6041
        %v6043 = vpop.xlane.xlu0 %6042
        %v6044 = vsel %vm833, %v6038, -inf
        %6045 = vmax.xlane.f32.xlu0 %v6044
        %v6046 = vpop.xlane.xlu0 %6045
        %v6047 = vsub.f32 %v5962, %v6043
        %v6048 = vsub.f32 %v6038, %v6046
        %v6049 = vmul.f32 %v6047, 1.442695
        %v6050 = vpow.pop %v6049
        %v6051 = vmul.f32 %v6048, 1.442695
        %v6052 = vpow.pop %v6051
        %v6053 = vsel %vm833, %v6050, 0.0
        %6054 = vadd.xlane.f32.xlu0 %v6053
        %v6055 = vpop.xlane.xlu0 %6054
        %v6056 = vsel %vm833, %v6052, 0.0
        %6057 = vadd.xlane.f32.xlu0 %v6056
        %v6058 = vpop.xlane.xlu0 %6057
        %v6059 = vrcp.pop %v6055
        %v6060 = vrcp.pop %v6058
        %v6061 = vmul.f32 %v6050, %v6059
        %v6062 = vmul.f32 %v6052, %v6060
        %v6064 = vsel %vm833, %v6061, 0
        %6066 = vmatprep.subr.mxu0 0.0
        %6067 = vmatpush1.msra.mxu0 0.0
        %6068 = vmatprep.subr.mxu0 0.0
        %6069 = vmatpush1.msra.mxu0 0.0
        %6070 = vmatprep.subr.mxu0 0.0
        %6071 = vmatpush1.msra.mxu0 0.0
        %6072 = vmatprep.subr.mxu0 0.0
        %6073 = vmatpush1.msra.mxu0 0.0
        %6074 = vmatprep.subr.mxu0 0.0
        %6075 = vmatpush1.msra.mxu0 0.0
        %6076 = vmatprep.subr.mxu0 0.0
        %6077 = vmatpush1.msra.mxu0 0.0
        %6078 = vmatprep.subr.mxu0 0.0
        %6079 = vmatpush1.msra.mxu0 0.0
        %6080 = vmatprep.subr.mxu0 0.0
        %6081 = vmatpush1.msra.mxu0 0.0
        %6082 = vmatprep.subr.mxu0 0.0
        %6083 = vmatpush1.msra.mxu0 0.0
        %6084 = vmatprep.subr.mxu0 0.0
        %6085 = vmatpush1.msra.mxu0 0.0
        %6086 = vmatprep.subr.mxu0 0.0
        %6087 = vmatpush1.msra.mxu0 0.0
        %6088 = vmatprep.subr.mxu0 0.0
        %6089 = vmatpush1.msra.mxu0 0.0
        %6090 = vmatprep.subr.mxu0 0.0
        %6091 = vmatpush1.msra.mxu0 0.0
        %6092 = vmatprep.subr.mxu0 0.0
        %6093 = vmatpush1.msra.mxu0 0.0
        %6094 = vmatprep.subr.mxu0 0.0
        %6095 = vmatpush1.msra.mxu0 0.0
        %6096 = vmatprep.subr.mxu0 0.0
        %6097 = vmatpush1.msra.mxu0 %v5881
        %6098 = vmatprep.subr.mxu0 0.0
        %6099 = vmatpush2.msra.mxu0 0.0
        %6100 = vmatprep.subr.mxu0 0.0
        %6101 = vmatpush2.msra.mxu0 0.0
        %6102 = vmatprep.subr.mxu0 0.0
        %6103 = vmatpush2.msra.mxu0 0.0
        %6104 = vmatprep.subr.mxu0 0.0
        %6105 = vmatpush2.msra.mxu0 0.0
        %6106 = vmatprep.subr.mxu0 0.0
        %6107 = vmatpush2.msra.mxu0 0.0
        %6108 = vmatprep.subr.mxu0 0.0
        %6109 = vmatpush2.msra.mxu0 0.0
        %6110 = vmatprep.subr.mxu0 0.0
        %6111 = vmatpush2.msra.mxu0 0.0
        %6112 = vmatprep.subr.mxu0 0.0
        %6113 = vmatpush2.msra.mxu0 0.0
        %6114 = vmatprep.subr.mxu0 0.0
        %6115 = vmatpush2.msra.mxu0 0.0
        %6116 = vmatprep.subr.mxu0 0.0
        %6117 = vmatpush2.msra.mxu0 0.0
        %6118 = vmatprep.subr.mxu0 0.0
        %6119 = vmatpush2.msra.mxu0 0.0
        %6120 = vmatprep.subr.mxu0 0.0
        %6121 = vmatpush2.msra.mxu0 0.0
        %6122 = vmatprep.subr.mxu0 0.0
        %6123 = vmatpush2.msra.mxu0 0.0
        %6124 = vmatprep.subr.mxu0 0.0
        %6125 = vmatpush2.msra.mxu0 0.0
        %6126 = vmatprep.subr.mxu0 0.0
        %6127 = vmatpush2.msra.mxu0 0.0
        %6128 = vmatprep.subr.mxu0 0.0
        %6129 = vmatpush2.msra.mxu0 0.0
        %6130 = vmatprep.mubr.f32.mxu0 0.0
        %6131 = vmatmul.mubr.f32.gmra.mxu0 %v6064
        %v6132 = vpop.f32.mrf.mxu0
        %v6133 = vadd.f32 0.0, %v6132
        %v6134 = vpop.f32.mrf.mxu0
        %6135 = vdwg.mxu0
        %v6137 = vsel %vm833, %v6062, 0
        %6139 = vmatprep.subr.mxu0 0.0
        %6140 = vmatpush1.msra.mxu0 0.0
        %6141 = vmatprep.subr.mxu0 0.0
        %6142 = vmatpush1.msra.mxu0 0.0
        %6143 = vmatprep.subr.mxu0 0.0
        %6144 = vmatpush1.msra.mxu0 0.0
        %6145 = vmatprep.subr.mxu0 0.0
        %6146 = vmatpush1.msra.mxu0 0.0
        %6147 = vmatprep.subr.mxu0 0.0
        %6148 = vmatpush1.msra.mxu0 0.0
        %6149 = vmatprep.subr.mxu0 0.0
        %6150 = vmatpush1.msra.mxu0 0.0
        %6151 = vmatprep.subr.mxu0 0.0
        %6152 = vmatpush1.msra.mxu0 0.0
        %6153 = vmatprep.subr.mxu0 0.0
        %6154 = vmatpush1.msra.mxu0 0.0
        %6155 = vmatprep.subr.mxu0 0.0
        %6156 = vmatpush1.msra.mxu0 0.0
        %6157 = vmatprep.subr.mxu0 0.0
        %6158 = vmatpush1.msra.mxu0 0.0
        %6159 = vmatprep.subr.mxu0 0.0
        %6160 = vmatpush1.msra.mxu0 0.0
        %6161 = vmatprep.subr.mxu0 0.0
        %6162 = vmatpush1.msra.mxu0 0.0
        %6163 = vmatprep.subr.mxu0 0.0
        %6164 = vmatpush1.msra.mxu0 0.0
        %6165 = vmatprep.subr.mxu0 0.0
        %6166 = vmatpush1.msra.mxu0 0.0
        %6167 = vmatprep.subr.mxu0 0.0
        %6168 = vmatpush1.msra.mxu0 0.0
        %6169 = vmatprep.subr.mxu0 0.0
        %6170 = vmatpush1.msra.mxu0 %v5886
        %6171 = vmatprep.subr.mxu0 0.0
        %6172 = vmatpush2.msra.mxu0 0.0
        %6173 = vmatprep.subr.mxu0 0.0
        %6174 = vmatpush2.msra.mxu0 0.0
        %6175 = vmatprep.subr.mxu0 0.0
        %6176 = vmatpush2.msra.mxu0 0.0
        %6177 = vmatprep.subr.mxu0 0.0
        %6178 = vmatpush2.msra.mxu0 0.0
        %6179 = vmatprep.subr.mxu0 0.0
        %6180 = vmatpush2.msra.mxu0 0.0
        %6181 = vmatprep.subr.mxu0 0.0
        %6182 = vmatpush2.msra.mxu0 0.0
        %6183 = vmatprep.subr.mxu0 0.0
        %6184 = vmatpush2.msra.mxu0 0.0
        %6185 = vmatprep.subr.mxu0 0.0
        %6186 = vmatpush2.msra.mxu0 0.0
        %6187 = vmatprep.subr.mxu0 0.0
        %6188 = vmatpush2.msra.mxu0 0.0
        %6189 = vmatprep.subr.mxu0 0.0
        %6190 = vmatpush2.msra.mxu0 0.0
        %6191 = vmatprep.subr.mxu0 0.0
        %6192 = vmatpush2.msra.mxu0 0.0
        %6193 = vmatprep.subr.mxu0 0.0
        %6194 = vmatpush2.msra.mxu0 0.0
        %6195 = vmatprep.subr.mxu0 0.0
        %6196 = vmatpush2.msra.mxu0 0.0
        %6197 = vmatprep.subr.mxu0 0.0
        %6198 = vmatpush2.msra.mxu0 0.0
        %6199 = vmatprep.subr.mxu0 0.0
        %6200 = vmatpush2.msra.mxu0 0.0
        %6201 = vmatprep.subr.mxu0 0.0
        %6202 = vmatpush2.msra.mxu0 0.0
        %6203 = vmatprep.mubr.f32.mxu0 0.0
        %6204 = vmatmul.mubr.f32.gmra.mxu0 %v6137
        %v6205 = vpop.f32.mrf.mxu0
        %v6206 = vadd.f32 0.0, %v6205
        %v6207 = vpop.f32.mrf.mxu0
        %6208 = vdwg.mxu0
        %s6209 = sadd.s32 56, %s1154
        %s6210 = scalar_lea.vmem %s4, %s6209
        %v6211 = vld [vmem:[%s6210] sm:$0xff]
        %v6213 = vsel %vm833, %v6133, 0
        %v6216 = vsel %vm833, %v6206, 0
        %6218 = vmatprep.subr.mxu0 0.0
        %6219 = vmatpush1.msra.mxu0 0.0
        %6220 = vmatprep.subr.mxu0 0.0
        %6221 = vmatpush1.msra.mxu0 0.0
        %6222 = vmatprep.subr.mxu0 0.0
        %6223 = vmatpush1.msra.mxu0 0.0
        %6224 = vmatprep.subr.mxu0 0.0
        %6225 = vmatpush1.msra.mxu0 0.0
        %6226 = vmatprep.subr.mxu0 0.0
        %6227 = vmatpush1.msra.mxu0 0.0
        %6228 = vmatprep.subr.mxu0 0.0
        %6229 = vmatpush1.msra.mxu0 0.0
        %6230 = vmatprep.subr.mxu0 0.0
        %6231 = vmatpush1.msra.mxu0 0.0
        %6232 = vmatprep.subr.mxu0 0.0
        %6233 = vmatpush1.msra.mxu0 0.0
        %6234 = vmatprep.subr.mxu0 0.0
        %6235 = vmatpush1.msra.mxu0 0.0
        %6236 = vmatprep.subr.mxu0 0.0
        %6237 = vmatpush1.msra.mxu0 0.0
        %6238 = vmatprep.subr.mxu0 0.0
        %6239 = vmatpush1.msra.mxu0 0.0
        %6240 = vmatprep.subr.mxu0 0.0
        %6241 = vmatpush1.msra.mxu0 0.0
        %6242 = vmatprep.subr.mxu0 0.0
        %6243 = vmatpush1.msra.mxu0 0.0
        %6244 = vmatprep.subr.mxu0 0.0
        %6245 = vmatpush1.msra.mxu0 0.0
        %6246 = vmatprep.subr.mxu0 0.0
        %6247 = vmatpush1.msra.mxu0 0.0
        %6248 = vmatprep.subr.mxu0 0.0
        %6249 = vmatpush1.msra.mxu0 %v6211
        %6250 = vmatprep.subr.mxu0 0.0
        %6251 = vmatpush2.msra.mxu0 0.0
        %6252 = vmatprep.subr.mxu0 0.0
        %6253 = vmatpush2.msra.mxu0 0.0
        %6254 = vmatprep.subr.mxu0 0.0
        %6255 = vmatpush2.msra.mxu0 0.0
        %6256 = vmatprep.subr.mxu0 0.0
        %6257 = vmatpush2.msra.mxu0 0.0
        %6258 = vmatprep.subr.mxu0 0.0
        %6259 = vmatpush2.msra.mxu0 0.0
        %6260 = vmatprep.subr.mxu0 0.0
        %6261 = vmatpush2.msra.mxu0 0.0
        %6262 = vmatprep.subr.mxu0 0.0
        %6263 = vmatpush2.msra.mxu0 0.0
        %6264 = vmatprep.subr.mxu0 0.0
        %6265 = vmatpush2.msra.mxu0 0.0
        %6266 = vmatprep.subr.mxu0 0.0
        %6267 = vmatpush2.msra.mxu0 0.0
        %6268 = vmatprep.subr.mxu0 0.0
        %6269 = vmatpush2.msra.mxu0 0.0
        %6270 = vmatprep.subr.mxu0 0.0
        %6271 = vmatpush2.msra.mxu0 0.0
        %6272 = vmatprep.subr.mxu0 0.0
        %6273 = vmatpush2.msra.mxu0 0.0
        %6274 = vmatprep.subr.mxu0 0.0
        %6275 = vmatpush2.msra.mxu0 0.0
        %6276 = vmatprep.subr.mxu0 0.0
        %6277 = vmatpush2.msra.mxu0 0.0
        %6278 = vmatprep.subr.mxu0 0.0
        %6279 = vmatpush2.msra.mxu0 0.0
        %6280 = vmatprep.subr.mxu0 0.0
        %6281 = vmatpush2.msra.mxu0 0.0
        %6282 = vmatprep.mubr.f32.mxu0 0.0
        %6283 = vmatmul.mubr.f32.gmra.mxu0 %v6213
        %v6284 = vpop.f32.mrf.mxu0
        %v6285 = vadd.f32 0.0, %v6284
        %v6286 = vpop.f32.mrf.mxu0
        %6287 = vmatprep.mubr.f32.mxu0 0.0
        %6288 = vmatmul.mubr.f32.gmra.mxu0 %v6216
        %v6289 = vpop.f32.mrf.mxu0
        %v6290 = vadd.f32 0.0, %v6289
        %v6291 = vpop.f32.mrf.mxu0
        %6292 = vdwg.mxu0
        %v6293 = vadd.f32 %v5617, %v6285
        %v6294 = vadd.f32 %v5618, %v6290
        %s6295 = sadd.s32 8, %s473
        %s6296 = scalar_lea.vmem %s8, %s6295
        %v6297 = vld [vmem:[%s6296] sm:$0x1]
        %v6299 = vlaneseq
        %v6300 = vshrl.u32 %v6299, 7
        %v6301 = vsub.s32 0, %v6300
        %v6302 = vrot.slane %v6297, %v6301
        %v6304 = vadd.f32 %v6293, %v6302
        %v6305 = vadd.f32 %v6294, %v6302
        %v6306 = vadd.f32 %v6304, %v3587
        %v6307 = vadd.f32 %v6305, %v3588
        %s6308 = sadd.s32 9, %s473
        %s6309 = scalar_lea.vmem %s8, %s6308
        %v6310 = vld [vmem:[%s6309] sm:$0x1]
        %s6311 = sadd.s32 10, %s473
        %s6312 = scalar_lea.vmem %s8, %s6311
        %v6313 = vld [vmem:[%s6312] sm:$0x1]
        %v6314 = vsel %vm479, %v6306, 0.0
        %6315 = vadd.xlane.f32.xlu0 %v6314
        %v6316 = vpop.xlane.xlu0 %6315
        %v6317 = vsel %vm479, %v6307, 0.0
        %6318 = vadd.xlane.f32.xlu0 %v6317
        %v6319 = vpop.xlane.xlu0 %6318
        %v6320 = vmul.f32 %v6316, %v486
        %v6321 = vmul.f32 %v6319, %v486
        %v6322 = vsub.f32 %v6306, %v6320
        %v6323 = vsub.f32 %v6307, %v6321
        %v6324 = vmul.f32 %v6322, %v6322
        %v6325 = vmul.f32 %v6323, %v6323
        %v6326 = vsel %vm479, %v6324, 0.0
        %6327 = vadd.xlane.f32.xlu0 %v6326
        %v6328 = vpop.xlane.xlu0 %6327
        %v6329 = vsel %vm479, %v6325, 0.0
        %6330 = vadd.xlane.f32.xlu0 %v6329
        %v6331 = vpop.xlane.xlu0 %6330
        %v6332 = vmul.f32 %v6328, %v486
        %v6333 = vmul.f32 %v6331, %v486
        %v6334 = vadd.f32 %v6332, 1e-12
        %v6335 = vadd.f32 %v6333, 1e-12
        %v6336 = vrsqrt.pop %v6334
        %v6337 = vrsqrt.pop %v6335
        %v6338 = vmul.f32 %v6322, %v6336
        %v6339 = vmul.f32 %v6323, %v6337
        %v6341 = vlaneseq
        %v6342 = vshrl.u32 %v6341, 7
        %v6343 = vsub.s32 0, %v6342
        %v6344 = vrot.slane %v6310, %v6343
        %v6346 = vmul.f32 %v6338, %v6344
        %v6347 = vmul.f32 %v6339, %v6344
        %v6349 = vlaneseq
        %v6350 = vshrl.u32 %v6349, 7
        %v6351 = vsub.s32 0, %v6350
        %v6352 = vrot.slane %v6313, %v6351
        %v6354 = vadd.f32 %v6346, %v6352
        %v6355 = vadd.f32 %v6347, %v6352
        %s6356 = scalar_lea.vmem %s5, %s4185
        %v6357 = vld [vmem:[%s6356] sm:$0xff]
        %v6358 = vld [vmem:[%s6356 + $0x8] sm:$0xff]
        %v6359 = vld [vmem:[%s6356 + $0x10] sm:$0xff]
        %v6360 = vld [vmem:[%s6356 + $0x18] sm:$0xff]
        %s6361 = sadd.s32 1, %s3330
        %s6362 = scalar_lea.vmem %s6, %s6361
        %v6363 = vld [vmem:[%s6362] sm:$0x1]
        %v6365 = vlaneseq
        %v6366 = vshrl.u32 %v6365, 7
        %v6367 = vsub.s32 0, %v6366
        %v6368 = vrot.slane %v6363, %v6367
        %v6371 = vsel %vm479, %v6354, 0
        %v6374 = vsel %vm479, %v6355, 0
        %6376 = vmatprep.subr.mxu0 0.0
        %6377 = vmatpush1.msra.mxu0 0.0
        %6378 = vmatprep.subr.mxu0 0.0
        %6379 = vmatpush1.msra.mxu0 0.0
        %6380 = vmatprep.subr.mxu0 0.0
        %6381 = vmatpush1.msra.mxu0 0.0
        %6382 = vmatprep.subr.mxu0 0.0
        %6383 = vmatpush1.msra.mxu0 0.0
        %6384 = vmatprep.subr.mxu0 0.0
        %6385 = vmatpush1.msra.mxu0 0.0
        %6386 = vmatprep.subr.mxu0 0.0
        %6387 = vmatpush1.msra.mxu0 0.0
        %6388 = vmatprep.subr.mxu0 0.0
        %6389 = vmatpush1.msra.mxu0 0.0
        %6390 = vmatprep.subr.mxu0 0.0
        %6391 = vmatpush1.msra.mxu0 0.0
        %6392 = vmatprep.subr.mxu0 0.0
        %6393 = vmatpush1.msra.mxu0 0.0
        %6394 = vmatprep.subr.mxu0 0.0
        %6395 = vmatpush1.msra.mxu0 0.0
        %6396 = vmatprep.subr.mxu0 0.0
        %6397 = vmatpush1.msra.mxu0 0.0
        %6398 = vmatprep.subr.mxu0 0.0
        %6399 = vmatpush1.msra.mxu0 0.0
        %6400 = vmatprep.subr.mxu0 0.0
        %6401 = vmatpush1.msra.mxu0 %v6360
        %6402 = vmatprep.subr.mxu0 0.0
        %6403 = vmatpush1.msra.mxu0 %v6359
        %6404 = vmatprep.subr.mxu0 0.0
        %6405 = vmatpush1.msra.mxu0 %v6358
        %6406 = vmatprep.subr.mxu0 0.0
        %6407 = vmatpush1.msra.mxu0 %v6357
        %6408 = vmatprep.subr.mxu0 0.0
        %6409 = vmatpush2.msra.mxu0 0.0
        %6410 = vmatprep.subr.mxu0 0.0
        %6411 = vmatpush2.msra.mxu0 0.0
        %6412 = vmatprep.subr.mxu0 0.0
        %6413 = vmatpush2.msra.mxu0 0.0
        %6414 = vmatprep.subr.mxu0 0.0
        %6415 = vmatpush2.msra.mxu0 0.0
        %6416 = vmatprep.subr.mxu0 0.0
        %6417 = vmatpush2.msra.mxu0 0.0
        %6418 = vmatprep.subr.mxu0 0.0
        %6419 = vmatpush2.msra.mxu0 0.0
        %6420 = vmatprep.subr.mxu0 0.0
        %6421 = vmatpush2.msra.mxu0 0.0
        %6422 = vmatprep.subr.mxu0 0.0
        %6423 = vmatpush2.msra.mxu0 0.0
        %6424 = vmatprep.subr.mxu0 0.0
        %6425 = vmatpush2.msra.mxu0 0.0
        %6426 = vmatprep.subr.mxu0 0.0
        %6427 = vmatpush2.msra.mxu0 0.0
        %6428 = vmatprep.subr.mxu0 0.0
        %6429 = vmatpush2.msra.mxu0 0.0
        %6430 = vmatprep.subr.mxu0 0.0
        %6431 = vmatpush2.msra.mxu0 0.0
        %6432 = vmatprep.subr.mxu0 0.0
        %6433 = vmatpush2.msra.mxu0 0.0
        %6434 = vmatprep.subr.mxu0 0.0
        %6435 = vmatpush2.msra.mxu0 0.0
        %6436 = vmatprep.subr.mxu0 0.0
        %6437 = vmatpush2.msra.mxu0 0.0
        %6438 = vmatprep.subr.mxu0 0.0
        %6439 = vmatpush2.msra.mxu0 0.0
        %6440 = vmatprep.mubr.f32.mxu0 0.0
        %6441 = vmatmul.mubr.f32.gmra.mxu0 %v6371
        %v6442 = vpop.f32.mrf.mxu0
        %v6443 = vadd.f32 %v6368, %v6442
        %v6444 = vpop.f32.mrf.mxu0
        %6445 = vmatprep.mubr.f32.mxu0 0.0
        %6446 = vmatmul.mubr.f32.gmra.mxu0 %v6374
        %v6447 = vpop.f32.mrf.mxu0
        %v6448 = vadd.f32 %v6368, %v6447
        %v6449 = vpop.f32.mrf.mxu0
        %6450 = vdwg.mxu0
        %v6451 = vmul.f32 %v6443, %v6443
        %v6452 = vmul.f32 %v6448, %v6448
        %v6453 = vmul.f32 %v6443, %v6451
        %v6454 = vmul.f32 %v6448, %v6452
        %v6455 = vmul.f32 %v6453, 0.044715
        %v6456 = vmul.f32 %v6454, 0.044715
        %v6457 = vadd.f32 %v6443, %v6455
        %v6458 = vadd.f32 %v6448, %v6456
        %v6459 = vmul.f32 %v6457, 0.7978846
        %v6460 = vmul.f32 %v6458, 0.7978846
        %v6461 = vtanh.pop %v6459
        %v6462 = vtanh.pop %v6460
        %v6463 = vadd.f32 %v6461, 1.0
        %v6464 = vadd.f32 %v6462, 1.0
        %v6465 = vmul.f32 %v6463, 0.5
        %v6466 = vmul.f32 %v6464, 0.5
        %v6467 = vmul.f32 %v6443, %v6465
        %v6468 = vmul.f32 %v6448, %v6466
        %s6469 = sadd.s32 64, %s3438
        %s6470 = scalar_lea.vmem %s7, %s6469
        %v6471 = vld [vmem:[%s6470] sm:$0xff]
        %v6472 = vld [vmem:[%s6470 + $0x8] sm:$0xff]
        %v6473 = vld [vmem:[%s6470 + $0x10] sm:$0xff]
        %v6474 = vld [vmem:[%s6470 + $0x18] sm:$0xff]
        %v6475 = vld [vmem:[%s6470 + $0x20] sm:$0xff]
        %v6476 = vld [vmem:[%s6470 + $0x28] sm:$0xff]
        %v6477 = vld [vmem:[%s6470 + $0x30] sm:$0xff]
        %v6478 = vld [vmem:[%s6470 + $0x38] sm:$0xff]
        %s6479 = sadd.s32 11, %s473
        %s6480 = scalar_lea.vmem %s8, %s6479
        %v6481 = vld [vmem:[%s6480] sm:$0x1]
        %v6483 = vlaneseq
        %v6484 = vshrl.u32 %v6483, 7
        %v6485 = vsub.s32 0, %v6484
        %v6486 = vrot.slane %v6481, %v6485
        %v6489 = vsel %vm3457, %v6467, 0
        %v6492 = vsel %vm3457, %v6468, 0
        %6494 = vmatprep.subr.mxu0 0.0
        %6495 = vmatpush1.msra.mxu0 0.0
        %6496 = vmatprep.subr.mxu0 0.0
        %6497 = vmatpush1.msra.mxu0 0.0
        %6498 = vmatprep.subr.mxu0 0.0
        %6499 = vmatpush1.msra.mxu0 0.0
        %6500 = vmatprep.subr.mxu0 0.0
        %6501 = vmatpush1.msra.mxu0 0.0
        %6502 = vmatprep.subr.mxu0 0.0
        %6503 = vmatpush1.msra.mxu0 0.0
        %6504 = vmatprep.subr.mxu0 0.0
        %6505 = vmatpush1.msra.mxu0 0.0
        %6506 = vmatprep.subr.mxu0 0.0
        %6507 = vmatpush1.msra.mxu0 0.0
        %6508 = vmatprep.subr.mxu0 0.0
        %6509 = vmatpush1.msra.mxu0 0.0
        %6510 = vmatprep.subr.mxu0 0.0
        %6511 = vmatpush1.msra.mxu0 %v6478
        %6512 = vmatprep.subr.mxu0 0.0
        %6513 = vmatpush1.msra.mxu0 %v6477
        %6514 = vmatprep.subr.mxu0 0.0
        %6515 = vmatpush1.msra.mxu0 %v6476
        %6516 = vmatprep.subr.mxu0 0.0
        %6517 = vmatpush1.msra.mxu0 %v6475
        %6518 = vmatprep.subr.mxu0 0.0
        %6519 = vmatpush1.msra.mxu0 %v6474
        %6520 = vmatprep.subr.mxu0 0.0
        %6521 = vmatpush1.msra.mxu0 %v6473
        %6522 = vmatprep.subr.mxu0 0.0
        %6523 = vmatpush1.msra.mxu0 %v6472
        %6524 = vmatprep.subr.mxu0 0.0
        %6525 = vmatpush1.msra.mxu0 %v6471
        %6526 = vmatprep.subr.mxu0 0.0
        %6527 = vmatpush2.msra.mxu0 0.0
        %6528 = vmatprep.subr.mxu0 0.0
        %6529 = vmatpush2.msra.mxu0 0.0
        %6530 = vmatprep.subr.mxu0 0.0
        %6531 = vmatpush2.msra.mxu0 0.0
        %6532 = vmatprep.subr.mxu0 0.0
        %6533 = vmatpush2.msra.mxu0 0.0
        %6534 = vmatprep.subr.mxu0 0.0
        %6535 = vmatpush2.msra.mxu0 0.0
        %6536 = vmatprep.subr.mxu0 0.0
        %6537 = vmatpush2.msra.mxu0 0.0
        %6538 = vmatprep.subr.mxu0 0.0
        %6539 = vmatpush2.msra.mxu0 0.0
        %6540 = vmatprep.subr.mxu0 0.0
        %6541 = vmatpush2.msra.mxu0 0.0
        %6542 = vmatprep.subr.mxu0 0.0
        %6543 = vmatpush2.msra.mxu0 0.0
        %6544 = vmatprep.subr.mxu0 0.0
        %6545 = vmatpush2.msra.mxu0 0.0
        %6546 = vmatprep.subr.mxu0 0.0
        %6547 = vmatpush2.msra.mxu0 0.0
        %6548 = vmatprep.subr.mxu0 0.0
        %6549 = vmatpush2.msra.mxu0 0.0
        %6550 = vmatprep.subr.mxu0 0.0
        %6551 = vmatpush2.msra.mxu0 0.0
        %6552 = vmatprep.subr.mxu0 0.0
        %6553 = vmatpush2.msra.mxu0 0.0
        %6554 = vmatprep.subr.mxu0 0.0
        %6555 = vmatpush2.msra.mxu0 0.0
        %6556 = vmatprep.subr.mxu0 0.0
        %6557 = vmatpush2.msra.mxu0 0.0
        %6558 = vmatprep.mubr.f32.mxu0 0.0
        %6559 = vmatmul.mubr.f32.gmra.mxu0 %v6489
        %v6560 = vpop.f32.mrf.mxu0
        %v6561 = vadd.f32 %v6486, %v6560
        %v6562 = vpop.f32.mrf.mxu0
        %6563 = vmatprep.mubr.f32.mxu0 0.0
        %6564 = vmatmul.mubr.f32.gmra.mxu0 %v6492
        %v6565 = vpop.f32.mrf.mxu0
        %v6566 = vadd.f32 %v6486, %v6565
        %v6567 = vpop.f32.mrf.mxu0
        %6568 = vdwg.mxu0
        %v6569 = vadd.f32 %v6561, %v6354
        %v6570 = vadd.f32 %v6566, %v6355
        %s6571 = sadd.s32 12, %s473
        %s6572 = scalar_lea.vmem %s8, %s6571
        %v6573 = vld [vmem:[%s6572] sm:$0x1]
        %s6574 = sadd.s32 13, %s473
        %s6575 = scalar_lea.vmem %s8, %s6574
        %v6576 = vld [vmem:[%s6575] sm:$0x1]
        %v6577 = vsel %vm479, %v6569, 0.0
        %6578 = vadd.xlane.f32.xlu0 %v6577
        %v6579 = vpop.xlane.xlu0 %6578
        %v6580 = vsel %vm479, %v6570, 0.0
        %6581 = vadd.xlane.f32.xlu0 %v6580
        %v6582 = vpop.xlane.xlu0 %6581
        %v6583 = vmul.f32 %v6579, %v486
        %v6584 = vmul.f32 %v6582, %v486
        %v6585 = vsub.f32 %v6569, %v6583
        %v6586 = vsub.f32 %v6570, %v6584
        %v6587 = vmul.f32 %v6585, %v6585
        %v6588 = vmul.f32 %v6586, %v6586
        %v6589 = vsel %vm479, %v6587, 0.0
        %6590 = vadd.xlane.f32.xlu0 %v6589
        %v6591 = vpop.xlane.xlu0 %6590
        %v6592 = vsel %vm479, %v6588, 0.0
        %6593 = vadd.xlane.f32.xlu0 %v6592
        %v6594 = vpop.xlane.xlu0 %6593
        %v6595 = vmul.f32 %v6591, %v486
        %v6596 = vmul.f32 %v6594, %v486
        %v6597 = vadd.f32 %v6595, 1e-12
        %v6598 = vadd.f32 %v6596, 1e-12
        %v6599 = vrsqrt.pop %v6597
        %v6600 = vrsqrt.pop %v6598
        %v6601 = vmul.f32 %v6585, %v6599
        %v6602 = vmul.f32 %v6586, %v6600
        %v6604 = vlaneseq
        %v6605 = vshrl.u32 %v6604, 7
        %v6606 = vsub.s32 0, %v6605
        %v6607 = vrot.slane %v6573, %v6606
        %v6609 = vmul.f32 %v6601, %v6607
        %v6610 = vmul.f32 %v6602, %v6607
        %v6612 = vlaneseq
        %v6613 = vshrl.u32 %v6612, 7
        %v6614 = vsub.s32 0, %v6613
        %v6615 = vrot.slane %v6576, %v6614
        %v6617 = vadd.f32 %v6609, %v6615
        %v6618 = vadd.f32 %v6610, %v6615
        %s6619 = smul.u32 %s26, 32
        %s6620 = scalar_lea.vmem %s9, %s6619
        %v6621 = vld [vmem:[%s6620] sm:$0xff]
        %v6622 = vld [vmem:[%s6620 + $0x8] sm:$0xff]
        %v6623 = vld [vmem:[%s6620 + $0x10] sm:$0xff]
        %v6624 = vld [vmem:[%s6620 + $0x18] sm:$0xff]
        %s6625 = sadd.s32 14, %s473
        %s6626 = scalar_lea.vmem %s8, %s6625
        %v6627 = vld [vmem:[%s6626] sm:$0x1]
        %v6629 = vlaneseq
        %v6630 = vshrl.u32 %v6629, 7
        %v6631 = vsub.s32 0, %v6630
        %v6632 = vrot.slane %v6627, %v6631
        %v6636 = vrot.slane %v6618, 7
        %vm6637 = vcmask 1041409
        %v6638 = vsel %vm6637, %v6636, %v6617
        %v6639 = vsel %vm479, %v6638, 0
        %6641 = vmatprep.subr.mxu0 0.0
        %6642 = vmatpush1.msra.mxu0 0.0
        %6643 = vmatprep.subr.mxu0 0.0
        %6644 = vmatpush1.msra.mxu0 0.0
        %6645 = vmatprep.subr.mxu0 0.0
        %6646 = vmatpush1.msra.mxu0 0.0
        %6647 = vmatprep.subr.mxu0 0.0
        %6648 = vmatpush1.msra.mxu0 0.0
        %6649 = vmatprep.subr.mxu0 0.0
        %6650 = vmatpush1.msra.mxu0 0.0
        %6651 = vmatprep.subr.mxu0 0.0
        %6652 = vmatpush1.msra.mxu0 0.0
        %6653 = vmatprep.subr.mxu0 0.0
        %6654 = vmatpush1.msra.mxu0 0.0
        %6655 = vmatprep.subr.mxu0 0.0
        %6656 = vmatpush1.msra.mxu0 0.0
        %6657 = vmatprep.subr.mxu0 0.0
        %6658 = vmatpush1.msra.mxu0 0.0
        %6659 = vmatprep.subr.mxu0 0.0
        %6660 = vmatpush1.msra.mxu0 0.0
        %6661 = vmatprep.subr.mxu0 0.0
        %6662 = vmatpush1.msra.mxu0 0.0
        %6663 = vmatprep.subr.mxu0 0.0
        %6664 = vmatpush1.msra.mxu0 0.0
        %6665 = vmatprep.subr.mxu0 0.0
        %6666 = vmatpush1.msra.mxu0 %v6624
        %6667 = vmatprep.subr.mxu0 0.0
        %6668 = vmatpush1.msra.mxu0 %v6623
        %6669 = vmatprep.subr.mxu0 0.0
        %6670 = vmatpush1.msra.mxu0 %v6622
        %6671 = vmatprep.subr.mxu0 0.0
        %6672 = vmatpush1.msra.mxu0 %v6621
        %6673 = vmatprep.subr.mxu0 0.0
        %6674 = vmatpush2.msra.mxu0 0.0
        %6675 = vmatprep.subr.mxu0 0.0
        %6676 = vmatpush2.msra.mxu0 0.0
        %6677 = vmatprep.subr.mxu0 0.0
        %6678 = vmatpush2.msra.mxu0 0.0
        %6679 = vmatprep.subr.mxu0 0.0
        %6680 = vmatpush2.msra.mxu0 0.0
        %6681 = vmatprep.subr.mxu0 0.0
        %6682 = vmatpush2.msra.mxu0 0.0
        %6683 = vmatprep.subr.mxu0 0.0
        %6684 = vmatpush2.msra.mxu0 0.0
        %6685 = vmatprep.subr.mxu0 0.0
        %6686 = vmatpush2.msra.mxu0 0.0
        %6687 = vmatprep.subr.mxu0 0.0
        %6688 = vmatpush2.msra.mxu0 0.0
        %6689 = vmatprep.subr.mxu0 0.0
        %6690 = vmatpush2.msra.mxu0 0.0
        %6691 = vmatprep.subr.mxu0 0.0
        %6692 = vmatpush2.msra.mxu0 0.0
        %6693 = vmatprep.subr.mxu0 0.0
        %6694 = vmatpush2.msra.mxu0 0.0
        %6695 = vmatprep.subr.mxu0 0.0
        %6696 = vmatpush2.msra.mxu0 0.0
        %6697 = vmatprep.subr.mxu0 0.0
        %6698 = vmatpush2.msra.mxu0 0.0
        %6699 = vmatprep.subr.mxu0 0.0
        %6700 = vmatpush2.msra.mxu0 0.0
        %6701 = vmatprep.subr.mxu0 0.0
        %6702 = vmatpush2.msra.mxu0 0.0
        %6703 = vmatprep.subr.mxu0 0.0
        %6704 = vmatpush2.msra.mxu0 0.0
        %6705 = vmatprep.mubr.f32.mxu0 0.0
        %6706 = vmatmul.mubr.f32.gmra.mxu0 %v6639
        %v6707 = vpop.f32.mrf.mxu0
        %v6708 = vadd.f32 %v6632, %v6707
        %v6709 = vpop.f32.mrf.mxu0
        %6710 = vdwg.mxu0
        %v6711 = vtanh.pop %v6708
        %p6712 = scmp.eq.s32.totalorder %s26, 0
        // Predicated region
        $region77: #{_lambda_.1} parent=75 // pred_check
          %p6713 = pneg %p6712
        $region78: #{_lambda_.1} parent=75 // pred_check_branch
          %6715 = sbr.rel (%p6713) target = $region80
        $region79: #{_lambda_.1} parent=75 // pred_region
          %vm6716 = vcmask 254976
          %6717 = vst.msk [vmem:[#allocation2] sm:$0x3] %vm6716, %v6711
        $region80: #{_lambda_.1} parent=75 // pred_fallthru
          _
        %p6718 = scmp.eq.s32.totalorder %s26, 1
        // Predicated region
        $region81: #{_lambda_.1} parent=75 // pred_check
          %p6719 = pneg %p6718
        $region82: #{_lambda_.1} parent=75 // pred_check_branch
          %6721 = sbr.rel (%p6719) target = $region84
        $region83: #{_lambda_.1} parent=75 // pred_region
          %v6722 = vld [vmem:[#allocation2] sm:$0x3]
          %v6723 = vld [vmem:[%s10] sm:$0xff]
          %v6724 = vld [vmem:[%s10 + $0x8] sm:$0xff]
          %v6725 = vld [vmem:[%s10 + $0x10] sm:$0xff]
          %v6726 = vld [vmem:[%s10 + $0x18] sm:$0xff]
          %v6727 = vld [vmem:[%s10 + $0x20] sm:$0xff]
          %v6728 = vld [vmem:[%s10 + $0x28] sm:$0xff]
          %v6729 = vld [vmem:[%s10 + $0x30] sm:$0xff]
          %v6730 = vld [vmem:[%s10 + $0x38] sm:$0xff]
          %v6732 = vsel %vm479, %v6722, 0
          %6734 = vmatprep.subr.mxu0 0.0
          %6735 = vmatpush1.msra.mxu0 0.0
          %6736 = vmatprep.subr.mxu0 0.0
          %6737 = vmatpush1.msra.mxu0 0.0
          %6738 = vmatprep.subr.mxu0 0.0
          %6739 = vmatpush1.msra.mxu0 0.0
          %6740 = vmatprep.subr.mxu0 0.0
          %6741 = vmatpush1.msra.mxu0 0.0
          %6742 = vmatprep.subr.mxu0 0.0
          %6743 = vmatpush1.msra.mxu0 0.0
          %6744 = vmatprep.subr.mxu0 0.0
          %6745 = vmatpush1.msra.mxu0 0.0
          %6746 = vmatprep.subr.mxu0 0.0
          %6747 = vmatpush1.msra.mxu0 0.0
          %6748 = vmatprep.subr.mxu0 0.0
          %6749 = vmatpush1.msra.mxu0 0.0
          %6750 = vmatprep.subr.mxu0 0.0
          %6751 = vmatpush1.msra.mxu0 0.0
          %6752 = vmatprep.subr.mxu0 0.0
          %6753 = vmatpush1.msra.mxu0 0.0
          %6754 = vmatprep.subr.mxu0 0.0
          %6755 = vmatpush1.msra.mxu0 0.0
          %6756 = vmatprep.subr.mxu0 0.0
          %6757 = vmatpush1.msra.mxu0 0.0
          %6758 = vmatprep.subr.mxu0 0.0
          %6759 = vmatpush1.msra.mxu0 %v6730
          %6760 = vmatprep.subr.mxu0 0.0
          %6761 = vmatpush1.msra.mxu0 %v6729
          %6762 = vmatprep.subr.mxu0 0.0
          %6763 = vmatpush1.msra.mxu0 %v6728
          %6764 = vmatprep.subr.mxu0 0.0
          %6765 = vmatpush1.msra.mxu0 %v6727
          %6766 = vmatprep.subr.mxu0 0.0
          %6767 = vmatpush2.msra.mxu0 0.0
          %6768 = vmatprep.subr.mxu0 0.0
          %6769 = vmatpush2.msra.mxu0 0.0
          %6770 = vmatprep.subr.mxu0 0.0
          %6771 = vmatpush2.msra.mxu0 0.0
          %6772 = vmatprep.subr.mxu0 0.0
          %6773 = vmatpush2.msra.mxu0 0.0
          %6774 = vmatprep.subr.mxu0 0.0
          %6775 = vmatpush2.msra.mxu0 0.0
          %6776 = vmatprep.subr.mxu0 0.0
          %6777 = vmatpush2.msra.mxu0 0.0
          %6778 = vmatprep.subr.mxu0 0.0
          %6779 = vmatpush2.msra.mxu0 0.0
          %6780 = vmatprep.subr.mxu0 0.0
          %6781 = vmatpush2.msra.mxu0 0.0
          %6782 = vmatprep.subr.mxu0 0.0
          %6783 = vmatpush2.msra.mxu0 0.0
          %6784 = vmatprep.subr.mxu0 0.0
          %6785 = vmatpush2.msra.mxu0 0.0
          %6786 = vmatprep.subr.mxu0 0.0
          %6787 = vmatpush2.msra.mxu0 0.0
          %6788 = vmatprep.subr.mxu0 0.0
          %6789 = vmatpush2.msra.mxu0 0.0
          %6790 = vmatprep.subr.mxu0 0.0
          %6791 = vmatpush2.msra.mxu0 0.0
          %6792 = vmatprep.subr.mxu0 0.0
          %6793 = vmatpush2.msra.mxu0 0.0
          %6794 = vmatprep.subr.mxu0 0.0
          %6795 = vmatpush2.msra.mxu0 0.0
          %6796 = vmatprep.subr.mxu0 0.0
          %6797 = vmatpush2.msra.mxu0 0.0
          %6798 = vmatprep.mubr.f32.mxu0 0.0
          %6799 = vmatmul.mubr.f32.gmra.mxu0 %v6732
          %v6800 = vpop.f32.mrf.mxu0
          %v6801 = vadd.f32 0.0, %v6800
          %v6802 = vpop.f32.mrf.mxu0
          %6803 = vdwg.mxu0
          %v6805 = vsel %vm479, %v6711, 0
          %6807 = vmatprep.subr.mxu0 0.0
          %6808 = vmatpush1.msra.mxu0 0.0
          %6809 = vmatprep.subr.mxu0 0.0
          %6810 = vmatpush1.msra.mxu0 0.0
          %6811 = vmatprep.subr.mxu0 0.0
          %6812 = vmatpush1.msra.mxu0 0.0
          %6813 = vmatprep.subr.mxu0 0.0
          %6814 = vmatpush1.msra.mxu0 0.0
          %6815 = vmatprep.subr.mxu0 0.0
          %6816 = vmatpush1.msra.mxu0 0.0
          %6817 = vmatprep.subr.mxu0 0.0
          %6818 = vmatpush1.msra.mxu0 0.0
          %6819 = vmatprep.subr.mxu0 0.0
          %6820 = vmatpush1.msra.mxu0 0.0
          %6821 = vmatprep.subr.mxu0 0.0
          %6822 = vmatpush1.msra.mxu0 0.0
          %6823 = vmatprep.subr.mxu0 0.0
          %6824 = vmatpush1.msra.mxu0 0.0
          %6825 = vmatprep.subr.mxu0 0.0
          %6826 = vmatpush1.msra.mxu0 0.0
          %6827 = vmatprep.subr.mxu0 0.0
          %6828 = vmatpush1.msra.mxu0 0.0
          %6829 = vmatprep.subr.mxu0 0.0
          %6830 = vmatpush1.msra.mxu0 0.0
          %6831 = vmatprep.subr.mxu0 0.0
          %6832 = vmatpush1.msra.mxu0 %v6726
          %6833 = vmatprep.subr.mxu0 0.0
          %6834 = vmatpush1.msra.mxu0 %v6725
          %6835 = vmatprep.subr.mxu0 0.0
          %6836 = vmatpush1.msra.mxu0 %v6724
          %6837 = vmatprep.subr.mxu0 0.0
          %6838 = vmatpush1.msra.mxu0 %v6723
          %6839 = vmatprep.subr.mxu0 0.0
          %6840 = vmatpush2.msra.mxu0 0.0
          %6841 = vmatprep.subr.mxu0 0.0
          %6842 = vmatpush2.msra.mxu0 0.0
          %6843 = vmatprep.subr.mxu0 0.0
          %6844 = vmatpush2.msra.mxu0 0.0
          %6845 = vmatprep.subr.mxu0 0.0
          %6846 = vmatpush2.msra.mxu0 0.0
          %6847 = vmatprep.subr.mxu0 0.0
          %6848 = vmatpush2.msra.mxu0 0.0
          %6849 = vmatprep.subr.mxu0 0.0
          %6850 = vmatpush2.msra.mxu0 0.0
          %6851 = vmatprep.subr.mxu0 0.0
          %6852 = vmatpush2.msra.mxu0 0.0
          %6853 = vmatprep.subr.mxu0 0.0
          %6854 = vmatpush2.msra.mxu0 0.0
          %6855 = vmatprep.subr.mxu0 0.0
          %6856 = vmatpush2.msra.mxu0 0.0
          %6857 = vmatprep.subr.mxu0 0.0
          %6858 = vmatpush2.msra.mxu0 0.0
          %6859 = vmatprep.subr.mxu0 0.0
          %6860 = vmatpush2.msra.mxu0 0.0
          %6861 = vmatprep.subr.mxu0 0.0
          %6862 = vmatpush2.msra.mxu0 0.0
          %6863 = vmatprep.subr.mxu0 0.0
          %6864 = vmatpush2.msra.mxu0 0.0
          %6865 = vmatprep.subr.mxu0 0.0
          %6866 = vmatpush2.msra.mxu0 0.0
          %6867 = vmatprep.subr.mxu0 0.0
          %6868 = vmatpush2.msra.mxu0 0.0
          %6869 = vmatprep.subr.mxu0 0.0
          %6870 = vmatpush2.msra.mxu0 0.0
          %6871 = vmatprep.mubr.f32.mxu0 0.0
          %6872 = vmatmul.mubr.f32.gmra.mxu0 %v6805
          %v6873 = vpop.f32.mrf.mxu0
          %v6874 = vadd.f32 %v6801, %v6873
          %v6875 = vpop.f32.mrf.mxu0
          %6876 = vdwg.mxu0
          %v6877 = vld [vmem:[%s11] sm:$0x1]
          %v6879 = vlaneseq
          %v6880 = vshrl.u32 %v6879, 7
          %v6881 = vsub.s32 0, %v6880
          %v6882 = vrot.slane %v6877, %v6881
          %v6884 = vadd.f32 %v6874, %v6882
          %v6885 = vld [vmem:[%s12] sm:$0xff]
          %v6886 = vld [vmem:[%s12 + $0x8] sm:$0xff]
          %v6887 = vld [vmem:[%s12 + $0x10] sm:$0xff]
          %v6888 = vld [vmem:[%s12 + $0x18] sm:$0xff]
          %v6889 = vld [vmem:[%s13] sm:$0x1]
          %v6891 = vlaneseq
          %v6892 = vshrl.u32 %v6891, 7
          %v6893 = vsub.s32 0, %v6892
          %v6894 = vrot.slane %v6889, %v6893
          %v6897 = vsel %vm479, %v6884, 0
          %6899 = vmatprep.subr.mxu0 0.0
          %6900 = vmatpush1.msra.mxu0 0.0
          %6901 = vmatprep.subr.mxu0 0.0
          %6902 = vmatpush1.msra.mxu0 0.0
          %6903 = vmatprep.subr.mxu0 0.0
          %6904 = vmatpush1.msra.mxu0 0.0
          %6905 = vmatprep.subr.mxu0 0.0
          %6906 = vmatpush1.msra.mxu0 0.0
          %6907 = vmatprep.subr.mxu0 0.0
          %6908 = vmatpush1.msra.mxu0 0.0
          %6909 = vmatprep.subr.mxu0 0.0
          %6910 = vmatpush1.msra.mxu0 0.0
          %6911 = vmatprep.subr.mxu0 0.0
          %6912 = vmatpush1.msra.mxu0 0.0
          %6913 = vmatprep.subr.mxu0 0.0
          %6914 = vmatpush1.msra.mxu0 0.0
          %6915 = vmatprep.subr.mxu0 0.0
          %6916 = vmatpush1.msra.mxu0 0.0
          %6917 = vmatprep.subr.mxu0 0.0
          %6918 = vmatpush1.msra.mxu0 0.0
          %6919 = vmatprep.subr.mxu0 0.0
          %6920 = vmatpush1.msra.mxu0 0.0
          %6921 = vmatprep.subr.mxu0 0.0
          %6922 = vmatpush1.msra.mxu0 0.0
          %6923 = vmatprep.subr.mxu0 0.0
          %6924 = vmatpush1.msra.mxu0 %v6888
          %6925 = vmatprep.subr.mxu0 0.0
          %6926 = vmatpush1.msra.mxu0 %v6887
          %6927 = vmatprep.subr.mxu0 0.0
          %6928 = vmatpush1.msra.mxu0 %v6886
          %6929 = vmatprep.subr.mxu0 0.0
          %6930 = vmatpush1.msra.mxu0 %v6885
          %6931 = vmatprep.subr.mxu0 0.0
          %6932 = vmatpush2.msra.mxu0 0.0
          %6933 = vmatprep.subr.mxu0 0.0
          %6934 = vmatpush2.msra.mxu0 0.0
          %6935 = vmatprep.subr.mxu0 0.0
          %6936 = vmatpush2.msra.mxu0 0.0
          %6937 = vmatprep.subr.mxu0 0.0
          %6938 = vmatpush2.msra.mxu0 0.0
          %6939 = vmatprep.subr.mxu0 0.0
          %6940 = vmatpush2.msra.mxu0 0.0
          %6941 = vmatprep.subr.mxu0 0.0
          %6942 = vmatpush2.msra.mxu0 0.0
          %6943 = vmatprep.subr.mxu0 0.0
          %6944 = vmatpush2.msra.mxu0 0.0
          %6945 = vmatprep.subr.mxu0 0.0
          %6946 = vmatpush2.msra.mxu0 0.0
          %6947 = vmatprep.subr.mxu0 0.0
          %6948 = vmatpush2.msra.mxu0 0.0
          %6949 = vmatprep.subr.mxu0 0.0
          %6950 = vmatpush2.msra.mxu0 0.0
          %6951 = vmatprep.subr.mxu0 0.0
          %6952 = vmatpush2.msra.mxu0 0.0
          %6953 = vmatprep.subr.mxu0 0.0
          %6954 = vmatpush2.msra.mxu0 0.0
          %6955 = vmatprep.subr.mxu0 0.0
          %6956 = vmatpush2.msra.mxu0 0.0
          %6957 = vmatprep.subr.mxu0 0.0
          %6958 = vmatpush2.msra.mxu0 0.0
          %6959 = vmatprep.subr.mxu0 0.0
          %6960 = vmatpush2.msra.mxu0 0.0
          %6961 = vmatprep.subr.mxu0 0.0
          %6962 = vmatpush2.msra.mxu0 0.0
          %6963 = vmatprep.mubr.f32.mxu0 0.0
          %6964 = vmatmul.mubr.f32.gmra.mxu0 %v6897
          %v6965 = vpop.f32.mrf.mxu0
          %v6966 = vadd.f32 %v6894, %v6965
          %v6967 = vpop.f32.mrf.mxu0
          %6968 = vdwg.mxu0
          %vm6969 = vcmask 17408
          %6970 = vst.msk [vmem:[#allocation3] sm:$0x3] %vm6969, %v6966
        $region84: #{_lambda_.1} parent=75 // pred_fallthru
          _
        // Predicated region
        $region85: #{_lambda_.1} parent=75 // pred_check
          %p6971 = pneg %p343
        $region86: #{_lambda_.1} parent=75 // pred_check_branch
          %6973 = sbr.rel (%p6971) target = $region88
        $region87: #{_lambda_.1} parent=75 // pred_region
          %s6975 = ssub.s32 32, 32
          %6976 = vsyncadd [#allocation4], %s6975
          %s6978 = sshll.u32 [#allocation3], 4
          %s6979 = int_to_ptr.vmem [resolvable:$true] %s6978
          %6981 = dma.vmem_to_hbm [thread:$0]  %s6979, 32, %s14, [#allocation4]
        $region88: #{_lambda_.1} parent=75 // pred_fallthru
          _
        // Predicated region
        $region89: #{_lambda_.1} parent=75 // pred_check
          %p6982 = pneg %p343
        $region90: #{_lambda_.1} parent=75 // pred_check_branch
          %6984 = sbr.rel (%p6982) target = $region92
        $region91: #{_lambda_.1} parent=75 // pred_region
          %6985 = dma.done [#allocation4], 32
        $region92: #{_lambda_.1} parent=75 // pred_fallthru
          _
      $region76: #{_lambda_.1} parent=5 // pred_fallthru
        _
      %p6986 = scmp.le.s32.totalorder 2, %s21
      // Predicated region
      $region93: #{_lambda_.1} parent=5 // pred_check
        %p6987 = pneg %p6986
      $region94: #{_lambda_.1} parent=5 // pred_check_branch
        %6989 = sbr.rel (%p6987) target = $region96
      $region95: #{_lambda_.1} parent=5 // pred_region
        %s6990 = ssub.s32 %s21, 2
      $region96: #{_lambda_.1} parent=5 // pred_fallthru
        _
    $region6: #{_lambda_.1} parent=1 // loop_footer
      %s25 = sadd.s32 1, %s21
    $region7: #{_lambda_.1} parent=1 // loop_footer_branch
      %20 = sbr.rel target = $region3
    $region8: #{_lambda_.1} parent=1 // loop_exit
      _
    %6991 = vsyncpa [#allocation4], 1
    %s6992 = scalar_lea.sflag [#allocation4], 1
    %6993 = vsyncpa %s6992, 1

</llo_original>
